<compile_context>
chip_gen: v5e
topology: v5e:2x2
jax: 0.10.0
libtpu: 0.0.40
codegen_flags: <defaults>
</compile_context>

<pallas_src>
import functools

import jax
import jax.numpy as jnp
from jax import lax
from jax.experimental import pallas as pl
from jax.experimental.pallas import tpu as pltpu


# ----------------------------- Pallas kernel --------------------------------

def _dfe_kernel(x_ref,
                wsh_ref, bsh_ref,
                pw1_ref, pwd_ref, pw2_ref,
                rew1_ref, rewd_ref, proj_ref,
                out_ref, *, H, W, ch, hidden, num_layers):
    HW = H * W
    c1 = 2 * ch
    L = x_ref.shape[1]              # batch_tile * H * W (images stacked along lanes)

    # Per-image boundary masks for ReflectionPad2d(1), built once (lane-indexed).
    # NOTE: reflection padding assumes H >= 2 and W >= 2 (checked in the wrapper).
    pix = lax.broadcasted_iota(jnp.int32, (1, L), 1) % HW
    col = pix % W
    row_first = pix < W
    row_last = pix >= (H - 1) * W
    col_first = col == 0
    col_last = col == W - 1

    def mm(w, x):
        """1x1 conv as an MXU matmul: (Cout, Cin) @ (Cin, L) -> (Cout, L), f32."""
        return jnp.dot(w, x, preferred_element_type=jnp.float32,
                       precision=lax.Precision.HIGHEST)

    def neighbor(x, off):
        """y[:, i] = x[:, (i + off) % L]  (circular lane shift on the XLU)."""
        return pltpu.roll(x, (-off) % L, 1)

    def depthwise3x3(h, wd):
        """Depthwise 3x3 conv with ReflectionPad2d(1).  h: (C, L), wd: (C, 9).

        Only two rolls per axis; the +1/-1 taps reuse them via the boundary
        masks.  Roll wrap-around across image boundaries only hits lanes the
        masks overwrite, so the per-image reflection stays exact.
        """
        up = neighbor(h, -W)        # value of the row above (interior pixels)
        dn = neighbor(h, +W)        # value of the row below (interior pixels)
        acc = None
        for dr in (-1, 0, 1):
            if dr == -1:
                r = jnp.where(row_first, dn, up)
            elif dr == 1:
                r = jnp.where(row_last, up, dn)
            else:
                r = h
            lft = neighbor(r, -1)
            rgt = neighbor(r, +1)
            for dc, tap in ((-1, jnp.where(col_first, rgt, lft)),
                            (0, r),
                            (1, jnp.where(col_last, lft, rgt))):
                k = (dr + 1) * 3 + (dc + 1)
                term = wd[:, k:k + 1] * tap
                acc = term if acc is None else acc + term
        return acc

    z = x_ref[...]                                    # (c1, L), packed [z1; z2]

    for l in range(num_layers):
        # shffleconv (1x1 + bias) + separateFeature: one dot, split by row offset.
        y = mm(wsh_ref[l], z) + bsh_ref[l]
        z1 = y[0:ch, :]
        z2 = y[ch:c1, :]

        # theta_phi inverted residual block on z1.
        h = jnp.clip(mm(pw1_ref[l], z1), 0.0, 6.0)
        h = jnp.clip(depthwise3x3(h, pwd_ref[l]), 0.0, 6.0)
        z2 = z2 + mm(pw2_ref[l], h)

        # theta_rho / theta_eta fused (both consume the updated z2): one expand
        # to 2*hidden channels, one depthwise pass, one block-diagonal
        # projection producing [rho; eta] in a single dot.
        m = jnp.clip(mm(rew1_ref[l], z2), 0.0, 6.0)   # (2*hidden, L)
        m = jnp.clip(depthwise3x3(m, rewd_ref[l]), 0.0, 6.0)
        re = mm(proj_ref[l], m)                       # (2*ch, L) = [rho; eta]
        z1 = z1 * jnp.exp(re[0:ch, :]) + re[ch:c1, :]

        z = jnp.concatenate([z1, z2], axis=0)

    out_ref[...] = z                                  # one full-tile store


# ------------------------------- wrapper -------------------------------------

def dfe_forward(x_nchw, params_list, batch_tile=None):
    """x: (N, c1, H, W) float32 (PyTorch NCHW).  Returns (N, c1, H, W)."""
    N, c1, H, W = x_nchw.shape
    assert H >= 2 and W >= 2, "ReflectionPad2d(1) requires H, W >= 2"
    assert c1 % 2 == 0
    ch = c1 // 2
    hidden = 2 * ch
    HW = H * W
    n_layers = len(params_list)

    if batch_tile is None:
        # Fold batch into the lane axis (amortizes per-grid-step and setup cost)
        # but keep >= 2 grid steps when N >= 2 so both v7x TensorCores get work.
        batch_tile = max(1, N // 2)
        batch_tile = min(batch_tile, max(1, 16384 // HW))     # cap lane extent
    batch_tile = min(batch_tile, N)
    while N % batch_tile:
        batch_tile -= 1
    if (batch_tile * HW) % 128 != 0 and batch_tile != N:
        batch_tile = N                 # block lane dim must be %128 or full extent
    L = batch_tile * HW

    # Layout: channels on sublanes, (image, pixel) flattened on lanes.
    x = jnp.transpose(x_nchw.reshape(N, c1, HW).astype(jnp.float32),
                      (1, 0, 2)).reshape(c1, N * HW)

    def pack(p):
        def irb(q):
            return (q["w1"][:, :, 0, 0],                      # (hidden, ch)
                    q["wd"][:, 0, :, :].reshape(hidden, 9),   # (hidden, 9)
                    q["w2"][:, :, 0, 0])                      # (ch, hidden)

        pw1, pwd, pw2 = irb(p["theta_phi"])
        rw1, rwd, rw2 = irb(p["theta_rho"])
        ew1, ewd, ew2 = irb(p["theta_eta"])
        zeros = jnp.zeros_like(rw2)
        proj = jnp.concatenate(
            [jnp.concatenate([rw2, zeros], axis=1),
             jnp.concatenate([zeros, ew2], axis=1)], axis=0)   # (2*ch, 2*hidden)
        return (p["shuffle_w"][:, :, 0, 0],                    # (c1, c1)
                p["shuffle_b"].reshape(c1, 1),
                pw1, pwd, pw2,
                jnp.concatenate([rw1, ew1], axis=0),           # fused expand  (2*hidden, ch)
                jnp.concatenate([rwd, ewd], axis=0),           # fused dw taps (2*hidden, 9)
                proj)

    packed = [pack(p) for p in params_list]
    weights = [jnp.stack([pk[i] for pk in packed], axis=0).astype(jnp.float32)
               for i in range(len(packed[0]))]                 # each (n_layers, ...)

    kernel = functools.partial(_dfe_kernel, H=H, W=W, ch=ch, hidden=hidden,
                               num_layers=n_layers)

    x_spec = pl.BlockSpec((c1, L), lambda n: (0, n))
    w_specs = [pl.BlockSpec(w.shape, lambda n, nd=w.ndim: (0,) * nd)
               for w in weights]

    out = pl.pallas_call(
        kernel,
        out_shape=jax.ShapeDtypeStruct((c1, N * HW), jnp.float32),
        grid=(N // batch_tile,),
        in_specs=[x_spec] + w_specs,
        out_specs=x_spec,
        compiler_params=pltpu.CompilerParams(
            dimension_semantics=("parallel",)),
    )(x, *weights)

    return jnp.transpose(out.reshape(c1, N, HW), (1, 0, 2)).reshape(N, c1, H, W)


# ----------------------- parameters & pure-JAX reference ---------------------

def make_params(key, c1=8, c2=8):
    ch_in, ch_out = c1 // 2, c2 // 2
    hidden = 2 * ch_in
    ks = jax.random.split(key, 5)

    def n(k, shape, s=0.1):
        return (s * jax.random.normal(k, shape)).astype(jnp.float32)

    def irb(k):
        k1, k2, k3 = jax.random.split(k, 3)
        return {"w1": n(k1, (hidden, ch_in, 1, 1)),    # 1x1 expand
                "wd": n(k2, (hidden, 1, 3, 3)),        # depthwise 3x3
                "w2": n(k3, (ch_out, hidden, 1, 1))}   # 1x1 project

    return {"shuffle_w": n(ks[0], (c2, c1, 1, 1)),
            "shuffle_b": n(ks[1], (c2,)),
            "theta_phi": irb(ks[2]),
            "theta_rho": irb(ks[3]),
            "theta_eta": irb(ks[4])}


def _conv1x1_ref(x, w, b=None):
    y = lax.conv_general_dilated(x, w, (1, 1), "VALID",
                                 dimension_numbers=("NCHW", "OIHW", "NCHW"),
                                 precision=lax.Precision.HIGHEST)
    if b is not None:
        y = y + b[None, :, None, None]
    return y


def _irb_ref(x, p):
    h = jnp.clip(_conv1x1_ref(x, p["w1"]), 0.0, 6.0)
    hp = jnp.pad(h, ((0, 0), (0, 0), (1, 1), (1, 1)), mode="reflect")
    h = lax.conv_general_dilated(hp, p["wd"], (1, 1), "VALID",
                                 dimension_numbers=("NCHW", "OIHW", "NCHW"),
                                 feature_group_count=h.shape[1],
                                 precision=lax.Precision.HIGHEST)
    h = jnp.clip(h, 0.0, 6.0)
    return _conv1x1_ref(h, p["w2"])


def detailnode_ref(z1, z2, params):
    x = _conv1x1_ref(jnp.concatenate([z1, z2], axis=1),
                     params["shuffle_w"], params["shuffle_b"])
    ch = x.shape[1] // 2
    z1n, z2n = x[:, :ch], x[:, ch:]
    z2o = z2n + _irb_ref(z1n, params["theta_phi"])
    z1o = (z1n * jnp.exp(_irb_ref(z2o, params["theta_rho"]))
           + _irb_ref(z2o, params["theta_eta"]))
    return z1o, z2o


def dfe_ref(x, params_list):
    ch = x.shape[1] // 2
    z1, z2 = x[:, :ch], x[:, ch:]
    for p in params_list:
        z1, z2 = detailnode_ref(z1, z2, p)
    return jnp.concatenate([z1, z2], axis=1)


# --------------------------------- main ---------------------------------------

if __name__ == "__main__":
    key = jax.random.PRNGKey(0)
    kx, kp = jax.random.split(key)

    c1 = c2 = 8                      # DFE(c1=8, c2=8, num_layers=3)
    num_layers = 3
    H = W = 16
    params_list = [make_params(k, c1, c2) for k in jax.random.split(kp, num_layers)]

    # N=2: batch_tile=1, grid=(2,)  (two parallel blocks -> both v7x TCs busy)
    # N=4: batch_tile=2, grid=(2,)  (exercises lane-axis batch folding + per-image masks)
    for N in (2, 4):
        x = jax.random.normal(jax.random.fold_in(kx, N), (N, c1, H, W), jnp.float32)
        out = dfe_forward(x, params_list)
        jax.block_until_ready(out)

        ref = dfe_ref(x, params_list)
        assert out.shape == (N, c1, H, W)
        max_err = float(jnp.max(jnp.abs(out - ref)))
        assert jnp.allclose(out, ref, rtol=1e-3, atol=1e-3), (N, max_err)

    print("KERNEL_OK")
</pallas_src>

<mosaic_0001>
module attributes {stable_mosaic.version = 11 : i64} {
  func.func @_dfe_kernel(%arg0: i32, %arg1: memref<8x256xf32, #tpu.memory_space<vmem>>, %arg2: memref<3x8x8xf32, #tpu.memory_space<vmem>>, %arg3: memref<3x8x1xf32, #tpu.memory_space<vmem>>, %arg4: memref<3x8x4xf32, #tpu.memory_space<vmem>>, %arg5: memref<3x8x9xf32, #tpu.memory_space<vmem>>, %arg6: memref<3x4x8xf32, #tpu.memory_space<vmem>>, %arg7: memref<3x16x4xf32, #tpu.memory_space<vmem>>, %arg8: memref<3x16x9xf32, #tpu.memory_space<vmem>>, %arg9: memref<3x8x16xf32, #tpu.memory_space<vmem>>, %arg10: memref<8x256xf32, #tpu.memory_space<vmem>>) attributes {dimension_semantics = [#tpu.dimension_semantics<parallel>], iteration_bounds = array<i64: 2>, scalar_prefetch = 0 : i64, scratch_operands = 0 : i64, tpu.core_type = #tpu.core_type<tc>, window_params = [{transform_indices = @transform_0, window_bounds = array<i64: 8, 256>}, {pipeline_mode = #tpu.pipeline_mode<synchronous>, transform_indices = @transform_1, window_bounds = array<i64: 3, 8, 8>}, {pipeline_mode = #tpu.pipeline_mode<synchronous>, transform_indices = @transform_2, window_bounds = array<i64: 3, 8, 1>}, {pipeline_mode = #tpu.pipeline_mode<synchronous>, transform_indices = @transform_3, window_bounds = array<i64: 3, 8, 4>}, {pipeline_mode = #tpu.pipeline_mode<synchronous>, transform_indices = @transform_4, window_bounds = array<i64: 3, 8, 9>}, {pipeline_mode = #tpu.pipeline_mode<synchronous>, transform_indices = @transform_5, window_bounds = array<i64: 3, 4, 8>}, {pipeline_mode = #tpu.pipeline_mode<synchronous>, transform_indices = @transform_6, window_bounds = array<i64: 3, 16, 4>}, {pipeline_mode = #tpu.pipeline_mode<synchronous>, transform_indices = @transform_7, window_bounds = array<i64: 3, 16, 9>}, {pipeline_mode = #tpu.pipeline_mode<synchronous>, transform_indices = @transform_8, window_bounds = array<i64: 3, 8, 16>}, {transform_indices = @transform_9, window_bounds = array<i64: 8, 256>}]} {
    %0 = tpu.iota {dimensions = array<i32: 1>} : vector<1x256xi32>
    %c256_i32 = arith.constant 256 : i32
    %c0_i32 = arith.constant 0 : i32
    %1 = arith.cmpi eq, %c256_i32, %c0_i32 : i32
    %c1_i32 = arith.constant 1 : i32
    %2 = arith.select %1, %c1_i32, %c256_i32 : i32
    %3 = vector.broadcast %2 : i32 to vector<1x256xi32>
    %4 = arith.remsi %0, %3 : vector<1x256xi32>
    %c0_i32_0 = arith.constant 0 : i32
    %5 = vector.broadcast %c0_i32_0 : i32 to vector<1x256xi32>
    %6 = arith.cmpi ne, %4, %5 : vector<1x256xi32>
    %c0_i32_1 = arith.constant 0 : i32
    %7 = vector.broadcast %c0_i32_1 : i32 to vector<1x256xi32>
    %8 = arith.cmpi slt, %4, %7 : vector<1x256xi32>
    %c0_i32_2 = arith.constant 0 : i32
    %9 = arith.cmpi slt, %2, %c0_i32_2 : i32
    %10 = vector.broadcast %9 : i1 to vector<1x256xi1>
    %11 = vector.broadcast %10 : vector<1x256xi1> to vector<1x256xi1>
    %12 = arith.xori %8, %11 : vector<1x256xi1>
    %13 = arith.andi %12, %6 : vector<1x256xi1>
    %14 = vector.broadcast %2 : i32 to vector<1x256xi32>
    %15 = arith.addi %4, %14 : vector<1x256xi32>
    %16 = arith.select %13, %15, %4 : vector<1x256xi1>, vector<1x256xi32>
    %c16_i32 = arith.constant 16 : i32
    %c0_i32_3 = arith.constant 0 : i32
    %17 = arith.cmpi eq, %c16_i32, %c0_i32_3 : i32
    %c1_i32_4 = arith.constant 1 : i32
    %18 = arith.select %17, %c1_i32_4, %c16_i32 : i32
    %19 = vector.broadcast %18 : i32 to vector<1x256xi32>
    %20 = arith.remsi %16, %19 : vector<1x256xi32>
    %c0_i32_5 = arith.constant 0 : i32
    %21 = vector.broadcast %c0_i32_5 : i32 to vector<1x256xi32>
    %22 = arith.cmpi ne, %20, %21 : vector<1x256xi32>
    %c0_i32_6 = arith.constant 0 : i32
    %23 = vector.broadcast %c0_i32_6 : i32 to vector<1x256xi32>
    %24 = arith.cmpi slt, %20, %23 : vector<1x256xi32>
    %c0_i32_7 = arith.constant 0 : i32
    %25 = arith.cmpi slt, %18, %c0_i32_7 : i32
    %26 = vector.broadcast %25 : i1 to vector<1x256xi1>
    %27 = vector.broadcast %26 : vector<1x256xi1> to vector<1x256xi1>
    %28 = arith.xori %24, %27 : vector<1x256xi1>
    %29 = arith.andi %28, %22 : vector<1x256xi1>
    %30 = vector.broadcast %18 : i32 to vector<1x256xi32>
    %31 = arith.addi %20, %30 : vector<1x256xi32>
    %32 = arith.select %29, %31, %20 : vector<1x256xi1>, vector<1x256xi32>
    %c16_i32_8 = arith.constant 16 : i32
    %33 = vector.broadcast %c16_i32_8 : i32 to vector<1x256xi32>
    %34 = arith.cmpi slt, %16, %33 : vector<1x256xi32>
    %c240_i32 = arith.constant 240 : i32
    %35 = vector.broadcast %c240_i32 : i32 to vector<1x256xi32>
    %36 = arith.cmpi sge, %16, %35 : vector<1x256xi32>
    %c0_i32_9 = arith.constant 0 : i32
    %37 = vector.broadcast %c0_i32_9 : i32 to vector<1x256xi32>
    %38 = arith.cmpi eq, %32, %37 : vector<1x256xi32>
    %c15_i32 = arith.constant 15 : i32
    %39 = vector.broadcast %c15_i32 : i32 to vector<1x256xi32>
    %40 = arith.cmpi eq, %32, %39 : vector<1x256xi32>
    %c0 = arith.constant 0 : index
    %c0_10 = arith.constant 0 : index
    %41 = vector.load %arg1[%c0, %c0_10] : memref<8x256xf32, #tpu.memory_space<vmem>>, vector<8x256xf32>
    %c0_11 = arith.constant 0 : index
    %c0_12 = arith.constant 0 : index
    %c0_13 = arith.constant 0 : index
    %42 = vector.load %arg2[%c0_11, %c0_12, %c0_13] : memref<3x8x8xf32, #tpu.memory_space<vmem>>, vector<1x8x8xf32>
    %43 = vector.shape_cast %42 : vector<1x8x8xf32> to vector<8x8xf32>
    %cst = arith.constant dense<0.000000e+00> : vector<8x256xf32>
    %44 = tpu.matmul %43, %41, %cst {dimension_numbers = #tpu.dot_dimension_numbers<[1], [0], [0], [1], [0, 0, 1, 1], [], []>, precision = #tpu.contract_precision<fp32>} : vector<8x8xf32>, vector<8x256xf32>, vector<8x256xf32> -> vector<8x256xf32>
    %c0_14 = arith.constant 0 : index
    %c0_15 = arith.constant 0 : index
    %c0_16 = arith.constant 0 : index
    %45 = vector.load %arg3[%c0_14, %c0_15, %c0_16] : memref<3x8x1xf32, #tpu.memory_space<vmem>>, vector<1x8x1xf32>
    %46 = vector.shape_cast %45 : vector<1x8x1xf32> to vector<8x1xf32>
    %47 = vector.broadcast %46 : vector<8x1xf32> to vector<8x256xf32>
    %48 = arith.addf %44, %47 : vector<8x256xf32>
    %49 = vector.extract_strided_slice %48 {offsets = [0, 0], sizes = [4, 256], strides = [1, 1]} : vector<8x256xf32> to vector<4x256xf32>
    %50 = vector.extract_strided_slice %48 {offsets = [4, 0], sizes = [4, 256], strides = [1, 1]} : vector<8x256xf32> to vector<4x256xf32>
    %c0_17 = arith.constant 0 : index
    %c0_18 = arith.constant 0 : index
    %c0_19 = arith.constant 0 : index
    %51 = vector.load %arg4[%c0_17, %c0_18, %c0_19] : memref<3x8x4xf32, #tpu.memory_space<vmem>>, vector<1x8x4xf32>
    %52 = vector.shape_cast %51 : vector<1x8x4xf32> to vector<8x4xf32>
    %cst_20 = arith.constant dense<0.000000e+00> : vector<8x256xf32>
    %53 = tpu.matmul %52, %49, %cst_20 {dimension_numbers = #tpu.dot_dimension_numbers<[1], [0], [0], [1], [0, 0, 1, 1], [], []>, precision = #tpu.contract_precision<fp32>} : vector<8x4xf32>, vector<4x256xf32>, vector<8x256xf32> -> vector<8x256xf32>
    %cst_21 = arith.constant 0.000000e+00 : f32
    %cst_22 = arith.constant 6.000000e+00 : f32
    %54 = vector.broadcast %cst_21 : f32 to vector<8x256xf32>
    %55 = arith.maximumf %54, %53 : vector<8x256xf32>
    %56 = vector.broadcast %cst_22 : f32 to vector<8x256xf32>
    %57 = arith.minimumf %56, %55 : vector<8x256xf32>
    %c0_23 = arith.constant 0 : index
    %c0_24 = arith.constant 0 : index
    %c0_25 = arith.constant 0 : index
    %58 = vector.load %arg5[%c0_23, %c0_24, %c0_25] : memref<3x8x9xf32, #tpu.memory_space<vmem>>, vector<1x8x9xf32>
    %59 = vector.shape_cast %58 : vector<1x8x9xf32> to vector<8x9xf32>
    %c16_i32_26 = arith.constant 16 : i32
    %60 = tpu.dynamic_rotate %57 by %c16_i32_26 dim 1 : vector<8x256xf32>, i32 -> vector<8x256xf32>
    %c240_i32_27 = arith.constant 240 : i32
    %61 = tpu.dynamic_rotate %57 by %c240_i32_27 dim 1 : vector<8x256xf32>, i32 -> vector<8x256xf32>
    %62 = vector.shape_cast %34 : vector<1x256xi1> to vector<1x256xi1>
    %63 = vector.broadcast %62 : vector<1x256xi1> to vector<8x256xi1>
    %64 = arith.select %63, %61, %60 : vector<8x256xi1>, vector<8x256xf32>
    %c1_i32_28 = arith.constant 1 : i32
    %65 = tpu.dynamic_rotate %64 by %c1_i32_28 dim 1 : vector<8x256xf32>, i32 -> vector<8x256xf32>
    %c255_i32 = arith.constant 255 : i32
    %66 = tpu.dynamic_rotate %64 by %c255_i32 dim 1 : vector<8x256xf32>, i32 -> vector<8x256xf32>
    %67 = vector.shape_cast %38 : vector<1x256xi1> to vector<1x256xi1>
    %68 = vector.broadcast %67 : vector<1x256xi1> to vector<8x256xi1>
    %69 = arith.select %68, %66, %65 : vector<8x256xi1>, vector<8x256xf32>
    %70 = vector.shape_cast %40 : vector<1x256xi1> to vector<1x256xi1>
    %71 = vector.broadcast %70 : vector<1x256xi1> to vector<8x256xi1>
    %72 = arith.select %71, %65, %66 : vector<8x256xi1>, vector<8x256xf32>
    %73 = vector.extract_strided_slice %59 {offsets = [0, 0], sizes = [8, 1], strides = [1, 1]} : vector<8x9xf32> to vector<8x1xf32>
    %74 = vector.broadcast %73 : vector<8x1xf32> to vector<8x256xf32>
    %75 = arith.mulf %74, %69 : vector<8x256xf32>
    %76 = vector.extract_strided_slice %59 {offsets = [0, 1], sizes = [8, 1], strides = [1, 1]} : vector<8x9xf32> to vector<8x1xf32>
    %77 = vector.broadcast %76 : vector<8x1xf32> to vector<8x256xf32>
    %78 = arith.mulf %77, %64 : vector<8x256xf32>
    %79 = arith.addf %75, %78 : vector<8x256xf32>
    %80 = vector.extract_strided_slice %59 {offsets = [0, 2], sizes = [8, 1], strides = [1, 1]} : vector<8x9xf32> to vector<8x1xf32>
    %81 = vector.broadcast %80 : vector<8x1xf32> to vector<8x256xf32>
    %82 = arith.mulf %81, %72 : vector<8x256xf32>
    %83 = arith.addf %79, %82 : vector<8x256xf32>
    %c1_i32_29 = arith.constant 1 : i32
    %84 = tpu.dynamic_rotate %57 by %c1_i32_29 dim 1 : vector<8x256xf32>, i32 -> vector<8x256xf32>
    %c255_i32_30 = arith.constant 255 : i32
    %85 = tpu.dynamic_rotate %57 by %c255_i32_30 dim 1 : vector<8x256xf32>, i32 -> vector<8x256xf32>
    %86 = vector.shape_cast %38 : vector<1x256xi1> to vector<1x256xi1>
    %87 = vector.broadcast %86 : vector<1x256xi1> to vector<8x256xi1>
    %88 = arith.select %87, %85, %84 : vector<8x256xi1>, vector<8x256xf32>
    %89 = vector.shape_cast %40 : vector<1x256xi1> to vector<1x256xi1>
    %90 = vector.broadcast %89 : vector<1x256xi1> to vector<8x256xi1>
    %91 = arith.select %90, %84, %85 : vector<8x256xi1>, vector<8x256xf32>
    %92 = vector.extract_strided_slice %59 {offsets = [0, 3], sizes = [8, 1], strides = [1, 1]} : vector<8x9xf32> to vector<8x1xf32>
    %93 = vector.broadcast %92 : vector<8x1xf32> to vector<8x256xf32>
    %94 = arith.mulf %93, %88 : vector<8x256xf32>
    %95 = arith.addf %83, %94 : vector<8x256xf32>
    %96 = vector.extract_strided_slice %59 {offsets = [0, 4], sizes = [8, 1], strides = [1, 1]} : vector<8x9xf32> to vector<8x1xf32>
    %97 = vector.broadcast %96 : vector<8x1xf32> to vector<8x256xf32>
    %98 = arith.mulf %97, %57 : vector<8x256xf32>
    %99 = arith.addf %95, %98 : vector<8x256xf32>
    %100 = vector.extract_strided_slice %59 {offsets = [0, 5], sizes = [8, 1], strides = [1, 1]} : vector<8x9xf32> to vector<8x1xf32>
    %101 = vector.broadcast %100 : vector<8x1xf32> to vector<8x256xf32>
    %102 = arith.mulf %101, %91 : vector<8x256xf32>
    %103 = arith.addf %99, %102 : vector<8x256xf32>
    %104 = vector.shape_cast %36 : vector<1x256xi1> to vector<1x256xi1>
    %105 = vector.broadcast %104 : vector<1x256xi1> to vector<8x256xi1>
    %106 = arith.select %105, %60, %61 : vector<8x256xi1>, vector<8x256xf32>
    %c1_i32_31 = arith.constant 1 : i32
    %107 = tpu.dynamic_rotate %106 by %c1_i32_31 dim 1 : vector<8x256xf32>, i32 -> vector<8x256xf32>
    %c255_i32_32 = arith.constant 255 : i32
    %108 = tpu.dynamic_rotate %106 by %c255_i32_32 dim 1 : vector<8x256xf32>, i32 -> vector<8x256xf32>
    %109 = vector.shape_cast %38 : vector<1x256xi1> to vector<1x256xi1>
    %110 = vector.broadcast %109 : vector<1x256xi1> to vector<8x256xi1>
    %111 = arith.select %110, %108, %107 : vector<8x256xi1>, vector<8x256xf32>
    %112 = vector.shape_cast %40 : vector<1x256xi1> to vector<1x256xi1>
    %113 = vector.broadcast %112 : vector<1x256xi1> to vector<8x256xi1>
    %114 = arith.select %113, %107, %108 : vector<8x256xi1>, vector<8x256xf32>
    %115 = vector.extract_strided_slice %59 {offsets = [0, 6], sizes = [8, 1], strides = [1, 1]} : vector<8x9xf32> to vector<8x1xf32>
    %116 = vector.broadcast %115 : vector<8x1xf32> to vector<8x256xf32>
    %117 = arith.mulf %116, %111 : vector<8x256xf32>
    %118 = arith.addf %103, %117 : vector<8x256xf32>
    %119 = vector.extract_strided_slice %59 {offsets = [0, 7], sizes = [8, 1], strides = [1, 1]} : vector<8x9xf32> to vector<8x1xf32>
    %120 = vector.broadcast %119 : vector<8x1xf32> to vector<8x256xf32>
    %121 = arith.mulf %120, %106 : vector<8x256xf32>
    %122 = arith.addf %118, %121 : vector<8x256xf32>
    %123 = vector.extract_strided_slice %59 {offsets = [0, 8], sizes = [8, 1], strides = [1, 1]} : vector<8x9xf32> to vector<8x1xf32>
    %124 = vector.broadcast %123 : vector<8x1xf32> to vector<8x256xf32>
    %125 = arith.mulf %124, %114 : vector<8x256xf32>
    %126 = arith.addf %122, %125 : vector<8x256xf32>
    %cst_33 = arith.constant 0.000000e+00 : f32
    %cst_34 = arith.constant 6.000000e+00 : f32
    %127 = vector.broadcast %cst_33 : f32 to vector<8x256xf32>
    %128 = arith.maximumf %127, %126 : vector<8x256xf32>
    %129 = vector.broadcast %cst_34 : f32 to vector<8x256xf32>
    %130 = arith.minimumf %129, %128 : vector<8x256xf32>
    %c0_35 = arith.constant 0 : index
    %c0_36 = arith.constant 0 : index
    %c0_37 = arith.constant 0 : index
    %131 = vector.load %arg6[%c0_35, %c0_36, %c0_37] : memref<3x4x8xf32, #tpu.memory_space<vmem>>, vector<1x4x8xf32>
    %132 = vector.shape_cast %131 : vector<1x4x8xf32> to vector<4x8xf32>
    %cst_38 = arith.constant dense<0.000000e+00> : vector<4x256xf32>
    %133 = tpu.matmul %132, %130, %cst_38 {dimension_numbers = #tpu.dot_dimension_numbers<[1], [0], [0], [1], [0, 0, 1, 1], [], []>, precision = #tpu.contract_precision<fp32>} : vector<4x8xf32>, vector<8x256xf32>, vector<4x256xf32> -> vector<4x256xf32>
    %134 = arith.addf %50, %133 : vector<4x256xf32>
    %c0_39 = arith.constant 0 : index
    %c0_40 = arith.constant 0 : index
    %c0_41 = arith.constant 0 : index
    %135 = vector.load %arg7[%c0_39, %c0_40, %c0_41] : memref<3x16x4xf32, #tpu.memory_space<vmem>>, vector<1x16x4xf32>
    %136 = vector.shape_cast %135 : vector<1x16x4xf32> to vector<16x4xf32>
    %cst_42 = arith.constant dense<0.000000e+00> : vector<16x256xf32>
    %137 = tpu.matmul %136, %134, %cst_42 {dimension_numbers = #tpu.dot_dimension_numbers<[1], [0], [0], [1], [0, 0, 1, 1], [], []>, precision = #tpu.contract_precision<fp32>} : vector<16x4xf32>, vector<4x256xf32>, vector<16x256xf32> -> vector<16x256xf32>
    %cst_43 = arith.constant 0.000000e+00 : f32
    %cst_44 = arith.constant 6.000000e+00 : f32
    %138 = vector.broadcast %cst_43 : f32 to vector<16x256xf32>
    %139 = arith.maximumf %138, %137 : vector<16x256xf32>
    %140 = vector.broadcast %cst_44 : f32 to vector<16x256xf32>
    %141 = arith.minimumf %140, %139 : vector<16x256xf32>
    %c0_45 = arith.constant 0 : index
    %c0_46 = arith.constant 0 : index
    %c0_47 = arith.constant 0 : index
    %142 = vector.load %arg8[%c0_45, %c0_46, %c0_47] : memref<3x16x9xf32, #tpu.memory_space<vmem>>, vector<1x16x9xf32>
    %143 = vector.shape_cast %142 : vector<1x16x9xf32> to vector<16x9xf32>
    %c16_i32_48 = arith.constant 16 : i32
    %144 = tpu.dynamic_rotate %141 by %c16_i32_48 dim 1 : vector<16x256xf32>, i32 -> vector<16x256xf32>
    %c240_i32_49 = arith.constant 240 : i32
    %145 = tpu.dynamic_rotate %141 by %c240_i32_49 dim 1 : vector<16x256xf32>, i32 -> vector<16x256xf32>
    %146 = vector.shape_cast %34 : vector<1x256xi1> to vector<1x256xi1>
    %147 = vector.broadcast %146 : vector<1x256xi1> to vector<16x256xi1>
    %148 = arith.select %147, %145, %144 : vector<16x256xi1>, vector<16x256xf32>
    %c1_i32_50 = arith.constant 1 : i32
    %149 = tpu.dynamic_rotate %148 by %c1_i32_50 dim 1 : vector<16x256xf32>, i32 -> vector<16x256xf32>
    %c255_i32_51 = arith.constant 255 : i32
    %150 = tpu.dynamic_rotate %148 by %c255_i32_51 dim 1 : vector<16x256xf32>, i32 -> vector<16x256xf32>
    %151 = vector.shape_cast %38 : vector<1x256xi1> to vector<1x256xi1>
    %152 = vector.broadcast %151 : vector<1x256xi1> to vector<16x256xi1>
    %153 = arith.select %152, %150, %149 : vector<16x256xi1>, vector<16x256xf32>
    %154 = vector.shape_cast %40 : vector<1x256xi1> to vector<1x256xi1>
    %155 = vector.broadcast %154 : vector<1x256xi1> to vector<16x256xi1>
    %156 = arith.select %155, %149, %150 : vector<16x256xi1>, vector<16x256xf32>
    %157 = vector.extract_strided_slice %143 {offsets = [0, 0], sizes = [16, 1], strides = [1, 1]} : vector<16x9xf32> to vector<16x1xf32>
    %158 = vector.broadcast %157 : vector<16x1xf32> to vector<16x256xf32>
    %159 = arith.mulf %158, %153 : vector<16x256xf32>
    %160 = vector.extract_strided_slice %143 {offsets = [0, 1], sizes = [16, 1], strides = [1, 1]} : vector<16x9xf32> to vector<16x1xf32>
    %161 = vector.broadcast %160 : vector<16x1xf32> to vector<16x256xf32>
    %162 = arith.mulf %161, %148 : vector<16x256xf32>
    %163 = arith.addf %159, %162 : vector<16x256xf32>
    %164 = vector.extract_strided_slice %143 {offsets = [0, 2], sizes = [16, 1], strides = [1, 1]} : vector<16x9xf32> to vector<16x1xf32>
    %165 = vector.broadcast %164 : vector<16x1xf32> to vector<16x256xf32>
    %166 = arith.mulf %165, %156 : vector<16x256xf32>
    %167 = arith.addf %163, %166 : vector<16x256xf32>
    %c1_i32_52 = arith.constant 1 : i32
    %168 = tpu.dynamic_rotate %141 by %c1_i32_52 dim 1 : vector<16x256xf32>, i32 -> vector<16x256xf32>
    %c255_i32_53 = arith.constant 255 : i32
    %169 = tpu.dynamic_rotate %141 by %c255_i32_53 dim 1 : vector<16x256xf32>, i32 -> vector<16x256xf32>
    %170 = vector.shape_cast %38 : vector<1x256xi1> to vector<1x256xi1>
    %171 = vector.broadcast %170 : vector<1x256xi1> to vector<16x256xi1>
    %172 = arith.select %171, %169, %168 : vector<16x256xi1>, vector<16x256xf32>
    %173 = vector.shape_cast %40 : vector<1x256xi1> to vector<1x256xi1>
    %174 = vector.broadcast %173 : vector<1x256xi1> to vector<16x256xi1>
    %175 = arith.select %174, %168, %169 : vector<16x256xi1>, vector<16x256xf32>
    %176 = vector.extract_strided_slice %143 {offsets = [0, 3], sizes = [16, 1], strides = [1, 1]} : vector<16x9xf32> to vector<16x1xf32>
    %177 = vector.broadcast %176 : vector<16x1xf32> to vector<16x256xf32>
    %178 = arith.mulf %177, %172 : vector<16x256xf32>
    %179 = arith.addf %167, %178 : vector<16x256xf32>
    %180 = vector.extract_strided_slice %143 {offsets = [0, 4], sizes = [16, 1], strides = [1, 1]} : vector<16x9xf32> to vector<16x1xf32>
    %181 = vector.broadcast %180 : vector<16x1xf32> to vector<16x256xf32>
    %182 = arith.mulf %181, %141 : vector<16x256xf32>
    %183 = arith.addf %179, %182 : vector<16x256xf32>
    %184 = vector.extract_strided_slice %143 {offsets = [0, 5], sizes = [16, 1], strides = [1, 1]} : vector<16x9xf32> to vector<16x1xf32>
    %185 = vector.broadcast %184 : vector<16x1xf32> to vector<16x256xf32>
    %186 = arith.mulf %185, %175 : vector<16x256xf32>
    %187 = arith.addf %183, %186 : vector<16x256xf32>
    %188 = vector.shape_cast %36 : vector<1x256xi1> to vector<1x256xi1>
    %189 = vector.broadcast %188 : vector<1x256xi1> to vector<16x256xi1>
    %190 = arith.select %189, %144, %145 : vector<16x256xi1>, vector<16x256xf32>
    %c1_i32_54 = arith.constant 1 : i32
    %191 = tpu.dynamic_rotate %190 by %c1_i32_54 dim 1 : vector<16x256xf32>, i32 -> vector<16x256xf32>
    %c255_i32_55 = arith.constant 255 : i32
    %192 = tpu.dynamic_rotate %190 by %c255_i32_55 dim 1 : vector<16x256xf32>, i32 -> vector<16x256xf32>
    %193 = vector.shape_cast %38 : vector<1x256xi1> to vector<1x256xi1>
    %194 = vector.broadcast %193 : vector<1x256xi1> to vector<16x256xi1>
    %195 = arith.select %194, %192, %191 : vector<16x256xi1>, vector<16x256xf32>
    %196 = vector.shape_cast %40 : vector<1x256xi1> to vector<1x256xi1>
    %197 = vector.broadcast %196 : vector<1x256xi1> to vector<16x256xi1>
    %198 = arith.select %197, %191, %192 : vector<16x256xi1>, vector<16x256xf32>
    %199 = vector.extract_strided_slice %143 {offsets = [0, 6], sizes = [16, 1], strides = [1, 1]} : vector<16x9xf32> to vector<16x1xf32>
    %200 = vector.broadcast %199 : vector<16x1xf32> to vector<16x256xf32>
    %201 = arith.mulf %200, %195 : vector<16x256xf32>
    %202 = arith.addf %187, %201 : vector<16x256xf32>
    %203 = vector.extract_strided_slice %143 {offsets = [0, 7], sizes = [16, 1], strides = [1, 1]} : vector<16x9xf32> to vector<16x1xf32>
    %204 = vector.broadcast %203 : vector<16x1xf32> to vector<16x256xf32>
    %205 = arith.mulf %204, %190 : vector<16x256xf32>
    %206 = arith.addf %202, %205 : vector<16x256xf32>
    %207 = vector.extract_strided_slice %143 {offsets = [0, 8], sizes = [16, 1], strides = [1, 1]} : vector<16x9xf32> to vector<16x1xf32>
    %208 = vector.broadcast %207 : vector<16x1xf32> to vector<16x256xf32>
    %209 = arith.mulf %208, %198 : vector<16x256xf32>
    %210 = arith.addf %206, %209 : vector<16x256xf32>
    %cst_56 = arith.constant 0.000000e+00 : f32
    %cst_57 = arith.constant 6.000000e+00 : f32
    %211 = vector.broadcast %cst_56 : f32 to vector<16x256xf32>
    %212 = arith.maximumf %211, %210 : vector<16x256xf32>
    %213 = vector.broadcast %cst_57 : f32 to vector<16x256xf32>
    %214 = arith.minimumf %213, %212 : vector<16x256xf32>
    %c0_58 = arith.constant 0 : index
    %c0_59 = arith.constant 0 : index
    %c0_60 = arith.constant 0 : index
    %215 = vector.load %arg9[%c0_58, %c0_59, %c0_60] : memref<3x8x16xf32, #tpu.memory_space<vmem>>, vector<1x8x16xf32>
    %216 = vector.shape_cast %215 : vector<1x8x16xf32> to vector<8x16xf32>
    %cst_61 = arith.constant dense<0.000000e+00> : vector<8x256xf32>
    %217 = tpu.matmul %216, %214, %cst_61 {dimension_numbers = #tpu.dot_dimension_numbers<[1], [0], [0], [1], [0, 0, 1, 1], [], []>, precision = #tpu.contract_precision<fp32>} : vector<8x16xf32>, vector<16x256xf32>, vector<8x256xf32> -> vector<8x256xf32>
    %218 = vector.extract_strided_slice %217 {offsets = [0, 0], sizes = [4, 256], strides = [1, 1]} : vector<8x256xf32> to vector<4x256xf32>
    %219 = math.exp %218 : vector<4x256xf32>
    %220 = arith.mulf %49, %219 : vector<4x256xf32>
    %221 = vector.extract_strided_slice %217 {offsets = [4, 0], sizes = [4, 256], strides = [1, 1]} : vector<8x256xf32> to vector<4x256xf32>
    %222 = arith.addf %220, %221 : vector<4x256xf32>
    %223 = tpu.concatenate %222, %134 in 0 : vector<4x256xf32>, vector<4x256xf32> -> vector<8x256xf32>
    %c1 = arith.constant 1 : index
    %c0_62 = arith.constant 0 : index
    %c0_63 = arith.constant 0 : index
    %224 = vector.load %arg2[%c1, %c0_62, %c0_63] : memref<3x8x8xf32, #tpu.memory_space<vmem>>, vector<1x8x8xf32>
    %225 = vector.shape_cast %224 : vector<1x8x8xf32> to vector<8x8xf32>
    %cst_64 = arith.constant dense<0.000000e+00> : vector<8x256xf32>
    %226 = tpu.matmul %225, %223, %cst_64 {dimension_numbers = #tpu.dot_dimension_numbers<[1], [0], [0], [1], [0, 0, 1, 1], [], []>, precision = #tpu.contract_precision<fp32>} : vector<8x8xf32>, vector<8x256xf32>, vector<8x256xf32> -> vector<8x256xf32>
    %c1_65 = arith.constant 1 : index
    %c0_66 = arith.constant 0 : index
    %c0_67 = arith.constant 0 : index
    %227 = vector.load %arg3[%c1_65, %c0_66, %c0_67] : memref<3x8x1xf32, #tpu.memory_space<vmem>>, vector<1x8x1xf32>
    %228 = vector.shape_cast %227 : vector<1x8x1xf32> to vector<8x1xf32>
    %229 = vector.broadcast %228 : vector<8x1xf32> to vector<8x256xf32>
    %230 = arith.addf %226, %229 : vector<8x256xf32>
    %231 = vector.extract_strided_slice %230 {offsets = [0, 0], sizes = [4, 256], strides = [1, 1]} : vector<8x256xf32> to vector<4x256xf32>
    %232 = vector.extract_strided_slice %230 {offsets = [4, 0], sizes = [4, 256], strides = [1, 1]} : vector<8x256xf32> to vector<4x256xf32>
    %c1_68 = arith.constant 1 : index
    %c0_69 = arith.constant 0 : index
    %c0_70 = arith.constant 0 : index
    %233 = vector.load %arg4[%c1_68, %c0_69, %c0_70] : memref<3x8x4xf32, #tpu.memory_space<vmem>>, vector<1x8x4xf32>
    %234 = vector.shape_cast %233 : vector<1x8x4xf32> to vector<8x4xf32>
    %cst_71 = arith.constant dense<0.000000e+00> : vector<8x256xf32>
    %235 = tpu.matmul %234, %231, %cst_71 {dimension_numbers = #tpu.dot_dimension_numbers<[1], [0], [0], [1], [0, 0, 1, 1], [], []>, precision = #tpu.contract_precision<fp32>} : vector<8x4xf32>, vector<4x256xf32>, vector<8x256xf32> -> vector<8x256xf32>
    %cst_72 = arith.constant 0.000000e+00 : f32
    %cst_73 = arith.constant 6.000000e+00 : f32
    %236 = vector.broadcast %cst_72 : f32 to vector<8x256xf32>
    %237 = arith.maximumf %236, %235 : vector<8x256xf32>
    %238 = vector.broadcast %cst_73 : f32 to vector<8x256xf32>
    %239 = arith.minimumf %238, %237 : vector<8x256xf32>
    %c1_74 = arith.constant 1 : index
    %c0_75 = arith.constant 0 : index
    %c0_76 = arith.constant 0 : index
    %240 = vector.load %arg5[%c1_74, %c0_75, %c0_76] : memref<3x8x9xf32, #tpu.memory_space<vmem>>, vector<1x8x9xf32>
    %241 = vector.shape_cast %240 : vector<1x8x9xf32> to vector<8x9xf32>
    %c16_i32_77 = arith.constant 16 : i32
    %242 = tpu.dynamic_rotate %239 by %c16_i32_77 dim 1 : vector<8x256xf32>, i32 -> vector<8x256xf32>
    %c240_i32_78 = arith.constant 240 : i32
    %243 = tpu.dynamic_rotate %239 by %c240_i32_78 dim 1 : vector<8x256xf32>, i32 -> vector<8x256xf32>
    %244 = vector.shape_cast %34 : vector<1x256xi1> to vector<1x256xi1>
    %245 = vector.broadcast %244 : vector<1x256xi1> to vector<8x256xi1>
    %246 = arith.select %245, %243, %242 : vector<8x256xi1>, vector<8x256xf32>
    %c1_i32_79 = arith.constant 1 : i32
    %247 = tpu.dynamic_rotate %246 by %c1_i32_79 dim 1 : vector<8x256xf32>, i32 -> vector<8x256xf32>
    %c255_i32_80 = arith.constant 255 : i32
    %248 = tpu.dynamic_rotate %246 by %c255_i32_80 dim 1 : vector<8x256xf32>, i32 -> vector<8x256xf32>
    %249 = vector.shape_cast %38 : vector<1x256xi1> to vector<1x256xi1>
    %250 = vector.broadcast %249 : vector<1x256xi1> to vector<8x256xi1>
    %251 = arith.select %250, %248, %247 : vector<8x256xi1>, vector<8x256xf32>
    %252 = vector.shape_cast %40 : vector<1x256xi1> to vector<1x256xi1>
    %253 = vector.broadcast %252 : vector<1x256xi1> to vector<8x256xi1>
    %254 = arith.select %253, %247, %248 : vector<8x256xi1>, vector<8x256xf32>
    %255 = vector.extract_strided_slice %241 {offsets = [0, 0], sizes = [8, 1], strides = [1, 1]} : vector<8x9xf32> to vector<8x1xf32>
    %256 = vector.broadcast %255 : vector<8x1xf32> to vector<8x256xf32>
    %257 = arith.mulf %256, %251 : vector<8x256xf32>
    %258 = vector.extract_strided_slice %241 {offsets = [0, 1], sizes = [8, 1], strides = [1, 1]} : vector<8x9xf32> to vector<8x1xf32>
    %259 = vector.broadcast %258 : vector<8x1xf32> to vector<8x256xf32>
    %260 = arith.mulf %259, %246 : vector<8x256xf32>
    %261 = arith.addf %257, %260 : vector<8x256xf32>
    %262 = vector.extract_strided_slice %241 {offsets = [0, 2], sizes = [8, 1], strides = [1, 1]} : vector<8x9xf32> to vector<8x1xf32>
    %263 = vector.broadcast %262 : vector<8x1xf32> to vector<8x256xf32>
    %264 = arith.mulf %263, %254 : vector<8x256xf32>
    %265 = arith.addf %261, %264 : vector<8x256xf32>
    %c1_i32_81 = arith.constant 1 : i32
    %266 = tpu.dynamic_rotate %239 by %c1_i32_81 dim 1 : vector<8x256xf32>, i32 -> vector<8x256xf32>
    %c255_i32_82 = arith.constant 255 : i32
    %267 = tpu.dynamic_rotate %239 by %c255_i32_82 dim 1 : vector<8x256xf32>, i32 -> vector<8x256xf32>
    %268 = vector.shape_cast %38 : vector<1x256xi1> to vector<1x256xi1>
    %269 = vector.broadcast %268 : vector<1x256xi1> to vector<8x256xi1>
    %270 = arith.select %269, %267, %266 : vector<8x256xi1>, vector<8x256xf32>
    %271 = vector.shape_cast %40 : vector<1x256xi1> to vector<1x256xi1>
    %272 = vector.broadcast %271 : vector<1x256xi1> to vector<8x256xi1>
    %273 = arith.select %272, %266, %267 : vector<8x256xi1>, vector<8x256xf32>
    %274 = vector.extract_strided_slice %241 {offsets = [0, 3], sizes = [8, 1], strides = [1, 1]} : vector<8x9xf32> to vector<8x1xf32>
    %275 = vector.broadcast %274 : vector<8x1xf32> to vector<8x256xf32>
    %276 = arith.mulf %275, %270 : vector<8x256xf32>
    %277 = arith.addf %265, %276 : vector<8x256xf32>
    %278 = vector.extract_strided_slice %241 {offsets = [0, 4], sizes = [8, 1], strides = [1, 1]} : vector<8x9xf32> to vector<8x1xf32>
    %279 = vector.broadcast %278 : vector<8x1xf32> to vector<8x256xf32>
    %280 = arith.mulf %279, %239 : vector<8x256xf32>
    %281 = arith.addf %277, %280 : vector<8x256xf32>
    %282 = vector.extract_strided_slice %241 {offsets = [0, 5], sizes = [8, 1], strides = [1, 1]} : vector<8x9xf32> to vector<8x1xf32>
    %283 = vector.broadcast %282 : vector<8x1xf32> to vector<8x256xf32>
    %284 = arith.mulf %283, %273 : vector<8x256xf32>
    %285 = arith.addf %281, %284 : vector<8x256xf32>
    %286 = vector.shape_cast %36 : vector<1x256xi1> to vector<1x256xi1>
    %287 = vector.broadcast %286 : vector<1x256xi1> to vector<8x256xi1>
    %288 = arith.select %287, %242, %243 : vector<8x256xi1>, vector<8x256xf32>
    %c1_i32_83 = arith.constant 1 : i32
    %289 = tpu.dynamic_rotate %288 by %c1_i32_83 dim 1 : vector<8x256xf32>, i32 -> vector<8x256xf32>
    %c255_i32_84 = arith.constant 255 : i32
    %290 = tpu.dynamic_rotate %288 by %c255_i32_84 dim 1 : vector<8x256xf32>, i32 -> vector<8x256xf32>
    %291 = vector.shape_cast %38 : vector<1x256xi1> to vector<1x256xi1>
    %292 = vector.broadcast %291 : vector<1x256xi1> to vector<8x256xi1>
    %293 = arith.select %292, %290, %289 : vector<8x256xi1>, vector<8x256xf32>
    %294 = vector.shape_cast %40 : vector<1x256xi1> to vector<1x256xi1>
    %295 = vector.broadcast %294 : vector<1x256xi1> to vector<8x256xi1>
    %296 = arith.select %295, %289, %290 : vector<8x256xi1>, vector<8x256xf32>
    %297 = vector.extract_strided_slice %241 {offsets = [0, 6], sizes = [8, 1], strides = [1, 1]} : vector<8x9xf32> to vector<8x1xf32>
    %298 = vector.broadcast %297 : vector<8x1xf32> to vector<8x256xf32>
    %299 = arith.mulf %298, %293 : vector<8x256xf32>
    %300 = arith.addf %285, %299 : vector<8x256xf32>
    %301 = vector.extract_strided_slice %241 {offsets = [0, 7], sizes = [8, 1], strides = [1, 1]} : vector<8x9xf32> to vector<8x1xf32>
    %302 = vector.broadcast %301 : vector<8x1xf32> to vector<8x256xf32>
    %303 = arith.mulf %302, %288 : vector<8x256xf32>
    %304 = arith.addf %300, %303 : vector<8x256xf32>
    %305 = vector.extract_strided_slice %241 {offsets = [0, 8], sizes = [8, 1], strides = [1, 1]} : vector<8x9xf32> to vector<8x1xf32>
    %306 = vector.broadcast %305 : vector<8x1xf32> to vector<8x256xf32>
    %307 = arith.mulf %306, %296 : vector<8x256xf32>
    %308 = arith.addf %304, %307 : vector<8x256xf32>
    %cst_85 = arith.constant 0.000000e+00 : f32
    %cst_86 = arith.constant 6.000000e+00 : f32
    %309 = vector.broadcast %cst_85 : f32 to vector<8x256xf32>
    %310 = arith.maximumf %309, %308 : vector<8x256xf32>
    %311 = vector.broadcast %cst_86 : f32 to vector<8x256xf32>
    %312 = arith.minimumf %311, %310 : vector<8x256xf32>
    %c1_87 = arith.constant 1 : index
    %c0_88 = arith.constant 0 : index
    %c0_89 = arith.constant 0 : index
    %313 = vector.load %arg6[%c1_87, %c0_88, %c0_89] : memref<3x4x8xf32, #tpu.memory_space<vmem>>, vector<1x4x8xf32>
    %314 = vector.shape_cast %313 : vector<1x4x8xf32> to vector<4x8xf32>
    %cst_90 = arith.constant dense<0.000000e+00> : vector<4x256xf32>
    %315 = tpu.matmul %314, %312, %cst_90 {dimension_numbers = #tpu.dot_dimension_numbers<[1], [0], [0], [1], [0, 0, 1, 1], [], []>, precision = #tpu.contract_precision<fp32>} : vector<4x8xf32>, vector<8x256xf32>, vector<4x256xf32> -> vector<4x256xf32>
    %316 = arith.addf %232, %315 : vector<4x256xf32>
    %c1_91 = arith.constant 1 : index
    %c0_92 = arith.constant 0 : index
    %c0_93 = arith.constant 0 : index
    %317 = vector.load %arg7[%c1_91, %c0_92, %c0_93] : memref<3x16x4xf32, #tpu.memory_space<vmem>>, vector<1x16x4xf32>
    %318 = vector.shape_cast %317 : vector<1x16x4xf32> to vector<16x4xf32>
    %cst_94 = arith.constant dense<0.000000e+00> : vector<16x256xf32>
    %319 = tpu.matmul %318, %316, %cst_94 {dimension_numbers = #tpu.dot_dimension_numbers<[1], [0], [0], [1], [0, 0, 1, 1], [], []>, precision = #tpu.contract_precision<fp32>} : vector<16x4xf32>, vector<4x256xf32>, vector<16x256xf32> -> vector<16x256xf32>
    %cst_95 = arith.constant 0.000000e+00 : f32
    %cst_96 = arith.constant 6.000000e+00 : f32
    %320 = vector.broadcast %cst_95 : f32 to vector<16x256xf32>
    %321 = arith.maximumf %320, %319 : vector<16x256xf32>
    %322 = vector.broadcast %cst_96 : f32 to vector<16x256xf32>
    %323 = arith.minimumf %322, %321 : vector<16x256xf32>
    %c1_97 = arith.constant 1 : index
    %c0_98 = arith.constant 0 : index
    %c0_99 = arith.constant 0 : index
    %324 = vector.load %arg8[%c1_97, %c0_98, %c0_99] : memref<3x16x9xf32, #tpu.memory_space<vmem>>, vector<1x16x9xf32>
    %325 = vector.shape_cast %324 : vector<1x16x9xf32> to vector<16x9xf32>
    %c16_i32_100 = arith.constant 16 : i32
    %326 = tpu.dynamic_rotate %323 by %c16_i32_100 dim 1 : vector<16x256xf32>, i32 -> vector<16x256xf32>
    %c240_i32_101 = arith.constant 240 : i32
    %327 = tpu.dynamic_rotate %323 by %c240_i32_101 dim 1 : vector<16x256xf32>, i32 -> vector<16x256xf32>
    %328 = vector.shape_cast %34 : vector<1x256xi1> to vector<1x256xi1>
    %329 = vector.broadcast %328 : vector<1x256xi1> to vector<16x256xi1>
    %330 = arith.select %329, %327, %326 : vector<16x256xi1>, vector<16x256xf32>
    %c1_i32_102 = arith.constant 1 : i32
    %331 = tpu.dynamic_rotate %330 by %c1_i32_102 dim 1 : vector<16x256xf32>, i32 -> vector<16x256xf32>
    %c255_i32_103 = arith.constant 255 : i32
    %332 = tpu.dynamic_rotate %330 by %c255_i32_103 dim 1 : vector<16x256xf32>, i32 -> vector<16x256xf32>
    %333 = vector.shape_cast %38 : vector<1x256xi1> to vector<1x256xi1>
    %334 = vector.broadcast %333 : vector<1x256xi1> to vector<16x256xi1>
    %335 = arith.select %334, %332, %331 : vector<16x256xi1>, vector<16x256xf32>
    %336 = vector.shape_cast %40 : vector<1x256xi1> to vector<1x256xi1>
    %337 = vector.broadcast %336 : vector<1x256xi1> to vector<16x256xi1>
    %338 = arith.select %337, %331, %332 : vector<16x256xi1>, vector<16x256xf32>
    %339 = vector.extract_strided_slice %325 {offsets = [0, 0], sizes = [16, 1], strides = [1, 1]} : vector<16x9xf32> to vector<16x1xf32>
    %340 = vector.broadcast %339 : vector<16x1xf32> to vector<16x256xf32>
    %341 = arith.mulf %340, %335 : vector<16x256xf32>
    %342 = vector.extract_strided_slice %325 {offsets = [0, 1], sizes = [16, 1], strides = [1, 1]} : vector<16x9xf32> to vector<16x1xf32>
    %343 = vector.broadcast %342 : vector<16x1xf32> to vector<16x256xf32>
    %344 = arith.mulf %343, %330 : vector<16x256xf32>
    %345 = arith.addf %341, %344 : vector<16x256xf32>
    %346 = vector.extract_strided_slice %325 {offsets = [0, 2], sizes = [16, 1], strides = [1, 1]} : vector<16x9xf32> to vector<16x1xf32>
    %347 = vector.broadcast %346 : vector<16x1xf32> to vector<16x256xf32>
    %348 = arith.mulf %347, %338 : vector<16x256xf32>
    %349 = arith.addf %345, %348 : vector<16x256xf32>
    %c1_i32_104 = arith.constant 1 : i32
    %350 = tpu.dynamic_rotate %323 by %c1_i32_104 dim 1 : vector<16x256xf32>, i32 -> vector<16x256xf32>
    %c255_i32_105 = arith.constant 255 : i32
    %351 = tpu.dynamic_rotate %323 by %c255_i32_105 dim 1 : vector<16x256xf32>, i32 -> vector<16x256xf32>
    %352 = vector.shape_cast %38 : vector<1x256xi1> to vector<1x256xi1>
    %353 = vector.broadcast %352 : vector<1x256xi1> to vector<16x256xi1>
    %354 = arith.select %353, %351, %350 : vector<16x256xi1>, vector<16x256xf32>
    %355 = vector.shape_cast %40 : vector<1x256xi1> to vector<1x256xi1>
    %356 = vector.broadcast %355 : vector<1x256xi1> to vector<16x256xi1>
    %357 = arith.select %356, %350, %351 : vector<16x256xi1>, vector<16x256xf32>
    %358 = vector.extract_strided_slice %325 {offsets = [0, 3], sizes = [16, 1], strides = [1, 1]} : vector<16x9xf32> to vector<16x1xf32>
    %359 = vector.broadcast %358 : vector<16x1xf32> to vector<16x256xf32>
    %360 = arith.mulf %359, %354 : vector<16x256xf32>
    %361 = arith.addf %349, %360 : vector<16x256xf32>
    %362 = vector.extract_strided_slice %325 {offsets = [0, 4], sizes = [16, 1], strides = [1, 1]} : vector<16x9xf32> to vector<16x1xf32>
    %363 = vector.broadcast %362 : vector<16x1xf32> to vector<16x256xf32>
    %364 = arith.mulf %363, %323 : vector<16x256xf32>
    %365 = arith.addf %361, %364 : vector<16x256xf32>
    %366 = vector.extract_strided_slice %325 {offsets = [0, 5], sizes = [16, 1], strides = [1, 1]} : vector<16x9xf32> to vector<16x1xf32>
    %367 = vector.broadcast %366 : vector<16x1xf32> to vector<16x256xf32>
    %368 = arith.mulf %367, %357 : vector<16x256xf32>
    %369 = arith.addf %365, %368 : vector<16x256xf32>
    %370 = vector.shape_cast %36 : vector<1x256xi1> to vector<1x256xi1>
    %371 = vector.broadcast %370 : vector<1x256xi1> to vector<16x256xi1>
    %372 = arith.select %371, %326, %327 : vector<16x256xi1>, vector<16x256xf32>
    %c1_i32_106 = arith.constant 1 : i32
    %373 = tpu.dynamic_rotate %372 by %c1_i32_106 dim 1 : vector<16x256xf32>, i32 -> vector<16x256xf32>
    %c255_i32_107 = arith.constant 255 : i32
    %374 = tpu.dynamic_rotate %372 by %c255_i32_107 dim 1 : vector<16x256xf32>, i32 -> vector<16x256xf32>
    %375 = vector.shape_cast %38 : vector<1x256xi1> to vector<1x256xi1>
    %376 = vector.broadcast %375 : vector<1x256xi1> to vector<16x256xi1>
    %377 = arith.select %376, %374, %373 : vector<16x256xi1>, vector<16x256xf32>
    %378 = vector.shape_cast %40 : vector<1x256xi1> to vector<1x256xi1>
    %379 = vector.broadcast %378 : vector<1x256xi1> to vector<16x256xi1>
    %380 = arith.select %379, %373, %374 : vector<16x256xi1>, vector<16x256xf32>
    %381 = vector.extract_strided_slice %325 {offsets = [0, 6], sizes = [16, 1], strides = [1, 1]} : vector<16x9xf32> to vector<16x1xf32>
    %382 = vector.broadcast %381 : vector<16x1xf32> to vector<16x256xf32>
    %383 = arith.mulf %382, %377 : vector<16x256xf32>
    %384 = arith.addf %369, %383 : vector<16x256xf32>
    %385 = vector.extract_strided_slice %325 {offsets = [0, 7], sizes = [16, 1], strides = [1, 1]} : vector<16x9xf32> to vector<16x1xf32>
    %386 = vector.broadcast %385 : vector<16x1xf32> to vector<16x256xf32>
    %387 = arith.mulf %386, %372 : vector<16x256xf32>
    %388 = arith.addf %384, %387 : vector<16x256xf32>
    %389 = vector.extract_strided_slice %325 {offsets = [0, 8], sizes = [16, 1], strides = [1, 1]} : vector<16x9xf32> to vector<16x1xf32>
    %390 = vector.broadcast %389 : vector<16x1xf32> to vector<16x256xf32>
    %391 = arith.mulf %390, %380 : vector<16x256xf32>
    %392 = arith.addf %388, %391 : vector<16x256xf32>
    %cst_108 = arith.constant 0.000000e+00 : f32
    %cst_109 = arith.constant 6.000000e+00 : f32
    %393 = vector.broadcast %cst_108 : f32 to vector<16x256xf32>
    %394 = arith.maximumf %393, %392 : vector<16x256xf32>
    %395 = vector.broadcast %cst_109 : f32 to vector<16x256xf32>
    %396 = arith.minimumf %395, %394 : vector<16x256xf32>
    %c1_110 = arith.constant 1 : index
    %c0_111 = arith.constant 0 : index
    %c0_112 = arith.constant 0 : index
    %397 = vector.load %arg9[%c1_110, %c0_111, %c0_112] : memref<3x8x16xf32, #tpu.memory_space<vmem>>, vector<1x8x16xf32>
    %398 = vector.shape_cast %397 : vector<1x8x16xf32> to vector<8x16xf32>
    %cst_113 = arith.constant dense<0.000000e+00> : vector<8x256xf32>
    %399 = tpu.matmul %398, %396, %cst_113 {dimension_numbers = #tpu.dot_dimension_numbers<[1], [0], [0], [1], [0, 0, 1, 1], [], []>, precision = #tpu.contract_precision<fp32>} : vector<8x16xf32>, vector<16x256xf32>, vector<8x256xf32> -> vector<8x256xf32>
    %400 = vector.extract_strided_slice %399 {offsets = [0, 0], sizes = [4, 256], strides = [1, 1]} : vector<8x256xf32> to vector<4x256xf32>
    %401 = math.exp %400 : vector<4x256xf32>
    %402 = arith.mulf %231, %401 : vector<4x256xf32>
    %403 = vector.extract_strided_slice %399 {offsets = [4, 0], sizes = [4, 256], strides = [1, 1]} : vector<8x256xf32> to vector<4x256xf32>
    %404 = arith.addf %402, %403 : vector<4x256xf32>
    %405 = tpu.concatenate %404, %316 in 0 : vector<4x256xf32>, vector<4x256xf32> -> vector<8x256xf32>
    %c2 = arith.constant 2 : index
    %c0_114 = arith.constant 0 : index
    %c0_115 = arith.constant 0 : index
    %406 = vector.load %arg2[%c2, %c0_114, %c0_115] : memref<3x8x8xf32, #tpu.memory_space<vmem>>, vector<1x8x8xf32>
    %407 = vector.shape_cast %406 : vector<1x8x8xf32> to vector<8x8xf32>
    %cst_116 = arith.constant dense<0.000000e+00> : vector<8x256xf32>
    %408 = tpu.matmul %407, %405, %cst_116 {dimension_numbers = #tpu.dot_dimension_numbers<[1], [0], [0], [1], [0, 0, 1, 1], [], []>, precision = #tpu.contract_precision<fp32>} : vector<8x8xf32>, vector<8x256xf32>, vector<8x256xf32> -> vector<8x256xf32>
    %c2_117 = arith.constant 2 : index
    %c0_118 = arith.constant 0 : index
    %c0_119 = arith.constant 0 : index
    %409 = vector.load %arg3[%c2_117, %c0_118, %c0_119] : memref<3x8x1xf32, #tpu.memory_space<vmem>>, vector<1x8x1xf32>
    %410 = vector.shape_cast %409 : vector<1x8x1xf32> to vector<8x1xf32>
    %411 = vector.broadcast %410 : vector<8x1xf32> to vector<8x256xf32>
    %412 = arith.addf %408, %411 : vector<8x256xf32>
    %413 = vector.extract_strided_slice %412 {offsets = [0, 0], sizes = [4, 256], strides = [1, 1]} : vector<8x256xf32> to vector<4x256xf32>
    %414 = vector.extract_strided_slice %412 {offsets = [4, 0], sizes = [4, 256], strides = [1, 1]} : vector<8x256xf32> to vector<4x256xf32>
    %c2_120 = arith.constant 2 : index
    %c0_121 = arith.constant 0 : index
    %c0_122 = arith.constant 0 : index
    %415 = vector.load %arg4[%c2_120, %c0_121, %c0_122] : memref<3x8x4xf32, #tpu.memory_space<vmem>>, vector<1x8x4xf32>
    %416 = vector.shape_cast %415 : vector<1x8x4xf32> to vector<8x4xf32>
    %cst_123 = arith.constant dense<0.000000e+00> : vector<8x256xf32>
    %417 = tpu.matmul %416, %413, %cst_123 {dimension_numbers = #tpu.dot_dimension_numbers<[1], [0], [0], [1], [0, 0, 1, 1], [], []>, precision = #tpu.contract_precision<fp32>} : vector<8x4xf32>, vector<4x256xf32>, vector<8x256xf32> -> vector<8x256xf32>
    %cst_124 = arith.constant 0.000000e+00 : f32
    %cst_125 = arith.constant 6.000000e+00 : f32
    %418 = vector.broadcast %cst_124 : f32 to vector<8x256xf32>
    %419 = arith.maximumf %418, %417 : vector<8x256xf32>
    %420 = vector.broadcast %cst_125 : f32 to vector<8x256xf32>
    %421 = arith.minimumf %420, %419 : vector<8x256xf32>
    %c2_126 = arith.constant 2 : index
    %c0_127 = arith.constant 0 : index
    %c0_128 = arith.constant 0 : index
    %422 = vector.load %arg5[%c2_126, %c0_127, %c0_128] : memref<3x8x9xf32, #tpu.memory_space<vmem>>, vector<1x8x9xf32>
    %423 = vector.shape_cast %422 : vector<1x8x9xf32> to vector<8x9xf32>
    %c16_i32_129 = arith.constant 16 : i32
    %424 = tpu.dynamic_rotate %421 by %c16_i32_129 dim 1 : vector<8x256xf32>, i32 -> vector<8x256xf32>
    %c240_i32_130 = arith.constant 240 : i32
    %425 = tpu.dynamic_rotate %421 by %c240_i32_130 dim 1 : vector<8x256xf32>, i32 -> vector<8x256xf32>
    %426 = vector.shape_cast %34 : vector<1x256xi1> to vector<1x256xi1>
    %427 = vector.broadcast %426 : vector<1x256xi1> to vector<8x256xi1>
    %428 = arith.select %427, %425, %424 : vector<8x256xi1>, vector<8x256xf32>
    %c1_i32_131 = arith.constant 1 : i32
    %429 = tpu.dynamic_rotate %428 by %c1_i32_131 dim 1 : vector<8x256xf32>, i32 -> vector<8x256xf32>
    %c255_i32_132 = arith.constant 255 : i32
    %430 = tpu.dynamic_rotate %428 by %c255_i32_132 dim 1 : vector<8x256xf32>, i32 -> vector<8x256xf32>
    %431 = vector.shape_cast %38 : vector<1x256xi1> to vector<1x256xi1>
    %432 = vector.broadcast %431 : vector<1x256xi1> to vector<8x256xi1>
    %433 = arith.select %432, %430, %429 : vector<8x256xi1>, vector<8x256xf32>
    %434 = vector.shape_cast %40 : vector<1x256xi1> to vector<1x256xi1>
    %435 = vector.broadcast %434 : vector<1x256xi1> to vector<8x256xi1>
    %436 = arith.select %435, %429, %430 : vector<8x256xi1>, vector<8x256xf32>
    %437 = vector.extract_strided_slice %423 {offsets = [0, 0], sizes = [8, 1], strides = [1, 1]} : vector<8x9xf32> to vector<8x1xf32>
    %438 = vector.broadcast %437 : vector<8x1xf32> to vector<8x256xf32>
    %439 = arith.mulf %438, %433 : vector<8x256xf32>
    %440 = vector.extract_strided_slice %423 {offsets = [0, 1], sizes = [8, 1], strides = [1, 1]} : vector<8x9xf32> to vector<8x1xf32>
    %441 = vector.broadcast %440 : vector<8x1xf32> to vector<8x256xf32>
    %442 = arith.mulf %441, %428 : vector<8x256xf32>
    %443 = arith.addf %439, %442 : vector<8x256xf32>
    %444 = vector.extract_strided_slice %423 {offsets = [0, 2], sizes = [8, 1], strides = [1, 1]} : vector<8x9xf32> to vector<8x1xf32>
    %445 = vector.broadcast %444 : vector<8x1xf32> to vector<8x256xf32>
    %446 = arith.mulf %445, %436 : vector<8x256xf32>
    %447 = arith.addf %443, %446 : vector<8x256xf32>
    %c1_i32_133 = arith.constant 1 : i32
    %448 = tpu.dynamic_rotate %421 by %c1_i32_133 dim 1 : vector<8x256xf32>, i32 -> vector<8x256xf32>
    %c255_i32_134 = arith.constant 255 : i32
    %449 = tpu.dynamic_rotate %421 by %c255_i32_134 dim 1 : vector<8x256xf32>, i32 -> vector<8x256xf32>
    %450 = vector.shape_cast %38 : vector<1x256xi1> to vector<1x256xi1>
    %451 = vector.broadcast %450 : vector<1x256xi1> to vector<8x256xi1>
    %452 = arith.select %451, %449, %448 : vector<8x256xi1>, vector<8x256xf32>
    %453 = vector.shape_cast %40 : vector<1x256xi1> to vector<1x256xi1>
    %454 = vector.broadcast %453 : vector<1x256xi1> to vector<8x256xi1>
    %455 = arith.select %454, %448, %449 : vector<8x256xi1>, vector<8x256xf32>
    %456 = vector.extract_strided_slice %423 {offsets = [0, 3], sizes = [8, 1], strides = [1, 1]} : vector<8x9xf32> to vector<8x1xf32>
    %457 = vector.broadcast %456 : vector<8x1xf32> to vector<8x256xf32>
    %458 = arith.mulf %457, %452 : vector<8x256xf32>
    %459 = arith.addf %447, %458 : vector<8x256xf32>
    %460 = vector.extract_strided_slice %423 {offsets = [0, 4], sizes = [8, 1], strides = [1, 1]} : vector<8x9xf32> to vector<8x1xf32>
    %461 = vector.broadcast %460 : vector<8x1xf32> to vector<8x256xf32>
    %462 = arith.mulf %461, %421 : vector<8x256xf32>
    %463 = arith.addf %459, %462 : vector<8x256xf32>
    %464 = vector.extract_strided_slice %423 {offsets = [0, 5], sizes = [8, 1], strides = [1, 1]} : vector<8x9xf32> to vector<8x1xf32>
    %465 = vector.broadcast %464 : vector<8x1xf32> to vector<8x256xf32>
    %466 = arith.mulf %465, %455 : vector<8x256xf32>
    %467 = arith.addf %463, %466 : vector<8x256xf32>
    %468 = vector.shape_cast %36 : vector<1x256xi1> to vector<1x256xi1>
    %469 = vector.broadcast %468 : vector<1x256xi1> to vector<8x256xi1>
    %470 = arith.select %469, %424, %425 : vector<8x256xi1>, vector<8x256xf32>
    %c1_i32_135 = arith.constant 1 : i32
    %471 = tpu.dynamic_rotate %470 by %c1_i32_135 dim 1 : vector<8x256xf32>, i32 -> vector<8x256xf32>
    %c255_i32_136 = arith.constant 255 : i32
    %472 = tpu.dynamic_rotate %470 by %c255_i32_136 dim 1 : vector<8x256xf32>, i32 -> vector<8x256xf32>
    %473 = vector.shape_cast %38 : vector<1x256xi1> to vector<1x256xi1>
    %474 = vector.broadcast %473 : vector<1x256xi1> to vector<8x256xi1>
    %475 = arith.select %474, %472, %471 : vector<8x256xi1>, vector<8x256xf32>
    %476 = vector.shape_cast %40 : vector<1x256xi1> to vector<1x256xi1>
    %477 = vector.broadcast %476 : vector<1x256xi1> to vector<8x256xi1>
    %478 = arith.select %477, %471, %472 : vector<8x256xi1>, vector<8x256xf32>
    %479 = vector.extract_strided_slice %423 {offsets = [0, 6], sizes = [8, 1], strides = [1, 1]} : vector<8x9xf32> to vector<8x1xf32>
    %480 = vector.broadcast %479 : vector<8x1xf32> to vector<8x256xf32>
    %481 = arith.mulf %480, %475 : vector<8x256xf32>
    %482 = arith.addf %467, %481 : vector<8x256xf32>
    %483 = vector.extract_strided_slice %423 {offsets = [0, 7], sizes = [8, 1], strides = [1, 1]} : vector<8x9xf32> to vector<8x1xf32>
    %484 = vector.broadcast %483 : vector<8x1xf32> to vector<8x256xf32>
    %485 = arith.mulf %484, %470 : vector<8x256xf32>
    %486 = arith.addf %482, %485 : vector<8x256xf32>
    %487 = vector.extract_strided_slice %423 {offsets = [0, 8], sizes = [8, 1], strides = [1, 1]} : vector<8x9xf32> to vector<8x1xf32>
    %488 = vector.broadcast %487 : vector<8x1xf32> to vector<8x256xf32>
    %489 = arith.mulf %488, %478 : vector<8x256xf32>
    %490 = arith.addf %486, %489 : vector<8x256xf32>
    %cst_137 = arith.constant 0.000000e+00 : f32
    %cst_138 = arith.constant 6.000000e+00 : f32
    %491 = vector.broadcast %cst_137 : f32 to vector<8x256xf32>
    %492 = arith.maximumf %491, %490 : vector<8x256xf32>
    %493 = vector.broadcast %cst_138 : f32 to vector<8x256xf32>
    %494 = arith.minimumf %493, %492 : vector<8x256xf32>
    %c2_139 = arith.constant 2 : index
    %c0_140 = arith.constant 0 : index
    %c0_141 = arith.constant 0 : index
    %495 = vector.load %arg6[%c2_139, %c0_140, %c0_141] : memref<3x4x8xf32, #tpu.memory_space<vmem>>, vector<1x4x8xf32>
    %496 = vector.shape_cast %495 : vector<1x4x8xf32> to vector<4x8xf32>
    %cst_142 = arith.constant dense<0.000000e+00> : vector<4x256xf32>
    %497 = tpu.matmul %496, %494, %cst_142 {dimension_numbers = #tpu.dot_dimension_numbers<[1], [0], [0], [1], [0, 0, 1, 1], [], []>, precision = #tpu.contract_precision<fp32>} : vector<4x8xf32>, vector<8x256xf32>, vector<4x256xf32> -> vector<4x256xf32>
    %498 = arith.addf %414, %497 : vector<4x256xf32>
    %c2_143 = arith.constant 2 : index
    %c0_144 = arith.constant 0 : index
    %c0_145 = arith.constant 0 : index
    %499 = vector.load %arg7[%c2_143, %c0_144, %c0_145] : memref<3x16x4xf32, #tpu.memory_space<vmem>>, vector<1x16x4xf32>
    %500 = vector.shape_cast %499 : vector<1x16x4xf32> to vector<16x4xf32>
    %cst_146 = arith.constant dense<0.000000e+00> : vector<16x256xf32>
    %501 = tpu.matmul %500, %498, %cst_146 {dimension_numbers = #tpu.dot_dimension_numbers<[1], [0], [0], [1], [0, 0, 1, 1], [], []>, precision = #tpu.contract_precision<fp32>} : vector<16x4xf32>, vector<4x256xf32>, vector<16x256xf32> -> vector<16x256xf32>
    %cst_147 = arith.constant 0.000000e+00 : f32
    %cst_148 = arith.constant 6.000000e+00 : f32
    %502 = vector.broadcast %cst_147 : f32 to vector<16x256xf32>
    %503 = arith.maximumf %502, %501 : vector<16x256xf32>
    %504 = vector.broadcast %cst_148 : f32 to vector<16x256xf32>
    %505 = arith.minimumf %504, %503 : vector<16x256xf32>
    %c2_149 = arith.constant 2 : index
    %c0_150 = arith.constant 0 : index
    %c0_151 = arith.constant 0 : index
    %506 = vector.load %arg8[%c2_149, %c0_150, %c0_151] : memref<3x16x9xf32, #tpu.memory_space<vmem>>, vector<1x16x9xf32>
    %507 = vector.shape_cast %506 : vector<1x16x9xf32> to vector<16x9xf32>
    %c16_i32_152 = arith.constant 16 : i32
    %508 = tpu.dynamic_rotate %505 by %c16_i32_152 dim 1 : vector<16x256xf32>, i32 -> vector<16x256xf32>
    %c240_i32_153 = arith.constant 240 : i32
    %509 = tpu.dynamic_rotate %505 by %c240_i32_153 dim 1 : vector<16x256xf32>, i32 -> vector<16x256xf32>
    %510 = vector.shape_cast %34 : vector<1x256xi1> to vector<1x256xi1>
    %511 = vector.broadcast %510 : vector<1x256xi1> to vector<16x256xi1>
    %512 = arith.select %511, %509, %508 : vector<16x256xi1>, vector<16x256xf32>
    %c1_i32_154 = arith.constant 1 : i32
    %513 = tpu.dynamic_rotate %512 by %c1_i32_154 dim 1 : vector<16x256xf32>, i32 -> vector<16x256xf32>
    %c255_i32_155 = arith.constant 255 : i32
    %514 = tpu.dynamic_rotate %512 by %c255_i32_155 dim 1 : vector<16x256xf32>, i32 -> vector<16x256xf32>
    %515 = vector.shape_cast %38 : vector<1x256xi1> to vector<1x256xi1>
    %516 = vector.broadcast %515 : vector<1x256xi1> to vector<16x256xi1>
    %517 = arith.select %516, %514, %513 : vector<16x256xi1>, vector<16x256xf32>
    %518 = vector.shape_cast %40 : vector<1x256xi1> to vector<1x256xi1>
    %519 = vector.broadcast %518 : vector<1x256xi1> to vector<16x256xi1>
    %520 = arith.select %519, %513, %514 : vector<16x256xi1>, vector<16x256xf32>
    %521 = vector.extract_strided_slice %507 {offsets = [0, 0], sizes = [16, 1], strides = [1, 1]} : vector<16x9xf32> to vector<16x1xf32>
    %522 = vector.broadcast %521 : vector<16x1xf32> to vector<16x256xf32>
    %523 = arith.mulf %522, %517 : vector<16x256xf32>
    %524 = vector.extract_strided_slice %507 {offsets = [0, 1], sizes = [16, 1], strides = [1, 1]} : vector<16x9xf32> to vector<16x1xf32>
    %525 = vector.broadcast %524 : vector<16x1xf32> to vector<16x256xf32>
    %526 = arith.mulf %525, %512 : vector<16x256xf32>
    %527 = arith.addf %523, %526 : vector<16x256xf32>
    %528 = vector.extract_strided_slice %507 {offsets = [0, 2], sizes = [16, 1], strides = [1, 1]} : vector<16x9xf32> to vector<16x1xf32>
    %529 = vector.broadcast %528 : vector<16x1xf32> to vector<16x256xf32>
    %530 = arith.mulf %529, %520 : vector<16x256xf32>
    %531 = arith.addf %527, %530 : vector<16x256xf32>
    %c1_i32_156 = arith.constant 1 : i32
    %532 = tpu.dynamic_rotate %505 by %c1_i32_156 dim 1 : vector<16x256xf32>, i32 -> vector<16x256xf32>
    %c255_i32_157 = arith.constant 255 : i32
    %533 = tpu.dynamic_rotate %505 by %c255_i32_157 dim 1 : vector<16x256xf32>, i32 -> vector<16x256xf32>
    %534 = vector.shape_cast %38 : vector<1x256xi1> to vector<1x256xi1>
    %535 = vector.broadcast %534 : vector<1x256xi1> to vector<16x256xi1>
    %536 = arith.select %535, %533, %532 : vector<16x256xi1>, vector<16x256xf32>
    %537 = vector.shape_cast %40 : vector<1x256xi1> to vector<1x256xi1>
    %538 = vector.broadcast %537 : vector<1x256xi1> to vector<16x256xi1>
    %539 = arith.select %538, %532, %533 : vector<16x256xi1>, vector<16x256xf32>
    %540 = vector.extract_strided_slice %507 {offsets = [0, 3], sizes = [16, 1], strides = [1, 1]} : vector<16x9xf32> to vector<16x1xf32>
    %541 = vector.broadcast %540 : vector<16x1xf32> to vector<16x256xf32>
    %542 = arith.mulf %541, %536 : vector<16x256xf32>
    %543 = arith.addf %531, %542 : vector<16x256xf32>
    %544 = vector.extract_strided_slice %507 {offsets = [0, 4], sizes = [16, 1], strides = [1, 1]} : vector<16x9xf32> to vector<16x1xf32>
    %545 = vector.broadcast %544 : vector<16x1xf32> to vector<16x256xf32>
    %546 = arith.mulf %545, %505 : vector<16x256xf32>
    %547 = arith.addf %543, %546 : vector<16x256xf32>
    %548 = vector.extract_strided_slice %507 {offsets = [0, 5], sizes = [16, 1], strides = [1, 1]} : vector<16x9xf32> to vector<16x1xf32>
    %549 = vector.broadcast %548 : vector<16x1xf32> to vector<16x256xf32>
    %550 = arith.mulf %549, %539 : vector<16x256xf32>
    %551 = arith.addf %547, %550 : vector<16x256xf32>
    %552 = vector.shape_cast %36 : vector<1x256xi1> to vector<1x256xi1>
    %553 = vector.broadcast %552 : vector<1x256xi1> to vector<16x256xi1>
    %554 = arith.select %553, %508, %509 : vector<16x256xi1>, vector<16x256xf32>
    %c1_i32_158 = arith.constant 1 : i32
    %555 = tpu.dynamic_rotate %554 by %c1_i32_158 dim 1 : vector<16x256xf32>, i32 -> vector<16x256xf32>
    %c255_i32_159 = arith.constant 255 : i32
    %556 = tpu.dynamic_rotate %554 by %c255_i32_159 dim 1 : vector<16x256xf32>, i32 -> vector<16x256xf32>
    %557 = vector.shape_cast %38 : vector<1x256xi1> to vector<1x256xi1>
    %558 = vector.broadcast %557 : vector<1x256xi1> to vector<16x256xi1>
    %559 = arith.select %558, %556, %555 : vector<16x256xi1>, vector<16x256xf32>
    %560 = vector.shape_cast %40 : vector<1x256xi1> to vector<1x256xi1>
    %561 = vector.broadcast %560 : vector<1x256xi1> to vector<16x256xi1>
    %562 = arith.select %561, %555, %556 : vector<16x256xi1>, vector<16x256xf32>
    %563 = vector.extract_strided_slice %507 {offsets = [0, 6], sizes = [16, 1], strides = [1, 1]} : vector<16x9xf32> to vector<16x1xf32>
    %564 = vector.broadcast %563 : vector<16x1xf32> to vector<16x256xf32>
    %565 = arith.mulf %564, %559 : vector<16x256xf32>
    %566 = arith.addf %551, %565 : vector<16x256xf32>
    %567 = vector.extract_strided_slice %507 {offsets = [0, 7], sizes = [16, 1], strides = [1, 1]} : vector<16x9xf32> to vector<16x1xf32>
    %568 = vector.broadcast %567 : vector<16x1xf32> to vector<16x256xf32>
    %569 = arith.mulf %568, %554 : vector<16x256xf32>
    %570 = arith.addf %566, %569 : vector<16x256xf32>
    %571 = vector.extract_strided_slice %507 {offsets = [0, 8], sizes = [16, 1], strides = [1, 1]} : vector<16x9xf32> to vector<16x1xf32>
    %572 = vector.broadcast %571 : vector<16x1xf32> to vector<16x256xf32>
    %573 = arith.mulf %572, %562 : vector<16x256xf32>
    %574 = arith.addf %570, %573 : vector<16x256xf32>
    %cst_160 = arith.constant 0.000000e+00 : f32
    %cst_161 = arith.constant 6.000000e+00 : f32
    %575 = vector.broadcast %cst_160 : f32 to vector<16x256xf32>
    %576 = arith.maximumf %575, %574 : vector<16x256xf32>
    %577 = vector.broadcast %cst_161 : f32 to vector<16x256xf32>
    %578 = arith.minimumf %577, %576 : vector<16x256xf32>
    %c2_162 = arith.constant 2 : index
    %c0_163 = arith.constant 0 : index
    %c0_164 = arith.constant 0 : index
    %579 = vector.load %arg9[%c2_162, %c0_163, %c0_164] : memref<3x8x16xf32, #tpu.memory_space<vmem>>, vector<1x8x16xf32>
    %580 = vector.shape_cast %579 : vector<1x8x16xf32> to vector<8x16xf32>
    %cst_165 = arith.constant dense<0.000000e+00> : vector<8x256xf32>
    %581 = tpu.matmul %580, %578, %cst_165 {dimension_numbers = #tpu.dot_dimension_numbers<[1], [0], [0], [1], [0, 0, 1, 1], [], []>, precision = #tpu.contract_precision<fp32>} : vector<8x16xf32>, vector<16x256xf32>, vector<8x256xf32> -> vector<8x256xf32>
    %582 = vector.extract_strided_slice %581 {offsets = [0, 0], sizes = [4, 256], strides = [1, 1]} : vector<8x256xf32> to vector<4x256xf32>
    %583 = math.exp %582 : vector<4x256xf32>
    %584 = arith.mulf %413, %583 : vector<4x256xf32>
    %585 = vector.extract_strided_slice %581 {offsets = [4, 0], sizes = [4, 256], strides = [1, 1]} : vector<8x256xf32> to vector<4x256xf32>
    %586 = arith.addf %584, %585 : vector<4x256xf32>
    %587 = tpu.concatenate %586, %498 in 0 : vector<4x256xf32>, vector<4x256xf32> -> vector<8x256xf32>
    %c0_166 = arith.constant 0 : index
    %c0_167 = arith.constant 0 : index
    %588 = vector.load %arg10[%c0_166, %c0_167] : memref<8x256xf32, #tpu.memory_space<vmem>>, vector<8x256xf32>
    tpu.vector_store %arg10[%c0_166, %c0_167], %587 {strides = array<i32>} : memref<8x256xf32, #tpu.memory_space<vmem>>, vector<8x256xf32>,
    return
  }
  func.func @transform_0(%arg0: i32) -> (i32, i32) {
    %c0_i32 = arith.constant 0 : i32
    %c0_i32_0 = arith.constant 0 : i32
    return %c0_i32, %arg0 : i32, i32
  }
  func.func @transform_1(%arg0: i32) -> (i32, i32, i32) {
    %c0_i32 = arith.constant 0 : i32
    %c0_i32_0 = arith.constant 0 : i32
    %c0_i32_1 = arith.constant 0 : i32
    %c0_i32_2 = arith.constant 0 : i32
    return %c0_i32, %c0_i32_0, %c0_i32_1 : i32, i32, i32
  }
  func.func @transform_2(%arg0: i32) -> (i32, i32, i32) {
    %c0_i32 = arith.constant 0 : i32
    %c0_i32_0 = arith.constant 0 : i32
    %c0_i32_1 = arith.constant 0 : i32
    %c0_i32_2 = arith.constant 0 : i32
    return %c0_i32, %c0_i32_0, %c0_i32_1 : i32, i32, i32
  }
  func.func @transform_3(%arg0: i32) -> (i32, i32, i32) {
    %c0_i32 = arith.constant 0 : i32
    %c0_i32_0 = arith.constant 0 : i32
    %c0_i32_1 = arith.constant 0 : i32
    %c0_i32_2 = arith.constant 0 : i32
    return %c0_i32, %c0_i32_0, %c0_i32_1 : i32, i32, i32
  }
  func.func @transform_4(%arg0: i32) -> (i32, i32, i32) {
    %c0_i32 = arith.constant 0 : i32
    %c0_i32_0 = arith.constant 0 : i32
    %c0_i32_1 = arith.constant 0 : i32
    %c0_i32_2 = arith.constant 0 : i32
    return %c0_i32, %c0_i32_0, %c0_i32_1 : i32, i32, i32
  }
  func.func @transform_5(%arg0: i32) -> (i32, i32, i32) {
    %c0_i32 = arith.constant 0 : i32
    %c0_i32_0 = arith.constant 0 : i32
    %c0_i32_1 = arith.constant 0 : i32
    %c0_i32_2 = arith.constant 0 : i32
    return %c0_i32, %c0_i32_0, %c0_i32_1 : i32, i32, i32
  }
  func.func @transform_6(%arg0: i32) -> (i32, i32, i32) {
    %c0_i32 = arith.constant 0 : i32
    %c0_i32_0 = arith.constant 0 : i32
    %c0_i32_1 = arith.constant 0 : i32
    %c0_i32_2 = arith.constant 0 : i32
    return %c0_i32, %c0_i32_0, %c0_i32_1 : i32, i32, i32
  }
  func.func @transform_7(%arg0: i32) -> (i32, i32, i32) {
    %c0_i32 = arith.constant 0 : i32
    %c0_i32_0 = arith.constant 0 : i32
    %c0_i32_1 = arith.constant 0 : i32
    %c0_i32_2 = arith.constant 0 : i32
    return %c0_i32, %c0_i32_0, %c0_i32_1 : i32, i32, i32
  }
  func.func @transform_8(%arg0: i32) -> (i32, i32, i32) {
    %c0_i32 = arith.constant 0 : i32
    %c0_i32_0 = arith.constant 0 : i32
    %c0_i32_1 = arith.constant 0 : i32
    %c0_i32_2 = arith.constant 0 : i32
    return %c0_i32, %c0_i32_0, %c0_i32_1 : i32, i32, i32
  }
  func.func @transform_9(%arg0: i32) -> (i32, i32) {
    %c0_i32 = arith.constant 0 : i32
    %c0_i32_0 = arith.constant 0 : i32
    return %c0_i32, %arg0 : i32, i32
  }
}

</mosaic_0001>

<llo_original>
// kernel: tpu_custom_call.1
$region0: #{tpu_custom_call.1}
  #allocation0 [shape = 'u32[]', space=smem, size = 0x4, offset = 0x4, fixed_abs, tag = 'smem constant byte address 0x4 - core index']
  #allocation1 [shape = 'u32[72,128]{1,0:T(1,128)}', space=vmem, size = 0x9000, scoped, tag = 'internal scratch']
  %s0 = inlined_call_operand.vmem [shape: f32[8,512], index: 0, kind: input, shape index: {}]
  %s1 = inlined_call_operand.vmem [shape: f32[3,8,8], index: 1, kind: input, shape index: {}]
  %s2 = inlined_call_operand.vmem [shape: f32[3,8,1], index: 2, kind: input, shape index: {}]
  %s3 = inlined_call_operand.vmem [shape: f32[3,8,4], index: 3, kind: input, shape index: {}]
  %s4 = inlined_call_operand.vmem [shape: f32[3,8,9], index: 4, kind: input, shape index: {}]
  %s5 = inlined_call_operand.vmem [shape: f32[3,4,8], index: 5, kind: input, shape index: {}]
  %s6 = inlined_call_operand.vmem [shape: f32[3,16,4], index: 6, kind: input, shape index: {}]
  %s7 = inlined_call_operand.vmem [shape: f32[3,16,9], index: 7, kind: input, shape index: {}]
  %s8 = inlined_call_operand.vmem [shape: f32[3,8,16], index: 8, kind: input, shape index: {}]
  %s9 = inlined_call_operand.hbm [shape: f32[8,512], index: 9, kind: output, shape index: {}]
  %s10 = sld [smem:[#allocation0]]
  $region69: #{tpu_custom_call.1} parent=0
    _
  %s12 = ssub.s32 1, %s10
  %s13 = scalar_select 0, %s12, %s10
  $region1: #{tpu_custom_call.1} parent=0
    #allocation2 [shape = 'u8[16384]{0}', space=vmem, size = 0x4000, scoped, tag = 'output window, operand 0']
    #allocation3 [shape = 's32[2]{0}', space=sflag, size = 0x8, scoped, tag = 'scoped memory for tpu_custom_call.1']
    %14 = vsyncpa [#allocation3], 0
    %s15 = scalar_lea.sflag [#allocation3], 1
    %16 = vsyncpa %s15, 0
    loop: start=0, step=1, limit=4
    $region2: #{tpu_custom_call.1} parent=1 // loop_pre_header
      _
    $region3: #{tpu_custom_call.1} parent=1 // loop_header
      %s18 = sphi 0, %s22
      %p19 = scmp.ge.s32.totalorder %s18, 4
      %s28 = sphi 0, %s30
      %s31 = sphi 0, %s28
      %s32 = sphi 0, %s31
      %s48 = sphi 0, %s32
      %s52 = sphi 0, %s52
      %s54 = sphi 0, %s52
      %s55 = sphi 0, %s54
      %s69 = sphi 0, %s55
      %s73 = sphi 0, %s73
      %s75 = sphi 0, %s73
      %s76 = sphi 0, %s75
      %s90 = sphi 0, %s76
      %s94 = sphi 0, %s94
      %s96 = sphi 0, %s94
      %s97 = sphi 0, %s96
      %s111 = sphi 0, %s97
      %s115 = sphi 0, %s115
      %s117 = sphi 0, %s115
      %s118 = sphi 0, %s117
      %s132 = sphi 0, %s118
      %s136 = sphi 0, %s136
      %s138 = sphi 0, %s136
      %s139 = sphi 0, %s138
      %s153 = sphi 0, %s139
      %s157 = sphi 0, %s157
      %s159 = sphi 0, %s157
      %s160 = sphi 0, %s159
      %s174 = sphi 0, %s160
      %s178 = sphi 0, %s178
      %s180 = sphi 0, %s178
      %s181 = sphi 0, %s180
      %s195 = sphi 0, %s181
      %s199 = sphi 0, %s199
      %s201 = sphi 0, %s199
      %s202 = sphi 0, %s201
      %s216 = sphi 0, %s202
      %s222 = sphi 0, %s224
      %s225 = sphi 0, %s222
      %s226 = sphi 0, %s225
      %s242 = sphi 0, %s226
    $region4: #{tpu_custom_call.1} parent=1 // loop_header_branch
      %21 = sbr.rel (%p19) target = $region8
    $region5: #{tpu_custom_call.1} parent=1 // loop_body
      %s23 = ssub.s32 %s18, 1
      %s24 = ssub.s32 %s18, 2
      %s25 = sadd.s32 %s18, 1
      %s26 = ssub.s32 %s18, %s25
      %p27 = scmp.eq.s32.totalorder %s26, 0
      %s29 = sadd.s32 %s28, 1
      %s30 = scalar_select %p27, %s28, %s29
      %p33 = pneg %p27
      %p34 = scmp.eq.s32.totalorder %s18, 1
      %p35 = por %p33, %p34
      %p36 = scmp.ne.s32.totalorder %s28, %s31
      %p37 = scmp.eq.s32.totalorder %s18, 0
      %p38 = por %p36, %p37
      %p39 = scmp.ne.s32.totalorder %s28, %s31
      %p40 = scmp.eq.s32.totalorder %s23, 1
      %p41 = por %p39, %p40
      %p42 = scmp.ne.s32.totalorder %s31, %s32
      %p43 = scmp.eq.s32.totalorder %s23, 0
      %p44 = por %p42, %p43
      %p45 = scmp.ne.s32.totalorder %s31, %s32
      %p46 = scmp.eq.s32.totalorder %s24, 1
      %p47 = por %p45, %p46
      %p49 = scmp.ne.s32.totalorder %s32, %s48
      %p50 = scmp.eq.s32.totalorder %s24, 0
      %p51 = por %p49, %p50
      %s53 = sadd.s32 %s52, 1
      %p56 = scmp.eq.s32.totalorder %s18, 1
      %p57 = scmp.ne.s32.totalorder %s52, %s54
      %p58 = scmp.eq.s32.totalorder %s18, 0
      %p59 = por %p57, %p58
      %p60 = scmp.ne.s32.totalorder %s52, %s54
      %p61 = scmp.eq.s32.totalorder %s23, 1
      %p62 = por %p60, %p61
      %p63 = scmp.ne.s32.totalorder %s54, %s55
      %p64 = scmp.eq.s32.totalorder %s23, 0
      %p65 = por %p63, %p64
      %p66 = scmp.ne.s32.totalorder %s54, %s55
      %p67 = scmp.eq.s32.totalorder %s24, 1
      %p68 = por %p66, %p67
      %p70 = scmp.ne.s32.totalorder %s55, %s69
      %p71 = scmp.eq.s32.totalorder %s24, 0
      %p72 = por %p70, %p71
      %s74 = sadd.s32 %s73, 1
      %p77 = scmp.eq.s32.totalorder %s18, 1
      %p78 = scmp.ne.s32.totalorder %s73, %s75
      %p79 = scmp.eq.s32.totalorder %s18, 0
      %p80 = por %p78, %p79
      %p81 = scmp.ne.s32.totalorder %s73, %s75
      %p82 = scmp.eq.s32.totalorder %s23, 1
      %p83 = por %p81, %p82
      %p84 = scmp.ne.s32.totalorder %s75, %s76
      %p85 = scmp.eq.s32.totalorder %s23, 0
      %p86 = por %p84, %p85
      %p87 = scmp.ne.s32.totalorder %s75, %s76
      %p88 = scmp.eq.s32.totalorder %s24, 1
      %p89 = por %p87, %p88
      %p91 = scmp.ne.s32.totalorder %s76, %s90
      %p92 = scmp.eq.s32.totalorder %s24, 0
      %p93 = por %p91, %p92
      %s95 = sadd.s32 %s94, 1
      %p98 = scmp.eq.s32.totalorder %s18, 1
      %p99 = scmp.ne.s32.totalorder %s94, %s96
      %p100 = scmp.eq.s32.totalorder %s18, 0
      %p101 = por %p99, %p100
      %p102 = scmp.ne.s32.totalorder %s94, %s96
      %p103 = scmp.eq.s32.totalorder %s23, 1
      %p104 = por %p102, %p103
      %p105 = scmp.ne.s32.totalorder %s96, %s97
      %p106 = scmp.eq.s32.totalorder %s23, 0
      %p107 = por %p105, %p106
      %p108 = scmp.ne.s32.totalorder %s96, %s97
      %p109 = scmp.eq.s32.totalorder %s24, 1
      %p110 = por %p108, %p109
      %p112 = scmp.ne.s32.totalorder %s97, %s111
      %p113 = scmp.eq.s32.totalorder %s24, 0
      %p114 = por %p112, %p113
      %s116 = sadd.s32 %s115, 1
      %p119 = scmp.eq.s32.totalorder %s18, 1
      %p120 = scmp.ne.s32.totalorder %s115, %s117
      %p121 = scmp.eq.s32.totalorder %s18, 0
      %p122 = por %p120, %p121
      %p123 = scmp.ne.s32.totalorder %s115, %s117
      %p124 = scmp.eq.s32.totalorder %s23, 1
      %p125 = por %p123, %p124
      %p126 = scmp.ne.s32.totalorder %s117, %s118
      %p127 = scmp.eq.s32.totalorder %s23, 0
      %p128 = por %p126, %p127
      %p129 = scmp.ne.s32.totalorder %s117, %s118
      %p130 = scmp.eq.s32.totalorder %s24, 1
      %p131 = por %p129, %p130
      %p133 = scmp.ne.s32.totalorder %s118, %s132
      %p134 = scmp.eq.s32.totalorder %s24, 0
      %p135 = por %p133, %p134
      %s137 = sadd.s32 %s136, 1
      %p140 = scmp.eq.s32.totalorder %s18, 1
      %p141 = scmp.ne.s32.totalorder %s136, %s138
      %p142 = scmp.eq.s32.totalorder %s18, 0
      %p143 = por %p141, %p142
      %p144 = scmp.ne.s32.totalorder %s136, %s138
      %p145 = scmp.eq.s32.totalorder %s23, 1
      %p146 = por %p144, %p145
      %p147 = scmp.ne.s32.totalorder %s138, %s139
      %p148 = scmp.eq.s32.totalorder %s23, 0
      %p149 = por %p147, %p148
      %p150 = scmp.ne.s32.totalorder %s138, %s139
      %p151 = scmp.eq.s32.totalorder %s24, 1
      %p152 = por %p150, %p151
      %p154 = scmp.ne.s32.totalorder %s139, %s153
      %p155 = scmp.eq.s32.totalorder %s24, 0
      %p156 = por %p154, %p155
      %s158 = sadd.s32 %s157, 1
      %p161 = scmp.eq.s32.totalorder %s18, 1
      %p162 = scmp.ne.s32.totalorder %s157, %s159
      %p163 = scmp.eq.s32.totalorder %s18, 0
      %p164 = por %p162, %p163
      %p165 = scmp.ne.s32.totalorder %s157, %s159
      %p166 = scmp.eq.s32.totalorder %s23, 1
      %p167 = por %p165, %p166
      %p168 = scmp.ne.s32.totalorder %s159, %s160
      %p169 = scmp.eq.s32.totalorder %s23, 0
      %p170 = por %p168, %p169
      %p171 = scmp.ne.s32.totalorder %s159, %s160
      %p172 = scmp.eq.s32.totalorder %s24, 1
      %p173 = por %p171, %p172
      %p175 = scmp.ne.s32.totalorder %s160, %s174
      %p176 = scmp.eq.s32.totalorder %s24, 0
      %p177 = por %p175, %p176
      %s179 = sadd.s32 %s178, 1
      %p182 = scmp.eq.s32.totalorder %s18, 1
      %p183 = scmp.ne.s32.totalorder %s178, %s180
      %p184 = scmp.eq.s32.totalorder %s18, 0
      %p185 = por %p183, %p184
      %p186 = scmp.ne.s32.totalorder %s178, %s180
      %p187 = scmp.eq.s32.totalorder %s23, 1
      %p188 = por %p186, %p187
      %p189 = scmp.ne.s32.totalorder %s180, %s181
      %p190 = scmp.eq.s32.totalorder %s23, 0
      %p191 = por %p189, %p190
      %p192 = scmp.ne.s32.totalorder %s180, %s181
      %p193 = scmp.eq.s32.totalorder %s24, 1
      %p194 = por %p192, %p193
      %p196 = scmp.ne.s32.totalorder %s181, %s195
      %p197 = scmp.eq.s32.totalorder %s24, 0
      %p198 = por %p196, %p197
      %s200 = sadd.s32 %s199, 1
      %p203 = scmp.eq.s32.totalorder %s18, 1
      %p204 = scmp.ne.s32.totalorder %s199, %s201
      %p205 = scmp.eq.s32.totalorder %s18, 0
      %p206 = por %p204, %p205
      %p207 = scmp.ne.s32.totalorder %s199, %s201
      %p208 = scmp.eq.s32.totalorder %s23, 1
      %p209 = por %p207, %p208
      %p210 = scmp.ne.s32.totalorder %s201, %s202
      %p211 = scmp.eq.s32.totalorder %s23, 0
      %p212 = por %p210, %p211
      %p213 = scmp.ne.s32.totalorder %s201, %s202
      %p214 = scmp.eq.s32.totalorder %s24, 1
      %p215 = por %p213, %p214
      %p217 = scmp.ne.s32.totalorder %s202, %s216
      %p218 = scmp.eq.s32.totalorder %s24, 0
      %p219 = por %p217, %p218
      %s220 = ssub.s32 %s18, %s25
      %p221 = scmp.eq.s32.totalorder %s220, 0
      %s223 = sadd.s32 %s222, 1
      %s224 = scalar_select %p221, %s222, %s223
      %p227 = pneg %p221
      %p228 = scmp.eq.s32.totalorder %s18, 1
      %p229 = por %p227, %p228
      %p230 = scmp.ne.s32.totalorder %s222, %s225
      %p231 = scmp.eq.s32.totalorder %s18, 0
      %p232 = por %p230, %p231
      %p233 = scmp.ne.s32.totalorder %s222, %s225
      %p234 = scmp.eq.s32.totalorder %s23, 1
      %p235 = por %p233, %p234
      %p236 = scmp.ne.s32.totalorder %s225, %s226
      %p237 = scmp.eq.s32.totalorder %s23, 0
      %p238 = por %p236, %p237
      %p239 = scmp.ne.s32.totalorder %s225, %s226
      %p240 = scmp.eq.s32.totalorder %s24, 1
      %p241 = por %p239, %p240
      %p243 = scmp.ne.s32.totalorder %s226, %s242
      %p244 = scmp.eq.s32.totalorder %s24, 0
      %p245 = por %p243, %p244
      %p246 = scmp.le.s32.totalorder 1, %s18
      %p247 = scmp.lt.s32.totalorder %s18, 3
      %p248 = pnand %p246, %p247
      %p249 = pneg %p248
      // Predicated region
      $region9: #{tpu_custom_call.1} parent=5 // pred_check
        _
      $region10: #{tpu_custom_call.1} parent=5 // pred_check_branch
        %251 = sbr.rel (%p248) target = $region12
      $region11: #{tpu_custom_call.1} parent=5 // pred_region
        %s252 = ssub.s32 %s18, 1
        // Predicated region
        $region13: #{tpu_custom_call.1} parent=11 // pred_check
          %p253 = pneg %p65
        $region14: #{tpu_custom_call.1} parent=11 // pred_check_branch
          %255 = sbr.rel (%p253) target = $region16
        $region15: #{tpu_custom_call.1} parent=11 // pred_region
          _
        $region16: #{tpu_custom_call.1} parent=11 // pred_fallthru
          _
        // Predicated region
        $region17: #{tpu_custom_call.1} parent=11 // pred_check
          %p256 = pneg %p86
        $region18: #{tpu_custom_call.1} parent=11 // pred_check_branch
          %258 = sbr.rel (%p256) target = $region20
        $region19: #{tpu_custom_call.1} parent=11 // pred_region
          _
        $region20: #{tpu_custom_call.1} parent=11 // pred_fallthru
          _
        // Predicated region
        $region21: #{tpu_custom_call.1} parent=11 // pred_check
          %p259 = pneg %p107
        $region22: #{tpu_custom_call.1} parent=11 // pred_check_branch
          %261 = sbr.rel (%p259) target = $region24
        $region23: #{tpu_custom_call.1} parent=11 // pred_region
          _
        $region24: #{tpu_custom_call.1} parent=11 // pred_fallthru
          _
        // Predicated region
        $region25: #{tpu_custom_call.1} parent=11 // pred_check
          %p262 = pneg %p128
        $region26: #{tpu_custom_call.1} parent=11 // pred_check_branch
          %264 = sbr.rel (%p262) target = $region28
        $region27: #{tpu_custom_call.1} parent=11 // pred_region
          _
        $region28: #{tpu_custom_call.1} parent=11 // pred_fallthru
          _
        // Predicated region
        $region29: #{tpu_custom_call.1} parent=11 // pred_check
          %p265 = pneg %p149
        $region30: #{tpu_custom_call.1} parent=11 // pred_check_branch
          %267 = sbr.rel (%p265) target = $region32
        $region31: #{tpu_custom_call.1} parent=11 // pred_region
          _
        $region32: #{tpu_custom_call.1} parent=11 // pred_fallthru
          _
        // Predicated region
        $region33: #{tpu_custom_call.1} parent=11 // pred_check
          %p268 = pneg %p170
        $region34: #{tpu_custom_call.1} parent=11 // pred_check_branch
          %270 = sbr.rel (%p268) target = $region36
        $region35: #{tpu_custom_call.1} parent=11 // pred_region
          _
        $region36: #{tpu_custom_call.1} parent=11 // pred_fallthru
          _
        // Predicated region
        $region37: #{tpu_custom_call.1} parent=11 // pred_check
          %p271 = pneg %p191
        $region38: #{tpu_custom_call.1} parent=11 // pred_check_branch
          %273 = sbr.rel (%p271) target = $region40
        $region39: #{tpu_custom_call.1} parent=11 // pred_region
          _
        $region40: #{tpu_custom_call.1} parent=11 // pred_fallthru
          _
        // Predicated region
        $region41: #{tpu_custom_call.1} parent=11 // pred_check
          %p274 = pneg %p212
        $region42: #{tpu_custom_call.1} parent=11 // pred_check_branch
          %276 = sbr.rel (%p274) target = $region44
        $region43: #{tpu_custom_call.1} parent=11 // pred_region
          _
        $region44: #{tpu_custom_call.1} parent=11 // pred_fallthru
          _
      $region12: #{tpu_custom_call.1} parent=5 // pred_fallthru
        _
      %p277 = scmp.lt.s32.totalorder %s18, 2
      // Predicated region
      $region45: #{tpu_custom_call.1} parent=5 // pred_check
        %p278 = pneg %p277
      $region46: #{tpu_custom_call.1} parent=5 // pred_check_branch
        %280 = sbr.rel (%p278) target = $region48
      $region47: #{tpu_custom_call.1} parent=5 // pred_region
        // Predicated region
        $region49: #{tpu_custom_call.1} parent=47 // pred_check
          %p281 = pneg %p38
        $region50: #{tpu_custom_call.1} parent=47 // pred_check_branch
          %283 = sbr.rel (%p281) target = $region52
        $region51: #{tpu_custom_call.1} parent=47 // pred_region
          %s284 = smul.u32 2, %s18
          %p285 = scmp.lt.s32.totalorder %s284, 3
          %s286 = scalar_select %p285, %s284, 3
          %s287 = smul.addr %s286, 8
          %s288 = scalar_lea.vmem %s0, %s287
          %s289 = smul.u32 2, %s18
        $region52: #{tpu_custom_call.1} parent=47 // pred_fallthru
          _
      $region48: #{tpu_custom_call.1} parent=5 // pred_fallthru
        _
      %p290 = scmp.le.s32.totalorder 1, %s18
      %p291 = scmp.lt.s32.totalorder %s18, 3
      %p292 = pnand %p290, %p291
      %p293 = pneg %p292
      // Predicated region
      $region53: #{tpu_custom_call.1} parent=5 // pred_check
        _
      $region54: #{tpu_custom_call.1} parent=5 // pred_check_branch
        %295 = sbr.rel (%p292) target = $region56
      $region55: #{tpu_custom_call.1} parent=5 // pred_region
        %s296 = ssub.s32 %s18, 1
        %s297 = smul.u32 2, %s23
        %p298 = scmp.lt.s32.totalorder %s297, 3
        %s299 = scalar_select %p298, %s297, 3
        %s300 = smul.addr %s299, 8
        %s301 = scalar_lea.vmem %s0, %s300
        %p302 = pneg %p44
        %p303 = pneg %p41
        %p304 = pneg %p65
        %p305 = pneg %p62
        %p306 = pneg %p86
        %p307 = pneg %p83
        %p308 = pneg %p107
        %p309 = pneg %p104
        %p310 = pneg %p128
        %p311 = pneg %p125
        %p312 = pneg %p149
        %p313 = pneg %p146
        %p314 = pneg %p170
        %p315 = pneg %p167
        %p316 = pneg %p191
        %p317 = pneg %p188
        %p318 = pneg %p212
        %p319 = pneg %p209
        %p320 = pneg %p238
        %p321 = pneg %p235
        %s322 = sand.u32 %s225, 1
        %s323 = scalar_lea.sflag [#allocation3], %s322
        %s324 = sand.u32 %s225, 1
        %s325 = smul.addr %s324, 16
        %s326 = scalar_lea.vmem [#allocation2], %s325
        %s327 = smul.u32 2, %s23
        %p328 = scmp.lt.s32.totalorder %s327, 3
        %s329 = scalar_select %p328, %s327, 3
        %s330 = smul.addr %s329, 8
        %s331 = scalar_lea.vmem %s0, %s330
        %s332 = smul.u32 2, %s23
        %s333 = smul.u32 2, %s23
        %v334 = vlaneseq
        %v335 = vand.u32 %v334, 127
        %v336 = vadd.s32 %v335, 128
        %vm337 = vcmp.lt.s32.totalorder %v335, 0
        %v338 = vsub.s32 0, %v335
        %v339 = vsel %vm337, %v338, %v335
        %v340 = vshrl.u32 %v339, 8
        %v341 = vand.u32 %v339, 255
        %v342 = vsub.s32 0, %v341
        %v343 = vsel %vm337, %v342, %v341
        %vm344 = vcmp.lt.s32.totalorder %v336, 0
        %v345 = vsub.s32 0, %v336
        %v346 = vsel %vm344, %v345, %v336
        %v347 = vshrl.u32 %v346, 8
        %v348 = vand.u32 %v346, 255
        %v349 = vsub.s32 0, %v348
        %v350 = vsel %vm344, %v349, %v348
        %vm351 = vcmp.ne.s32.totalorder %v343, 0
        %vm352 = vcmp.ne.s32.totalorder %v350, 0
        %vm353 = vcmp.lt.s32.totalorder %v343, 0
        %vm354 = vcmp.lt.s32.totalorder %v350, 0
        %vm355 = vmand %vm353, %vm351
        %vm356 = vmand %vm354, %vm352
        %v357 = vadd.s32 %v343, 256
        %v358 = vadd.s32 %v350, 256
        %v359 = vsel %vm355, %v357, %v343
        %v360 = vsel %vm356, %v358, %v350
        %vm361 = vcmp.lt.s32.totalorder %v359, 0
        %v362 = vsub.s32 0, %v359
        %v363 = vsel %vm361, %v362, %v359
        %v364 = vshrl.u32 %v363, 4
        %v365 = vand.u32 %v363, 15
        %v366 = vsub.s32 0, %v365
        %v367 = vsel %vm361, %v366, %v365
        %vm368 = vcmp.lt.s32.totalorder %v360, 0
        %v369 = vsub.s32 0, %v360
        %v370 = vsel %vm368, %v369, %v360
        %v371 = vshrl.u32 %v370, 4
        %v372 = vand.u32 %v370, 15
        %v373 = vsub.s32 0, %v372
        %v374 = vsel %vm368, %v373, %v372
        %vm375 = vcmp.ne.s32.totalorder %v367, 0
        %vm376 = vcmp.ne.s32.totalorder %v374, 0
        %vm377 = vcmp.lt.s32.totalorder %v367, 0
        %vm378 = vcmp.lt.s32.totalorder %v374, 0
        %vm379 = vmand %vm377, %vm375
        %vm380 = vmand %vm378, %vm376
        %v381 = vadd.s32 %v367, 16
        %v382 = vadd.s32 %v374, 16
        %v383 = vsel %vm379, %v381, %v367
        %v384 = vsel %vm380, %v382, %v374
        %vm385 = vcmp.lt.s32.totalorder %v359, 16
        %vm386 = vcmp.lt.s32.totalorder %v360, 16
        %vm387 = vcmp.ge.s32.totalorder %v359, 240
        %vm388 = vcmp.ge.s32.totalorder %v360, 240
        %vm389 = vcmp.eq.s32.totalorder %v383, 0
        %vm390 = vcmp.eq.s32.totalorder %v384, 0
        %vm391 = vcmp.eq.s32.totalorder %v383, 15
        %vm392 = vcmp.eq.s32.totalorder %v384, 15
        %v393 = vld [vmem:[%s331] sm:$0xff]
        %v394 = vld [vmem:[%s331 + $0x8] sm:$0xff]
        %v395 = vld [vmem:[%s1] sm:$0xff]
        %v396 = vld [vmem:[%s2] sm:$0xff]
        %398 = vset.pattern.permute.xlu0 0
        %399 = vperm.xlu0 %398, %v396
        %v400 = vpop.permute.xlu0 %399
        %vm402 = vcmask 64512
        %v404 = vsel %vm402, %v395, 0
        %406 = vmatpush.msra.mxu0 0.0
        %407 = vmatpush.msra.mxu0 0.0
        %408 = vmatpush.msra.mxu0 0.0
        %409 = vmatpush.msra.mxu0 0.0
        %410 = vmatpush.msra.mxu0 0.0
        %411 = vmatpush.msra.mxu0 0.0
        %412 = vmatpush.msra.mxu0 0.0
        %413 = vmatpush.msra.mxu0 0.0
        %414 = vmatpush.msra.mxu0 0.0
        %415 = vmatpush.msra.mxu0 0.0
        %416 = vmatpush.msra.mxu0 0.0
        %417 = vmatpush.msra.mxu0 0.0
        %418 = vmatpush.msra.mxu0 0.0
        %419 = vmatpush.msra.mxu0 0.0
        %420 = vmatpush.msra.mxu0 0.0
        %v421 = vand.u32 %v393, 4294901760
        %422 = vmatpush.msra.mxu0 %v421
        %v423 = vand.u32 %v404, 4294901760
        %v424 = vsub.f32 %v404, %v423
        %v425 = vand.u32 %v424, 4294901760
        %v426 = vsub.f32 %v424, %v425
        %v427 = vand.u32 %v426, 4294901760
        %428 = vmatmul.f32.gmra.mxu0 %v427
        %v429 = vpop.f32.mrf.mxu0
        %v430 = vadd.f32 %v400, %v429
        %431 = vdwg.mxu0
        %432 = vmatpush.msra.mxu0 0.0
        %433 = vmatpush.msra.mxu0 0.0
        %434 = vmatpush.msra.mxu0 0.0
        %435 = vmatpush.msra.mxu0 0.0
        %436 = vmatpush.msra.mxu0 0.0
        %437 = vmatpush.msra.mxu0 0.0
        %438 = vmatpush.msra.mxu0 0.0
        %439 = vmatpush.msra.mxu0 0.0
        %440 = vmatpush.msra.mxu0 0.0
        %441 = vmatpush.msra.mxu0 0.0
        %442 = vmatpush.msra.mxu0 0.0
        %443 = vmatpush.msra.mxu0 0.0
        %444 = vmatpush.msra.mxu0 0.0
        %445 = vmatpush.msra.mxu0 0.0
        %446 = vmatpush.msra.mxu0 0.0
        %v447 = vand.u32 %v393, 4294901760
        %v448 = vsub.f32 %v393, %v447
        %v449 = vand.u32 %v448, 4294901760
        %v450 = vsub.f32 %v448, %v449
        %v451 = vand.u32 %v450, 4294901760
        %452 = vmatpush.msra.mxu0 %v451
        %v453 = vand.u32 %v404, 4294901760
        %454 = vmatmul.f32.gmra.mxu0 %v453
        %v455 = vpop.f32.mrf.mxu0
        %v456 = vadd.f32 %v430, %v455
        %457 = vdwg.mxu0
        %458 = vmatpush.msra.mxu0 0.0
        %459 = vmatpush.msra.mxu0 0.0
        %460 = vmatpush.msra.mxu0 0.0
        %461 = vmatpush.msra.mxu0 0.0
        %462 = vmatpush.msra.mxu0 0.0
        %463 = vmatpush.msra.mxu0 0.0
        %464 = vmatpush.msra.mxu0 0.0
        %465 = vmatpush.msra.mxu0 0.0
        %466 = vmatpush.msra.mxu0 0.0
        %467 = vmatpush.msra.mxu0 0.0
        %468 = vmatpush.msra.mxu0 0.0
        %469 = vmatpush.msra.mxu0 0.0
        %470 = vmatpush.msra.mxu0 0.0
        %471 = vmatpush.msra.mxu0 0.0
        %472 = vmatpush.msra.mxu0 0.0
        %v473 = vand.u32 %v393, 4294901760
        %v474 = vsub.f32 %v393, %v473
        %475 = vmatpush.msra.mxu0 %v474
        %v476 = vand.u32 %v404, 4294901760
        %v477 = vsub.f32 %v404, %v476
        %478 = vmatmul.f32.gmra.mxu0 %v477
        %v479 = vpop.f32.mrf.mxu0
        %v480 = vadd.f32 %v456, %v479
        %481 = vdwg.mxu0
        %482 = vmatpush.msra.mxu0 0.0
        %483 = vmatpush.msra.mxu0 0.0
        %484 = vmatpush.msra.mxu0 0.0
        %485 = vmatpush.msra.mxu0 0.0
        %486 = vmatpush.msra.mxu0 0.0
        %487 = vmatpush.msra.mxu0 0.0
        %488 = vmatpush.msra.mxu0 0.0
        %489 = vmatpush.msra.mxu0 0.0
        %490 = vmatpush.msra.mxu0 0.0
        %491 = vmatpush.msra.mxu0 0.0
        %492 = vmatpush.msra.mxu0 0.0
        %493 = vmatpush.msra.mxu0 0.0
        %494 = vmatpush.msra.mxu0 0.0
        %495 = vmatpush.msra.mxu0 0.0
        %496 = vmatpush.msra.mxu0 0.0
        %v497 = vand.u32 %v393, 4294901760
        %498 = vmatpush.msra.mxu0 %v497
        %v499 = vand.u32 %v404, 4294901760
        %v500 = vsub.f32 %v404, %v499
        %v501 = vand.u32 %v500, 4294901760
        %502 = vmatmul.f32.gmra.mxu0 %v501
        %v503 = vpop.f32.mrf.mxu0
        %v504 = vadd.f32 %v480, %v503
        %505 = vdwg.mxu0
        %506 = vmatpush.msra.mxu0 0.0
        %507 = vmatpush.msra.mxu0 0.0
        %508 = vmatpush.msra.mxu0 0.0
        %509 = vmatpush.msra.mxu0 0.0
        %510 = vmatpush.msra.mxu0 0.0
        %511 = vmatpush.msra.mxu0 0.0
        %512 = vmatpush.msra.mxu0 0.0
        %513 = vmatpush.msra.mxu0 0.0
        %514 = vmatpush.msra.mxu0 0.0
        %515 = vmatpush.msra.mxu0 0.0
        %516 = vmatpush.msra.mxu0 0.0
        %517 = vmatpush.msra.mxu0 0.0
        %518 = vmatpush.msra.mxu0 0.0
        %519 = vmatpush.msra.mxu0 0.0
        %520 = vmatpush.msra.mxu0 0.0
        %v521 = vand.u32 %v393, 4294901760
        %v522 = vsub.f32 %v393, %v521
        %v523 = vand.u32 %v522, 4294901760
        %524 = vmatpush.msra.mxu0 %v523
        %v525 = vand.u32 %v404, 4294901760
        %526 = vmatmul.f32.gmra.mxu0 %v525
        %v527 = vpop.f32.mrf.mxu0
        %v528 = vadd.f32 %v504, %v527
        %529 = vdwg.mxu0
        %530 = vmatpush.msra.mxu0 0.0
        %531 = vmatpush.msra.mxu0 0.0
        %532 = vmatpush.msra.mxu0 0.0
        %533 = vmatpush.msra.mxu0 0.0
        %534 = vmatpush.msra.mxu0 0.0
        %535 = vmatpush.msra.mxu0 0.0
        %536 = vmatpush.msra.mxu0 0.0
        %537 = vmatpush.msra.mxu0 0.0
        %538 = vmatpush.msra.mxu0 0.0
        %539 = vmatpush.msra.mxu0 0.0
        %540 = vmatpush.msra.mxu0 0.0
        %541 = vmatpush.msra.mxu0 0.0
        %542 = vmatpush.msra.mxu0 0.0
        %543 = vmatpush.msra.mxu0 0.0
        %544 = vmatpush.msra.mxu0 0.0
        %v545 = vand.u32 %v393, 4294901760
        %546 = vmatpush.msra.mxu0 %v545
        %v547 = vand.u32 %v404, 4294901760
        %548 = vmatmul.f32.gmra.mxu0 %v547
        %v549 = vpop.f32.mrf.mxu0
        %v550 = vadd.f32 %v528, %v549
        %551 = vdwg.mxu0
        %552 = vmatpush.msra.mxu0 0.0
        %553 = vmatpush.msra.mxu0 0.0
        %554 = vmatpush.msra.mxu0 0.0
        %555 = vmatpush.msra.mxu0 0.0
        %556 = vmatpush.msra.mxu0 0.0
        %557 = vmatpush.msra.mxu0 0.0
        %558 = vmatpush.msra.mxu0 0.0
        %559 = vmatpush.msra.mxu0 0.0
        %560 = vmatpush.msra.mxu0 0.0
        %561 = vmatpush.msra.mxu0 0.0
        %562 = vmatpush.msra.mxu0 0.0
        %563 = vmatpush.msra.mxu0 0.0
        %564 = vmatpush.msra.mxu0 0.0
        %565 = vmatpush.msra.mxu0 0.0
        %566 = vmatpush.msra.mxu0 0.0
        %v567 = vand.u32 %v394, 4294901760
        %568 = vmatpush.msra.mxu0 %v567
        %v569 = vand.u32 %v404, 4294901760
        %v570 = vsub.f32 %v404, %v569
        %v571 = vand.u32 %v570, 4294901760
        %v572 = vsub.f32 %v570, %v571
        %v573 = vand.u32 %v572, 4294901760
        %574 = vmatmul.f32.gmra.mxu0 %v573
        %v575 = vpop.f32.mrf.mxu0
        %v576 = vadd.f32 %v400, %v575
        %577 = vdwg.mxu0
        %578 = vmatpush.msra.mxu0 0.0
        %579 = vmatpush.msra.mxu0 0.0
        %580 = vmatpush.msra.mxu0 0.0
        %581 = vmatpush.msra.mxu0 0.0
        %582 = vmatpush.msra.mxu0 0.0
        %583 = vmatpush.msra.mxu0 0.0
        %584 = vmatpush.msra.mxu0 0.0
        %585 = vmatpush.msra.mxu0 0.0
        %586 = vmatpush.msra.mxu0 0.0
        %587 = vmatpush.msra.mxu0 0.0
        %588 = vmatpush.msra.mxu0 0.0
        %589 = vmatpush.msra.mxu0 0.0
        %590 = vmatpush.msra.mxu0 0.0
        %591 = vmatpush.msra.mxu0 0.0
        %592 = vmatpush.msra.mxu0 0.0
        %v593 = vand.u32 %v394, 4294901760
        %v594 = vsub.f32 %v394, %v593
        %v595 = vand.u32 %v594, 4294901760
        %v596 = vsub.f32 %v594, %v595
        %v597 = vand.u32 %v596, 4294901760
        %598 = vmatpush.msra.mxu0 %v597
        %v599 = vand.u32 %v404, 4294901760
        %600 = vmatmul.f32.gmra.mxu0 %v599
        %v601 = vpop.f32.mrf.mxu0
        %v602 = vadd.f32 %v576, %v601
        %603 = vdwg.mxu0
        %604 = vmatpush.msra.mxu0 0.0
        %605 = vmatpush.msra.mxu0 0.0
        %606 = vmatpush.msra.mxu0 0.0
        %607 = vmatpush.msra.mxu0 0.0
        %608 = vmatpush.msra.mxu0 0.0
        %609 = vmatpush.msra.mxu0 0.0
        %610 = vmatpush.msra.mxu0 0.0
        %611 = vmatpush.msra.mxu0 0.0
        %612 = vmatpush.msra.mxu0 0.0
        %613 = vmatpush.msra.mxu0 0.0
        %614 = vmatpush.msra.mxu0 0.0
        %615 = vmatpush.msra.mxu0 0.0
        %616 = vmatpush.msra.mxu0 0.0
        %617 = vmatpush.msra.mxu0 0.0
        %618 = vmatpush.msra.mxu0 0.0
        %v619 = vand.u32 %v394, 4294901760
        %v620 = vsub.f32 %v394, %v619
        %621 = vmatpush.msra.mxu0 %v620
        %v622 = vand.u32 %v404, 4294901760
        %v623 = vsub.f32 %v404, %v622
        %624 = vmatmul.f32.gmra.mxu0 %v623
        %v625 = vpop.f32.mrf.mxu0
        %v626 = vadd.f32 %v602, %v625
        %627 = vdwg.mxu0
        %628 = vmatpush.msra.mxu0 0.0
        %629 = vmatpush.msra.mxu0 0.0
        %630 = vmatpush.msra.mxu0 0.0
        %631 = vmatpush.msra.mxu0 0.0
        %632 = vmatpush.msra.mxu0 0.0
        %633 = vmatpush.msra.mxu0 0.0
        %634 = vmatpush.msra.mxu0 0.0
        %635 = vmatpush.msra.mxu0 0.0
        %636 = vmatpush.msra.mxu0 0.0
        %637 = vmatpush.msra.mxu0 0.0
        %638 = vmatpush.msra.mxu0 0.0
        %639 = vmatpush.msra.mxu0 0.0
        %640 = vmatpush.msra.mxu0 0.0
        %641 = vmatpush.msra.mxu0 0.0
        %642 = vmatpush.msra.mxu0 0.0
        %v643 = vand.u32 %v394, 4294901760
        %644 = vmatpush.msra.mxu0 %v643
        %v645 = vand.u32 %v404, 4294901760
        %v646 = vsub.f32 %v404, %v645
        %v647 = vand.u32 %v646, 4294901760
        %648 = vmatmul.f32.gmra.mxu0 %v647
        %v649 = vpop.f32.mrf.mxu0
        %v650 = vadd.f32 %v626, %v649
        %651 = vdwg.mxu0
        %652 = vmatpush.msra.mxu0 0.0
        %653 = vmatpush.msra.mxu0 0.0
        %654 = vmatpush.msra.mxu0 0.0
        %655 = vmatpush.msra.mxu0 0.0
        %656 = vmatpush.msra.mxu0 0.0
        %657 = vmatpush.msra.mxu0 0.0
        %658 = vmatpush.msra.mxu0 0.0
        %659 = vmatpush.msra.mxu0 0.0
        %660 = vmatpush.msra.mxu0 0.0
        %661 = vmatpush.msra.mxu0 0.0
        %662 = vmatpush.msra.mxu0 0.0
        %663 = vmatpush.msra.mxu0 0.0
        %664 = vmatpush.msra.mxu0 0.0
        %665 = vmatpush.msra.mxu0 0.0
        %666 = vmatpush.msra.mxu0 0.0
        %v667 = vand.u32 %v394, 4294901760
        %v668 = vsub.f32 %v394, %v667
        %v669 = vand.u32 %v668, 4294901760
        %670 = vmatpush.msra.mxu0 %v669
        %v671 = vand.u32 %v404, 4294901760
        %672 = vmatmul.f32.gmra.mxu0 %v671
        %v673 = vpop.f32.mrf.mxu0
        %v674 = vadd.f32 %v650, %v673
        %675 = vdwg.mxu0
        %676 = vmatpush.msra.mxu0 0.0
        %677 = vmatpush.msra.mxu0 0.0
        %678 = vmatpush.msra.mxu0 0.0
        %679 = vmatpush.msra.mxu0 0.0
        %680 = vmatpush.msra.mxu0 0.0
        %681 = vmatpush.msra.mxu0 0.0
        %682 = vmatpush.msra.mxu0 0.0
        %683 = vmatpush.msra.mxu0 0.0
        %684 = vmatpush.msra.mxu0 0.0
        %685 = vmatpush.msra.mxu0 0.0
        %686 = vmatpush.msra.mxu0 0.0
        %687 = vmatpush.msra.mxu0 0.0
        %688 = vmatpush.msra.mxu0 0.0
        %689 = vmatpush.msra.mxu0 0.0
        %690 = vmatpush.msra.mxu0 0.0
        %v691 = vand.u32 %v394, 4294901760
        %692 = vmatpush.msra.mxu0 %v691
        %v693 = vand.u32 %v404, 4294901760
        %694 = vmatmul.f32.gmra.mxu0 %v693
        %v695 = vpop.f32.mrf.mxu0
        %v696 = vadd.f32 %v674, %v695
        %697 = vdwg.mxu0
        %v698 = vld [vmem:[%s3] sm:$0xff]
        %vm699 = vcmask 31744
        %v701 = vsel %vm699, %v698, 0
        %vm703 = vcmask 1043456
        %v705 = vsel %vm703, %v550, 0
        %v708 = vsel %vm703, %v696, 0
        %710 = vmatpush.msra.mxu0 0.0
        %711 = vmatpush.msra.mxu0 0.0
        %712 = vmatpush.msra.mxu0 0.0
        %713 = vmatpush.msra.mxu0 0.0
        %714 = vmatpush.msra.mxu0 0.0
        %715 = vmatpush.msra.mxu0 0.0
        %716 = vmatpush.msra.mxu0 0.0
        %717 = vmatpush.msra.mxu0 0.0
        %718 = vmatpush.msra.mxu0 0.0
        %719 = vmatpush.msra.mxu0 0.0
        %720 = vmatpush.msra.mxu0 0.0
        %721 = vmatpush.msra.mxu0 0.0
        %722 = vmatpush.msra.mxu0 0.0
        %723 = vmatpush.msra.mxu0 0.0
        %724 = vmatpush.msra.mxu0 0.0
        %v725 = vand.u32 %v705, 4294901760
        %726 = vmatpush.msra.mxu0 %v725
        %v727 = vand.u32 %v701, 4294901760
        %v728 = vsub.f32 %v701, %v727
        %v729 = vand.u32 %v728, 4294901760
        %v730 = vsub.f32 %v728, %v729
        %v731 = vand.u32 %v730, 4294901760
        %732 = vmatmul.f32.gmra.mxu0 %v731
        %v733 = vpop.f32.mrf.mxu0
        %v734 = vadd.f32 0.0, %v733
        %735 = vdwg.mxu0
        %736 = vmatpush.msra.mxu0 0.0
        %737 = vmatpush.msra.mxu0 0.0
        %738 = vmatpush.msra.mxu0 0.0
        %739 = vmatpush.msra.mxu0 0.0
        %740 = vmatpush.msra.mxu0 0.0
        %741 = vmatpush.msra.mxu0 0.0
        %742 = vmatpush.msra.mxu0 0.0
        %743 = vmatpush.msra.mxu0 0.0
        %744 = vmatpush.msra.mxu0 0.0
        %745 = vmatpush.msra.mxu0 0.0
        %746 = vmatpush.msra.mxu0 0.0
        %747 = vmatpush.msra.mxu0 0.0
        %748 = vmatpush.msra.mxu0 0.0
        %749 = vmatpush.msra.mxu0 0.0
        %750 = vmatpush.msra.mxu0 0.0
        %v751 = vand.u32 %v705, 4294901760
        %v752 = vsub.f32 %v705, %v751
        %v753 = vand.u32 %v752, 4294901760
        %v754 = vsub.f32 %v752, %v753
        %v755 = vand.u32 %v754, 4294901760
        %756 = vmatpush.msra.mxu0 %v755
        %v757 = vand.u32 %v701, 4294901760
        %758 = vmatmul.f32.gmra.mxu0 %v757
        %v759 = vpop.f32.mrf.mxu0
        %v760 = vadd.f32 %v734, %v759
        %761 = vdwg.mxu0
        %762 = vmatpush.msra.mxu0 0.0
        %763 = vmatpush.msra.mxu0 0.0
        %764 = vmatpush.msra.mxu0 0.0
        %765 = vmatpush.msra.mxu0 0.0
        %766 = vmatpush.msra.mxu0 0.0
        %767 = vmatpush.msra.mxu0 0.0
        %768 = vmatpush.msra.mxu0 0.0
        %769 = vmatpush.msra.mxu0 0.0
        %770 = vmatpush.msra.mxu0 0.0
        %771 = vmatpush.msra.mxu0 0.0
        %772 = vmatpush.msra.mxu0 0.0
        %773 = vmatpush.msra.mxu0 0.0
        %774 = vmatpush.msra.mxu0 0.0
        %775 = vmatpush.msra.mxu0 0.0
        %776 = vmatpush.msra.mxu0 0.0
        %v777 = vand.u32 %v705, 4294901760
        %v778 = vsub.f32 %v705, %v777
        %779 = vmatpush.msra.mxu0 %v778
        %v780 = vand.u32 %v701, 4294901760
        %v781 = vsub.f32 %v701, %v780
        %782 = vmatmul.f32.gmra.mxu0 %v781
        %v783 = vpop.f32.mrf.mxu0
        %v784 = vadd.f32 %v760, %v783
        %785 = vdwg.mxu0
        %786 = vmatpush.msra.mxu0 0.0
        %787 = vmatpush.msra.mxu0 0.0
        %788 = vmatpush.msra.mxu0 0.0
        %789 = vmatpush.msra.mxu0 0.0
        %790 = vmatpush.msra.mxu0 0.0
        %791 = vmatpush.msra.mxu0 0.0
        %792 = vmatpush.msra.mxu0 0.0
        %793 = vmatpush.msra.mxu0 0.0
        %794 = vmatpush.msra.mxu0 0.0
        %795 = vmatpush.msra.mxu0 0.0
        %796 = vmatpush.msra.mxu0 0.0
        %797 = vmatpush.msra.mxu0 0.0
        %798 = vmatpush.msra.mxu0 0.0
        %799 = vmatpush.msra.mxu0 0.0
        %800 = vmatpush.msra.mxu0 0.0
        %v801 = vand.u32 %v705, 4294901760
        %802 = vmatpush.msra.mxu0 %v801
        %v803 = vand.u32 %v701, 4294901760
        %v804 = vsub.f32 %v701, %v803
        %v805 = vand.u32 %v804, 4294901760
        %806 = vmatmul.f32.gmra.mxu0 %v805
        %v807 = vpop.f32.mrf.mxu0
        %v808 = vadd.f32 %v784, %v807
        %809 = vdwg.mxu0
        %810 = vmatpush.msra.mxu0 0.0
        %811 = vmatpush.msra.mxu0 0.0
        %812 = vmatpush.msra.mxu0 0.0
        %813 = vmatpush.msra.mxu0 0.0
        %814 = vmatpush.msra.mxu0 0.0
        %815 = vmatpush.msra.mxu0 0.0
        %816 = vmatpush.msra.mxu0 0.0
        %817 = vmatpush.msra.mxu0 0.0
        %818 = vmatpush.msra.mxu0 0.0
        %819 = vmatpush.msra.mxu0 0.0
        %820 = vmatpush.msra.mxu0 0.0
        %821 = vmatpush.msra.mxu0 0.0
        %822 = vmatpush.msra.mxu0 0.0
        %823 = vmatpush.msra.mxu0 0.0
        %824 = vmatpush.msra.mxu0 0.0
        %v825 = vand.u32 %v705, 4294901760
        %v826 = vsub.f32 %v705, %v825
        %v827 = vand.u32 %v826, 4294901760
        %828 = vmatpush.msra.mxu0 %v827
        %v829 = vand.u32 %v701, 4294901760
        %830 = vmatmul.f32.gmra.mxu0 %v829
        %v831 = vpop.f32.mrf.mxu0
        %v832 = vadd.f32 %v808, %v831
        %833 = vdwg.mxu0
        %834 = vmatpush.msra.mxu0 0.0
        %835 = vmatpush.msra.mxu0 0.0
        %836 = vmatpush.msra.mxu0 0.0
        %837 = vmatpush.msra.mxu0 0.0
        %838 = vmatpush.msra.mxu0 0.0
        %839 = vmatpush.msra.mxu0 0.0
        %840 = vmatpush.msra.mxu0 0.0
        %841 = vmatpush.msra.mxu0 0.0
        %842 = vmatpush.msra.mxu0 0.0
        %843 = vmatpush.msra.mxu0 0.0
        %844 = vmatpush.msra.mxu0 0.0
        %845 = vmatpush.msra.mxu0 0.0
        %846 = vmatpush.msra.mxu0 0.0
        %847 = vmatpush.msra.mxu0 0.0
        %848 = vmatpush.msra.mxu0 0.0
        %v849 = vand.u32 %v705, 4294901760
        %850 = vmatpush.msra.mxu0 %v849
        %v851 = vand.u32 %v701, 4294901760
        %852 = vmatmul.f32.gmra.mxu0 %v851
        %v853 = vpop.f32.mrf.mxu0
        %v854 = vadd.f32 %v832, %v853
        %855 = vdwg.mxu0
        %856 = vmatpush.msra.mxu0 0.0
        %857 = vmatpush.msra.mxu0 0.0
        %858 = vmatpush.msra.mxu0 0.0
        %859 = vmatpush.msra.mxu0 0.0
        %860 = vmatpush.msra.mxu0 0.0
        %861 = vmatpush.msra.mxu0 0.0
        %862 = vmatpush.msra.mxu0 0.0
        %863 = vmatpush.msra.mxu0 0.0
        %864 = vmatpush.msra.mxu0 0.0
        %865 = vmatpush.msra.mxu0 0.0
        %866 = vmatpush.msra.mxu0 0.0
        %867 = vmatpush.msra.mxu0 0.0
        %868 = vmatpush.msra.mxu0 0.0
        %869 = vmatpush.msra.mxu0 0.0
        %870 = vmatpush.msra.mxu0 0.0
        %v871 = vand.u32 %v708, 4294901760
        %872 = vmatpush.msra.mxu0 %v871
        %v873 = vand.u32 %v701, 4294901760
        %v874 = vsub.f32 %v701, %v873
        %v875 = vand.u32 %v874, 4294901760
        %v876 = vsub.f32 %v874, %v875
        %v877 = vand.u32 %v876, 4294901760
        %878 = vmatmul.f32.gmra.mxu0 %v877
        %v879 = vpop.f32.mrf.mxu0
        %v880 = vadd.f32 0.0, %v879
        %881 = vdwg.mxu0
        %882 = vmatpush.msra.mxu0 0.0
        %883 = vmatpush.msra.mxu0 0.0
        %884 = vmatpush.msra.mxu0 0.0
        %885 = vmatpush.msra.mxu0 0.0
        %886 = vmatpush.msra.mxu0 0.0
        %887 = vmatpush.msra.mxu0 0.0
        %888 = vmatpush.msra.mxu0 0.0
        %889 = vmatpush.msra.mxu0 0.0
        %890 = vmatpush.msra.mxu0 0.0
        %891 = vmatpush.msra.mxu0 0.0
        %892 = vmatpush.msra.mxu0 0.0
        %893 = vmatpush.msra.mxu0 0.0
        %894 = vmatpush.msra.mxu0 0.0
        %895 = vmatpush.msra.mxu0 0.0
        %896 = vmatpush.msra.mxu0 0.0
        %v897 = vand.u32 %v708, 4294901760
        %v898 = vsub.f32 %v708, %v897
        %v899 = vand.u32 %v898, 4294901760
        %v900 = vsub.f32 %v898, %v899
        %v901 = vand.u32 %v900, 4294901760
        %902 = vmatpush.msra.mxu0 %v901
        %v903 = vand.u32 %v701, 4294901760
        %904 = vmatmul.f32.gmra.mxu0 %v903
        %v905 = vpop.f32.mrf.mxu0
        %v906 = vadd.f32 %v880, %v905
        %907 = vdwg.mxu0
        %908 = vmatpush.msra.mxu0 0.0
        %909 = vmatpush.msra.mxu0 0.0
        %910 = vmatpush.msra.mxu0 0.0
        %911 = vmatpush.msra.mxu0 0.0
        %912 = vmatpush.msra.mxu0 0.0
        %913 = vmatpush.msra.mxu0 0.0
        %914 = vmatpush.msra.mxu0 0.0
        %915 = vmatpush.msra.mxu0 0.0
        %916 = vmatpush.msra.mxu0 0.0
        %917 = vmatpush.msra.mxu0 0.0
        %918 = vmatpush.msra.mxu0 0.0
        %919 = vmatpush.msra.mxu0 0.0
        %920 = vmatpush.msra.mxu0 0.0
        %921 = vmatpush.msra.mxu0 0.0
        %922 = vmatpush.msra.mxu0 0.0
        %v923 = vand.u32 %v708, 4294901760
        %v924 = vsub.f32 %v708, %v923
        %925 = vmatpush.msra.mxu0 %v924
        %v926 = vand.u32 %v701, 4294901760
        %v927 = vsub.f32 %v701, %v926
        %928 = vmatmul.f32.gmra.mxu0 %v927
        %v929 = vpop.f32.mrf.mxu0
        %v930 = vadd.f32 %v906, %v929
        %931 = vdwg.mxu0
        %932 = vmatpush.msra.mxu0 0.0
        %933 = vmatpush.msra.mxu0 0.0
        %934 = vmatpush.msra.mxu0 0.0
        %935 = vmatpush.msra.mxu0 0.0
        %936 = vmatpush.msra.mxu0 0.0
        %937 = vmatpush.msra.mxu0 0.0
        %938 = vmatpush.msra.mxu0 0.0
        %939 = vmatpush.msra.mxu0 0.0
        %940 = vmatpush.msra.mxu0 0.0
        %941 = vmatpush.msra.mxu0 0.0
        %942 = vmatpush.msra.mxu0 0.0
        %943 = vmatpush.msra.mxu0 0.0
        %944 = vmatpush.msra.mxu0 0.0
        %945 = vmatpush.msra.mxu0 0.0
        %946 = vmatpush.msra.mxu0 0.0
        %v947 = vand.u32 %v708, 4294901760
        %948 = vmatpush.msra.mxu0 %v947
        %v949 = vand.u32 %v701, 4294901760
        %v950 = vsub.f32 %v701, %v949
        %v951 = vand.u32 %v950, 4294901760
        %952 = vmatmul.f32.gmra.mxu0 %v951
        %v953 = vpop.f32.mrf.mxu0
        %v954 = vadd.f32 %v930, %v953
        %955 = vdwg.mxu0
        %956 = vmatpush.msra.mxu0 0.0
        %957 = vmatpush.msra.mxu0 0.0
        %958 = vmatpush.msra.mxu0 0.0
        %959 = vmatpush.msra.mxu0 0.0
        %960 = vmatpush.msra.mxu0 0.0
        %961 = vmatpush.msra.mxu0 0.0
        %962 = vmatpush.msra.mxu0 0.0
        %963 = vmatpush.msra.mxu0 0.0
        %964 = vmatpush.msra.mxu0 0.0
        %965 = vmatpush.msra.mxu0 0.0
        %966 = vmatpush.msra.mxu0 0.0
        %967 = vmatpush.msra.mxu0 0.0
        %968 = vmatpush.msra.mxu0 0.0
        %969 = vmatpush.msra.mxu0 0.0
        %970 = vmatpush.msra.mxu0 0.0
        %v971 = vand.u32 %v708, 4294901760
        %v972 = vsub.f32 %v708, %v971
        %v973 = vand.u32 %v972, 4294901760
        %974 = vmatpush.msra.mxu0 %v973
        %v975 = vand.u32 %v701, 4294901760
        %976 = vmatmul.f32.gmra.mxu0 %v975
        %v977 = vpop.f32.mrf.mxu0
        %v978 = vadd.f32 %v954, %v977
        %979 = vdwg.mxu0
        %980 = vmatpush.msra.mxu0 0.0
        %981 = vmatpush.msra.mxu0 0.0
        %982 = vmatpush.msra.mxu0 0.0
        %983 = vmatpush.msra.mxu0 0.0
        %984 = vmatpush.msra.mxu0 0.0
        %985 = vmatpush.msra.mxu0 0.0
        %986 = vmatpush.msra.mxu0 0.0
        %987 = vmatpush.msra.mxu0 0.0
        %988 = vmatpush.msra.mxu0 0.0
        %989 = vmatpush.msra.mxu0 0.0
        %990 = vmatpush.msra.mxu0 0.0
        %991 = vmatpush.msra.mxu0 0.0
        %992 = vmatpush.msra.mxu0 0.0
        %993 = vmatpush.msra.mxu0 0.0
        %994 = vmatpush.msra.mxu0 0.0
        %v995 = vand.u32 %v708, 4294901760
        %996 = vmatpush.msra.mxu0 %v995
        %v997 = vand.u32 %v701, 4294901760
        %998 = vmatmul.f32.gmra.mxu0 %v997
        %v999 = vpop.f32.mrf.mxu0
        %v1000 = vadd.f32 %v978, %v999
        %1001 = vdwg.mxu0
        %v1002 = vmax.f32 %v854, 0.0
        %v1003 = vmax.f32 %v1000, 0.0
        %v1004 = vmin.f32 %v1002, 6.0
        %v1005 = vmin.f32 %v1003, 6.0
        %v1006 = vld [vmem:[%s4] sm:$0xff]
        %1007 = vrot.lane.b32.xlu0 %v1004, 16
        %v1008 = vpop.permute.xlu0 %1007
        %1009 = vrot.lane.b32.xlu0 %v1005, 16
        %v1010 = vpop.permute.xlu0 %1009
        %vm1011 = vcmp.lt.s32.totalorder %v335, 16
        %v1012 = vsel %vm1011, %v1008, %v1010
        %v1013 = vsel %vm1011, %v1010, %v1008
        %1014 = vrot.lane.b32.xlu0 %v1004, 112
        %v1015 = vpop.permute.xlu0 %1014
        %1016 = vrot.lane.b32.xlu0 %v1005, 112
        %v1017 = vpop.permute.xlu0 %1016
        %vm1018 = vcmp.lt.s32.totalorder %v335, 112
        %v1019 = vsel %vm1018, %v1015, %v1017
        %v1020 = vsel %vm1018, %v1017, %v1015
        %v1021 = vsel %vm385, 1, 0
        %v1022 = vsel %vm386, 1, 0
        %vm1023 = vcmp.eq.s32.totalorder %v1021, 1
        %vm1024 = vcmp.eq.s32.totalorder %v1022, 1
        %v1025 = vsel %vm1023, %v1019, %v1013
        %v1026 = vsel %vm1024, %v1020, %v1012
        %1027 = vrot.lane.b32.xlu0 %v1025, 1
        %v1028 = vpop.permute.xlu0 %1027
        %1029 = vrot.lane.b32.xlu0 %v1026, 1
        %v1030 = vpop.permute.xlu0 %1029
        %vm1031 = vcmp.lt.s32.totalorder %v335, 1
        %v1032 = vsel %vm1031, %v1028, %v1030
        %v1033 = vsel %vm1031, %v1030, %v1028
        %1034 = vrot.lane.b32.xlu0 %v1025, 127
        %v1035 = vpop.permute.xlu0 %1034
        %1036 = vrot.lane.b32.xlu0 %v1026, 127
        %v1037 = vpop.permute.xlu0 %1036
        %vm1038 = vcmp.lt.s32.totalorder %v335, 127
        %v1039 = vsel %vm1038, %v1035, %v1037
        %v1040 = vsel %vm1038, %v1037, %v1035
        %v1041 = vsel %vm389, 1, 0
        %v1042 = vsel %vm390, 1, 0
        %vm1043 = vcmp.eq.s32.totalorder %v1041, 1
        %vm1044 = vcmp.eq.s32.totalorder %v1042, 1
        %v1045 = vsel %vm1043, %v1039, %v1033
        %v1046 = vsel %vm1044, %v1040, %v1032
        %v1047 = vsel %vm391, 1, 0
        %v1048 = vsel %vm392, 1, 0
        %vm1049 = vcmp.eq.s32.totalorder %v1047, 1
        %vm1050 = vcmp.eq.s32.totalorder %v1048, 1
        %v1051 = vsel %vm1049, %v1033, %v1039
        %v1052 = vsel %vm1050, %v1032, %v1040
        %1054 = vset.pattern.permute.xlu0 0
        %1055 = vperm.xlu0 %1054, %v1006
        %v1056 = vpop.permute.xlu0 %1055
        %v1058 = vmul.f32 %v1056, %v1045
        %v1059 = vmul.f32 %v1056, %v1046
        %1060 = vset.pattern.permute.xlu0 1
        %1061 = vperm.xlu0 %1060, %v1006
        %v1062 = vpop.permute.xlu0 %1061
        %v1064 = vmul.f32 %v1062, %v1025
        %v1065 = vmul.f32 %v1062, %v1026
        %v1066 = vadd.f32 %v1058, %v1064
        %v1067 = vadd.f32 %v1059, %v1065
        %1068 = vset.pattern.permute.xlu0 2
        %1069 = vperm.xlu0 %1068, %v1006
        %v1070 = vpop.permute.xlu0 %1069
        %v1072 = vmul.f32 %v1070, %v1051
        %v1073 = vmul.f32 %v1070, %v1052
        %v1074 = vadd.f32 %v1066, %v1072
        %v1075 = vadd.f32 %v1067, %v1073
        %1076 = vrot.lane.b32.xlu0 %v1004, 1
        %v1077 = vpop.permute.xlu0 %1076
        %1078 = vrot.lane.b32.xlu0 %v1005, 1
        %v1079 = vpop.permute.xlu0 %1078
        %v1080 = vsel %vm1031, %v1077, %v1079
        %v1081 = vsel %vm1031, %v1079, %v1077
        %1082 = vrot.lane.b32.xlu0 %v1004, 127
        %v1083 = vpop.permute.xlu0 %1082
        %1084 = vrot.lane.b32.xlu0 %v1005, 127
        %v1085 = vpop.permute.xlu0 %1084
        %v1086 = vsel %vm1038, %v1083, %v1085
        %v1087 = vsel %vm1038, %v1085, %v1083
        %v1088 = vsel %vm1043, %v1086, %v1081
        %v1089 = vsel %vm1044, %v1087, %v1080
        %v1090 = vsel %vm1049, %v1081, %v1086
        %v1091 = vsel %vm1050, %v1080, %v1087
        %1092 = vset.pattern.permute.xlu0 3
        %1093 = vperm.xlu0 %1092, %v1006
        %v1094 = vpop.permute.xlu0 %1093
        %v1096 = vmul.f32 %v1094, %v1088
        %v1097 = vmul.f32 %v1094, %v1089
        %v1098 = vadd.f32 %v1074, %v1096
        %v1099 = vadd.f32 %v1075, %v1097
        %1100 = vset.pattern.permute.xlu0 4
        %1101 = vperm.xlu0 %1100, %v1006
        %v1102 = vpop.permute.xlu0 %1101
        %v1104 = vmul.f32 %v1102, %v1004
        %v1105 = vmul.f32 %v1102, %v1005
        %v1106 = vadd.f32 %v1098, %v1104
        %v1107 = vadd.f32 %v1099, %v1105
        %1108 = vset.pattern.permute.xlu0 5
        %1109 = vperm.xlu0 %1108, %v1006
        %v1110 = vpop.permute.xlu0 %1109
        %v1112 = vmul.f32 %v1110, %v1090
        %v1113 = vmul.f32 %v1110, %v1091
        %v1114 = vadd.f32 %v1106, %v1112
        %v1115 = vadd.f32 %v1107, %v1113
        %v1116 = vsel %vm387, 1, 0
        %v1117 = vsel %vm388, 1, 0
        %vm1118 = vcmp.eq.s32.totalorder %v1116, 1
        %vm1119 = vcmp.eq.s32.totalorder %v1117, 1
        %v1120 = vsel %vm1118, %v1013, %v1019
        %v1121 = vsel %vm1119, %v1012, %v1020
        %1122 = vrot.lane.b32.xlu0 %v1120, 1
        %v1123 = vpop.permute.xlu0 %1122
        %1124 = vrot.lane.b32.xlu0 %v1121, 1
        %v1125 = vpop.permute.xlu0 %1124
        %v1126 = vsel %vm1031, %v1123, %v1125
        %v1127 = vsel %vm1031, %v1125, %v1123
        %1128 = vrot.lane.b32.xlu0 %v1120, 127
        %v1129 = vpop.permute.xlu0 %1128
        %1130 = vrot.lane.b32.xlu0 %v1121, 127
        %v1131 = vpop.permute.xlu0 %1130
        %v1132 = vsel %vm1038, %v1129, %v1131
        %v1133 = vsel %vm1038, %v1131, %v1129
        %v1134 = vsel %vm1043, %v1132, %v1127
        %v1135 = vsel %vm1044, %v1133, %v1126
        %v1136 = vsel %vm1049, %v1127, %v1132
        %v1137 = vsel %vm1050, %v1126, %v1133
        %1138 = vset.pattern.permute.xlu0 6
        %1139 = vperm.xlu0 %1138, %v1006
        %v1140 = vpop.permute.xlu0 %1139
        %v1142 = vmul.f32 %v1140, %v1134
        %v1143 = vmul.f32 %v1140, %v1135
        %v1144 = vadd.f32 %v1114, %v1142
        %v1145 = vadd.f32 %v1115, %v1143
        %1146 = vset.pattern.permute.xlu0 7
        %1147 = vperm.xlu0 %1146, %v1006
        %v1148 = vpop.permute.xlu0 %1147
        %v1150 = vmul.f32 %v1148, %v1120
        %v1151 = vmul.f32 %v1148, %v1121
        %v1152 = vadd.f32 %v1144, %v1150
        %v1153 = vadd.f32 %v1145, %v1151
        %1154 = vset.pattern.permute.xlu0 8
        %1155 = vperm.xlu0 %1154, %v1006
        %v1156 = vpop.permute.xlu0 %1155
        %v1158 = vmul.f32 %v1156, %v1136
        %v1159 = vmul.f32 %v1156, %v1137
        %v1160 = vadd.f32 %v1152, %v1158
        %v1161 = vadd.f32 %v1153, %v1159
        %v1162 = vmax.f32 %v1160, 0.0
        %v1163 = vmax.f32 %v1161, 0.0
        %v1164 = vmin.f32 %v1162, 6.0
        %v1165 = vmin.f32 %v1163, 6.0
        %v1166 = vld [vmem:[%s5] sm:$0xf]
        %v1168 = vsel %vm402, %v1166, 0
        %1170 = vmatpush.msra.mxu0 0.0
        %1171 = vmatpush.msra.mxu0 0.0
        %1172 = vmatpush.msra.mxu0 0.0
        %1173 = vmatpush.msra.mxu0 0.0
        %1174 = vmatpush.msra.mxu0 0.0
        %1175 = vmatpush.msra.mxu0 0.0
        %1176 = vmatpush.msra.mxu0 0.0
        %1177 = vmatpush.msra.mxu0 0.0
        %1178 = vmatpush.msra.mxu0 0.0
        %1179 = vmatpush.msra.mxu0 0.0
        %1180 = vmatpush.msra.mxu0 0.0
        %1181 = vmatpush.msra.mxu0 0.0
        %1182 = vmatpush.msra.mxu0 0.0
        %1183 = vmatpush.msra.mxu0 0.0
        %1184 = vmatpush.msra.mxu0 0.0
        %v1185 = vand.u32 %v1164, 4294901760
        %1186 = vmatpush.msra.mxu0 %v1185
        %v1187 = vand.u32 %v1168, 4294901760
        %v1188 = vsub.f32 %v1168, %v1187
        %v1189 = vand.u32 %v1188, 4294901760
        %v1190 = vsub.f32 %v1188, %v1189
        %v1191 = vand.u32 %v1190, 4294901760
        %1192 = vmatmul.f32.gmra.mxu0 %v1191
        %v1193 = vpop.f32.mrf.mxu0
        %v1194 = vadd.f32 0.0, %v1193
        %1195 = vdwg.mxu0
        %1196 = vmatpush.msra.mxu0 0.0
        %1197 = vmatpush.msra.mxu0 0.0
        %1198 = vmatpush.msra.mxu0 0.0
        %1199 = vmatpush.msra.mxu0 0.0
        %1200 = vmatpush.msra.mxu0 0.0
        %1201 = vmatpush.msra.mxu0 0.0
        %1202 = vmatpush.msra.mxu0 0.0
        %1203 = vmatpush.msra.mxu0 0.0
        %1204 = vmatpush.msra.mxu0 0.0
        %1205 = vmatpush.msra.mxu0 0.0
        %1206 = vmatpush.msra.mxu0 0.0
        %1207 = vmatpush.msra.mxu0 0.0
        %1208 = vmatpush.msra.mxu0 0.0
        %1209 = vmatpush.msra.mxu0 0.0
        %1210 = vmatpush.msra.mxu0 0.0
        %v1211 = vand.u32 %v1164, 4294901760
        %v1212 = vsub.f32 %v1164, %v1211
        %v1213 = vand.u32 %v1212, 4294901760
        %v1214 = vsub.f32 %v1212, %v1213
        %v1215 = vand.u32 %v1214, 4294901760
        %1216 = vmatpush.msra.mxu0 %v1215
        %v1217 = vand.u32 %v1168, 4294901760
        %1218 = vmatmul.f32.gmra.mxu0 %v1217
        %v1219 = vpop.f32.mrf.mxu0
        %v1220 = vadd.f32 %v1194, %v1219
        %1221 = vdwg.mxu0
        %1222 = vmatpush.msra.mxu0 0.0
        %1223 = vmatpush.msra.mxu0 0.0
        %1224 = vmatpush.msra.mxu0 0.0
        %1225 = vmatpush.msra.mxu0 0.0
        %1226 = vmatpush.msra.mxu0 0.0
        %1227 = vmatpush.msra.mxu0 0.0
        %1228 = vmatpush.msra.mxu0 0.0
        %1229 = vmatpush.msra.mxu0 0.0
        %1230 = vmatpush.msra.mxu0 0.0
        %1231 = vmatpush.msra.mxu0 0.0
        %1232 = vmatpush.msra.mxu0 0.0
        %1233 = vmatpush.msra.mxu0 0.0
        %1234 = vmatpush.msra.mxu0 0.0
        %1235 = vmatpush.msra.mxu0 0.0
        %1236 = vmatpush.msra.mxu0 0.0
        %v1237 = vand.u32 %v1164, 4294901760
        %v1238 = vsub.f32 %v1164, %v1237
        %1239 = vmatpush.msra.mxu0 %v1238
        %v1240 = vand.u32 %v1168, 4294901760
        %v1241 = vsub.f32 %v1168, %v1240
        %1242 = vmatmul.f32.gmra.mxu0 %v1241
        %v1243 = vpop.f32.mrf.mxu0
        %v1244 = vadd.f32 %v1220, %v1243
        %1245 = vdwg.mxu0
        %1246 = vmatpush.msra.mxu0 0.0
        %1247 = vmatpush.msra.mxu0 0.0
        %1248 = vmatpush.msra.mxu0 0.0
        %1249 = vmatpush.msra.mxu0 0.0
        %1250 = vmatpush.msra.mxu0 0.0
        %1251 = vmatpush.msra.mxu0 0.0
        %1252 = vmatpush.msra.mxu0 0.0
        %1253 = vmatpush.msra.mxu0 0.0
        %1254 = vmatpush.msra.mxu0 0.0
        %1255 = vmatpush.msra.mxu0 0.0
        %1256 = vmatpush.msra.mxu0 0.0
        %1257 = vmatpush.msra.mxu0 0.0
        %1258 = vmatpush.msra.mxu0 0.0
        %1259 = vmatpush.msra.mxu0 0.0
        %1260 = vmatpush.msra.mxu0 0.0
        %v1261 = vand.u32 %v1164, 4294901760
        %1262 = vmatpush.msra.mxu0 %v1261
        %v1263 = vand.u32 %v1168, 4294901760
        %v1264 = vsub.f32 %v1168, %v1263
        %v1265 = vand.u32 %v1264, 4294901760
        %1266 = vmatmul.f32.gmra.mxu0 %v1265
        %v1267 = vpop.f32.mrf.mxu0
        %v1268 = vadd.f32 %v1244, %v1267
        %1269 = vdwg.mxu0
        %1270 = vmatpush.msra.mxu0 0.0
        %1271 = vmatpush.msra.mxu0 0.0
        %1272 = vmatpush.msra.mxu0 0.0
        %1273 = vmatpush.msra.mxu0 0.0
        %1274 = vmatpush.msra.mxu0 0.0
        %1275 = vmatpush.msra.mxu0 0.0
        %1276 = vmatpush.msra.mxu0 0.0
        %1277 = vmatpush.msra.mxu0 0.0
        %1278 = vmatpush.msra.mxu0 0.0
        %1279 = vmatpush.msra.mxu0 0.0
        %1280 = vmatpush.msra.mxu0 0.0
        %1281 = vmatpush.msra.mxu0 0.0
        %1282 = vmatpush.msra.mxu0 0.0
        %1283 = vmatpush.msra.mxu0 0.0
        %1284 = vmatpush.msra.mxu0 0.0
        %v1285 = vand.u32 %v1164, 4294901760
        %v1286 = vsub.f32 %v1164, %v1285
        %v1287 = vand.u32 %v1286, 4294901760
        %1288 = vmatpush.msra.mxu0 %v1287
        %v1289 = vand.u32 %v1168, 4294901760
        %1290 = vmatmul.f32.gmra.mxu0 %v1289
        %v1291 = vpop.f32.mrf.mxu0
        %v1292 = vadd.f32 %v1268, %v1291
        %1293 = vdwg.mxu0
        %1294 = vmatpush.msra.mxu0 0.0
        %1295 = vmatpush.msra.mxu0 0.0
        %1296 = vmatpush.msra.mxu0 0.0
        %1297 = vmatpush.msra.mxu0 0.0
        %1298 = vmatpush.msra.mxu0 0.0
        %1299 = vmatpush.msra.mxu0 0.0
        %1300 = vmatpush.msra.mxu0 0.0
        %1301 = vmatpush.msra.mxu0 0.0
        %1302 = vmatpush.msra.mxu0 0.0
        %1303 = vmatpush.msra.mxu0 0.0
        %1304 = vmatpush.msra.mxu0 0.0
        %1305 = vmatpush.msra.mxu0 0.0
        %1306 = vmatpush.msra.mxu0 0.0
        %1307 = vmatpush.msra.mxu0 0.0
        %1308 = vmatpush.msra.mxu0 0.0
        %v1309 = vand.u32 %v1164, 4294901760
        %1310 = vmatpush.msra.mxu0 %v1309
        %v1311 = vand.u32 %v1168, 4294901760
        %1312 = vmatmul.f32.gmra.mxu0 %v1311
        %v1313 = vpop.f32.mrf.mxu0
        %v1314 = vadd.f32 %v1292, %v1313
        %1315 = vdwg.mxu0
        %1316 = vmatpush.msra.mxu0 0.0
        %1317 = vmatpush.msra.mxu0 0.0
        %1318 = vmatpush.msra.mxu0 0.0
        %1319 = vmatpush.msra.mxu0 0.0
        %1320 = vmatpush.msra.mxu0 0.0
        %1321 = vmatpush.msra.mxu0 0.0
        %1322 = vmatpush.msra.mxu0 0.0
        %1323 = vmatpush.msra.mxu0 0.0
        %1324 = vmatpush.msra.mxu0 0.0
        %1325 = vmatpush.msra.mxu0 0.0
        %1326 = vmatpush.msra.mxu0 0.0
        %1327 = vmatpush.msra.mxu0 0.0
        %1328 = vmatpush.msra.mxu0 0.0
        %1329 = vmatpush.msra.mxu0 0.0
        %1330 = vmatpush.msra.mxu0 0.0
        %v1331 = vand.u32 %v1165, 4294901760
        %1332 = vmatpush.msra.mxu0 %v1331
        %v1333 = vand.u32 %v1168, 4294901760
        %v1334 = vsub.f32 %v1168, %v1333
        %v1335 = vand.u32 %v1334, 4294901760
        %v1336 = vsub.f32 %v1334, %v1335
        %v1337 = vand.u32 %v1336, 4294901760
        %1338 = vmatmul.f32.gmra.mxu0 %v1337
        %v1339 = vpop.f32.mrf.mxu0
        %v1340 = vadd.f32 0.0, %v1339
        %1341 = vdwg.mxu0
        %1342 = vmatpush.msra.mxu0 0.0
        %1343 = vmatpush.msra.mxu0 0.0
        %1344 = vmatpush.msra.mxu0 0.0
        %1345 = vmatpush.msra.mxu0 0.0
        %1346 = vmatpush.msra.mxu0 0.0
        %1347 = vmatpush.msra.mxu0 0.0
        %1348 = vmatpush.msra.mxu0 0.0
        %1349 = vmatpush.msra.mxu0 0.0
        %1350 = vmatpush.msra.mxu0 0.0
        %1351 = vmatpush.msra.mxu0 0.0
        %1352 = vmatpush.msra.mxu0 0.0
        %1353 = vmatpush.msra.mxu0 0.0
        %1354 = vmatpush.msra.mxu0 0.0
        %1355 = vmatpush.msra.mxu0 0.0
        %1356 = vmatpush.msra.mxu0 0.0
        %v1357 = vand.u32 %v1165, 4294901760
        %v1358 = vsub.f32 %v1165, %v1357
        %v1359 = vand.u32 %v1358, 4294901760
        %v1360 = vsub.f32 %v1358, %v1359
        %v1361 = vand.u32 %v1360, 4294901760
        %1362 = vmatpush.msra.mxu0 %v1361
        %v1363 = vand.u32 %v1168, 4294901760
        %1364 = vmatmul.f32.gmra.mxu0 %v1363
        %v1365 = vpop.f32.mrf.mxu0
        %v1366 = vadd.f32 %v1340, %v1365
        %1367 = vdwg.mxu0
        %1368 = vmatpush.msra.mxu0 0.0
        %1369 = vmatpush.msra.mxu0 0.0
        %1370 = vmatpush.msra.mxu0 0.0
        %1371 = vmatpush.msra.mxu0 0.0
        %1372 = vmatpush.msra.mxu0 0.0
        %1373 = vmatpush.msra.mxu0 0.0
        %1374 = vmatpush.msra.mxu0 0.0
        %1375 = vmatpush.msra.mxu0 0.0
        %1376 = vmatpush.msra.mxu0 0.0
        %1377 = vmatpush.msra.mxu0 0.0
        %1378 = vmatpush.msra.mxu0 0.0
        %1379 = vmatpush.msra.mxu0 0.0
        %1380 = vmatpush.msra.mxu0 0.0
        %1381 = vmatpush.msra.mxu0 0.0
        %1382 = vmatpush.msra.mxu0 0.0
        %v1383 = vand.u32 %v1165, 4294901760
        %v1384 = vsub.f32 %v1165, %v1383
        %1385 = vmatpush.msra.mxu0 %v1384
        %v1386 = vand.u32 %v1168, 4294901760
        %v1387 = vsub.f32 %v1168, %v1386
        %1388 = vmatmul.f32.gmra.mxu0 %v1387
        %v1389 = vpop.f32.mrf.mxu0
        %v1390 = vadd.f32 %v1366, %v1389
        %1391 = vdwg.mxu0
        %1392 = vmatpush.msra.mxu0 0.0
        %1393 = vmatpush.msra.mxu0 0.0
        %1394 = vmatpush.msra.mxu0 0.0
        %1395 = vmatpush.msra.mxu0 0.0
        %1396 = vmatpush.msra.mxu0 0.0
        %1397 = vmatpush.msra.mxu0 0.0
        %1398 = vmatpush.msra.mxu0 0.0
        %1399 = vmatpush.msra.mxu0 0.0
        %1400 = vmatpush.msra.mxu0 0.0
        %1401 = vmatpush.msra.mxu0 0.0
        %1402 = vmatpush.msra.mxu0 0.0
        %1403 = vmatpush.msra.mxu0 0.0
        %1404 = vmatpush.msra.mxu0 0.0
        %1405 = vmatpush.msra.mxu0 0.0
        %1406 = vmatpush.msra.mxu0 0.0
        %v1407 = vand.u32 %v1165, 4294901760
        %1408 = vmatpush.msra.mxu0 %v1407
        %v1409 = vand.u32 %v1168, 4294901760
        %v1410 = vsub.f32 %v1168, %v1409
        %v1411 = vand.u32 %v1410, 4294901760
        %1412 = vmatmul.f32.gmra.mxu0 %v1411
        %v1413 = vpop.f32.mrf.mxu0
        %v1414 = vadd.f32 %v1390, %v1413
        %1415 = vdwg.mxu0
        %1416 = vmatpush.msra.mxu0 0.0
        %1417 = vmatpush.msra.mxu0 0.0
        %1418 = vmatpush.msra.mxu0 0.0
        %1419 = vmatpush.msra.mxu0 0.0
        %1420 = vmatpush.msra.mxu0 0.0
        %1421 = vmatpush.msra.mxu0 0.0
        %1422 = vmatpush.msra.mxu0 0.0
        %1423 = vmatpush.msra.mxu0 0.0
        %1424 = vmatpush.msra.mxu0 0.0
        %1425 = vmatpush.msra.mxu0 0.0
        %1426 = vmatpush.msra.mxu0 0.0
        %1427 = vmatpush.msra.mxu0 0.0
        %1428 = vmatpush.msra.mxu0 0.0
        %1429 = vmatpush.msra.mxu0 0.0
        %1430 = vmatpush.msra.mxu0 0.0
        %v1431 = vand.u32 %v1165, 4294901760
        %v1432 = vsub.f32 %v1165, %v1431
        %v1433 = vand.u32 %v1432, 4294901760
        %1434 = vmatpush.msra.mxu0 %v1433
        %v1435 = vand.u32 %v1168, 4294901760
        %1436 = vmatmul.f32.gmra.mxu0 %v1435
        %v1437 = vpop.f32.mrf.mxu0
        %v1438 = vadd.f32 %v1414, %v1437
        %1439 = vdwg.mxu0
        %1440 = vmatpush.msra.mxu0 0.0
        %1441 = vmatpush.msra.mxu0 0.0
        %1442 = vmatpush.msra.mxu0 0.0
        %1443 = vmatpush.msra.mxu0 0.0
        %1444 = vmatpush.msra.mxu0 0.0
        %1445 = vmatpush.msra.mxu0 0.0
        %1446 = vmatpush.msra.mxu0 0.0
        %1447 = vmatpush.msra.mxu0 0.0
        %1448 = vmatpush.msra.mxu0 0.0
        %1449 = vmatpush.msra.mxu0 0.0
        %1450 = vmatpush.msra.mxu0 0.0
        %1451 = vmatpush.msra.mxu0 0.0
        %1452 = vmatpush.msra.mxu0 0.0
        %1453 = vmatpush.msra.mxu0 0.0
        %1454 = vmatpush.msra.mxu0 0.0
        %v1455 = vand.u32 %v1165, 4294901760
        %1456 = vmatpush.msra.mxu0 %v1455
        %v1457 = vand.u32 %v1168, 4294901760
        %1458 = vmatmul.f32.gmra.mxu0 %v1457
        %v1459 = vpop.f32.mrf.mxu0
        %v1460 = vadd.f32 %v1438, %v1459
        %1461 = vdwg.mxu0
        %v1464 = vrot.slane %v1314, 4
        %v1465 = vrot.slane %v1460, 4
        %v1468 = vadd.f32 %v550, %v1464
        %v1469 = vadd.f32 %v696, %v1465
        %v1470 = vld [vmem:[%s6] sm:$0xff]
        %v1471 = vld [vmem:[%s6 + $0x8] sm:$0xff]
        %v1474 = vrot.slane %v1468, 4
        %v1475 = vrot.slane %v1469, 4
        %v1477 = vsel %vm699, %v1470, 0
        %v1480 = vsel %vm699, %v1471, 0
        %v1482 = vsel %vm703, %v1474, 0
        %v1484 = vsel %vm703, %v1475, 0
        %1486 = vmatpush.msra.mxu0 0.0
        %1487 = vmatpush.msra.mxu0 0.0
        %1488 = vmatpush.msra.mxu0 0.0
        %1489 = vmatpush.msra.mxu0 0.0
        %1490 = vmatpush.msra.mxu0 0.0
        %1491 = vmatpush.msra.mxu0 0.0
        %1492 = vmatpush.msra.mxu0 0.0
        %1493 = vmatpush.msra.mxu0 0.0
        %1494 = vmatpush.msra.mxu0 0.0
        %1495 = vmatpush.msra.mxu0 0.0
        %1496 = vmatpush.msra.mxu0 0.0
        %1497 = vmatpush.msra.mxu0 0.0
        %1498 = vmatpush.msra.mxu0 0.0
        %1499 = vmatpush.msra.mxu0 0.0
        %1500 = vmatpush.msra.mxu0 0.0
        %v1501 = vand.u32 %v1482, 4294901760
        %1502 = vmatpush.msra.mxu0 %v1501
        %v1503 = vand.u32 %v1477, 4294901760
        %v1504 = vsub.f32 %v1477, %v1503
        %v1505 = vand.u32 %v1504, 4294901760
        %v1506 = vsub.f32 %v1504, %v1505
        %v1507 = vand.u32 %v1506, 4294901760
        %1508 = vmatmul.f32.gmra.mxu0 %v1507
        %v1509 = vpop.f32.mrf.mxu0
        %v1510 = vadd.f32 0.0, %v1509
        %v1511 = vand.u32 %v1480, 4294901760
        %v1512 = vsub.f32 %v1480, %v1511
        %v1513 = vand.u32 %v1512, 4294901760
        %v1514 = vsub.f32 %v1512, %v1513
        %v1515 = vand.u32 %v1514, 4294901760
        %1516 = vmatmul.f32.gmra.mxu0 %v1515
        %v1517 = vpop.f32.mrf.mxu0
        %v1518 = vadd.f32 0.0, %v1517
        %1519 = vdwg.mxu0
        %1520 = vmatpush.msra.mxu0 0.0
        %1521 = vmatpush.msra.mxu0 0.0
        %1522 = vmatpush.msra.mxu0 0.0
        %1523 = vmatpush.msra.mxu0 0.0
        %1524 = vmatpush.msra.mxu0 0.0
        %1525 = vmatpush.msra.mxu0 0.0
        %1526 = vmatpush.msra.mxu0 0.0
        %1527 = vmatpush.msra.mxu0 0.0
        %1528 = vmatpush.msra.mxu0 0.0
        %1529 = vmatpush.msra.mxu0 0.0
        %1530 = vmatpush.msra.mxu0 0.0
        %1531 = vmatpush.msra.mxu0 0.0
        %1532 = vmatpush.msra.mxu0 0.0
        %1533 = vmatpush.msra.mxu0 0.0
        %1534 = vmatpush.msra.mxu0 0.0
        %v1535 = vand.u32 %v1482, 4294901760
        %v1536 = vsub.f32 %v1482, %v1535
        %v1537 = vand.u32 %v1536, 4294901760
        %v1538 = vsub.f32 %v1536, %v1537
        %v1539 = vand.u32 %v1538, 4294901760
        %1540 = vmatpush.msra.mxu0 %v1539
        %v1541 = vand.u32 %v1477, 4294901760
        %1542 = vmatmul.f32.gmra.mxu0 %v1541
        %v1543 = vpop.f32.mrf.mxu0
        %v1544 = vadd.f32 %v1510, %v1543
        %v1545 = vand.u32 %v1480, 4294901760
        %1546 = vmatmul.f32.gmra.mxu0 %v1545
        %v1547 = vpop.f32.mrf.mxu0
        %v1548 = vadd.f32 %v1518, %v1547
        %1549 = vdwg.mxu0
        %1550 = vmatpush.msra.mxu0 0.0
        %1551 = vmatpush.msra.mxu0 0.0
        %1552 = vmatpush.msra.mxu0 0.0
        %1553 = vmatpush.msra.mxu0 0.0
        %1554 = vmatpush.msra.mxu0 0.0
        %1555 = vmatpush.msra.mxu0 0.0
        %1556 = vmatpush.msra.mxu0 0.0
        %1557 = vmatpush.msra.mxu0 0.0
        %1558 = vmatpush.msra.mxu0 0.0
        %1559 = vmatpush.msra.mxu0 0.0
        %1560 = vmatpush.msra.mxu0 0.0
        %1561 = vmatpush.msra.mxu0 0.0
        %1562 = vmatpush.msra.mxu0 0.0
        %1563 = vmatpush.msra.mxu0 0.0
        %1564 = vmatpush.msra.mxu0 0.0
        %v1565 = vand.u32 %v1482, 4294901760
        %v1566 = vsub.f32 %v1482, %v1565
        %1567 = vmatpush.msra.mxu0 %v1566
        %v1568 = vand.u32 %v1477, 4294901760
        %v1569 = vsub.f32 %v1477, %v1568
        %1570 = vmatmul.f32.gmra.mxu0 %v1569
        %v1571 = vpop.f32.mrf.mxu0
        %v1572 = vadd.f32 %v1544, %v1571
        %v1573 = vand.u32 %v1480, 4294901760
        %v1574 = vsub.f32 %v1480, %v1573
        %1575 = vmatmul.f32.gmra.mxu0 %v1574
        %v1576 = vpop.f32.mrf.mxu0
        %v1577 = vadd.f32 %v1548, %v1576
        %1578 = vdwg.mxu0
        %1579 = vmatpush.msra.mxu0 0.0
        %1580 = vmatpush.msra.mxu0 0.0
        %1581 = vmatpush.msra.mxu0 0.0
        %1582 = vmatpush.msra.mxu0 0.0
        %1583 = vmatpush.msra.mxu0 0.0
        %1584 = vmatpush.msra.mxu0 0.0
        %1585 = vmatpush.msra.mxu0 0.0
        %1586 = vmatpush.msra.mxu0 0.0
        %1587 = vmatpush.msra.mxu0 0.0
        %1588 = vmatpush.msra.mxu0 0.0
        %1589 = vmatpush.msra.mxu0 0.0
        %1590 = vmatpush.msra.mxu0 0.0
        %1591 = vmatpush.msra.mxu0 0.0
        %1592 = vmatpush.msra.mxu0 0.0
        %1593 = vmatpush.msra.mxu0 0.0
        %v1594 = vand.u32 %v1482, 4294901760
        %1595 = vmatpush.msra.mxu0 %v1594
        %v1596 = vand.u32 %v1477, 4294901760
        %v1597 = vsub.f32 %v1477, %v1596
        %v1598 = vand.u32 %v1597, 4294901760
        %1599 = vmatmul.f32.gmra.mxu0 %v1598
        %v1600 = vpop.f32.mrf.mxu0
        %v1601 = vadd.f32 %v1572, %v1600
        %v1602 = vand.u32 %v1480, 4294901760
        %v1603 = vsub.f32 %v1480, %v1602
        %v1604 = vand.u32 %v1603, 4294901760
        %1605 = vmatmul.f32.gmra.mxu0 %v1604
        %v1606 = vpop.f32.mrf.mxu0
        %v1607 = vadd.f32 %v1577, %v1606
        %1608 = vdwg.mxu0
        %1609 = vmatpush.msra.mxu0 0.0
        %1610 = vmatpush.msra.mxu0 0.0
        %1611 = vmatpush.msra.mxu0 0.0
        %1612 = vmatpush.msra.mxu0 0.0
        %1613 = vmatpush.msra.mxu0 0.0
        %1614 = vmatpush.msra.mxu0 0.0
        %1615 = vmatpush.msra.mxu0 0.0
        %1616 = vmatpush.msra.mxu0 0.0
        %1617 = vmatpush.msra.mxu0 0.0
        %1618 = vmatpush.msra.mxu0 0.0
        %1619 = vmatpush.msra.mxu0 0.0
        %1620 = vmatpush.msra.mxu0 0.0
        %1621 = vmatpush.msra.mxu0 0.0
        %1622 = vmatpush.msra.mxu0 0.0
        %1623 = vmatpush.msra.mxu0 0.0
        %v1624 = vand.u32 %v1482, 4294901760
        %v1625 = vsub.f32 %v1482, %v1624
        %v1626 = vand.u32 %v1625, 4294901760
        %1627 = vmatpush.msra.mxu0 %v1626
        %v1628 = vand.u32 %v1477, 4294901760
        %1629 = vmatmul.f32.gmra.mxu0 %v1628
        %v1630 = vpop.f32.mrf.mxu0
        %v1631 = vadd.f32 %v1601, %v1630
        %v1632 = vand.u32 %v1480, 4294901760
        %1633 = vmatmul.f32.gmra.mxu0 %v1632
        %v1634 = vpop.f32.mrf.mxu0
        %v1635 = vadd.f32 %v1607, %v1634
        %1636 = vdwg.mxu0
        %1637 = vmatpush.msra.mxu0 0.0
        %1638 = vmatpush.msra.mxu0 0.0
        %1639 = vmatpush.msra.mxu0 0.0
        %1640 = vmatpush.msra.mxu0 0.0
        %1641 = vmatpush.msra.mxu0 0.0
        %1642 = vmatpush.msra.mxu0 0.0
        %1643 = vmatpush.msra.mxu0 0.0
        %1644 = vmatpush.msra.mxu0 0.0
        %1645 = vmatpush.msra.mxu0 0.0
        %1646 = vmatpush.msra.mxu0 0.0
        %1647 = vmatpush.msra.mxu0 0.0
        %1648 = vmatpush.msra.mxu0 0.0
        %1649 = vmatpush.msra.mxu0 0.0
        %1650 = vmatpush.msra.mxu0 0.0
        %1651 = vmatpush.msra.mxu0 0.0
        %v1652 = vand.u32 %v1482, 4294901760
        %1653 = vmatpush.msra.mxu0 %v1652
        %v1654 = vand.u32 %v1477, 4294901760
        %1655 = vmatmul.f32.gmra.mxu0 %v1654
        %v1656 = vpop.f32.mrf.mxu0
        %v1657 = vadd.f32 %v1631, %v1656
        %v1658 = vand.u32 %v1480, 4294901760
        %1659 = vmatmul.f32.gmra.mxu0 %v1658
        %v1660 = vpop.f32.mrf.mxu0
        %v1661 = vadd.f32 %v1635, %v1660
        %1662 = vdwg.mxu0
        %1663 = vmatpush.msra.mxu0 0.0
        %1664 = vmatpush.msra.mxu0 0.0
        %1665 = vmatpush.msra.mxu0 0.0
        %1666 = vmatpush.msra.mxu0 0.0
        %1667 = vmatpush.msra.mxu0 0.0
        %1668 = vmatpush.msra.mxu0 0.0
        %1669 = vmatpush.msra.mxu0 0.0
        %1670 = vmatpush.msra.mxu0 0.0
        %1671 = vmatpush.msra.mxu0 0.0
        %1672 = vmatpush.msra.mxu0 0.0
        %1673 = vmatpush.msra.mxu0 0.0
        %1674 = vmatpush.msra.mxu0 0.0
        %1675 = vmatpush.msra.mxu0 0.0
        %1676 = vmatpush.msra.mxu0 0.0
        %1677 = vmatpush.msra.mxu0 0.0
        %v1678 = vand.u32 %v1484, 4294901760
        %1679 = vmatpush.msra.mxu0 %v1678
        %v1680 = vand.u32 %v1477, 4294901760
        %v1681 = vsub.f32 %v1477, %v1680
        %v1682 = vand.u32 %v1681, 4294901760
        %v1683 = vsub.f32 %v1681, %v1682
        %v1684 = vand.u32 %v1683, 4294901760
        %1685 = vmatmul.f32.gmra.mxu0 %v1684
        %v1686 = vpop.f32.mrf.mxu0
        %v1687 = vadd.f32 0.0, %v1686
        %v1688 = vand.u32 %v1480, 4294901760
        %v1689 = vsub.f32 %v1480, %v1688
        %v1690 = vand.u32 %v1689, 4294901760
        %v1691 = vsub.f32 %v1689, %v1690
        %v1692 = vand.u32 %v1691, 4294901760
        %1693 = vmatmul.f32.gmra.mxu0 %v1692
        %v1694 = vpop.f32.mrf.mxu0
        %v1695 = vadd.f32 0.0, %v1694
        %1696 = vdwg.mxu0
        %1697 = vmatpush.msra.mxu0 0.0
        %1698 = vmatpush.msra.mxu0 0.0
        %1699 = vmatpush.msra.mxu0 0.0
        %1700 = vmatpush.msra.mxu0 0.0
        %1701 = vmatpush.msra.mxu0 0.0
        %1702 = vmatpush.msra.mxu0 0.0
        %1703 = vmatpush.msra.mxu0 0.0
        %1704 = vmatpush.msra.mxu0 0.0
        %1705 = vmatpush.msra.mxu0 0.0
        %1706 = vmatpush.msra.mxu0 0.0
        %1707 = vmatpush.msra.mxu0 0.0
        %1708 = vmatpush.msra.mxu0 0.0
        %1709 = vmatpush.msra.mxu0 0.0
        %1710 = vmatpush.msra.mxu0 0.0
        %1711 = vmatpush.msra.mxu0 0.0
        %v1712 = vand.u32 %v1484, 4294901760
        %v1713 = vsub.f32 %v1484, %v1712
        %v1714 = vand.u32 %v1713, 4294901760
        %v1715 = vsub.f32 %v1713, %v1714
        %v1716 = vand.u32 %v1715, 4294901760
        %1717 = vmatpush.msra.mxu0 %v1716
        %v1718 = vand.u32 %v1477, 4294901760
        %1719 = vmatmul.f32.gmra.mxu0 %v1718
        %v1720 = vpop.f32.mrf.mxu0
        %v1721 = vadd.f32 %v1687, %v1720
        %v1722 = vand.u32 %v1480, 4294901760
        %1723 = vmatmul.f32.gmra.mxu0 %v1722
        %v1724 = vpop.f32.mrf.mxu0
        %v1725 = vadd.f32 %v1695, %v1724
        %1726 = vdwg.mxu0
        %1727 = vmatpush.msra.mxu0 0.0
        %1728 = vmatpush.msra.mxu0 0.0
        %1729 = vmatpush.msra.mxu0 0.0
        %1730 = vmatpush.msra.mxu0 0.0
        %1731 = vmatpush.msra.mxu0 0.0
        %1732 = vmatpush.msra.mxu0 0.0
        %1733 = vmatpush.msra.mxu0 0.0
        %1734 = vmatpush.msra.mxu0 0.0
        %1735 = vmatpush.msra.mxu0 0.0
        %1736 = vmatpush.msra.mxu0 0.0
        %1737 = vmatpush.msra.mxu0 0.0
        %1738 = vmatpush.msra.mxu0 0.0
        %1739 = vmatpush.msra.mxu0 0.0
        %1740 = vmatpush.msra.mxu0 0.0
        %1741 = vmatpush.msra.mxu0 0.0
        %v1742 = vand.u32 %v1484, 4294901760
        %v1743 = vsub.f32 %v1484, %v1742
        %1744 = vmatpush.msra.mxu0 %v1743
        %v1745 = vand.u32 %v1477, 4294901760
        %v1746 = vsub.f32 %v1477, %v1745
        %1747 = vmatmul.f32.gmra.mxu0 %v1746
        %v1748 = vpop.f32.mrf.mxu0
        %v1749 = vadd.f32 %v1721, %v1748
        %v1750 = vand.u32 %v1480, 4294901760
        %v1751 = vsub.f32 %v1480, %v1750
        %1752 = vmatmul.f32.gmra.mxu0 %v1751
        %v1753 = vpop.f32.mrf.mxu0
        %v1754 = vadd.f32 %v1725, %v1753
        %1755 = vdwg.mxu0
        %1756 = vmatpush.msra.mxu0 0.0
        %1757 = vmatpush.msra.mxu0 0.0
        %1758 = vmatpush.msra.mxu0 0.0
        %1759 = vmatpush.msra.mxu0 0.0
        %1760 = vmatpush.msra.mxu0 0.0
        %1761 = vmatpush.msra.mxu0 0.0
        %1762 = vmatpush.msra.mxu0 0.0
        %1763 = vmatpush.msra.mxu0 0.0
        %1764 = vmatpush.msra.mxu0 0.0
        %1765 = vmatpush.msra.mxu0 0.0
        %1766 = vmatpush.msra.mxu0 0.0
        %1767 = vmatpush.msra.mxu0 0.0
        %1768 = vmatpush.msra.mxu0 0.0
        %1769 = vmatpush.msra.mxu0 0.0
        %1770 = vmatpush.msra.mxu0 0.0
        %v1771 = vand.u32 %v1484, 4294901760
        %1772 = vmatpush.msra.mxu0 %v1771
        %v1773 = vand.u32 %v1477, 4294901760
        %v1774 = vsub.f32 %v1477, %v1773
        %v1775 = vand.u32 %v1774, 4294901760
        %1776 = vmatmul.f32.gmra.mxu0 %v1775
        %v1777 = vpop.f32.mrf.mxu0
        %v1778 = vadd.f32 %v1749, %v1777
        %v1779 = vand.u32 %v1480, 4294901760
        %v1780 = vsub.f32 %v1480, %v1779
        %v1781 = vand.u32 %v1780, 4294901760
        %1782 = vmatmul.f32.gmra.mxu0 %v1781
        %v1783 = vpop.f32.mrf.mxu0
        %v1784 = vadd.f32 %v1754, %v1783
        %1785 = vdwg.mxu0
        %1786 = vmatpush.msra.mxu0 0.0
        %1787 = vmatpush.msra.mxu0 0.0
        %1788 = vmatpush.msra.mxu0 0.0
        %1789 = vmatpush.msra.mxu0 0.0
        %1790 = vmatpush.msra.mxu0 0.0
        %1791 = vmatpush.msra.mxu0 0.0
        %1792 = vmatpush.msra.mxu0 0.0
        %1793 = vmatpush.msra.mxu0 0.0
        %1794 = vmatpush.msra.mxu0 0.0
        %1795 = vmatpush.msra.mxu0 0.0
        %1796 = vmatpush.msra.mxu0 0.0
        %1797 = vmatpush.msra.mxu0 0.0
        %1798 = vmatpush.msra.mxu0 0.0
        %1799 = vmatpush.msra.mxu0 0.0
        %1800 = vmatpush.msra.mxu0 0.0
        %v1801 = vand.u32 %v1484, 4294901760
        %v1802 = vsub.f32 %v1484, %v1801
        %v1803 = vand.u32 %v1802, 4294901760
        %1804 = vmatpush.msra.mxu0 %v1803
        %v1805 = vand.u32 %v1477, 4294901760
        %1806 = vmatmul.f32.gmra.mxu0 %v1805
        %v1807 = vpop.f32.mrf.mxu0
        %v1808 = vadd.f32 %v1778, %v1807
        %v1809 = vand.u32 %v1480, 4294901760
        %1810 = vmatmul.f32.gmra.mxu0 %v1809
        %v1811 = vpop.f32.mrf.mxu0
        %v1812 = vadd.f32 %v1784, %v1811
        %1813 = vdwg.mxu0
        %1814 = vmatpush.msra.mxu0 0.0
        %1815 = vmatpush.msra.mxu0 0.0
        %1816 = vmatpush.msra.mxu0 0.0
        %1817 = vmatpush.msra.mxu0 0.0
        %1818 = vmatpush.msra.mxu0 0.0
        %1819 = vmatpush.msra.mxu0 0.0
        %1820 = vmatpush.msra.mxu0 0.0
        %1821 = vmatpush.msra.mxu0 0.0
        %1822 = vmatpush.msra.mxu0 0.0
        %1823 = vmatpush.msra.mxu0 0.0
        %1824 = vmatpush.msra.mxu0 0.0
        %1825 = vmatpush.msra.mxu0 0.0
        %1826 = vmatpush.msra.mxu0 0.0
        %1827 = vmatpush.msra.mxu0 0.0
        %1828 = vmatpush.msra.mxu0 0.0
        %v1829 = vand.u32 %v1484, 4294901760
        %1830 = vmatpush.msra.mxu0 %v1829
        %v1831 = vand.u32 %v1477, 4294901760
        %1832 = vmatmul.f32.gmra.mxu0 %v1831
        %v1833 = vpop.f32.mrf.mxu0
        %v1834 = vadd.f32 %v1808, %v1833
        %v1835 = vand.u32 %v1480, 4294901760
        %1836 = vmatmul.f32.gmra.mxu0 %v1835
        %v1837 = vpop.f32.mrf.mxu0
        %v1838 = vadd.f32 %v1812, %v1837
        %1839 = vdwg.mxu0
        %v1840 = vmax.f32 %v1657, 0.0
        %v1841 = vmax.f32 %v1834, 0.0
        %v1842 = vmax.f32 %v1661, 0.0
        %v1843 = vmax.f32 %v1838, 0.0
        %v1844 = vmin.f32 %v1840, 6.0
        %v1845 = vmin.f32 %v1841, 6.0
        %v1846 = vmin.f32 %v1842, 6.0
        %v1847 = vmin.f32 %v1843, 6.0
        %v1848 = vld [vmem:[%s7] sm:$0xff]
        %v1849 = vld [vmem:[%s7 + $0x8] sm:$0xff]
        %1850 = vrot.lane.b32.xlu0 %v1844, 16
        %v1851 = vpop.permute.xlu0 %1850
        %1852 = vrot.lane.b32.xlu0 %v1846, 16
        %v1853 = vpop.permute.xlu0 %1852
        %1854 = vrot.lane.b32.xlu0 %v1845, 16
        %v1855 = vpop.permute.xlu0 %1854
        %1856 = vrot.lane.b32.xlu0 %v1847, 16
        %v1857 = vpop.permute.xlu0 %1856
        %v1858 = vsel %vm1011, %v1851, %v1855
        %v1859 = vsel %vm1011, %v1853, %v1857
        %v1860 = vsel %vm1011, %v1855, %v1851
        %v1861 = vsel %vm1011, %v1857, %v1853
        %1862 = vrot.lane.b32.xlu0 %v1844, 112
        %v1863 = vpop.permute.xlu0 %1862
        %1864 = vrot.lane.b32.xlu0 %v1846, 112
        %v1865 = vpop.permute.xlu0 %1864
        %1866 = vrot.lane.b32.xlu0 %v1845, 112
        %v1867 = vpop.permute.xlu0 %1866
        %1868 = vrot.lane.b32.xlu0 %v1847, 112
        %v1869 = vpop.permute.xlu0 %1868
        %v1870 = vsel %vm1018, %v1863, %v1867
        %v1871 = vsel %vm1018, %v1865, %v1869
        %v1872 = vsel %vm1018, %v1867, %v1863
        %v1873 = vsel %vm1018, %v1869, %v1865
        %v1874 = vsel %vm1023, %v1870, %v1860
        %v1875 = vsel %vm1024, %v1872, %v1858
        %v1876 = vsel %vm1023, %v1871, %v1861
        %v1877 = vsel %vm1024, %v1873, %v1859
        %1878 = vrot.lane.b32.xlu0 %v1874, 1
        %v1879 = vpop.permute.xlu0 %1878
        %1880 = vrot.lane.b32.xlu0 %v1876, 1
        %v1881 = vpop.permute.xlu0 %1880
        %1882 = vrot.lane.b32.xlu0 %v1875, 1
        %v1883 = vpop.permute.xlu0 %1882
        %1884 = vrot.lane.b32.xlu0 %v1877, 1
        %v1885 = vpop.permute.xlu0 %1884
        %v1886 = vsel %vm1031, %v1879, %v1883
        %v1887 = vsel %vm1031, %v1881, %v1885
        %v1888 = vsel %vm1031, %v1883, %v1879
        %v1889 = vsel %vm1031, %v1885, %v1881
        %1890 = vrot.lane.b32.xlu0 %v1874, 127
        %v1891 = vpop.permute.xlu0 %1890
        %1892 = vrot.lane.b32.xlu0 %v1876, 127
        %v1893 = vpop.permute.xlu0 %1892
        %1894 = vrot.lane.b32.xlu0 %v1875, 127
        %v1895 = vpop.permute.xlu0 %1894
        %1896 = vrot.lane.b32.xlu0 %v1877, 127
        %v1897 = vpop.permute.xlu0 %1896
        %v1898 = vsel %vm1038, %v1891, %v1895
        %v1899 = vsel %vm1038, %v1893, %v1897
        %v1900 = vsel %vm1038, %v1895, %v1891
        %v1901 = vsel %vm1038, %v1897, %v1893
        %v1902 = vsel %vm1043, %v1898, %v1888
        %v1903 = vsel %vm1044, %v1900, %v1886
        %v1904 = vsel %vm1043, %v1899, %v1889
        %v1905 = vsel %vm1044, %v1901, %v1887
        %v1906 = vsel %vm1049, %v1888, %v1898
        %v1907 = vsel %vm1050, %v1886, %v1900
        %v1908 = vsel %vm1049, %v1889, %v1899
        %v1909 = vsel %vm1050, %v1887, %v1901
        %1911 = vset.pattern.permute.xlu0 0
        %1912 = vperm.xlu0 %1911, %v1848
        %v1913 = vpop.permute.xlu0 %1912
        %1916 = vset.pattern.permute.xlu0 0
        %1917 = vperm.xlu0 %1916, %v1849
        %v1918 = vpop.permute.xlu0 %1917
        %v1920 = vmul.f32 %v1913, %v1902
        %v1921 = vmul.f32 %v1913, %v1903
        %v1922 = vmul.f32 %v1918, %v1904
        %v1923 = vmul.f32 %v1918, %v1905
        %1924 = vset.pattern.permute.xlu0 1
        %1925 = vperm.xlu0 %1924, %v1848
        %v1926 = vpop.permute.xlu0 %1925
        %1928 = vset.pattern.permute.xlu0 1
        %1929 = vperm.xlu0 %1928, %v1849
        %v1930 = vpop.permute.xlu0 %1929
        %v1932 = vmul.f32 %v1926, %v1874
        %v1933 = vmul.f32 %v1926, %v1875
        %v1934 = vmul.f32 %v1930, %v1876
        %v1935 = vmul.f32 %v1930, %v1877
        %v1936 = vadd.f32 %v1920, %v1932
        %v1937 = vadd.f32 %v1921, %v1933
        %v1938 = vadd.f32 %v1922, %v1934
        %v1939 = vadd.f32 %v1923, %v1935
        %1940 = vset.pattern.permute.xlu0 2
        %1941 = vperm.xlu0 %1940, %v1848
        %v1942 = vpop.permute.xlu0 %1941
        %1944 = vset.pattern.permute.xlu0 2
        %1945 = vperm.xlu0 %1944, %v1849
        %v1946 = vpop.permute.xlu0 %1945
        %v1948 = vmul.f32 %v1942, %v1906
        %v1949 = vmul.f32 %v1942, %v1907
        %v1950 = vmul.f32 %v1946, %v1908
        %v1951 = vmul.f32 %v1946, %v1909
        %v1952 = vadd.f32 %v1936, %v1948
        %v1953 = vadd.f32 %v1937, %v1949
        %v1954 = vadd.f32 %v1938, %v1950
        %v1955 = vadd.f32 %v1939, %v1951
        %1956 = vrot.lane.b32.xlu0 %v1844, 1
        %v1957 = vpop.permute.xlu0 %1956
        %1958 = vrot.lane.b32.xlu0 %v1846, 1
        %v1959 = vpop.permute.xlu0 %1958
        %1960 = vrot.lane.b32.xlu0 %v1845, 1
        %v1961 = vpop.permute.xlu0 %1960
        %1962 = vrot.lane.b32.xlu0 %v1847, 1
        %v1963 = vpop.permute.xlu0 %1962
        %v1964 = vsel %vm1031, %v1957, %v1961
        %v1965 = vsel %vm1031, %v1959, %v1963
        %v1966 = vsel %vm1031, %v1961, %v1957
        %v1967 = vsel %vm1031, %v1963, %v1959
        %1968 = vrot.lane.b32.xlu0 %v1844, 127
        %v1969 = vpop.permute.xlu0 %1968
        %1970 = vrot.lane.b32.xlu0 %v1846, 127
        %v1971 = vpop.permute.xlu0 %1970
        %1972 = vrot.lane.b32.xlu0 %v1845, 127
        %v1973 = vpop.permute.xlu0 %1972
        %1974 = vrot.lane.b32.xlu0 %v1847, 127
        %v1975 = vpop.permute.xlu0 %1974
        %v1976 = vsel %vm1038, %v1969, %v1973
        %v1977 = vsel %vm1038, %v1971, %v1975
        %v1978 = vsel %vm1038, %v1973, %v1969
        %v1979 = vsel %vm1038, %v1975, %v1971
        %v1980 = vsel %vm1043, %v1976, %v1966
        %v1981 = vsel %vm1044, %v1978, %v1964
        %v1982 = vsel %vm1043, %v1977, %v1967
        %v1983 = vsel %vm1044, %v1979, %v1965
        %v1984 = vsel %vm1049, %v1966, %v1976
        %v1985 = vsel %vm1050, %v1964, %v1978
        %v1986 = vsel %vm1049, %v1967, %v1977
        %v1987 = vsel %vm1050, %v1965, %v1979
        %1988 = vset.pattern.permute.xlu0 3
        %1989 = vperm.xlu0 %1988, %v1848
        %v1990 = vpop.permute.xlu0 %1989
        %1992 = vset.pattern.permute.xlu0 3
        %1993 = vperm.xlu0 %1992, %v1849
        %v1994 = vpop.permute.xlu0 %1993
        %v1996 = vmul.f32 %v1990, %v1980
        %v1997 = vmul.f32 %v1990, %v1981
        %v1998 = vmul.f32 %v1994, %v1982
        %v1999 = vmul.f32 %v1994, %v1983
        %v2000 = vadd.f32 %v1952, %v1996
        %v2001 = vadd.f32 %v1953, %v1997
        %v2002 = vadd.f32 %v1954, %v1998
        %v2003 = vadd.f32 %v1955, %v1999
        %2004 = vset.pattern.permute.xlu0 4
        %2005 = vperm.xlu0 %2004, %v1848
        %v2006 = vpop.permute.xlu0 %2005
        %2008 = vset.pattern.permute.xlu0 4
        %2009 = vperm.xlu0 %2008, %v1849
        %v2010 = vpop.permute.xlu0 %2009
        %v2012 = vmul.f32 %v2006, %v1844
        %v2013 = vmul.f32 %v2006, %v1845
        %v2014 = vmul.f32 %v2010, %v1846
        %v2015 = vmul.f32 %v2010, %v1847
        %v2016 = vadd.f32 %v2000, %v2012
        %v2017 = vadd.f32 %v2001, %v2013
        %v2018 = vadd.f32 %v2002, %v2014
        %v2019 = vadd.f32 %v2003, %v2015
        %2020 = vset.pattern.permute.xlu0 5
        %2021 = vperm.xlu0 %2020, %v1848
        %v2022 = vpop.permute.xlu0 %2021
        %2024 = vset.pattern.permute.xlu0 5
        %2025 = vperm.xlu0 %2024, %v1849
        %v2026 = vpop.permute.xlu0 %2025
        %v2028 = vmul.f32 %v2022, %v1984
        %v2029 = vmul.f32 %v2022, %v1985
        %v2030 = vmul.f32 %v2026, %v1986
        %v2031 = vmul.f32 %v2026, %v1987
        %v2032 = vadd.f32 %v2016, %v2028
        %v2033 = vadd.f32 %v2017, %v2029
        %v2034 = vadd.f32 %v2018, %v2030
        %v2035 = vadd.f32 %v2019, %v2031
        %v2036 = vsel %vm1118, %v1860, %v1870
        %v2037 = vsel %vm1119, %v1858, %v1872
        %v2038 = vsel %vm1118, %v1861, %v1871
        %v2039 = vsel %vm1119, %v1859, %v1873
        %2040 = vrot.lane.b32.xlu0 %v2036, 1
        %v2041 = vpop.permute.xlu0 %2040
        %2042 = vrot.lane.b32.xlu0 %v2038, 1
        %v2043 = vpop.permute.xlu0 %2042
        %2044 = vrot.lane.b32.xlu0 %v2037, 1
        %v2045 = vpop.permute.xlu0 %2044
        %2046 = vrot.lane.b32.xlu0 %v2039, 1
        %v2047 = vpop.permute.xlu0 %2046
        %v2048 = vsel %vm1031, %v2041, %v2045
        %v2049 = vsel %vm1031, %v2043, %v2047
        %v2050 = vsel %vm1031, %v2045, %v2041
        %v2051 = vsel %vm1031, %v2047, %v2043
        %2052 = vrot.lane.b32.xlu0 %v2036, 127
        %v2053 = vpop.permute.xlu0 %2052
        %2054 = vrot.lane.b32.xlu0 %v2038, 127
        %v2055 = vpop.permute.xlu0 %2054
        %2056 = vrot.lane.b32.xlu0 %v2037, 127
        %v2057 = vpop.permute.xlu0 %2056
        %2058 = vrot.lane.b32.xlu0 %v2039, 127
        %v2059 = vpop.permute.xlu0 %2058
        %v2060 = vsel %vm1038, %v2053, %v2057
        %v2061 = vsel %vm1038, %v2055, %v2059
        %v2062 = vsel %vm1038, %v2057, %v2053
        %v2063 = vsel %vm1038, %v2059, %v2055
        %v2064 = vsel %vm1043, %v2060, %v2050
        %v2065 = vsel %vm1044, %v2062, %v2048
        %v2066 = vsel %vm1043, %v2061, %v2051
        %v2067 = vsel %vm1044, %v2063, %v2049
        %v2068 = vsel %vm1049, %v2050, %v2060
        %v2069 = vsel %vm1050, %v2048, %v2062
        %v2070 = vsel %vm1049, %v2051, %v2061
        %v2071 = vsel %vm1050, %v2049, %v2063
        %2072 = vset.pattern.permute.xlu0 6
        %2073 = vperm.xlu0 %2072, %v1848
        %v2074 = vpop.permute.xlu0 %2073
        %2076 = vset.pattern.permute.xlu0 6
        %2077 = vperm.xlu0 %2076, %v1849
        %v2078 = vpop.permute.xlu0 %2077
        %v2080 = vmul.f32 %v2074, %v2064
        %v2081 = vmul.f32 %v2074, %v2065
        %v2082 = vmul.f32 %v2078, %v2066
        %v2083 = vmul.f32 %v2078, %v2067
        %v2084 = vadd.f32 %v2032, %v2080
        %v2085 = vadd.f32 %v2033, %v2081
        %v2086 = vadd.f32 %v2034, %v2082
        %v2087 = vadd.f32 %v2035, %v2083
        %2088 = vset.pattern.permute.xlu0 7
        %2089 = vperm.xlu0 %2088, %v1848
        %v2090 = vpop.permute.xlu0 %2089
        %2092 = vset.pattern.permute.xlu0 7
        %2093 = vperm.xlu0 %2092, %v1849
        %v2094 = vpop.permute.xlu0 %2093
        %v2096 = vmul.f32 %v2090, %v2036
        %v2097 = vmul.f32 %v2090, %v2037
        %v2098 = vmul.f32 %v2094, %v2038
        %v2099 = vmul.f32 %v2094, %v2039
        %v2100 = vadd.f32 %v2084, %v2096
        %v2101 = vadd.f32 %v2085, %v2097
        %v2102 = vadd.f32 %v2086, %v2098
        %v2103 = vadd.f32 %v2087, %v2099
        %2104 = vset.pattern.permute.xlu0 8
        %2105 = vperm.xlu0 %2104, %v1848
        %v2106 = vpop.permute.xlu0 %2105
        %2108 = vset.pattern.permute.xlu0 8
        %2109 = vperm.xlu0 %2108, %v1849
        %v2110 = vpop.permute.xlu0 %2109
        %v2112 = vmul.f32 %v2106, %v2068
        %v2113 = vmul.f32 %v2106, %v2069
        %v2114 = vmul.f32 %v2110, %v2070
        %v2115 = vmul.f32 %v2110, %v2071
        %v2116 = vadd.f32 %v2100, %v2112
        %v2117 = vadd.f32 %v2101, %v2113
        %v2118 = vadd.f32 %v2102, %v2114
        %v2119 = vadd.f32 %v2103, %v2115
        %v2120 = vmax.f32 %v2116, 0.0
        %v2121 = vmax.f32 %v2117, 0.0
        %v2122 = vmax.f32 %v2118, 0.0
        %v2123 = vmax.f32 %v2119, 0.0
        %v2124 = vmin.f32 %v2120, 6.0
        %v2125 = vmin.f32 %v2121, 6.0
        %v2126 = vmin.f32 %v2122, 6.0
        %v2127 = vmin.f32 %v2123, 6.0
        %v2128 = vld [vmem:[%s8] sm:$0xff]
        %vm2129 = vcmask 130048
        %v2131 = vsel %vm2129, %v2128, 0
        %2133 = vmatpush.msra.mxu0 0.0
        %2134 = vmatpush.msra.mxu0 0.0
        %2135 = vmatpush.msra.mxu0 0.0
        %2136 = vmatpush.msra.mxu0 0.0
        %2137 = vmatpush.msra.mxu0 0.0
        %2138 = vmatpush.msra.mxu0 0.0
        %2139 = vmatpush.msra.mxu0 0.0
        %2140 = vmatpush.msra.mxu0 0.0
        %2141 = vmatpush.msra.mxu0 0.0
        %2142 = vmatpush.msra.mxu0 0.0
        %2143 = vmatpush.msra.mxu0 0.0
        %2144 = vmatpush.msra.mxu0 0.0
        %2145 = vmatpush.msra.mxu0 0.0
        %2146 = vmatpush.msra.mxu0 0.0
        %v2147 = vand.u32 %v2126, 4294901760
        %2148 = vmatpush.msra.mxu0 %v2147
        %v2149 = vand.u32 %v2124, 4294901760
        %2150 = vmatpush.msra.mxu0 %v2149
        %v2151 = vand.u32 %v2131, 4294901760
        %v2152 = vsub.f32 %v2131, %v2151
        %v2153 = vand.u32 %v2152, 4294901760
        %v2154 = vsub.f32 %v2152, %v2153
        %v2155 = vand.u32 %v2154, 4294901760
        %2156 = vmatmul.f32.gmra.mxu0 %v2155
        %v2157 = vpop.f32.mrf.mxu0
        %v2158 = vadd.f32 0.0, %v2157
        %2159 = vdwg.mxu0
        %2160 = vmatpush.msra.mxu0 0.0
        %2161 = vmatpush.msra.mxu0 0.0
        %2162 = vmatpush.msra.mxu0 0.0
        %2163 = vmatpush.msra.mxu0 0.0
        %2164 = vmatpush.msra.mxu0 0.0
        %2165 = vmatpush.msra.mxu0 0.0
        %2166 = vmatpush.msra.mxu0 0.0
        %2167 = vmatpush.msra.mxu0 0.0
        %2168 = vmatpush.msra.mxu0 0.0
        %2169 = vmatpush.msra.mxu0 0.0
        %2170 = vmatpush.msra.mxu0 0.0
        %2171 = vmatpush.msra.mxu0 0.0
        %2172 = vmatpush.msra.mxu0 0.0
        %2173 = vmatpush.msra.mxu0 0.0
        %v2174 = vand.u32 %v2126, 4294901760
        %v2175 = vsub.f32 %v2126, %v2174
        %v2176 = vand.u32 %v2175, 4294901760
        %v2177 = vsub.f32 %v2175, %v2176
        %v2178 = vand.u32 %v2177, 4294901760
        %2179 = vmatpush.msra.mxu0 %v2178
        %v2180 = vand.u32 %v2124, 4294901760
        %v2181 = vsub.f32 %v2124, %v2180
        %v2182 = vand.u32 %v2181, 4294901760
        %v2183 = vsub.f32 %v2181, %v2182
        %v2184 = vand.u32 %v2183, 4294901760
        %2185 = vmatpush.msra.mxu0 %v2184
        %v2186 = vand.u32 %v2131, 4294901760
        %2187 = vmatmul.f32.gmra.mxu0 %v2186
        %v2188 = vpop.f32.mrf.mxu0
        %v2189 = vadd.f32 %v2158, %v2188
        %2190 = vdwg.mxu0
        %2191 = vmatpush.msra.mxu0 0.0
        %2192 = vmatpush.msra.mxu0 0.0
        %2193 = vmatpush.msra.mxu0 0.0
        %2194 = vmatpush.msra.mxu0 0.0
        %2195 = vmatpush.msra.mxu0 0.0
        %2196 = vmatpush.msra.mxu0 0.0
        %2197 = vmatpush.msra.mxu0 0.0
        %2198 = vmatpush.msra.mxu0 0.0
        %2199 = vmatpush.msra.mxu0 0.0
        %2200 = vmatpush.msra.mxu0 0.0
        %2201 = vmatpush.msra.mxu0 0.0
        %2202 = vmatpush.msra.mxu0 0.0
        %2203 = vmatpush.msra.mxu0 0.0
        %2204 = vmatpush.msra.mxu0 0.0
        %v2205 = vand.u32 %v2126, 4294901760
        %v2206 = vsub.f32 %v2126, %v2205
        %2207 = vmatpush.msra.mxu0 %v2206
        %v2208 = vand.u32 %v2124, 4294901760
        %v2209 = vsub.f32 %v2124, %v2208
        %2210 = vmatpush.msra.mxu0 %v2209
        %v2211 = vand.u32 %v2131, 4294901760
        %v2212 = vsub.f32 %v2131, %v2211
        %2213 = vmatmul.f32.gmra.mxu0 %v2212
        %v2214 = vpop.f32.mrf.mxu0
        %v2215 = vadd.f32 %v2189, %v2214
        %2216 = vdwg.mxu0
        %2217 = vmatpush.msra.mxu0 0.0
        %2218 = vmatpush.msra.mxu0 0.0
        %2219 = vmatpush.msra.mxu0 0.0
        %2220 = vmatpush.msra.mxu0 0.0
        %2221 = vmatpush.msra.mxu0 0.0
        %2222 = vmatpush.msra.mxu0 0.0
        %2223 = vmatpush.msra.mxu0 0.0
        %2224 = vmatpush.msra.mxu0 0.0
        %2225 = vmatpush.msra.mxu0 0.0
        %2226 = vmatpush.msra.mxu0 0.0
        %2227 = vmatpush.msra.mxu0 0.0
        %2228 = vmatpush.msra.mxu0 0.0
        %2229 = vmatpush.msra.mxu0 0.0
        %2230 = vmatpush.msra.mxu0 0.0
        %v2231 = vand.u32 %v2126, 4294901760
        %2232 = vmatpush.msra.mxu0 %v2231
        %v2233 = vand.u32 %v2124, 4294901760
        %2234 = vmatpush.msra.mxu0 %v2233
        %v2235 = vand.u32 %v2131, 4294901760
        %v2236 = vsub.f32 %v2131, %v2235
        %v2237 = vand.u32 %v2236, 4294901760
        %2238 = vmatmul.f32.gmra.mxu0 %v2237
        %v2239 = vpop.f32.mrf.mxu0
        %v2240 = vadd.f32 %v2215, %v2239
        %2241 = vdwg.mxu0
        %2242 = vmatpush.msra.mxu0 0.0
        %2243 = vmatpush.msra.mxu0 0.0
        %2244 = vmatpush.msra.mxu0 0.0
        %2245 = vmatpush.msra.mxu0 0.0
        %2246 = vmatpush.msra.mxu0 0.0
        %2247 = vmatpush.msra.mxu0 0.0
        %2248 = vmatpush.msra.mxu0 0.0
        %2249 = vmatpush.msra.mxu0 0.0
        %2250 = vmatpush.msra.mxu0 0.0
        %2251 = vmatpush.msra.mxu0 0.0
        %2252 = vmatpush.msra.mxu0 0.0
        %2253 = vmatpush.msra.mxu0 0.0
        %2254 = vmatpush.msra.mxu0 0.0
        %2255 = vmatpush.msra.mxu0 0.0
        %v2256 = vand.u32 %v2126, 4294901760
        %v2257 = vsub.f32 %v2126, %v2256
        %v2258 = vand.u32 %v2257, 4294901760
        %2259 = vmatpush.msra.mxu0 %v2258
        %v2260 = vand.u32 %v2124, 4294901760
        %v2261 = vsub.f32 %v2124, %v2260
        %v2262 = vand.u32 %v2261, 4294901760
        %2263 = vmatpush.msra.mxu0 %v2262
        %v2264 = vand.u32 %v2131, 4294901760
        %2265 = vmatmul.f32.gmra.mxu0 %v2264
        %v2266 = vpop.f32.mrf.mxu0
        %v2267 = vadd.f32 %v2240, %v2266
        %2268 = vdwg.mxu0
        %2269 = vmatpush.msra.mxu0 0.0
        %2270 = vmatpush.msra.mxu0 0.0
        %2271 = vmatpush.msra.mxu0 0.0
        %2272 = vmatpush.msra.mxu0 0.0
        %2273 = vmatpush.msra.mxu0 0.0
        %2274 = vmatpush.msra.mxu0 0.0
        %2275 = vmatpush.msra.mxu0 0.0
        %2276 = vmatpush.msra.mxu0 0.0
        %2277 = vmatpush.msra.mxu0 0.0
        %2278 = vmatpush.msra.mxu0 0.0
        %2279 = vmatpush.msra.mxu0 0.0
        %2280 = vmatpush.msra.mxu0 0.0
        %2281 = vmatpush.msra.mxu0 0.0
        %2282 = vmatpush.msra.mxu0 0.0
        %v2283 = vand.u32 %v2126, 4294901760
        %2284 = vmatpush.msra.mxu0 %v2283
        %v2285 = vand.u32 %v2124, 4294901760
        %2286 = vmatpush.msra.mxu0 %v2285
        %v2287 = vand.u32 %v2131, 4294901760
        %2288 = vmatmul.f32.gmra.mxu0 %v2287
        %v2289 = vpop.f32.mrf.mxu0
        %v2290 = vadd.f32 %v2267, %v2289
        %2291 = vdwg.mxu0
        %2292 = vmatpush.msra.mxu0 0.0
        %2293 = vmatpush.msra.mxu0 0.0
        %2294 = vmatpush.msra.mxu0 0.0
        %2295 = vmatpush.msra.mxu0 0.0
        %2296 = vmatpush.msra.mxu0 0.0
        %2297 = vmatpush.msra.mxu0 0.0
        %2298 = vmatpush.msra.mxu0 0.0
        %2299 = vmatpush.msra.mxu0 0.0
        %2300 = vmatpush.msra.mxu0 0.0
        %2301 = vmatpush.msra.mxu0 0.0
        %2302 = vmatpush.msra.mxu0 0.0
        %2303 = vmatpush.msra.mxu0 0.0
        %2304 = vmatpush.msra.mxu0 0.0
        %2305 = vmatpush.msra.mxu0 0.0
        %v2306 = vand.u32 %v2127, 4294901760
        %2307 = vmatpush.msra.mxu0 %v2306
        %v2308 = vand.u32 %v2125, 4294901760
        %2309 = vmatpush.msra.mxu0 %v2308
        %v2310 = vand.u32 %v2131, 4294901760
        %v2311 = vsub.f32 %v2131, %v2310
        %v2312 = vand.u32 %v2311, 4294901760
        %v2313 = vsub.f32 %v2311, %v2312
        %v2314 = vand.u32 %v2313, 4294901760
        %2315 = vmatmul.f32.gmra.mxu0 %v2314
        %v2316 = vpop.f32.mrf.mxu0
        %v2317 = vadd.f32 0.0, %v2316
        %2318 = vdwg.mxu0
        %2319 = vmatpush.msra.mxu0 0.0
        %2320 = vmatpush.msra.mxu0 0.0
        %2321 = vmatpush.msra.mxu0 0.0
        %2322 = vmatpush.msra.mxu0 0.0
        %2323 = vmatpush.msra.mxu0 0.0
        %2324 = vmatpush.msra.mxu0 0.0
        %2325 = vmatpush.msra.mxu0 0.0
        %2326 = vmatpush.msra.mxu0 0.0
        %2327 = vmatpush.msra.mxu0 0.0
        %2328 = vmatpush.msra.mxu0 0.0
        %2329 = vmatpush.msra.mxu0 0.0
        %2330 = vmatpush.msra.mxu0 0.0
        %2331 = vmatpush.msra.mxu0 0.0
        %2332 = vmatpush.msra.mxu0 0.0
        %v2333 = vand.u32 %v2127, 4294901760
        %v2334 = vsub.f32 %v2127, %v2333
        %v2335 = vand.u32 %v2334, 4294901760
        %v2336 = vsub.f32 %v2334, %v2335
        %v2337 = vand.u32 %v2336, 4294901760
        %2338 = vmatpush.msra.mxu0 %v2337
        %v2339 = vand.u32 %v2125, 4294901760
        %v2340 = vsub.f32 %v2125, %v2339
        %v2341 = vand.u32 %v2340, 4294901760
        %v2342 = vsub.f32 %v2340, %v2341
        %v2343 = vand.u32 %v2342, 4294901760
        %2344 = vmatpush.msra.mxu0 %v2343
        %v2345 = vand.u32 %v2131, 4294901760
        %2346 = vmatmul.f32.gmra.mxu0 %v2345
        %v2347 = vpop.f32.mrf.mxu0
        %v2348 = vadd.f32 %v2317, %v2347
        %2349 = vdwg.mxu0
        %2350 = vmatpush.msra.mxu0 0.0
        %2351 = vmatpush.msra.mxu0 0.0
        %2352 = vmatpush.msra.mxu0 0.0
        %2353 = vmatpush.msra.mxu0 0.0
        %2354 = vmatpush.msra.mxu0 0.0
        %2355 = vmatpush.msra.mxu0 0.0
        %2356 = vmatpush.msra.mxu0 0.0
        %2357 = vmatpush.msra.mxu0 0.0
        %2358 = vmatpush.msra.mxu0 0.0
        %2359 = vmatpush.msra.mxu0 0.0
        %2360 = vmatpush.msra.mxu0 0.0
        %2361 = vmatpush.msra.mxu0 0.0
        %2362 = vmatpush.msra.mxu0 0.0
        %2363 = vmatpush.msra.mxu0 0.0
        %v2364 = vand.u32 %v2127, 4294901760
        %v2365 = vsub.f32 %v2127, %v2364
        %2366 = vmatpush.msra.mxu0 %v2365
        %v2367 = vand.u32 %v2125, 4294901760
        %v2368 = vsub.f32 %v2125, %v2367
        %2369 = vmatpush.msra.mxu0 %v2368
        %v2370 = vand.u32 %v2131, 4294901760
        %v2371 = vsub.f32 %v2131, %v2370
        %2372 = vmatmul.f32.gmra.mxu0 %v2371
        %v2373 = vpop.f32.mrf.mxu0
        %v2374 = vadd.f32 %v2348, %v2373
        %2375 = vdwg.mxu0
        %2376 = vmatpush.msra.mxu0 0.0
        %2377 = vmatpush.msra.mxu0 0.0
        %2378 = vmatpush.msra.mxu0 0.0
        %2379 = vmatpush.msra.mxu0 0.0
        %2380 = vmatpush.msra.mxu0 0.0
        %2381 = vmatpush.msra.mxu0 0.0
        %2382 = vmatpush.msra.mxu0 0.0
        %2383 = vmatpush.msra.mxu0 0.0
        %2384 = vmatpush.msra.mxu0 0.0
        %2385 = vmatpush.msra.mxu0 0.0
        %2386 = vmatpush.msra.mxu0 0.0
        %2387 = vmatpush.msra.mxu0 0.0
        %2388 = vmatpush.msra.mxu0 0.0
        %2389 = vmatpush.msra.mxu0 0.0
        %v2390 = vand.u32 %v2127, 4294901760
        %2391 = vmatpush.msra.mxu0 %v2390
        %v2392 = vand.u32 %v2125, 4294901760
        %2393 = vmatpush.msra.mxu0 %v2392
        %v2394 = vand.u32 %v2131, 4294901760
        %v2395 = vsub.f32 %v2131, %v2394
        %v2396 = vand.u32 %v2395, 4294901760
        %2397 = vmatmul.f32.gmra.mxu0 %v2396
        %v2398 = vpop.f32.mrf.mxu0
        %v2399 = vadd.f32 %v2374, %v2398
        %2400 = vdwg.mxu0
        %2401 = vmatpush.msra.mxu0 0.0
        %2402 = vmatpush.msra.mxu0 0.0
        %2403 = vmatpush.msra.mxu0 0.0
        %2404 = vmatpush.msra.mxu0 0.0
        %2405 = vmatpush.msra.mxu0 0.0
        %2406 = vmatpush.msra.mxu0 0.0
        %2407 = vmatpush.msra.mxu0 0.0
        %2408 = vmatpush.msra.mxu0 0.0
        %2409 = vmatpush.msra.mxu0 0.0
        %2410 = vmatpush.msra.mxu0 0.0
        %2411 = vmatpush.msra.mxu0 0.0
        %2412 = vmatpush.msra.mxu0 0.0
        %2413 = vmatpush.msra.mxu0 0.0
        %2414 = vmatpush.msra.mxu0 0.0
        %v2415 = vand.u32 %v2127, 4294901760
        %v2416 = vsub.f32 %v2127, %v2415
        %v2417 = vand.u32 %v2416, 4294901760
        %2418 = vmatpush.msra.mxu0 %v2417
        %v2419 = vand.u32 %v2125, 4294901760
        %v2420 = vsub.f32 %v2125, %v2419
        %v2421 = vand.u32 %v2420, 4294901760
        %2422 = vmatpush.msra.mxu0 %v2421
        %v2423 = vand.u32 %v2131, 4294901760
        %2424 = vmatmul.f32.gmra.mxu0 %v2423
        %v2425 = vpop.f32.mrf.mxu0
        %v2426 = vadd.f32 %v2399, %v2425
        %2427 = vdwg.mxu0
        %2428 = vmatpush.msra.mxu0 0.0
        %2429 = vmatpush.msra.mxu0 0.0
        %2430 = vmatpush.msra.mxu0 0.0
        %2431 = vmatpush.msra.mxu0 0.0
        %2432 = vmatpush.msra.mxu0 0.0
        %2433 = vmatpush.msra.mxu0 0.0
        %2434 = vmatpush.msra.mxu0 0.0
        %2435 = vmatpush.msra.mxu0 0.0
        %2436 = vmatpush.msra.mxu0 0.0
        %2437 = vmatpush.msra.mxu0 0.0
        %2438 = vmatpush.msra.mxu0 0.0
        %2439 = vmatpush.msra.mxu0 0.0
        %2440 = vmatpush.msra.mxu0 0.0
        %2441 = vmatpush.msra.mxu0 0.0
        %v2442 = vand.u32 %v2127, 4294901760
        %2443 = vmatpush.msra.mxu0 %v2442
        %v2444 = vand.u32 %v2125, 4294901760
        %2445 = vmatpush.msra.mxu0 %v2444
        %v2446 = vand.u32 %v2131, 4294901760
        %2447 = vmatmul.f32.gmra.mxu0 %v2446
        %v2448 = vpop.f32.mrf.mxu0
        %v2449 = vadd.f32 %v2426, %v2448
        %2450 = vdwg.mxu0
        %v2451 = vmul.f32 %v2290, 1.442695
        %v2452 = vpow.pop %v2451
        %v2453 = vmul.f32 %v2449, 1.442695
        %v2454 = vpow.pop %v2453
        %v2455 = vmul.f32 %v550, %v2452
        %v2456 = vmul.f32 %v696, %v2454
        %v2459 = vrot.slane %v2290, 4
        %v2460 = vrot.slane %v2449, 4
        %v2463 = vadd.f32 %v2455, %v2459
        %v2464 = vadd.f32 %v2456, %v2460
        %v2465 = vsel %vm703, %v2463, %v1468
        %v2466 = vsel %vm703, %v2464, %v1469
        %s2467 = scalar_lea.vmem %s1, 8
        %v2468 = vld [vmem:[%s2467] sm:$0xff]
        %s2469 = scalar_lea.vmem %s2, 8
        %v2470 = vld [vmem:[%s2469] sm:$0xff]
        %2472 = vset.pattern.permute.xlu0 0
        %2473 = vperm.xlu0 %2472, %v2470
        %v2474 = vpop.permute.xlu0 %2473
        %v2477 = vsel %vm402, %v2468, 0
        %2479 = vmatpush.msra.mxu0 0.0
        %2480 = vmatpush.msra.mxu0 0.0
        %2481 = vmatpush.msra.mxu0 0.0
        %2482 = vmatpush.msra.mxu0 0.0
        %2483 = vmatpush.msra.mxu0 0.0
        %2484 = vmatpush.msra.mxu0 0.0
        %2485 = vmatpush.msra.mxu0 0.0
        %2486 = vmatpush.msra.mxu0 0.0
        %2487 = vmatpush.msra.mxu0 0.0
        %2488 = vmatpush.msra.mxu0 0.0
        %2489 = vmatpush.msra.mxu0 0.0
        %2490 = vmatpush.msra.mxu0 0.0
        %2491 = vmatpush.msra.mxu0 0.0
        %2492 = vmatpush.msra.mxu0 0.0
        %2493 = vmatpush.msra.mxu0 0.0
        %v2494 = vand.u32 %v2465, 4294901760
        %2495 = vmatpush.msra.mxu0 %v2494
        %v2496 = vand.u32 %v2477, 4294901760
        %v2497 = vsub.f32 %v2477, %v2496
        %v2498 = vand.u32 %v2497, 4294901760
        %v2499 = vsub.f32 %v2497, %v2498
        %v2500 = vand.u32 %v2499, 4294901760
        %2501 = vmatmul.f32.gmra.mxu0 %v2500
        %v2502 = vpop.f32.mrf.mxu0
        %v2503 = vadd.f32 %v2474, %v2502
        %2504 = vdwg.mxu0
        %2505 = vmatpush.msra.mxu0 0.0
        %2506 = vmatpush.msra.mxu0 0.0
        %2507 = vmatpush.msra.mxu0 0.0
        %2508 = vmatpush.msra.mxu0 0.0
        %2509 = vmatpush.msra.mxu0 0.0
        %2510 = vmatpush.msra.mxu0 0.0
        %2511 = vmatpush.msra.mxu0 0.0
        %2512 = vmatpush.msra.mxu0 0.0
        %2513 = vmatpush.msra.mxu0 0.0
        %2514 = vmatpush.msra.mxu0 0.0
        %2515 = vmatpush.msra.mxu0 0.0
        %2516 = vmatpush.msra.mxu0 0.0
        %2517 = vmatpush.msra.mxu0 0.0
        %2518 = vmatpush.msra.mxu0 0.0
        %2519 = vmatpush.msra.mxu0 0.0
        %v2520 = vand.u32 %v2465, 4294901760
        %v2521 = vsub.f32 %v2465, %v2520
        %v2522 = vand.u32 %v2521, 4294901760
        %v2523 = vsub.f32 %v2521, %v2522
        %v2524 = vand.u32 %v2523, 4294901760
        %2525 = vmatpush.msra.mxu0 %v2524
        %v2526 = vand.u32 %v2477, 4294901760
        %2527 = vmatmul.f32.gmra.mxu0 %v2526
        %v2528 = vpop.f32.mrf.mxu0
        %v2529 = vadd.f32 %v2503, %v2528
        %2530 = vdwg.mxu0
        %2531 = vmatpush.msra.mxu0 0.0
        %2532 = vmatpush.msra.mxu0 0.0
        %2533 = vmatpush.msra.mxu0 0.0
        %2534 = vmatpush.msra.mxu0 0.0
        %2535 = vmatpush.msra.mxu0 0.0
        %2536 = vmatpush.msra.mxu0 0.0
        %2537 = vmatpush.msra.mxu0 0.0
        %2538 = vmatpush.msra.mxu0 0.0
        %2539 = vmatpush.msra.mxu0 0.0
        %2540 = vmatpush.msra.mxu0 0.0
        %2541 = vmatpush.msra.mxu0 0.0
        %2542 = vmatpush.msra.mxu0 0.0
        %2543 = vmatpush.msra.mxu0 0.0
        %2544 = vmatpush.msra.mxu0 0.0
        %2545 = vmatpush.msra.mxu0 0.0
        %v2546 = vand.u32 %v2465, 4294901760
        %v2547 = vsub.f32 %v2465, %v2546
        %2548 = vmatpush.msra.mxu0 %v2547
        %v2549 = vand.u32 %v2477, 4294901760
        %v2550 = vsub.f32 %v2477, %v2549
        %2551 = vmatmul.f32.gmra.mxu0 %v2550
        %v2552 = vpop.f32.mrf.mxu0
        %v2553 = vadd.f32 %v2529, %v2552
        %2554 = vdwg.mxu0
        %2555 = vmatpush.msra.mxu0 0.0
        %2556 = vmatpush.msra.mxu0 0.0
        %2557 = vmatpush.msra.mxu0 0.0
        %2558 = vmatpush.msra.mxu0 0.0
        %2559 = vmatpush.msra.mxu0 0.0
        %2560 = vmatpush.msra.mxu0 0.0
        %2561 = vmatpush.msra.mxu0 0.0
        %2562 = vmatpush.msra.mxu0 0.0
        %2563 = vmatpush.msra.mxu0 0.0
        %2564 = vmatpush.msra.mxu0 0.0
        %2565 = vmatpush.msra.mxu0 0.0
        %2566 = vmatpush.msra.mxu0 0.0
        %2567 = vmatpush.msra.mxu0 0.0
        %2568 = vmatpush.msra.mxu0 0.0
        %2569 = vmatpush.msra.mxu0 0.0
        %v2570 = vand.u32 %v2465, 4294901760
        %2571 = vmatpush.msra.mxu0 %v2570
        %v2572 = vand.u32 %v2477, 4294901760
        %v2573 = vsub.f32 %v2477, %v2572
        %v2574 = vand.u32 %v2573, 4294901760
        %2575 = vmatmul.f32.gmra.mxu0 %v2574
        %v2576 = vpop.f32.mrf.mxu0
        %v2577 = vadd.f32 %v2553, %v2576
        %2578 = vdwg.mxu0
        %2579 = vmatpush.msra.mxu0 0.0
        %2580 = vmatpush.msra.mxu0 0.0
        %2581 = vmatpush.msra.mxu0 0.0
        %2582 = vmatpush.msra.mxu0 0.0
        %2583 = vmatpush.msra.mxu0 0.0
        %2584 = vmatpush.msra.mxu0 0.0
        %2585 = vmatpush.msra.mxu0 0.0
        %2586 = vmatpush.msra.mxu0 0.0
        %2587 = vmatpush.msra.mxu0 0.0
        %2588 = vmatpush.msra.mxu0 0.0
        %2589 = vmatpush.msra.mxu0 0.0
        %2590 = vmatpush.msra.mxu0 0.0
        %2591 = vmatpush.msra.mxu0 0.0
        %2592 = vmatpush.msra.mxu0 0.0
        %2593 = vmatpush.msra.mxu0 0.0
        %v2594 = vand.u32 %v2465, 4294901760
        %v2595 = vsub.f32 %v2465, %v2594
        %v2596 = vand.u32 %v2595, 4294901760
        %2597 = vmatpush.msra.mxu0 %v2596
        %v2598 = vand.u32 %v2477, 4294901760
        %2599 = vmatmul.f32.gmra.mxu0 %v2598
        %v2600 = vpop.f32.mrf.mxu0
        %v2601 = vadd.f32 %v2577, %v2600
        %2602 = vdwg.mxu0
        %2603 = vmatpush.msra.mxu0 0.0
        %2604 = vmatpush.msra.mxu0 0.0
        %2605 = vmatpush.msra.mxu0 0.0
        %2606 = vmatpush.msra.mxu0 0.0
        %2607 = vmatpush.msra.mxu0 0.0
        %2608 = vmatpush.msra.mxu0 0.0
        %2609 = vmatpush.msra.mxu0 0.0
        %2610 = vmatpush.msra.mxu0 0.0
        %2611 = vmatpush.msra.mxu0 0.0
        %2612 = vmatpush.msra.mxu0 0.0
        %2613 = vmatpush.msra.mxu0 0.0
        %2614 = vmatpush.msra.mxu0 0.0
        %2615 = vmatpush.msra.mxu0 0.0
        %2616 = vmatpush.msra.mxu0 0.0
        %2617 = vmatpush.msra.mxu0 0.0
        %v2618 = vand.u32 %v2465, 4294901760
        %2619 = vmatpush.msra.mxu0 %v2618
        %v2620 = vand.u32 %v2477, 4294901760
        %2621 = vmatmul.f32.gmra.mxu0 %v2620
        %v2622 = vpop.f32.mrf.mxu0
        %v2623 = vadd.f32 %v2601, %v2622
        %2624 = vdwg.mxu0
        %2625 = vmatpush.msra.mxu0 0.0
        %2626 = vmatpush.msra.mxu0 0.0
        %2627 = vmatpush.msra.mxu0 0.0
        %2628 = vmatpush.msra.mxu0 0.0
        %2629 = vmatpush.msra.mxu0 0.0
        %2630 = vmatpush.msra.mxu0 0.0
        %2631 = vmatpush.msra.mxu0 0.0
        %2632 = vmatpush.msra.mxu0 0.0
        %2633 = vmatpush.msra.mxu0 0.0
        %2634 = vmatpush.msra.mxu0 0.0
        %2635 = vmatpush.msra.mxu0 0.0
        %2636 = vmatpush.msra.mxu0 0.0
        %2637 = vmatpush.msra.mxu0 0.0
        %2638 = vmatpush.msra.mxu0 0.0
        %2639 = vmatpush.msra.mxu0 0.0
        %v2640 = vand.u32 %v2466, 4294901760
        %2641 = vmatpush.msra.mxu0 %v2640
        %v2642 = vand.u32 %v2477, 4294901760
        %v2643 = vsub.f32 %v2477, %v2642
        %v2644 = vand.u32 %v2643, 4294901760
        %v2645 = vsub.f32 %v2643, %v2644
        %v2646 = vand.u32 %v2645, 4294901760
        %2647 = vmatmul.f32.gmra.mxu0 %v2646
        %v2648 = vpop.f32.mrf.mxu0
        %v2649 = vadd.f32 %v2474, %v2648
        %2650 = vdwg.mxu0
        %2651 = vmatpush.msra.mxu0 0.0
        %2652 = vmatpush.msra.mxu0 0.0
        %2653 = vmatpush.msra.mxu0 0.0
        %2654 = vmatpush.msra.mxu0 0.0
        %2655 = vmatpush.msra.mxu0 0.0
        %2656 = vmatpush.msra.mxu0 0.0
        %2657 = vmatpush.msra.mxu0 0.0
        %2658 = vmatpush.msra.mxu0 0.0
        %2659 = vmatpush.msra.mxu0 0.0
        %2660 = vmatpush.msra.mxu0 0.0
        %2661 = vmatpush.msra.mxu0 0.0
        %2662 = vmatpush.msra.mxu0 0.0
        %2663 = vmatpush.msra.mxu0 0.0
        %2664 = vmatpush.msra.mxu0 0.0
        %2665 = vmatpush.msra.mxu0 0.0
        %v2666 = vand.u32 %v2466, 4294901760
        %v2667 = vsub.f32 %v2466, %v2666
        %v2668 = vand.u32 %v2667, 4294901760
        %v2669 = vsub.f32 %v2667, %v2668
        %v2670 = vand.u32 %v2669, 4294901760
        %2671 = vmatpush.msra.mxu0 %v2670
        %v2672 = vand.u32 %v2477, 4294901760
        %2673 = vmatmul.f32.gmra.mxu0 %v2672
        %v2674 = vpop.f32.mrf.mxu0
        %v2675 = vadd.f32 %v2649, %v2674
        %2676 = vdwg.mxu0
        %2677 = vmatpush.msra.mxu0 0.0
        %2678 = vmatpush.msra.mxu0 0.0
        %2679 = vmatpush.msra.mxu0 0.0
        %2680 = vmatpush.msra.mxu0 0.0
        %2681 = vmatpush.msra.mxu0 0.0
        %2682 = vmatpush.msra.mxu0 0.0
        %2683 = vmatpush.msra.mxu0 0.0
        %2684 = vmatpush.msra.mxu0 0.0
        %2685 = vmatpush.msra.mxu0 0.0
        %2686 = vmatpush.msra.mxu0 0.0
        %2687 = vmatpush.msra.mxu0 0.0
        %2688 = vmatpush.msra.mxu0 0.0
        %2689 = vmatpush.msra.mxu0 0.0
        %2690 = vmatpush.msra.mxu0 0.0
        %2691 = vmatpush.msra.mxu0 0.0
        %v2692 = vand.u32 %v2466, 4294901760
        %v2693 = vsub.f32 %v2466, %v2692
        %2694 = vmatpush.msra.mxu0 %v2693
        %v2695 = vand.u32 %v2477, 4294901760
        %v2696 = vsub.f32 %v2477, %v2695
        %2697 = vmatmul.f32.gmra.mxu0 %v2696
        %v2698 = vpop.f32.mrf.mxu0
        %v2699 = vadd.f32 %v2675, %v2698
        %2700 = vdwg.mxu0
        %2701 = vmatpush.msra.mxu0 0.0
        %2702 = vmatpush.msra.mxu0 0.0
        %2703 = vmatpush.msra.mxu0 0.0
        %2704 = vmatpush.msra.mxu0 0.0
        %2705 = vmatpush.msra.mxu0 0.0
        %2706 = vmatpush.msra.mxu0 0.0
        %2707 = vmatpush.msra.mxu0 0.0
        %2708 = vmatpush.msra.mxu0 0.0
        %2709 = vmatpush.msra.mxu0 0.0
        %2710 = vmatpush.msra.mxu0 0.0
        %2711 = vmatpush.msra.mxu0 0.0
        %2712 = vmatpush.msra.mxu0 0.0
        %2713 = vmatpush.msra.mxu0 0.0
        %2714 = vmatpush.msra.mxu0 0.0
        %2715 = vmatpush.msra.mxu0 0.0
        %v2716 = vand.u32 %v2466, 4294901760
        %2717 = vmatpush.msra.mxu0 %v2716
        %v2718 = vand.u32 %v2477, 4294901760
        %v2719 = vsub.f32 %v2477, %v2718
        %v2720 = vand.u32 %v2719, 4294901760
        %2721 = vmatmul.f32.gmra.mxu0 %v2720
        %v2722 = vpop.f32.mrf.mxu0
        %v2723 = vadd.f32 %v2699, %v2722
        %2724 = vdwg.mxu0
        %2725 = vmatpush.msra.mxu0 0.0
        %2726 = vmatpush.msra.mxu0 0.0
        %2727 = vmatpush.msra.mxu0 0.0
        %2728 = vmatpush.msra.mxu0 0.0
        %2729 = vmatpush.msra.mxu0 0.0
        %2730 = vmatpush.msra.mxu0 0.0
        %2731 = vmatpush.msra.mxu0 0.0
        %2732 = vmatpush.msra.mxu0 0.0
        %2733 = vmatpush.msra.mxu0 0.0
        %2734 = vmatpush.msra.mxu0 0.0
        %2735 = vmatpush.msra.mxu0 0.0
        %2736 = vmatpush.msra.mxu0 0.0
        %2737 = vmatpush.msra.mxu0 0.0
        %2738 = vmatpush.msra.mxu0 0.0
        %2739 = vmatpush.msra.mxu0 0.0
        %v2740 = vand.u32 %v2466, 4294901760
        %v2741 = vsub.f32 %v2466, %v2740
        %v2742 = vand.u32 %v2741, 4294901760
        %2743 = vmatpush.msra.mxu0 %v2742
        %v2744 = vand.u32 %v2477, 4294901760
        %2745 = vmatmul.f32.gmra.mxu0 %v2744
        %v2746 = vpop.f32.mrf.mxu0
        %v2747 = vadd.f32 %v2723, %v2746
        %2748 = vdwg.mxu0
        %2749 = vmatpush.msra.mxu0 0.0
        %2750 = vmatpush.msra.mxu0 0.0
        %2751 = vmatpush.msra.mxu0 0.0
        %2752 = vmatpush.msra.mxu0 0.0
        %2753 = vmatpush.msra.mxu0 0.0
        %2754 = vmatpush.msra.mxu0 0.0
        %2755 = vmatpush.msra.mxu0 0.0
        %2756 = vmatpush.msra.mxu0 0.0
        %2757 = vmatpush.msra.mxu0 0.0
        %2758 = vmatpush.msra.mxu0 0.0
        %2759 = vmatpush.msra.mxu0 0.0
        %2760 = vmatpush.msra.mxu0 0.0
        %2761 = vmatpush.msra.mxu0 0.0
        %2762 = vmatpush.msra.mxu0 0.0
        %2763 = vmatpush.msra.mxu0 0.0
        %v2764 = vand.u32 %v2466, 4294901760
        %2765 = vmatpush.msra.mxu0 %v2764
        %v2766 = vand.u32 %v2477, 4294901760
        %2767 = vmatmul.f32.gmra.mxu0 %v2766
        %v2768 = vpop.f32.mrf.mxu0
        %v2769 = vadd.f32 %v2747, %v2768
        %2770 = vdwg.mxu0
        %s2771 = scalar_lea.vmem %s3, 8
        %v2772 = vld [vmem:[%s2771] sm:$0xff]
        %v2774 = vsel %vm699, %v2772, 0
        %v2777 = vsel %vm703, %v2623, 0
        %v2780 = vsel %vm703, %v2769, 0
        %2782 = vmatpush.msra.mxu0 0.0
        %2783 = vmatpush.msra.mxu0 0.0
        %2784 = vmatpush.msra.mxu0 0.0
        %2785 = vmatpush.msra.mxu0 0.0
        %2786 = vmatpush.msra.mxu0 0.0
        %2787 = vmatpush.msra.mxu0 0.0
        %2788 = vmatpush.msra.mxu0 0.0
        %2789 = vmatpush.msra.mxu0 0.0
        %2790 = vmatpush.msra.mxu0 0.0
        %2791 = vmatpush.msra.mxu0 0.0
        %2792 = vmatpush.msra.mxu0 0.0
        %2793 = vmatpush.msra.mxu0 0.0
        %2794 = vmatpush.msra.mxu0 0.0
        %2795 = vmatpush.msra.mxu0 0.0
        %2796 = vmatpush.msra.mxu0 0.0
        %v2797 = vand.u32 %v2777, 4294901760
        %2798 = vmatpush.msra.mxu0 %v2797
        %v2799 = vand.u32 %v2774, 4294901760
        %v2800 = vsub.f32 %v2774, %v2799
        %v2801 = vand.u32 %v2800, 4294901760
        %v2802 = vsub.f32 %v2800, %v2801
        %v2803 = vand.u32 %v2802, 4294901760
        %2804 = vmatmul.f32.gmra.mxu0 %v2803
        %v2805 = vpop.f32.mrf.mxu0
        %v2806 = vadd.f32 0.0, %v2805
        %2807 = vdwg.mxu0
        %2808 = vmatpush.msra.mxu0 0.0
        %2809 = vmatpush.msra.mxu0 0.0
        %2810 = vmatpush.msra.mxu0 0.0
        %2811 = vmatpush.msra.mxu0 0.0
        %2812 = vmatpush.msra.mxu0 0.0
        %2813 = vmatpush.msra.mxu0 0.0
        %2814 = vmatpush.msra.mxu0 0.0
        %2815 = vmatpush.msra.mxu0 0.0
        %2816 = vmatpush.msra.mxu0 0.0
        %2817 = vmatpush.msra.mxu0 0.0
        %2818 = vmatpush.msra.mxu0 0.0
        %2819 = vmatpush.msra.mxu0 0.0
        %2820 = vmatpush.msra.mxu0 0.0
        %2821 = vmatpush.msra.mxu0 0.0
        %2822 = vmatpush.msra.mxu0 0.0
        %v2823 = vand.u32 %v2777, 4294901760
        %v2824 = vsub.f32 %v2777, %v2823
        %v2825 = vand.u32 %v2824, 4294901760
        %v2826 = vsub.f32 %v2824, %v2825
        %v2827 = vand.u32 %v2826, 4294901760
        %2828 = vmatpush.msra.mxu0 %v2827
        %v2829 = vand.u32 %v2774, 4294901760
        %2830 = vmatmul.f32.gmra.mxu0 %v2829
        %v2831 = vpop.f32.mrf.mxu0
        %v2832 = vadd.f32 %v2806, %v2831
        %2833 = vdwg.mxu0
        %2834 = vmatpush.msra.mxu0 0.0
        %2835 = vmatpush.msra.mxu0 0.0
        %2836 = vmatpush.msra.mxu0 0.0
        %2837 = vmatpush.msra.mxu0 0.0
        %2838 = vmatpush.msra.mxu0 0.0
        %2839 = vmatpush.msra.mxu0 0.0
        %2840 = vmatpush.msra.mxu0 0.0
        %2841 = vmatpush.msra.mxu0 0.0
        %2842 = vmatpush.msra.mxu0 0.0
        %2843 = vmatpush.msra.mxu0 0.0
        %2844 = vmatpush.msra.mxu0 0.0
        %2845 = vmatpush.msra.mxu0 0.0
        %2846 = vmatpush.msra.mxu0 0.0
        %2847 = vmatpush.msra.mxu0 0.0
        %2848 = vmatpush.msra.mxu0 0.0
        %v2849 = vand.u32 %v2777, 4294901760
        %v2850 = vsub.f32 %v2777, %v2849
        %2851 = vmatpush.msra.mxu0 %v2850
        %v2852 = vand.u32 %v2774, 4294901760
        %v2853 = vsub.f32 %v2774, %v2852
        %2854 = vmatmul.f32.gmra.mxu0 %v2853
        %v2855 = vpop.f32.mrf.mxu0
        %v2856 = vadd.f32 %v2832, %v2855
        %2857 = vdwg.mxu0
        %2858 = vmatpush.msra.mxu0 0.0
        %2859 = vmatpush.msra.mxu0 0.0
        %2860 = vmatpush.msra.mxu0 0.0
        %2861 = vmatpush.msra.mxu0 0.0
        %2862 = vmatpush.msra.mxu0 0.0
        %2863 = vmatpush.msra.mxu0 0.0
        %2864 = vmatpush.msra.mxu0 0.0
        %2865 = vmatpush.msra.mxu0 0.0
        %2866 = vmatpush.msra.mxu0 0.0
        %2867 = vmatpush.msra.mxu0 0.0
        %2868 = vmatpush.msra.mxu0 0.0
        %2869 = vmatpush.msra.mxu0 0.0
        %2870 = vmatpush.msra.mxu0 0.0
        %2871 = vmatpush.msra.mxu0 0.0
        %2872 = vmatpush.msra.mxu0 0.0
        %v2873 = vand.u32 %v2777, 4294901760
        %2874 = vmatpush.msra.mxu0 %v2873
        %v2875 = vand.u32 %v2774, 4294901760
        %v2876 = vsub.f32 %v2774, %v2875
        %v2877 = vand.u32 %v2876, 4294901760
        %2878 = vmatmul.f32.gmra.mxu0 %v2877
        %v2879 = vpop.f32.mrf.mxu0
        %v2880 = vadd.f32 %v2856, %v2879
        %2881 = vdwg.mxu0
        %2882 = vmatpush.msra.mxu0 0.0
        %2883 = vmatpush.msra.mxu0 0.0
        %2884 = vmatpush.msra.mxu0 0.0
        %2885 = vmatpush.msra.mxu0 0.0
        %2886 = vmatpush.msra.mxu0 0.0
        %2887 = vmatpush.msra.mxu0 0.0
        %2888 = vmatpush.msra.mxu0 0.0
        %2889 = vmatpush.msra.mxu0 0.0
        %2890 = vmatpush.msra.mxu0 0.0
        %2891 = vmatpush.msra.mxu0 0.0
        %2892 = vmatpush.msra.mxu0 0.0
        %2893 = vmatpush.msra.mxu0 0.0
        %2894 = vmatpush.msra.mxu0 0.0
        %2895 = vmatpush.msra.mxu0 0.0
        %2896 = vmatpush.msra.mxu0 0.0
        %v2897 = vand.u32 %v2777, 4294901760
        %v2898 = vsub.f32 %v2777, %v2897
        %v2899 = vand.u32 %v2898, 4294901760
        %2900 = vmatpush.msra.mxu0 %v2899
        %v2901 = vand.u32 %v2774, 4294901760
        %2902 = vmatmul.f32.gmra.mxu0 %v2901
        %v2903 = vpop.f32.mrf.mxu0
        %v2904 = vadd.f32 %v2880, %v2903
        %2905 = vdwg.mxu0
        %2906 = vmatpush.msra.mxu0 0.0
        %2907 = vmatpush.msra.mxu0 0.0
        %2908 = vmatpush.msra.mxu0 0.0
        %2909 = vmatpush.msra.mxu0 0.0
        %2910 = vmatpush.msra.mxu0 0.0
        %2911 = vmatpush.msra.mxu0 0.0
        %2912 = vmatpush.msra.mxu0 0.0
        %2913 = vmatpush.msra.mxu0 0.0
        %2914 = vmatpush.msra.mxu0 0.0
        %2915 = vmatpush.msra.mxu0 0.0
        %2916 = vmatpush.msra.mxu0 0.0
        %2917 = vmatpush.msra.mxu0 0.0
        %2918 = vmatpush.msra.mxu0 0.0
        %2919 = vmatpush.msra.mxu0 0.0
        %2920 = vmatpush.msra.mxu0 0.0
        %v2921 = vand.u32 %v2777, 4294901760
        %2922 = vmatpush.msra.mxu0 %v2921
        %v2923 = vand.u32 %v2774, 4294901760
        %2924 = vmatmul.f32.gmra.mxu0 %v2923
        %v2925 = vpop.f32.mrf.mxu0
        %v2926 = vadd.f32 %v2904, %v2925
        %2927 = vdwg.mxu0
        %2928 = vmatpush.msra.mxu0 0.0
        %2929 = vmatpush.msra.mxu0 0.0
        %2930 = vmatpush.msra.mxu0 0.0
        %2931 = vmatpush.msra.mxu0 0.0
        %2932 = vmatpush.msra.mxu0 0.0
        %2933 = vmatpush.msra.mxu0 0.0
        %2934 = vmatpush.msra.mxu0 0.0
        %2935 = vmatpush.msra.mxu0 0.0
        %2936 = vmatpush.msra.mxu0 0.0
        %2937 = vmatpush.msra.mxu0 0.0
        %2938 = vmatpush.msra.mxu0 0.0
        %2939 = vmatpush.msra.mxu0 0.0
        %2940 = vmatpush.msra.mxu0 0.0
        %2941 = vmatpush.msra.mxu0 0.0
        %2942 = vmatpush.msra.mxu0 0.0
        %v2943 = vand.u32 %v2780, 4294901760
        %2944 = vmatpush.msra.mxu0 %v2943
        %v2945 = vand.u32 %v2774, 4294901760
        %v2946 = vsub.f32 %v2774, %v2945
        %v2947 = vand.u32 %v2946, 4294901760
        %v2948 = vsub.f32 %v2946, %v2947
        %v2949 = vand.u32 %v2948, 4294901760
        %2950 = vmatmul.f32.gmra.mxu0 %v2949
        %v2951 = vpop.f32.mrf.mxu0
        %v2952 = vadd.f32 0.0, %v2951
        %2953 = vdwg.mxu0
        %2954 = vmatpush.msra.mxu0 0.0
        %2955 = vmatpush.msra.mxu0 0.0
        %2956 = vmatpush.msra.mxu0 0.0
        %2957 = vmatpush.msra.mxu0 0.0
        %2958 = vmatpush.msra.mxu0 0.0
        %2959 = vmatpush.msra.mxu0 0.0
        %2960 = vmatpush.msra.mxu0 0.0
        %2961 = vmatpush.msra.mxu0 0.0
        %2962 = vmatpush.msra.mxu0 0.0
        %2963 = vmatpush.msra.mxu0 0.0
        %2964 = vmatpush.msra.mxu0 0.0
        %2965 = vmatpush.msra.mxu0 0.0
        %2966 = vmatpush.msra.mxu0 0.0
        %2967 = vmatpush.msra.mxu0 0.0
        %2968 = vmatpush.msra.mxu0 0.0
        %v2969 = vand.u32 %v2780, 4294901760
        %v2970 = vsub.f32 %v2780, %v2969
        %v2971 = vand.u32 %v2970, 4294901760
        %v2972 = vsub.f32 %v2970, %v2971
        %v2973 = vand.u32 %v2972, 4294901760
        %2974 = vmatpush.msra.mxu0 %v2973
        %v2975 = vand.u32 %v2774, 4294901760
        %2976 = vmatmul.f32.gmra.mxu0 %v2975
        %v2977 = vpop.f32.mrf.mxu0
        %v2978 = vadd.f32 %v2952, %v2977
        %2979 = vdwg.mxu0
        %2980 = vmatpush.msra.mxu0 0.0
        %2981 = vmatpush.msra.mxu0 0.0
        %2982 = vmatpush.msra.mxu0 0.0
        %2983 = vmatpush.msra.mxu0 0.0
        %2984 = vmatpush.msra.mxu0 0.0
        %2985 = vmatpush.msra.mxu0 0.0
        %2986 = vmatpush.msra.mxu0 0.0
        %2987 = vmatpush.msra.mxu0 0.0
        %2988 = vmatpush.msra.mxu0 0.0
        %2989 = vmatpush.msra.mxu0 0.0
        %2990 = vmatpush.msra.mxu0 0.0
        %2991 = vmatpush.msra.mxu0 0.0
        %2992 = vmatpush.msra.mxu0 0.0
        %2993 = vmatpush.msra.mxu0 0.0
        %2994 = vmatpush.msra.mxu0 0.0
        %v2995 = vand.u32 %v2780, 4294901760
        %v2996 = vsub.f32 %v2780, %v2995
        %2997 = vmatpush.msra.mxu0 %v2996
        %v2998 = vand.u32 %v2774, 4294901760
        %v2999 = vsub.f32 %v2774, %v2998
        %3000 = vmatmul.f32.gmra.mxu0 %v2999
        %v3001 = vpop.f32.mrf.mxu0
        %v3002 = vadd.f32 %v2978, %v3001
        %3003 = vdwg.mxu0
        %3004 = vmatpush.msra.mxu0 0.0
        %3005 = vmatpush.msra.mxu0 0.0
        %3006 = vmatpush.msra.mxu0 0.0
        %3007 = vmatpush.msra.mxu0 0.0
        %3008 = vmatpush.msra.mxu0 0.0
        %3009 = vmatpush.msra.mxu0 0.0
        %3010 = vmatpush.msra.mxu0 0.0
        %3011 = vmatpush.msra.mxu0 0.0
        %3012 = vmatpush.msra.mxu0 0.0
        %3013 = vmatpush.msra.mxu0 0.0
        %3014 = vmatpush.msra.mxu0 0.0
        %3015 = vmatpush.msra.mxu0 0.0
        %3016 = vmatpush.msra.mxu0 0.0
        %3017 = vmatpush.msra.mxu0 0.0
        %3018 = vmatpush.msra.mxu0 0.0
        %v3019 = vand.u32 %v2780, 4294901760
        %3020 = vmatpush.msra.mxu0 %v3019
        %v3021 = vand.u32 %v2774, 4294901760
        %v3022 = vsub.f32 %v2774, %v3021
        %v3023 = vand.u32 %v3022, 4294901760
        %3024 = vmatmul.f32.gmra.mxu0 %v3023
        %v3025 = vpop.f32.mrf.mxu0
        %v3026 = vadd.f32 %v3002, %v3025
        %3027 = vdwg.mxu0
        %3028 = vmatpush.msra.mxu0 0.0
        %3029 = vmatpush.msra.mxu0 0.0
        %3030 = vmatpush.msra.mxu0 0.0
        %3031 = vmatpush.msra.mxu0 0.0
        %3032 = vmatpush.msra.mxu0 0.0
        %3033 = vmatpush.msra.mxu0 0.0
        %3034 = vmatpush.msra.mxu0 0.0
        %3035 = vmatpush.msra.mxu0 0.0
        %3036 = vmatpush.msra.mxu0 0.0
        %3037 = vmatpush.msra.mxu0 0.0
        %3038 = vmatpush.msra.mxu0 0.0
        %3039 = vmatpush.msra.mxu0 0.0
        %3040 = vmatpush.msra.mxu0 0.0
        %3041 = vmatpush.msra.mxu0 0.0
        %3042 = vmatpush.msra.mxu0 0.0
        %v3043 = vand.u32 %v2780, 4294901760
        %v3044 = vsub.f32 %v2780, %v3043
        %v3045 = vand.u32 %v3044, 4294901760
        %3046 = vmatpush.msra.mxu0 %v3045
        %v3047 = vand.u32 %v2774, 4294901760
        %3048 = vmatmul.f32.gmra.mxu0 %v3047
        %v3049 = vpop.f32.mrf.mxu0
        %v3050 = vadd.f32 %v3026, %v3049
        %3051 = vdwg.mxu0
        %3052 = vmatpush.msra.mxu0 0.0
        %3053 = vmatpush.msra.mxu0 0.0
        %3054 = vmatpush.msra.mxu0 0.0
        %3055 = vmatpush.msra.mxu0 0.0
        %3056 = vmatpush.msra.mxu0 0.0
        %3057 = vmatpush.msra.mxu0 0.0
        %3058 = vmatpush.msra.mxu0 0.0
        %3059 = vmatpush.msra.mxu0 0.0
        %3060 = vmatpush.msra.mxu0 0.0
        %3061 = vmatpush.msra.mxu0 0.0
        %3062 = vmatpush.msra.mxu0 0.0
        %3063 = vmatpush.msra.mxu0 0.0
        %3064 = vmatpush.msra.mxu0 0.0
        %3065 = vmatpush.msra.mxu0 0.0
        %3066 = vmatpush.msra.mxu0 0.0
        %v3067 = vand.u32 %v2780, 4294901760
        %3068 = vmatpush.msra.mxu0 %v3067
        %v3069 = vand.u32 %v2774, 4294901760
        %3070 = vmatmul.f32.gmra.mxu0 %v3069
        %v3071 = vpop.f32.mrf.mxu0
        %v3072 = vadd.f32 %v3050, %v3071
        %3073 = vdwg.mxu0
        %v3074 = vmax.f32 %v2926, 0.0
        %v3075 = vmax.f32 %v3072, 0.0
        %v3076 = vmin.f32 %v3074, 6.0
        %v3077 = vmin.f32 %v3075, 6.0
        %s3078 = scalar_lea.vmem %s4, 8
        %v3079 = vld [vmem:[%s3078] sm:$0xff]
        %3080 = vrot.lane.b32.xlu0 %v3076, 16
        %v3081 = vpop.permute.xlu0 %3080
        %3082 = vrot.lane.b32.xlu0 %v3077, 16
        %v3083 = vpop.permute.xlu0 %3082
        %v3084 = vsel %vm1011, %v3081, %v3083
        %v3085 = vsel %vm1011, %v3083, %v3081
        %3086 = vrot.lane.b32.xlu0 %v3076, 112
        %v3087 = vpop.permute.xlu0 %3086
        %3088 = vrot.lane.b32.xlu0 %v3077, 112
        %v3089 = vpop.permute.xlu0 %3088
        %v3090 = vsel %vm1018, %v3087, %v3089
        %v3091 = vsel %vm1018, %v3089, %v3087
        %v3092 = vsel %vm1023, %v3090, %v3085
        %v3093 = vsel %vm1024, %v3091, %v3084
        %3094 = vrot.lane.b32.xlu0 %v3092, 1
        %v3095 = vpop.permute.xlu0 %3094
        %3096 = vrot.lane.b32.xlu0 %v3093, 1
        %v3097 = vpop.permute.xlu0 %3096
        %v3098 = vsel %vm1031, %v3095, %v3097
        %v3099 = vsel %vm1031, %v3097, %v3095
        %3100 = vrot.lane.b32.xlu0 %v3092, 127
        %v3101 = vpop.permute.xlu0 %3100
        %3102 = vrot.lane.b32.xlu0 %v3093, 127
        %v3103 = vpop.permute.xlu0 %3102
        %v3104 = vsel %vm1038, %v3101, %v3103
        %v3105 = vsel %vm1038, %v3103, %v3101
        %v3106 = vsel %vm1043, %v3104, %v3099
        %v3107 = vsel %vm1044, %v3105, %v3098
        %v3108 = vsel %vm1049, %v3099, %v3104
        %v3109 = vsel %vm1050, %v3098, %v3105
        %3111 = vset.pattern.permute.xlu0 0
        %3112 = vperm.xlu0 %3111, %v3079
        %v3113 = vpop.permute.xlu0 %3112
        %v3115 = vmul.f32 %v3113, %v3106
        %v3116 = vmul.f32 %v3113, %v3107
        %3117 = vset.pattern.permute.xlu0 1
        %3118 = vperm.xlu0 %3117, %v3079
        %v3119 = vpop.permute.xlu0 %3118
        %v3121 = vmul.f32 %v3119, %v3092
        %v3122 = vmul.f32 %v3119, %v3093
        %v3123 = vadd.f32 %v3115, %v3121
        %v3124 = vadd.f32 %v3116, %v3122
        %3125 = vset.pattern.permute.xlu0 2
        %3126 = vperm.xlu0 %3125, %v3079
        %v3127 = vpop.permute.xlu0 %3126
        %v3129 = vmul.f32 %v3127, %v3108
        %v3130 = vmul.f32 %v3127, %v3109
        %v3131 = vadd.f32 %v3123, %v3129
        %v3132 = vadd.f32 %v3124, %v3130
        %3133 = vrot.lane.b32.xlu0 %v3076, 1
        %v3134 = vpop.permute.xlu0 %3133
        %3135 = vrot.lane.b32.xlu0 %v3077, 1
        %v3136 = vpop.permute.xlu0 %3135
        %v3137 = vsel %vm1031, %v3134, %v3136
        %v3138 = vsel %vm1031, %v3136, %v3134
        %3139 = vrot.lane.b32.xlu0 %v3076, 127
        %v3140 = vpop.permute.xlu0 %3139
        %3141 = vrot.lane.b32.xlu0 %v3077, 127
        %v3142 = vpop.permute.xlu0 %3141
        %v3143 = vsel %vm1038, %v3140, %v3142
        %v3144 = vsel %vm1038, %v3142, %v3140
        %v3145 = vsel %vm1043, %v3143, %v3138
        %v3146 = vsel %vm1044, %v3144, %v3137
        %v3147 = vsel %vm1049, %v3138, %v3143
        %v3148 = vsel %vm1050, %v3137, %v3144
        %3149 = vset.pattern.permute.xlu0 3
        %3150 = vperm.xlu0 %3149, %v3079
        %v3151 = vpop.permute.xlu0 %3150
        %v3153 = vmul.f32 %v3151, %v3145
        %v3154 = vmul.f32 %v3151, %v3146
        %v3155 = vadd.f32 %v3131, %v3153
        %v3156 = vadd.f32 %v3132, %v3154
        %3157 = vset.pattern.permute.xlu0 4
        %3158 = vperm.xlu0 %3157, %v3079
        %v3159 = vpop.permute.xlu0 %3158
        %v3161 = vmul.f32 %v3159, %v3076
        %v3162 = vmul.f32 %v3159, %v3077
        %v3163 = vadd.f32 %v3155, %v3161
        %v3164 = vadd.f32 %v3156, %v3162
        %3165 = vset.pattern.permute.xlu0 5
        %3166 = vperm.xlu0 %3165, %v3079
        %v3167 = vpop.permute.xlu0 %3166
        %v3169 = vmul.f32 %v3167, %v3147
        %v3170 = vmul.f32 %v3167, %v3148
        %v3171 = vadd.f32 %v3163, %v3169
        %v3172 = vadd.f32 %v3164, %v3170
        %v3173 = vsel %vm1118, %v3085, %v3090
        %v3174 = vsel %vm1119, %v3084, %v3091
        %3175 = vrot.lane.b32.xlu0 %v3173, 1
        %v3176 = vpop.permute.xlu0 %3175
        %3177 = vrot.lane.b32.xlu0 %v3174, 1
        %v3178 = vpop.permute.xlu0 %3177
        %v3179 = vsel %vm1031, %v3176, %v3178
        %v3180 = vsel %vm1031, %v3178, %v3176
        %3181 = vrot.lane.b32.xlu0 %v3173, 127
        %v3182 = vpop.permute.xlu0 %3181
        %3183 = vrot.lane.b32.xlu0 %v3174, 127
        %v3184 = vpop.permute.xlu0 %3183
        %v3185 = vsel %vm1038, %v3182, %v3184
        %v3186 = vsel %vm1038, %v3184, %v3182
        %v3187 = vsel %vm1043, %v3185, %v3180
        %v3188 = vsel %vm1044, %v3186, %v3179
        %v3189 = vsel %vm1049, %v3180, %v3185
        %v3190 = vsel %vm1050, %v3179, %v3186
        %3191 = vset.pattern.permute.xlu0 6
        %3192 = vperm.xlu0 %3191, %v3079
        %v3193 = vpop.permute.xlu0 %3192
        %v3195 = vmul.f32 %v3193, %v3187
        %v3196 = vmul.f32 %v3193, %v3188
        %v3197 = vadd.f32 %v3171, %v3195
        %v3198 = vadd.f32 %v3172, %v3196
        %3199 = vset.pattern.permute.xlu0 7
        %3200 = vperm.xlu0 %3199, %v3079
        %v3201 = vpop.permute.xlu0 %3200
        %v3203 = vmul.f32 %v3201, %v3173
        %v3204 = vmul.f32 %v3201, %v3174
        %v3205 = vadd.f32 %v3197, %v3203
        %v3206 = vadd.f32 %v3198, %v3204
        %3207 = vset.pattern.permute.xlu0 8
        %3208 = vperm.xlu0 %3207, %v3079
        %v3209 = vpop.permute.xlu0 %3208
        %v3211 = vmul.f32 %v3209, %v3189
        %v3212 = vmul.f32 %v3209, %v3190
        %v3213 = vadd.f32 %v3205, %v3211
        %v3214 = vadd.f32 %v3206, %v3212
        %v3215 = vmax.f32 %v3213, 0.0
        %v3216 = vmax.f32 %v3214, 0.0
        %v3217 = vmin.f32 %v3215, 6.0
        %v3218 = vmin.f32 %v3216, 6.0
        %s3219 = scalar_lea.vmem %s5, 4
        %v3220 = vld [vmem:[%s3219] sm:$0xf]
        %v3222 = vsel %vm402, %v3220, 0
        %3224 = vmatpush.msra.mxu0 0.0
        %3225 = vmatpush.msra.mxu0 0.0
        %3226 = vmatpush.msra.mxu0 0.0
        %3227 = vmatpush.msra.mxu0 0.0
        %3228 = vmatpush.msra.mxu0 0.0
        %3229 = vmatpush.msra.mxu0 0.0
        %3230 = vmatpush.msra.mxu0 0.0
        %3231 = vmatpush.msra.mxu0 0.0
        %3232 = vmatpush.msra.mxu0 0.0
        %3233 = vmatpush.msra.mxu0 0.0
        %3234 = vmatpush.msra.mxu0 0.0
        %3235 = vmatpush.msra.mxu0 0.0
        %3236 = vmatpush.msra.mxu0 0.0
        %3237 = vmatpush.msra.mxu0 0.0
        %3238 = vmatpush.msra.mxu0 0.0
        %v3239 = vand.u32 %v3217, 4294901760
        %3240 = vmatpush.msra.mxu0 %v3239
        %v3241 = vand.u32 %v3222, 4294901760
        %v3242 = vsub.f32 %v3222, %v3241
        %v3243 = vand.u32 %v3242, 4294901760
        %v3244 = vsub.f32 %v3242, %v3243
        %v3245 = vand.u32 %v3244, 4294901760
        %3246 = vmatmul.f32.gmra.mxu0 %v3245
        %v3247 = vpop.f32.mrf.mxu0
        %v3248 = vadd.f32 0.0, %v3247
        %3249 = vdwg.mxu0
        %3250 = vmatpush.msra.mxu0 0.0
        %3251 = vmatpush.msra.mxu0 0.0
        %3252 = vmatpush.msra.mxu0 0.0
        %3253 = vmatpush.msra.mxu0 0.0
        %3254 = vmatpush.msra.mxu0 0.0
        %3255 = vmatpush.msra.mxu0 0.0
        %3256 = vmatpush.msra.mxu0 0.0
        %3257 = vmatpush.msra.mxu0 0.0
        %3258 = vmatpush.msra.mxu0 0.0
        %3259 = vmatpush.msra.mxu0 0.0
        %3260 = vmatpush.msra.mxu0 0.0
        %3261 = vmatpush.msra.mxu0 0.0
        %3262 = vmatpush.msra.mxu0 0.0
        %3263 = vmatpush.msra.mxu0 0.0
        %3264 = vmatpush.msra.mxu0 0.0
        %v3265 = vand.u32 %v3217, 4294901760
        %v3266 = vsub.f32 %v3217, %v3265
        %v3267 = vand.u32 %v3266, 4294901760
        %v3268 = vsub.f32 %v3266, %v3267
        %v3269 = vand.u32 %v3268, 4294901760
        %3270 = vmatpush.msra.mxu0 %v3269
        %v3271 = vand.u32 %v3222, 4294901760
        %3272 = vmatmul.f32.gmra.mxu0 %v3271
        %v3273 = vpop.f32.mrf.mxu0
        %v3274 = vadd.f32 %v3248, %v3273
        %3275 = vdwg.mxu0
        %3276 = vmatpush.msra.mxu0 0.0
        %3277 = vmatpush.msra.mxu0 0.0
        %3278 = vmatpush.msra.mxu0 0.0
        %3279 = vmatpush.msra.mxu0 0.0
        %3280 = vmatpush.msra.mxu0 0.0
        %3281 = vmatpush.msra.mxu0 0.0
        %3282 = vmatpush.msra.mxu0 0.0
        %3283 = vmatpush.msra.mxu0 0.0
        %3284 = vmatpush.msra.mxu0 0.0
        %3285 = vmatpush.msra.mxu0 0.0
        %3286 = vmatpush.msra.mxu0 0.0
        %3287 = vmatpush.msra.mxu0 0.0
        %3288 = vmatpush.msra.mxu0 0.0
        %3289 = vmatpush.msra.mxu0 0.0
        %3290 = vmatpush.msra.mxu0 0.0
        %v3291 = vand.u32 %v3217, 4294901760
        %v3292 = vsub.f32 %v3217, %v3291
        %3293 = vmatpush.msra.mxu0 %v3292
        %v3294 = vand.u32 %v3222, 4294901760
        %v3295 = vsub.f32 %v3222, %v3294
        %3296 = vmatmul.f32.gmra.mxu0 %v3295
        %v3297 = vpop.f32.mrf.mxu0
        %v3298 = vadd.f32 %v3274, %v3297
        %3299 = vdwg.mxu0
        %3300 = vmatpush.msra.mxu0 0.0
        %3301 = vmatpush.msra.mxu0 0.0
        %3302 = vmatpush.msra.mxu0 0.0
        %3303 = vmatpush.msra.mxu0 0.0
        %3304 = vmatpush.msra.mxu0 0.0
        %3305 = vmatpush.msra.mxu0 0.0
        %3306 = vmatpush.msra.mxu0 0.0
        %3307 = vmatpush.msra.mxu0 0.0
        %3308 = vmatpush.msra.mxu0 0.0
        %3309 = vmatpush.msra.mxu0 0.0
        %3310 = vmatpush.msra.mxu0 0.0
        %3311 = vmatpush.msra.mxu0 0.0
        %3312 = vmatpush.msra.mxu0 0.0
        %3313 = vmatpush.msra.mxu0 0.0
        %3314 = vmatpush.msra.mxu0 0.0
        %v3315 = vand.u32 %v3217, 4294901760
        %3316 = vmatpush.msra.mxu0 %v3315
        %v3317 = vand.u32 %v3222, 4294901760
        %v3318 = vsub.f32 %v3222, %v3317
        %v3319 = vand.u32 %v3318, 4294901760
        %3320 = vmatmul.f32.gmra.mxu0 %v3319
        %v3321 = vpop.f32.mrf.mxu0
        %v3322 = vadd.f32 %v3298, %v3321
        %3323 = vdwg.mxu0
        %3324 = vmatpush.msra.mxu0 0.0
        %3325 = vmatpush.msra.mxu0 0.0
        %3326 = vmatpush.msra.mxu0 0.0
        %3327 = vmatpush.msra.mxu0 0.0
        %3328 = vmatpush.msra.mxu0 0.0
        %3329 = vmatpush.msra.mxu0 0.0
        %3330 = vmatpush.msra.mxu0 0.0
        %3331 = vmatpush.msra.mxu0 0.0
        %3332 = vmatpush.msra.mxu0 0.0
        %3333 = vmatpush.msra.mxu0 0.0
        %3334 = vmatpush.msra.mxu0 0.0
        %3335 = vmatpush.msra.mxu0 0.0
        %3336 = vmatpush.msra.mxu0 0.0
        %3337 = vmatpush.msra.mxu0 0.0
        %3338 = vmatpush.msra.mxu0 0.0
        %v3339 = vand.u32 %v3217, 4294901760
        %v3340 = vsub.f32 %v3217, %v3339
        %v3341 = vand.u32 %v3340, 4294901760
        %3342 = vmatpush.msra.mxu0 %v3341
        %v3343 = vand.u32 %v3222, 4294901760
        %3344 = vmatmul.f32.gmra.mxu0 %v3343
        %v3345 = vpop.f32.mrf.mxu0
        %v3346 = vadd.f32 %v3322, %v3345
        %3347 = vdwg.mxu0
        %3348 = vmatpush.msra.mxu0 0.0
        %3349 = vmatpush.msra.mxu0 0.0
        %3350 = vmatpush.msra.mxu0 0.0
        %3351 = vmatpush.msra.mxu0 0.0
        %3352 = vmatpush.msra.mxu0 0.0
        %3353 = vmatpush.msra.mxu0 0.0
        %3354 = vmatpush.msra.mxu0 0.0
        %3355 = vmatpush.msra.mxu0 0.0
        %3356 = vmatpush.msra.mxu0 0.0
        %3357 = vmatpush.msra.mxu0 0.0
        %3358 = vmatpush.msra.mxu0 0.0
        %3359 = vmatpush.msra.mxu0 0.0
        %3360 = vmatpush.msra.mxu0 0.0
        %3361 = vmatpush.msra.mxu0 0.0
        %3362 = vmatpush.msra.mxu0 0.0
        %v3363 = vand.u32 %v3217, 4294901760
        %3364 = vmatpush.msra.mxu0 %v3363
        %v3365 = vand.u32 %v3222, 4294901760
        %3366 = vmatmul.f32.gmra.mxu0 %v3365
        %v3367 = vpop.f32.mrf.mxu0
        %v3368 = vadd.f32 %v3346, %v3367
        %3369 = vdwg.mxu0
        %3370 = vmatpush.msra.mxu0 0.0
        %3371 = vmatpush.msra.mxu0 0.0
        %3372 = vmatpush.msra.mxu0 0.0
        %3373 = vmatpush.msra.mxu0 0.0
        %3374 = vmatpush.msra.mxu0 0.0
        %3375 = vmatpush.msra.mxu0 0.0
        %3376 = vmatpush.msra.mxu0 0.0
        %3377 = vmatpush.msra.mxu0 0.0
        %3378 = vmatpush.msra.mxu0 0.0
        %3379 = vmatpush.msra.mxu0 0.0
        %3380 = vmatpush.msra.mxu0 0.0
        %3381 = vmatpush.msra.mxu0 0.0
        %3382 = vmatpush.msra.mxu0 0.0
        %3383 = vmatpush.msra.mxu0 0.0
        %3384 = vmatpush.msra.mxu0 0.0
        %v3385 = vand.u32 %v3218, 4294901760
        %3386 = vmatpush.msra.mxu0 %v3385
        %v3387 = vand.u32 %v3222, 4294901760
        %v3388 = vsub.f32 %v3222, %v3387
        %v3389 = vand.u32 %v3388, 4294901760
        %v3390 = vsub.f32 %v3388, %v3389
        %v3391 = vand.u32 %v3390, 4294901760
        %3392 = vmatmul.f32.gmra.mxu0 %v3391
        %v3393 = vpop.f32.mrf.mxu0
        %v3394 = vadd.f32 0.0, %v3393
        %3395 = vdwg.mxu0
        %3396 = vmatpush.msra.mxu0 0.0
        %3397 = vmatpush.msra.mxu0 0.0
        %3398 = vmatpush.msra.mxu0 0.0
        %3399 = vmatpush.msra.mxu0 0.0
        %3400 = vmatpush.msra.mxu0 0.0
        %3401 = vmatpush.msra.mxu0 0.0
        %3402 = vmatpush.msra.mxu0 0.0
        %3403 = vmatpush.msra.mxu0 0.0
        %3404 = vmatpush.msra.mxu0 0.0
        %3405 = vmatpush.msra.mxu0 0.0
        %3406 = vmatpush.msra.mxu0 0.0
        %3407 = vmatpush.msra.mxu0 0.0
        %3408 = vmatpush.msra.mxu0 0.0
        %3409 = vmatpush.msra.mxu0 0.0
        %3410 = vmatpush.msra.mxu0 0.0
        %v3411 = vand.u32 %v3218, 4294901760
        %v3412 = vsub.f32 %v3218, %v3411
        %v3413 = vand.u32 %v3412, 4294901760
        %v3414 = vsub.f32 %v3412, %v3413
        %v3415 = vand.u32 %v3414, 4294901760
        %3416 = vmatpush.msra.mxu0 %v3415
        %v3417 = vand.u32 %v3222, 4294901760
        %3418 = vmatmul.f32.gmra.mxu0 %v3417
        %v3419 = vpop.f32.mrf.mxu0
        %v3420 = vadd.f32 %v3394, %v3419
        %3421 = vdwg.mxu0
        %3422 = vmatpush.msra.mxu0 0.0
        %3423 = vmatpush.msra.mxu0 0.0
        %3424 = vmatpush.msra.mxu0 0.0
        %3425 = vmatpush.msra.mxu0 0.0
        %3426 = vmatpush.msra.mxu0 0.0
        %3427 = vmatpush.msra.mxu0 0.0
        %3428 = vmatpush.msra.mxu0 0.0
        %3429 = vmatpush.msra.mxu0 0.0
        %3430 = vmatpush.msra.mxu0 0.0
        %3431 = vmatpush.msra.mxu0 0.0
        %3432 = vmatpush.msra.mxu0 0.0
        %3433 = vmatpush.msra.mxu0 0.0
        %3434 = vmatpush.msra.mxu0 0.0
        %3435 = vmatpush.msra.mxu0 0.0
        %3436 = vmatpush.msra.mxu0 0.0
        %v3437 = vand.u32 %v3218, 4294901760
        %v3438 = vsub.f32 %v3218, %v3437
        %3439 = vmatpush.msra.mxu0 %v3438
        %v3440 = vand.u32 %v3222, 4294901760
        %v3441 = vsub.f32 %v3222, %v3440
        %3442 = vmatmul.f32.gmra.mxu0 %v3441
        %v3443 = vpop.f32.mrf.mxu0
        %v3444 = vadd.f32 %v3420, %v3443
        %3445 = vdwg.mxu0
        %3446 = vmatpush.msra.mxu0 0.0
        %3447 = vmatpush.msra.mxu0 0.0
        %3448 = vmatpush.msra.mxu0 0.0
        %3449 = vmatpush.msra.mxu0 0.0
        %3450 = vmatpush.msra.mxu0 0.0
        %3451 = vmatpush.msra.mxu0 0.0
        %3452 = vmatpush.msra.mxu0 0.0
        %3453 = vmatpush.msra.mxu0 0.0
        %3454 = vmatpush.msra.mxu0 0.0
        %3455 = vmatpush.msra.mxu0 0.0
        %3456 = vmatpush.msra.mxu0 0.0
        %3457 = vmatpush.msra.mxu0 0.0
        %3458 = vmatpush.msra.mxu0 0.0
        %3459 = vmatpush.msra.mxu0 0.0
        %3460 = vmatpush.msra.mxu0 0.0
        %v3461 = vand.u32 %v3218, 4294901760
        %3462 = vmatpush.msra.mxu0 %v3461
        %v3463 = vand.u32 %v3222, 4294901760
        %v3464 = vsub.f32 %v3222, %v3463
        %v3465 = vand.u32 %v3464, 4294901760
        %3466 = vmatmul.f32.gmra.mxu0 %v3465
        %v3467 = vpop.f32.mrf.mxu0
        %v3468 = vadd.f32 %v3444, %v3467
        %3469 = vdwg.mxu0
        %3470 = vmatpush.msra.mxu0 0.0
        %3471 = vmatpush.msra.mxu0 0.0
        %3472 = vmatpush.msra.mxu0 0.0
        %3473 = vmatpush.msra.mxu0 0.0
        %3474 = vmatpush.msra.mxu0 0.0
        %3475 = vmatpush.msra.mxu0 0.0
        %3476 = vmatpush.msra.mxu0 0.0
        %3477 = vmatpush.msra.mxu0 0.0
        %3478 = vmatpush.msra.mxu0 0.0
        %3479 = vmatpush.msra.mxu0 0.0
        %3480 = vmatpush.msra.mxu0 0.0
        %3481 = vmatpush.msra.mxu0 0.0
        %3482 = vmatpush.msra.mxu0 0.0
        %3483 = vmatpush.msra.mxu0 0.0
        %3484 = vmatpush.msra.mxu0 0.0
        %v3485 = vand.u32 %v3218, 4294901760
        %v3486 = vsub.f32 %v3218, %v3485
        %v3487 = vand.u32 %v3486, 4294901760
        %3488 = vmatpush.msra.mxu0 %v3487
        %v3489 = vand.u32 %v3222, 4294901760
        %3490 = vmatmul.f32.gmra.mxu0 %v3489
        %v3491 = vpop.f32.mrf.mxu0
        %v3492 = vadd.f32 %v3468, %v3491
        %3493 = vdwg.mxu0
        %3494 = vmatpush.msra.mxu0 0.0
        %3495 = vmatpush.msra.mxu0 0.0
        %3496 = vmatpush.msra.mxu0 0.0
        %3497 = vmatpush.msra.mxu0 0.0
        %3498 = vmatpush.msra.mxu0 0.0
        %3499 = vmatpush.msra.mxu0 0.0
        %3500 = vmatpush.msra.mxu0 0.0
        %3501 = vmatpush.msra.mxu0 0.0
        %3502 = vmatpush.msra.mxu0 0.0
        %3503 = vmatpush.msra.mxu0 0.0
        %3504 = vmatpush.msra.mxu0 0.0
        %3505 = vmatpush.msra.mxu0 0.0
        %3506 = vmatpush.msra.mxu0 0.0
        %3507 = vmatpush.msra.mxu0 0.0
        %3508 = vmatpush.msra.mxu0 0.0
        %v3509 = vand.u32 %v3218, 4294901760
        %3510 = vmatpush.msra.mxu0 %v3509
        %v3511 = vand.u32 %v3222, 4294901760
        %3512 = vmatmul.f32.gmra.mxu0 %v3511
        %v3513 = vpop.f32.mrf.mxu0
        %v3514 = vadd.f32 %v3492, %v3513
        %3515 = vdwg.mxu0
        %v3518 = vrot.slane %v3368, 4
        %v3519 = vrot.slane %v3514, 4
        %v3522 = vadd.f32 %v2623, %v3518
        %v3523 = vadd.f32 %v2769, %v3519
        %s3524 = scalar_lea.vmem %s6, 16
        %v3525 = vld [vmem:[%s3524] sm:$0xff]
        %v3526 = vld [vmem:[%s3524 + $0x8] sm:$0xff]
        %v3529 = vrot.slane %v3522, 4
        %v3530 = vrot.slane %v3523, 4
        %v3532 = vsel %vm699, %v3525, 0
        %v3535 = vsel %vm699, %v3526, 0
        %v3537 = vsel %vm703, %v3529, 0
        %v3539 = vsel %vm703, %v3530, 0
        %3541 = vmatpush.msra.mxu0 0.0
        %3542 = vmatpush.msra.mxu0 0.0
        %3543 = vmatpush.msra.mxu0 0.0
        %3544 = vmatpush.msra.mxu0 0.0
        %3545 = vmatpush.msra.mxu0 0.0
        %3546 = vmatpush.msra.mxu0 0.0
        %3547 = vmatpush.msra.mxu0 0.0
        %3548 = vmatpush.msra.mxu0 0.0
        %3549 = vmatpush.msra.mxu0 0.0
        %3550 = vmatpush.msra.mxu0 0.0
        %3551 = vmatpush.msra.mxu0 0.0
        %3552 = vmatpush.msra.mxu0 0.0
        %3553 = vmatpush.msra.mxu0 0.0
        %3554 = vmatpush.msra.mxu0 0.0
        %3555 = vmatpush.msra.mxu0 0.0
        %v3556 = vand.u32 %v3537, 4294901760
        %3557 = vmatpush.msra.mxu0 %v3556
        %v3558 = vand.u32 %v3532, 4294901760
        %v3559 = vsub.f32 %v3532, %v3558
        %v3560 = vand.u32 %v3559, 4294901760
        %v3561 = vsub.f32 %v3559, %v3560
        %v3562 = vand.u32 %v3561, 4294901760
        %3563 = vmatmul.f32.gmra.mxu0 %v3562
        %v3564 = vpop.f32.mrf.mxu0
        %v3565 = vadd.f32 0.0, %v3564
        %v3566 = vand.u32 %v3535, 4294901760
        %v3567 = vsub.f32 %v3535, %v3566
        %v3568 = vand.u32 %v3567, 4294901760
        %v3569 = vsub.f32 %v3567, %v3568
        %v3570 = vand.u32 %v3569, 4294901760
        %3571 = vmatmul.f32.gmra.mxu0 %v3570
        %v3572 = vpop.f32.mrf.mxu0
        %v3573 = vadd.f32 0.0, %v3572
        %3574 = vdwg.mxu0
        %3575 = vmatpush.msra.mxu0 0.0
        %3576 = vmatpush.msra.mxu0 0.0
        %3577 = vmatpush.msra.mxu0 0.0
        %3578 = vmatpush.msra.mxu0 0.0
        %3579 = vmatpush.msra.mxu0 0.0
        %3580 = vmatpush.msra.mxu0 0.0
        %3581 = vmatpush.msra.mxu0 0.0
        %3582 = vmatpush.msra.mxu0 0.0
        %3583 = vmatpush.msra.mxu0 0.0
        %3584 = vmatpush.msra.mxu0 0.0
        %3585 = vmatpush.msra.mxu0 0.0
        %3586 = vmatpush.msra.mxu0 0.0
        %3587 = vmatpush.msra.mxu0 0.0
        %3588 = vmatpush.msra.mxu0 0.0
        %3589 = vmatpush.msra.mxu0 0.0
        %v3590 = vand.u32 %v3537, 4294901760
        %v3591 = vsub.f32 %v3537, %v3590
        %v3592 = vand.u32 %v3591, 4294901760
        %v3593 = vsub.f32 %v3591, %v3592
        %v3594 = vand.u32 %v3593, 4294901760
        %3595 = vmatpush.msra.mxu0 %v3594
        %v3596 = vand.u32 %v3532, 4294901760
        %3597 = vmatmul.f32.gmra.mxu0 %v3596
        %v3598 = vpop.f32.mrf.mxu0
        %v3599 = vadd.f32 %v3565, %v3598
        %v3600 = vand.u32 %v3535, 4294901760
        %3601 = vmatmul.f32.gmra.mxu0 %v3600
        %v3602 = vpop.f32.mrf.mxu0
        %v3603 = vadd.f32 %v3573, %v3602
        %3604 = vdwg.mxu0
        %3605 = vmatpush.msra.mxu0 0.0
        %3606 = vmatpush.msra.mxu0 0.0
        %3607 = vmatpush.msra.mxu0 0.0
        %3608 = vmatpush.msra.mxu0 0.0
        %3609 = vmatpush.msra.mxu0 0.0
        %3610 = vmatpush.msra.mxu0 0.0
        %3611 = vmatpush.msra.mxu0 0.0
        %3612 = vmatpush.msra.mxu0 0.0
        %3613 = vmatpush.msra.mxu0 0.0
        %3614 = vmatpush.msra.mxu0 0.0
        %3615 = vmatpush.msra.mxu0 0.0
        %3616 = vmatpush.msra.mxu0 0.0
        %3617 = vmatpush.msra.mxu0 0.0
        %3618 = vmatpush.msra.mxu0 0.0
        %3619 = vmatpush.msra.mxu0 0.0
        %v3620 = vand.u32 %v3537, 4294901760
        %v3621 = vsub.f32 %v3537, %v3620
        %3622 = vmatpush.msra.mxu0 %v3621
        %v3623 = vand.u32 %v3532, 4294901760
        %v3624 = vsub.f32 %v3532, %v3623
        %3625 = vmatmul.f32.gmra.mxu0 %v3624
        %v3626 = vpop.f32.mrf.mxu0
        %v3627 = vadd.f32 %v3599, %v3626
        %v3628 = vand.u32 %v3535, 4294901760
        %v3629 = vsub.f32 %v3535, %v3628
        %3630 = vmatmul.f32.gmra.mxu0 %v3629
        %v3631 = vpop.f32.mrf.mxu0
        %v3632 = vadd.f32 %v3603, %v3631
        %3633 = vdwg.mxu0
        %3634 = vmatpush.msra.mxu0 0.0
        %3635 = vmatpush.msra.mxu0 0.0
        %3636 = vmatpush.msra.mxu0 0.0
        %3637 = vmatpush.msra.mxu0 0.0
        %3638 = vmatpush.msra.mxu0 0.0
        %3639 = vmatpush.msra.mxu0 0.0
        %3640 = vmatpush.msra.mxu0 0.0
        %3641 = vmatpush.msra.mxu0 0.0
        %3642 = vmatpush.msra.mxu0 0.0
        %3643 = vmatpush.msra.mxu0 0.0
        %3644 = vmatpush.msra.mxu0 0.0
        %3645 = vmatpush.msra.mxu0 0.0
        %3646 = vmatpush.msra.mxu0 0.0
        %3647 = vmatpush.msra.mxu0 0.0
        %3648 = vmatpush.msra.mxu0 0.0
        %v3649 = vand.u32 %v3537, 4294901760
        %3650 = vmatpush.msra.mxu0 %v3649
        %v3651 = vand.u32 %v3532, 4294901760
        %v3652 = vsub.f32 %v3532, %v3651
        %v3653 = vand.u32 %v3652, 4294901760
        %3654 = vmatmul.f32.gmra.mxu0 %v3653
        %v3655 = vpop.f32.mrf.mxu0
        %v3656 = vadd.f32 %v3627, %v3655
        %v3657 = vand.u32 %v3535, 4294901760
        %v3658 = vsub.f32 %v3535, %v3657
        %v3659 = vand.u32 %v3658, 4294901760
        %3660 = vmatmul.f32.gmra.mxu0 %v3659
        %v3661 = vpop.f32.mrf.mxu0
        %v3662 = vadd.f32 %v3632, %v3661
        %3663 = vdwg.mxu0
        %3664 = vmatpush.msra.mxu0 0.0
        %3665 = vmatpush.msra.mxu0 0.0
        %3666 = vmatpush.msra.mxu0 0.0
        %3667 = vmatpush.msra.mxu0 0.0
        %3668 = vmatpush.msra.mxu0 0.0
        %3669 = vmatpush.msra.mxu0 0.0
        %3670 = vmatpush.msra.mxu0 0.0
        %3671 = vmatpush.msra.mxu0 0.0
        %3672 = vmatpush.msra.mxu0 0.0
        %3673 = vmatpush.msra.mxu0 0.0
        %3674 = vmatpush.msra.mxu0 0.0
        %3675 = vmatpush.msra.mxu0 0.0
        %3676 = vmatpush.msra.mxu0 0.0
        %3677 = vmatpush.msra.mxu0 0.0
        %3678 = vmatpush.msra.mxu0 0.0
        %v3679 = vand.u32 %v3537, 4294901760
        %v3680 = vsub.f32 %v3537, %v3679
        %v3681 = vand.u32 %v3680, 4294901760
        %3682 = vmatpush.msra.mxu0 %v3681
        %v3683 = vand.u32 %v3532, 4294901760
        %3684 = vmatmul.f32.gmra.mxu0 %v3683
        %v3685 = vpop.f32.mrf.mxu0
        %v3686 = vadd.f32 %v3656, %v3685
        %v3687 = vand.u32 %v3535, 4294901760
        %3688 = vmatmul.f32.gmra.mxu0 %v3687
        %v3689 = vpop.f32.mrf.mxu0
        %v3690 = vadd.f32 %v3662, %v3689
        %3691 = vdwg.mxu0
        %3692 = vmatpush.msra.mxu0 0.0
        %3693 = vmatpush.msra.mxu0 0.0
        %3694 = vmatpush.msra.mxu0 0.0
        %3695 = vmatpush.msra.mxu0 0.0
        %3696 = vmatpush.msra.mxu0 0.0
        %3697 = vmatpush.msra.mxu0 0.0
        %3698 = vmatpush.msra.mxu0 0.0
        %3699 = vmatpush.msra.mxu0 0.0
        %3700 = vmatpush.msra.mxu0 0.0
        %3701 = vmatpush.msra.mxu0 0.0
        %3702 = vmatpush.msra.mxu0 0.0
        %3703 = vmatpush.msra.mxu0 0.0
        %3704 = vmatpush.msra.mxu0 0.0
        %3705 = vmatpush.msra.mxu0 0.0
        %3706 = vmatpush.msra.mxu0 0.0
        %v3707 = vand.u32 %v3537, 4294901760
        %3708 = vmatpush.msra.mxu0 %v3707
        %v3709 = vand.u32 %v3532, 4294901760
        %3710 = vmatmul.f32.gmra.mxu0 %v3709
        %v3711 = vpop.f32.mrf.mxu0
        %v3712 = vadd.f32 %v3686, %v3711
        %v3713 = vand.u32 %v3535, 4294901760
        %3714 = vmatmul.f32.gmra.mxu0 %v3713
        %v3715 = vpop.f32.mrf.mxu0
        %v3716 = vadd.f32 %v3690, %v3715
        %3717 = vdwg.mxu0
        %3718 = vmatpush.msra.mxu0 0.0
        %3719 = vmatpush.msra.mxu0 0.0
        %3720 = vmatpush.msra.mxu0 0.0
        %3721 = vmatpush.msra.mxu0 0.0
        %3722 = vmatpush.msra.mxu0 0.0
        %3723 = vmatpush.msra.mxu0 0.0
        %3724 = vmatpush.msra.mxu0 0.0
        %3725 = vmatpush.msra.mxu0 0.0
        %3726 = vmatpush.msra.mxu0 0.0
        %3727 = vmatpush.msra.mxu0 0.0
        %3728 = vmatpush.msra.mxu0 0.0
        %3729 = vmatpush.msra.mxu0 0.0
        %3730 = vmatpush.msra.mxu0 0.0
        %3731 = vmatpush.msra.mxu0 0.0
        %3732 = vmatpush.msra.mxu0 0.0
        %v3733 = vand.u32 %v3539, 4294901760
        %3734 = vmatpush.msra.mxu0 %v3733
        %v3735 = vand.u32 %v3532, 4294901760
        %v3736 = vsub.f32 %v3532, %v3735
        %v3737 = vand.u32 %v3736, 4294901760
        %v3738 = vsub.f32 %v3736, %v3737
        %v3739 = vand.u32 %v3738, 4294901760
        %3740 = vmatmul.f32.gmra.mxu0 %v3739
        %v3741 = vpop.f32.mrf.mxu0
        %v3742 = vadd.f32 0.0, %v3741
        %v3743 = vand.u32 %v3535, 4294901760
        %v3744 = vsub.f32 %v3535, %v3743
        %v3745 = vand.u32 %v3744, 4294901760
        %v3746 = vsub.f32 %v3744, %v3745
        %v3747 = vand.u32 %v3746, 4294901760
        %3748 = vmatmul.f32.gmra.mxu0 %v3747
        %v3749 = vpop.f32.mrf.mxu0
        %v3750 = vadd.f32 0.0, %v3749
        %3751 = vdwg.mxu0
        %3752 = vmatpush.msra.mxu0 0.0
        %3753 = vmatpush.msra.mxu0 0.0
        %3754 = vmatpush.msra.mxu0 0.0
        %3755 = vmatpush.msra.mxu0 0.0
        %3756 = vmatpush.msra.mxu0 0.0
        %3757 = vmatpush.msra.mxu0 0.0
        %3758 = vmatpush.msra.mxu0 0.0
        %3759 = vmatpush.msra.mxu0 0.0
        %3760 = vmatpush.msra.mxu0 0.0
        %3761 = vmatpush.msra.mxu0 0.0
        %3762 = vmatpush.msra.mxu0 0.0
        %3763 = vmatpush.msra.mxu0 0.0
        %3764 = vmatpush.msra.mxu0 0.0
        %3765 = vmatpush.msra.mxu0 0.0
        %3766 = vmatpush.msra.mxu0 0.0
        %v3767 = vand.u32 %v3539, 4294901760
        %v3768 = vsub.f32 %v3539, %v3767
        %v3769 = vand.u32 %v3768, 4294901760
        %v3770 = vsub.f32 %v3768, %v3769
        %v3771 = vand.u32 %v3770, 4294901760
        %3772 = vmatpush.msra.mxu0 %v3771
        %v3773 = vand.u32 %v3532, 4294901760
        %3774 = vmatmul.f32.gmra.mxu0 %v3773
        %v3775 = vpop.f32.mrf.mxu0
        %v3776 = vadd.f32 %v3742, %v3775
        %v3777 = vand.u32 %v3535, 4294901760
        %3778 = vmatmul.f32.gmra.mxu0 %v3777
        %v3779 = vpop.f32.mrf.mxu0
        %v3780 = vadd.f32 %v3750, %v3779
        %3781 = vdwg.mxu0
        %3782 = vmatpush.msra.mxu0 0.0
        %3783 = vmatpush.msra.mxu0 0.0
        %3784 = vmatpush.msra.mxu0 0.0
        %3785 = vmatpush.msra.mxu0 0.0
        %3786 = vmatpush.msra.mxu0 0.0
        %3787 = vmatpush.msra.mxu0 0.0
        %3788 = vmatpush.msra.mxu0 0.0
        %3789 = vmatpush.msra.mxu0 0.0
        %3790 = vmatpush.msra.mxu0 0.0
        %3791 = vmatpush.msra.mxu0 0.0
        %3792 = vmatpush.msra.mxu0 0.0
        %3793 = vmatpush.msra.mxu0 0.0
        %3794 = vmatpush.msra.mxu0 0.0
        %3795 = vmatpush.msra.mxu0 0.0
        %3796 = vmatpush.msra.mxu0 0.0
        %v3797 = vand.u32 %v3539, 4294901760
        %v3798 = vsub.f32 %v3539, %v3797
        %3799 = vmatpush.msra.mxu0 %v3798
        %v3800 = vand.u32 %v3532, 4294901760
        %v3801 = vsub.f32 %v3532, %v3800
        %3802 = vmatmul.f32.gmra.mxu0 %v3801
        %v3803 = vpop.f32.mrf.mxu0
        %v3804 = vadd.f32 %v3776, %v3803
        %v3805 = vand.u32 %v3535, 4294901760
        %v3806 = vsub.f32 %v3535, %v3805
        %3807 = vmatmul.f32.gmra.mxu0 %v3806
        %v3808 = vpop.f32.mrf.mxu0
        %v3809 = vadd.f32 %v3780, %v3808
        %3810 = vdwg.mxu0
        %3811 = vmatpush.msra.mxu0 0.0
        %3812 = vmatpush.msra.mxu0 0.0
        %3813 = vmatpush.msra.mxu0 0.0
        %3814 = vmatpush.msra.mxu0 0.0
        %3815 = vmatpush.msra.mxu0 0.0
        %3816 = vmatpush.msra.mxu0 0.0
        %3817 = vmatpush.msra.mxu0 0.0
        %3818 = vmatpush.msra.mxu0 0.0
        %3819 = vmatpush.msra.mxu0 0.0
        %3820 = vmatpush.msra.mxu0 0.0
        %3821 = vmatpush.msra.mxu0 0.0
        %3822 = vmatpush.msra.mxu0 0.0
        %3823 = vmatpush.msra.mxu0 0.0
        %3824 = vmatpush.msra.mxu0 0.0
        %3825 = vmatpush.msra.mxu0 0.0
        %v3826 = vand.u32 %v3539, 4294901760
        %3827 = vmatpush.msra.mxu0 %v3826
        %v3828 = vand.u32 %v3532, 4294901760
        %v3829 = vsub.f32 %v3532, %v3828
        %v3830 = vand.u32 %v3829, 4294901760
        %3831 = vmatmul.f32.gmra.mxu0 %v3830
        %v3832 = vpop.f32.mrf.mxu0
        %v3833 = vadd.f32 %v3804, %v3832
        %v3834 = vand.u32 %v3535, 4294901760
        %v3835 = vsub.f32 %v3535, %v3834
        %v3836 = vand.u32 %v3835, 4294901760
        %3837 = vmatmul.f32.gmra.mxu0 %v3836
        %v3838 = vpop.f32.mrf.mxu0
        %v3839 = vadd.f32 %v3809, %v3838
        %3840 = vdwg.mxu0
        %3841 = vmatpush.msra.mxu0 0.0
        %3842 = vmatpush.msra.mxu0 0.0
        %3843 = vmatpush.msra.mxu0 0.0
        %3844 = vmatpush.msra.mxu0 0.0
        %3845 = vmatpush.msra.mxu0 0.0
        %3846 = vmatpush.msra.mxu0 0.0
        %3847 = vmatpush.msra.mxu0 0.0
        %3848 = vmatpush.msra.mxu0 0.0
        %3849 = vmatpush.msra.mxu0 0.0
        %3850 = vmatpush.msra.mxu0 0.0
        %3851 = vmatpush.msra.mxu0 0.0
        %3852 = vmatpush.msra.mxu0 0.0
        %3853 = vmatpush.msra.mxu0 0.0
        %3854 = vmatpush.msra.mxu0 0.0
        %3855 = vmatpush.msra.mxu0 0.0
        %v3856 = vand.u32 %v3539, 4294901760
        %v3857 = vsub.f32 %v3539, %v3856
        %v3858 = vand.u32 %v3857, 4294901760
        %3859 = vmatpush.msra.mxu0 %v3858
        %v3860 = vand.u32 %v3532, 4294901760
        %3861 = vmatmul.f32.gmra.mxu0 %v3860
        %v3862 = vpop.f32.mrf.mxu0
        %v3863 = vadd.f32 %v3833, %v3862
        %v3864 = vand.u32 %v3535, 4294901760
        %3865 = vmatmul.f32.gmra.mxu0 %v3864
        %v3866 = vpop.f32.mrf.mxu0
        %v3867 = vadd.f32 %v3839, %v3866
        %3868 = vdwg.mxu0
        %3869 = vmatpush.msra.mxu0 0.0
        %3870 = vmatpush.msra.mxu0 0.0
        %3871 = vmatpush.msra.mxu0 0.0
        %3872 = vmatpush.msra.mxu0 0.0
        %3873 = vmatpush.msra.mxu0 0.0
        %3874 = vmatpush.msra.mxu0 0.0
        %3875 = vmatpush.msra.mxu0 0.0
        %3876 = vmatpush.msra.mxu0 0.0
        %3877 = vmatpush.msra.mxu0 0.0
        %3878 = vmatpush.msra.mxu0 0.0
        %3879 = vmatpush.msra.mxu0 0.0
        %3880 = vmatpush.msra.mxu0 0.0
        %3881 = vmatpush.msra.mxu0 0.0
        %3882 = vmatpush.msra.mxu0 0.0
        %3883 = vmatpush.msra.mxu0 0.0
        %v3884 = vand.u32 %v3539, 4294901760
        %3885 = vmatpush.msra.mxu0 %v3884
        %v3886 = vand.u32 %v3532, 4294901760
        %3887 = vmatmul.f32.gmra.mxu0 %v3886
        %v3888 = vpop.f32.mrf.mxu0
        %v3889 = vadd.f32 %v3863, %v3888
        %v3890 = vand.u32 %v3535, 4294901760
        %3891 = vmatmul.f32.gmra.mxu0 %v3890
        %v3892 = vpop.f32.mrf.mxu0
        %v3893 = vadd.f32 %v3867, %v3892
        %3894 = vdwg.mxu0
        %v3895 = vmax.f32 %v3712, 0.0
        %v3896 = vmax.f32 %v3889, 0.0
        %v3897 = vmax.f32 %v3716, 0.0
        %v3898 = vmax.f32 %v3893, 0.0
        %v3899 = vmin.f32 %v3895, 6.0
        %v3900 = vmin.f32 %v3896, 6.0
        %v3901 = vmin.f32 %v3897, 6.0
        %v3902 = vmin.f32 %v3898, 6.0
        %s3903 = scalar_lea.vmem %s7, 16
        %v3904 = vld [vmem:[%s3903] sm:$0xff]
        %v3905 = vld [vmem:[%s3903 + $0x8] sm:$0xff]
        %3906 = vrot.lane.b32.xlu0 %v3899, 16
        %v3907 = vpop.permute.xlu0 %3906
        %3908 = vrot.lane.b32.xlu0 %v3901, 16
        %v3909 = vpop.permute.xlu0 %3908
        %3910 = vrot.lane.b32.xlu0 %v3900, 16
        %v3911 = vpop.permute.xlu0 %3910
        %3912 = vrot.lane.b32.xlu0 %v3902, 16
        %v3913 = vpop.permute.xlu0 %3912
        %v3914 = vsel %vm1011, %v3907, %v3911
        %v3915 = vsel %vm1011, %v3909, %v3913
        %v3916 = vsel %vm1011, %v3911, %v3907
        %v3917 = vsel %vm1011, %v3913, %v3909
        %3918 = vrot.lane.b32.xlu0 %v3899, 112
        %v3919 = vpop.permute.xlu0 %3918
        %3920 = vrot.lane.b32.xlu0 %v3901, 112
        %v3921 = vpop.permute.xlu0 %3920
        %3922 = vrot.lane.b32.xlu0 %v3900, 112
        %v3923 = vpop.permute.xlu0 %3922
        %3924 = vrot.lane.b32.xlu0 %v3902, 112
        %v3925 = vpop.permute.xlu0 %3924
        %v3926 = vsel %vm1018, %v3919, %v3923
        %v3927 = vsel %vm1018, %v3921, %v3925
        %v3928 = vsel %vm1018, %v3923, %v3919
        %v3929 = vsel %vm1018, %v3925, %v3921
        %v3930 = vsel %vm1023, %v3926, %v3916
        %v3931 = vsel %vm1024, %v3928, %v3914
        %v3932 = vsel %vm1023, %v3927, %v3917
        %v3933 = vsel %vm1024, %v3929, %v3915
        %3934 = vrot.lane.b32.xlu0 %v3930, 1
        %v3935 = vpop.permute.xlu0 %3934
        %3936 = vrot.lane.b32.xlu0 %v3932, 1
        %v3937 = vpop.permute.xlu0 %3936
        %3938 = vrot.lane.b32.xlu0 %v3931, 1
        %v3939 = vpop.permute.xlu0 %3938
        %3940 = vrot.lane.b32.xlu0 %v3933, 1
        %v3941 = vpop.permute.xlu0 %3940
        %v3942 = vsel %vm1031, %v3935, %v3939
        %v3943 = vsel %vm1031, %v3937, %v3941
        %v3944 = vsel %vm1031, %v3939, %v3935
        %v3945 = vsel %vm1031, %v3941, %v3937
        %3946 = vrot.lane.b32.xlu0 %v3930, 127
        %v3947 = vpop.permute.xlu0 %3946
        %3948 = vrot.lane.b32.xlu0 %v3932, 127
        %v3949 = vpop.permute.xlu0 %3948
        %3950 = vrot.lane.b32.xlu0 %v3931, 127
        %v3951 = vpop.permute.xlu0 %3950
        %3952 = vrot.lane.b32.xlu0 %v3933, 127
        %v3953 = vpop.permute.xlu0 %3952
        %v3954 = vsel %vm1038, %v3947, %v3951
        %v3955 = vsel %vm1038, %v3949, %v3953
        %v3956 = vsel %vm1038, %v3951, %v3947
        %v3957 = vsel %vm1038, %v3953, %v3949
        %v3958 = vsel %vm1043, %v3954, %v3944
        %v3959 = vsel %vm1044, %v3956, %v3942
        %v3960 = vsel %vm1043, %v3955, %v3945
        %v3961 = vsel %vm1044, %v3957, %v3943
        %v3962 = vsel %vm1049, %v3944, %v3954
        %v3963 = vsel %vm1050, %v3942, %v3956
        %v3964 = vsel %vm1049, %v3945, %v3955
        %v3965 = vsel %vm1050, %v3943, %v3957
        %3967 = vset.pattern.permute.xlu0 0
        %3968 = vperm.xlu0 %3967, %v3904
        %v3969 = vpop.permute.xlu0 %3968
        %3972 = vset.pattern.permute.xlu0 0
        %3973 = vperm.xlu0 %3972, %v3905
        %v3974 = vpop.permute.xlu0 %3973
        %v3976 = vmul.f32 %v3969, %v3958
        %v3977 = vmul.f32 %v3969, %v3959
        %v3978 = vmul.f32 %v3974, %v3960
        %v3979 = vmul.f32 %v3974, %v3961
        %3980 = vset.pattern.permute.xlu0 1
        %3981 = vperm.xlu0 %3980, %v3904
        %v3982 = vpop.permute.xlu0 %3981
        %3984 = vset.pattern.permute.xlu0 1
        %3985 = vperm.xlu0 %3984, %v3905
        %v3986 = vpop.permute.xlu0 %3985
        %v3988 = vmul.f32 %v3982, %v3930
        %v3989 = vmul.f32 %v3982, %v3931
        %v3990 = vmul.f32 %v3986, %v3932
        %v3991 = vmul.f32 %v3986, %v3933
        %v3992 = vadd.f32 %v3976, %v3988
        %v3993 = vadd.f32 %v3977, %v3989
        %v3994 = vadd.f32 %v3978, %v3990
        %v3995 = vadd.f32 %v3979, %v3991
        %3996 = vset.pattern.permute.xlu0 2
        %3997 = vperm.xlu0 %3996, %v3904
        %v3998 = vpop.permute.xlu0 %3997
        %4000 = vset.pattern.permute.xlu0 2
        %4001 = vperm.xlu0 %4000, %v3905
        %v4002 = vpop.permute.xlu0 %4001
        %v4004 = vmul.f32 %v3998, %v3962
        %v4005 = vmul.f32 %v3998, %v3963
        %v4006 = vmul.f32 %v4002, %v3964
        %v4007 = vmul.f32 %v4002, %v3965
        %v4008 = vadd.f32 %v3992, %v4004
        %v4009 = vadd.f32 %v3993, %v4005
        %v4010 = vadd.f32 %v3994, %v4006
        %v4011 = vadd.f32 %v3995, %v4007
        %4012 = vrot.lane.b32.xlu0 %v3899, 1
        %v4013 = vpop.permute.xlu0 %4012
        %4014 = vrot.lane.b32.xlu0 %v3901, 1
        %v4015 = vpop.permute.xlu0 %4014
        %4016 = vrot.lane.b32.xlu0 %v3900, 1
        %v4017 = vpop.permute.xlu0 %4016
        %4018 = vrot.lane.b32.xlu0 %v3902, 1
        %v4019 = vpop.permute.xlu0 %4018
        %v4020 = vsel %vm1031, %v4013, %v4017
        %v4021 = vsel %vm1031, %v4015, %v4019
        %v4022 = vsel %vm1031, %v4017, %v4013
        %v4023 = vsel %vm1031, %v4019, %v4015
        %4024 = vrot.lane.b32.xlu0 %v3899, 127
        %v4025 = vpop.permute.xlu0 %4024
        %4026 = vrot.lane.b32.xlu0 %v3901, 127
        %v4027 = vpop.permute.xlu0 %4026
        %4028 = vrot.lane.b32.xlu0 %v3900, 127
        %v4029 = vpop.permute.xlu0 %4028
        %4030 = vrot.lane.b32.xlu0 %v3902, 127
        %v4031 = vpop.permute.xlu0 %4030
        %v4032 = vsel %vm1038, %v4025, %v4029
        %v4033 = vsel %vm1038, %v4027, %v4031
        %v4034 = vsel %vm1038, %v4029, %v4025
        %v4035 = vsel %vm1038, %v4031, %v4027
        %v4036 = vsel %vm1043, %v4032, %v4022
        %v4037 = vsel %vm1044, %v4034, %v4020
        %v4038 = vsel %vm1043, %v4033, %v4023
        %v4039 = vsel %vm1044, %v4035, %v4021
        %v4040 = vsel %vm1049, %v4022, %v4032
        %v4041 = vsel %vm1050, %v4020, %v4034
        %v4042 = vsel %vm1049, %v4023, %v4033
        %v4043 = vsel %vm1050, %v4021, %v4035
        %4044 = vset.pattern.permute.xlu0 3
        %4045 = vperm.xlu0 %4044, %v3904
        %v4046 = vpop.permute.xlu0 %4045
        %4048 = vset.pattern.permute.xlu0 3
        %4049 = vperm.xlu0 %4048, %v3905
        %v4050 = vpop.permute.xlu0 %4049
        %v4052 = vmul.f32 %v4046, %v4036
        %v4053 = vmul.f32 %v4046, %v4037
        %v4054 = vmul.f32 %v4050, %v4038
        %v4055 = vmul.f32 %v4050, %v4039
        %v4056 = vadd.f32 %v4008, %v4052
        %v4057 = vadd.f32 %v4009, %v4053
        %v4058 = vadd.f32 %v4010, %v4054
        %v4059 = vadd.f32 %v4011, %v4055
        %4060 = vset.pattern.permute.xlu0 4
        %4061 = vperm.xlu0 %4060, %v3904
        %v4062 = vpop.permute.xlu0 %4061
        %4064 = vset.pattern.permute.xlu0 4
        %4065 = vperm.xlu0 %4064, %v3905
        %v4066 = vpop.permute.xlu0 %4065
        %v4068 = vmul.f32 %v4062, %v3899
        %v4069 = vmul.f32 %v4062, %v3900
        %v4070 = vmul.f32 %v4066, %v3901
        %v4071 = vmul.f32 %v4066, %v3902
        %v4072 = vadd.f32 %v4056, %v4068
        %v4073 = vadd.f32 %v4057, %v4069
        %v4074 = vadd.f32 %v4058, %v4070
        %v4075 = vadd.f32 %v4059, %v4071
        %4076 = vset.pattern.permute.xlu0 5
        %4077 = vperm.xlu0 %4076, %v3904
        %v4078 = vpop.permute.xlu0 %4077
        %4080 = vset.pattern.permute.xlu0 5
        %4081 = vperm.xlu0 %4080, %v3905
        %v4082 = vpop.permute.xlu0 %4081
        %v4084 = vmul.f32 %v4078, %v4040
        %v4085 = vmul.f32 %v4078, %v4041
        %v4086 = vmul.f32 %v4082, %v4042
        %v4087 = vmul.f32 %v4082, %v4043
        %v4088 = vadd.f32 %v4072, %v4084
        %v4089 = vadd.f32 %v4073, %v4085
        %v4090 = vadd.f32 %v4074, %v4086
        %v4091 = vadd.f32 %v4075, %v4087
        %v4092 = vsel %vm1118, %v3916, %v3926
        %v4093 = vsel %vm1119, %v3914, %v3928
        %v4094 = vsel %vm1118, %v3917, %v3927
        %v4095 = vsel %vm1119, %v3915, %v3929
        %4096 = vrot.lane.b32.xlu0 %v4092, 1
        %v4097 = vpop.permute.xlu0 %4096
        %4098 = vrot.lane.b32.xlu0 %v4094, 1
        %v4099 = vpop.permute.xlu0 %4098
        %4100 = vrot.lane.b32.xlu0 %v4093, 1
        %v4101 = vpop.permute.xlu0 %4100
        %4102 = vrot.lane.b32.xlu0 %v4095, 1
        %v4103 = vpop.permute.xlu0 %4102
        %v4104 = vsel %vm1031, %v4097, %v4101
        %v4105 = vsel %vm1031, %v4099, %v4103
        %v4106 = vsel %vm1031, %v4101, %v4097
        %v4107 = vsel %vm1031, %v4103, %v4099
        %4108 = vrot.lane.b32.xlu0 %v4092, 127
        %v4109 = vpop.permute.xlu0 %4108
        %4110 = vrot.lane.b32.xlu0 %v4094, 127
        %v4111 = vpop.permute.xlu0 %4110
        %4112 = vrot.lane.b32.xlu0 %v4093, 127
        %v4113 = vpop.permute.xlu0 %4112
        %4114 = vrot.lane.b32.xlu0 %v4095, 127
        %v4115 = vpop.permute.xlu0 %4114
        %v4116 = vsel %vm1038, %v4109, %v4113
        %v4117 = vsel %vm1038, %v4111, %v4115
        %v4118 = vsel %vm1038, %v4113, %v4109
        %v4119 = vsel %vm1038, %v4115, %v4111
        %v4120 = vsel %vm1043, %v4116, %v4106
        %v4121 = vsel %vm1044, %v4118, %v4104
        %v4122 = vsel %vm1043, %v4117, %v4107
        %v4123 = vsel %vm1044, %v4119, %v4105
        %v4124 = vsel %vm1049, %v4106, %v4116
        %v4125 = vsel %vm1050, %v4104, %v4118
        %v4126 = vsel %vm1049, %v4107, %v4117
        %v4127 = vsel %vm1050, %v4105, %v4119
        %4128 = vset.pattern.permute.xlu0 6
        %4129 = vperm.xlu0 %4128, %v3904
        %v4130 = vpop.permute.xlu0 %4129
        %4132 = vset.pattern.permute.xlu0 6
        %4133 = vperm.xlu0 %4132, %v3905
        %v4134 = vpop.permute.xlu0 %4133
        %v4136 = vmul.f32 %v4130, %v4120
        %v4137 = vmul.f32 %v4130, %v4121
        %v4138 = vmul.f32 %v4134, %v4122
        %v4139 = vmul.f32 %v4134, %v4123
        %v4140 = vadd.f32 %v4088, %v4136
        %v4141 = vadd.f32 %v4089, %v4137
        %v4142 = vadd.f32 %v4090, %v4138
        %v4143 = vadd.f32 %v4091, %v4139
        %4144 = vset.pattern.permute.xlu0 7
        %4145 = vperm.xlu0 %4144, %v3904
        %v4146 = vpop.permute.xlu0 %4145
        %4148 = vset.pattern.permute.xlu0 7
        %4149 = vperm.xlu0 %4148, %v3905
        %v4150 = vpop.permute.xlu0 %4149
        %v4152 = vmul.f32 %v4146, %v4092
        %v4153 = vmul.f32 %v4146, %v4093
        %v4154 = vmul.f32 %v4150, %v4094
        %v4155 = vmul.f32 %v4150, %v4095
        %v4156 = vadd.f32 %v4140, %v4152
        %v4157 = vadd.f32 %v4141, %v4153
        %v4158 = vadd.f32 %v4142, %v4154
        %v4159 = vadd.f32 %v4143, %v4155
        %4160 = vset.pattern.permute.xlu0 8
        %4161 = vperm.xlu0 %4160, %v3904
        %v4162 = vpop.permute.xlu0 %4161
        %4164 = vset.pattern.permute.xlu0 8
        %4165 = vperm.xlu0 %4164, %v3905
        %v4166 = vpop.permute.xlu0 %4165
        %v4168 = vmul.f32 %v4162, %v4124
        %v4169 = vmul.f32 %v4162, %v4125
        %v4170 = vmul.f32 %v4166, %v4126
        %v4171 = vmul.f32 %v4166, %v4127
        %v4172 = vadd.f32 %v4156, %v4168
        %v4173 = vadd.f32 %v4157, %v4169
        %v4174 = vadd.f32 %v4158, %v4170
        %v4175 = vadd.f32 %v4159, %v4171
        %v4176 = vmax.f32 %v4172, 0.0
        %v4177 = vmax.f32 %v4173, 0.0
        %v4178 = vmax.f32 %v4174, 0.0
        %v4179 = vmax.f32 %v4175, 0.0
        %v4180 = vmin.f32 %v4176, 6.0
        %v4181 = vmin.f32 %v4177, 6.0
        %v4182 = vmin.f32 %v4178, 6.0
        %v4183 = vmin.f32 %v4179, 6.0
        %s4184 = scalar_lea.vmem %s8, 8
        %v4185 = vld [vmem:[%s4184] sm:$0xff]
        %v4187 = vsel %vm2129, %v4185, 0
        %4189 = vmatpush.msra.mxu0 0.0
        %4190 = vmatpush.msra.mxu0 0.0
        %4191 = vmatpush.msra.mxu0 0.0
        %4192 = vmatpush.msra.mxu0 0.0
        %4193 = vmatpush.msra.mxu0 0.0
        %4194 = vmatpush.msra.mxu0 0.0
        %4195 = vmatpush.msra.mxu0 0.0
        %4196 = vmatpush.msra.mxu0 0.0
        %4197 = vmatpush.msra.mxu0 0.0
        %4198 = vmatpush.msra.mxu0 0.0
        %4199 = vmatpush.msra.mxu0 0.0
        %4200 = vmatpush.msra.mxu0 0.0
        %4201 = vmatpush.msra.mxu0 0.0
        %4202 = vmatpush.msra.mxu0 0.0
        %v4203 = vand.u32 %v4182, 4294901760
        %4204 = vmatpush.msra.mxu0 %v4203
        %v4205 = vand.u32 %v4180, 4294901760
        %4206 = vmatpush.msra.mxu0 %v4205
        %v4207 = vand.u32 %v4187, 4294901760
        %v4208 = vsub.f32 %v4187, %v4207
        %v4209 = vand.u32 %v4208, 4294901760
        %v4210 = vsub.f32 %v4208, %v4209
        %v4211 = vand.u32 %v4210, 4294901760
        %4212 = vmatmul.f32.gmra.mxu0 %v4211
        %v4213 = vpop.f32.mrf.mxu0
        %v4214 = vadd.f32 0.0, %v4213
        %4215 = vdwg.mxu0
        %4216 = vmatpush.msra.mxu0 0.0
        %4217 = vmatpush.msra.mxu0 0.0
        %4218 = vmatpush.msra.mxu0 0.0
        %4219 = vmatpush.msra.mxu0 0.0
        %4220 = vmatpush.msra.mxu0 0.0
        %4221 = vmatpush.msra.mxu0 0.0
        %4222 = vmatpush.msra.mxu0 0.0
        %4223 = vmatpush.msra.mxu0 0.0
        %4224 = vmatpush.msra.mxu0 0.0
        %4225 = vmatpush.msra.mxu0 0.0
        %4226 = vmatpush.msra.mxu0 0.0
        %4227 = vmatpush.msra.mxu0 0.0
        %4228 = vmatpush.msra.mxu0 0.0
        %4229 = vmatpush.msra.mxu0 0.0
        %v4230 = vand.u32 %v4182, 4294901760
        %v4231 = vsub.f32 %v4182, %v4230
        %v4232 = vand.u32 %v4231, 4294901760
        %v4233 = vsub.f32 %v4231, %v4232
        %v4234 = vand.u32 %v4233, 4294901760
        %4235 = vmatpush.msra.mxu0 %v4234
        %v4236 = vand.u32 %v4180, 4294901760
        %v4237 = vsub.f32 %v4180, %v4236
        %v4238 = vand.u32 %v4237, 4294901760
        %v4239 = vsub.f32 %v4237, %v4238
        %v4240 = vand.u32 %v4239, 4294901760
        %4241 = vmatpush.msra.mxu0 %v4240
        %v4242 = vand.u32 %v4187, 4294901760
        %4243 = vmatmul.f32.gmra.mxu0 %v4242
        %v4244 = vpop.f32.mrf.mxu0
        %v4245 = vadd.f32 %v4214, %v4244
        %4246 = vdwg.mxu0
        %4247 = vmatpush.msra.mxu0 0.0
        %4248 = vmatpush.msra.mxu0 0.0
        %4249 = vmatpush.msra.mxu0 0.0
        %4250 = vmatpush.msra.mxu0 0.0
        %4251 = vmatpush.msra.mxu0 0.0
        %4252 = vmatpush.msra.mxu0 0.0
        %4253 = vmatpush.msra.mxu0 0.0
        %4254 = vmatpush.msra.mxu0 0.0
        %4255 = vmatpush.msra.mxu0 0.0
        %4256 = vmatpush.msra.mxu0 0.0
        %4257 = vmatpush.msra.mxu0 0.0
        %4258 = vmatpush.msra.mxu0 0.0
        %4259 = vmatpush.msra.mxu0 0.0
        %4260 = vmatpush.msra.mxu0 0.0
        %v4261 = vand.u32 %v4182, 4294901760
        %v4262 = vsub.f32 %v4182, %v4261
        %4263 = vmatpush.msra.mxu0 %v4262
        %v4264 = vand.u32 %v4180, 4294901760
        %v4265 = vsub.f32 %v4180, %v4264
        %4266 = vmatpush.msra.mxu0 %v4265
        %v4267 = vand.u32 %v4187, 4294901760
        %v4268 = vsub.f32 %v4187, %v4267
        %4269 = vmatmul.f32.gmra.mxu0 %v4268
        %v4270 = vpop.f32.mrf.mxu0
        %v4271 = vadd.f32 %v4245, %v4270
        %4272 = vdwg.mxu0
        %4273 = vmatpush.msra.mxu0 0.0
        %4274 = vmatpush.msra.mxu0 0.0
        %4275 = vmatpush.msra.mxu0 0.0
        %4276 = vmatpush.msra.mxu0 0.0
        %4277 = vmatpush.msra.mxu0 0.0
        %4278 = vmatpush.msra.mxu0 0.0
        %4279 = vmatpush.msra.mxu0 0.0
        %4280 = vmatpush.msra.mxu0 0.0
        %4281 = vmatpush.msra.mxu0 0.0
        %4282 = vmatpush.msra.mxu0 0.0
        %4283 = vmatpush.msra.mxu0 0.0
        %4284 = vmatpush.msra.mxu0 0.0
        %4285 = vmatpush.msra.mxu0 0.0
        %4286 = vmatpush.msra.mxu0 0.0
        %v4287 = vand.u32 %v4182, 4294901760
        %4288 = vmatpush.msra.mxu0 %v4287
        %v4289 = vand.u32 %v4180, 4294901760
        %4290 = vmatpush.msra.mxu0 %v4289
        %v4291 = vand.u32 %v4187, 4294901760
        %v4292 = vsub.f32 %v4187, %v4291
        %v4293 = vand.u32 %v4292, 4294901760
        %4294 = vmatmul.f32.gmra.mxu0 %v4293
        %v4295 = vpop.f32.mrf.mxu0
        %v4296 = vadd.f32 %v4271, %v4295
        %4297 = vdwg.mxu0
        %4298 = vmatpush.msra.mxu0 0.0
        %4299 = vmatpush.msra.mxu0 0.0
        %4300 = vmatpush.msra.mxu0 0.0
        %4301 = vmatpush.msra.mxu0 0.0
        %4302 = vmatpush.msra.mxu0 0.0
        %4303 = vmatpush.msra.mxu0 0.0
        %4304 = vmatpush.msra.mxu0 0.0
        %4305 = vmatpush.msra.mxu0 0.0
        %4306 = vmatpush.msra.mxu0 0.0
        %4307 = vmatpush.msra.mxu0 0.0
        %4308 = vmatpush.msra.mxu0 0.0
        %4309 = vmatpush.msra.mxu0 0.0
        %4310 = vmatpush.msra.mxu0 0.0
        %4311 = vmatpush.msra.mxu0 0.0
        %v4312 = vand.u32 %v4182, 4294901760
        %v4313 = vsub.f32 %v4182, %v4312
        %v4314 = vand.u32 %v4313, 4294901760
        %4315 = vmatpush.msra.mxu0 %v4314
        %v4316 = vand.u32 %v4180, 4294901760
        %v4317 = vsub.f32 %v4180, %v4316
        %v4318 = vand.u32 %v4317, 4294901760
        %4319 = vmatpush.msra.mxu0 %v4318
        %v4320 = vand.u32 %v4187, 4294901760
        %4321 = vmatmul.f32.gmra.mxu0 %v4320
        %v4322 = vpop.f32.mrf.mxu0
        %v4323 = vadd.f32 %v4296, %v4322
        %4324 = vdwg.mxu0
        %4325 = vmatpush.msra.mxu0 0.0
        %4326 = vmatpush.msra.mxu0 0.0
        %4327 = vmatpush.msra.mxu0 0.0
        %4328 = vmatpush.msra.mxu0 0.0
        %4329 = vmatpush.msra.mxu0 0.0
        %4330 = vmatpush.msra.mxu0 0.0
        %4331 = vmatpush.msra.mxu0 0.0
        %4332 = vmatpush.msra.mxu0 0.0
        %4333 = vmatpush.msra.mxu0 0.0
        %4334 = vmatpush.msra.mxu0 0.0
        %4335 = vmatpush.msra.mxu0 0.0
        %4336 = vmatpush.msra.mxu0 0.0
        %4337 = vmatpush.msra.mxu0 0.0
        %4338 = vmatpush.msra.mxu0 0.0
        %v4339 = vand.u32 %v4182, 4294901760
        %4340 = vmatpush.msra.mxu0 %v4339
        %v4341 = vand.u32 %v4180, 4294901760
        %4342 = vmatpush.msra.mxu0 %v4341
        %v4343 = vand.u32 %v4187, 4294901760
        %4344 = vmatmul.f32.gmra.mxu0 %v4343
        %v4345 = vpop.f32.mrf.mxu0
        %v4346 = vadd.f32 %v4323, %v4345
        %4347 = vdwg.mxu0
        %4348 = vmatpush.msra.mxu0 0.0
        %4349 = vmatpush.msra.mxu0 0.0
        %4350 = vmatpush.msra.mxu0 0.0
        %4351 = vmatpush.msra.mxu0 0.0
        %4352 = vmatpush.msra.mxu0 0.0
        %4353 = vmatpush.msra.mxu0 0.0
        %4354 = vmatpush.msra.mxu0 0.0
        %4355 = vmatpush.msra.mxu0 0.0
        %4356 = vmatpush.msra.mxu0 0.0
        %4357 = vmatpush.msra.mxu0 0.0
        %4358 = vmatpush.msra.mxu0 0.0
        %4359 = vmatpush.msra.mxu0 0.0
        %4360 = vmatpush.msra.mxu0 0.0
        %4361 = vmatpush.msra.mxu0 0.0
        %v4362 = vand.u32 %v4183, 4294901760
        %4363 = vmatpush.msra.mxu0 %v4362
        %v4364 = vand.u32 %v4181, 4294901760
        %4365 = vmatpush.msra.mxu0 %v4364
        %v4366 = vand.u32 %v4187, 4294901760
        %v4367 = vsub.f32 %v4187, %v4366
        %v4368 = vand.u32 %v4367, 4294901760
        %v4369 = vsub.f32 %v4367, %v4368
        %v4370 = vand.u32 %v4369, 4294901760
        %4371 = vmatmul.f32.gmra.mxu0 %v4370
        %v4372 = vpop.f32.mrf.mxu0
        %v4373 = vadd.f32 0.0, %v4372
        %4374 = vdwg.mxu0
        %4375 = vmatpush.msra.mxu0 0.0
        %4376 = vmatpush.msra.mxu0 0.0
        %4377 = vmatpush.msra.mxu0 0.0
        %4378 = vmatpush.msra.mxu0 0.0
        %4379 = vmatpush.msra.mxu0 0.0
        %4380 = vmatpush.msra.mxu0 0.0
        %4381 = vmatpush.msra.mxu0 0.0
        %4382 = vmatpush.msra.mxu0 0.0
        %4383 = vmatpush.msra.mxu0 0.0
        %4384 = vmatpush.msra.mxu0 0.0
        %4385 = vmatpush.msra.mxu0 0.0
        %4386 = vmatpush.msra.mxu0 0.0
        %4387 = vmatpush.msra.mxu0 0.0
        %4388 = vmatpush.msra.mxu0 0.0
        %v4389 = vand.u32 %v4183, 4294901760
        %v4390 = vsub.f32 %v4183, %v4389
        %v4391 = vand.u32 %v4390, 4294901760
        %v4392 = vsub.f32 %v4390, %v4391
        %v4393 = vand.u32 %v4392, 4294901760
        %4394 = vmatpush.msra.mxu0 %v4393
        %v4395 = vand.u32 %v4181, 4294901760
        %v4396 = vsub.f32 %v4181, %v4395
        %v4397 = vand.u32 %v4396, 4294901760
        %v4398 = vsub.f32 %v4396, %v4397
        %v4399 = vand.u32 %v4398, 4294901760
        %4400 = vmatpush.msra.mxu0 %v4399
        %v4401 = vand.u32 %v4187, 4294901760
        %4402 = vmatmul.f32.gmra.mxu0 %v4401
        %v4403 = vpop.f32.mrf.mxu0
        %v4404 = vadd.f32 %v4373, %v4403
        %4405 = vdwg.mxu0
        %4406 = vmatpush.msra.mxu0 0.0
        %4407 = vmatpush.msra.mxu0 0.0
        %4408 = vmatpush.msra.mxu0 0.0
        %4409 = vmatpush.msra.mxu0 0.0
        %4410 = vmatpush.msra.mxu0 0.0
        %4411 = vmatpush.msra.mxu0 0.0
        %4412 = vmatpush.msra.mxu0 0.0
        %4413 = vmatpush.msra.mxu0 0.0
        %4414 = vmatpush.msra.mxu0 0.0
        %4415 = vmatpush.msra.mxu0 0.0
        %4416 = vmatpush.msra.mxu0 0.0
        %4417 = vmatpush.msra.mxu0 0.0
        %4418 = vmatpush.msra.mxu0 0.0
        %4419 = vmatpush.msra.mxu0 0.0
        %v4420 = vand.u32 %v4183, 4294901760
        %v4421 = vsub.f32 %v4183, %v4420
        %4422 = vmatpush.msra.mxu0 %v4421
        %v4423 = vand.u32 %v4181, 4294901760
        %v4424 = vsub.f32 %v4181, %v4423
        %4425 = vmatpush.msra.mxu0 %v4424
        %v4426 = vand.u32 %v4187, 4294901760
        %v4427 = vsub.f32 %v4187, %v4426
        %4428 = vmatmul.f32.gmra.mxu0 %v4427
        %v4429 = vpop.f32.mrf.mxu0
        %v4430 = vadd.f32 %v4404, %v4429
        %4431 = vdwg.mxu0
        %4432 = vmatpush.msra.mxu0 0.0
        %4433 = vmatpush.msra.mxu0 0.0
        %4434 = vmatpush.msra.mxu0 0.0
        %4435 = vmatpush.msra.mxu0 0.0
        %4436 = vmatpush.msra.mxu0 0.0
        %4437 = vmatpush.msra.mxu0 0.0
        %4438 = vmatpush.msra.mxu0 0.0
        %4439 = vmatpush.msra.mxu0 0.0
        %4440 = vmatpush.msra.mxu0 0.0
        %4441 = vmatpush.msra.mxu0 0.0
        %4442 = vmatpush.msra.mxu0 0.0
        %4443 = vmatpush.msra.mxu0 0.0
        %4444 = vmatpush.msra.mxu0 0.0
        %4445 = vmatpush.msra.mxu0 0.0
        %v4446 = vand.u32 %v4183, 4294901760
        %4447 = vmatpush.msra.mxu0 %v4446
        %v4448 = vand.u32 %v4181, 4294901760
        %4449 = vmatpush.msra.mxu0 %v4448
        %v4450 = vand.u32 %v4187, 4294901760
        %v4451 = vsub.f32 %v4187, %v4450
        %v4452 = vand.u32 %v4451, 4294901760
        %4453 = vmatmul.f32.gmra.mxu0 %v4452
        %v4454 = vpop.f32.mrf.mxu0
        %v4455 = vadd.f32 %v4430, %v4454
        %4456 = vdwg.mxu0
        %4457 = vmatpush.msra.mxu0 0.0
        %4458 = vmatpush.msra.mxu0 0.0
        %4459 = vmatpush.msra.mxu0 0.0
        %4460 = vmatpush.msra.mxu0 0.0
        %4461 = vmatpush.msra.mxu0 0.0
        %4462 = vmatpush.msra.mxu0 0.0
        %4463 = vmatpush.msra.mxu0 0.0
        %4464 = vmatpush.msra.mxu0 0.0
        %4465 = vmatpush.msra.mxu0 0.0
        %4466 = vmatpush.msra.mxu0 0.0
        %4467 = vmatpush.msra.mxu0 0.0
        %4468 = vmatpush.msra.mxu0 0.0
        %4469 = vmatpush.msra.mxu0 0.0
        %4470 = vmatpush.msra.mxu0 0.0
        %v4471 = vand.u32 %v4183, 4294901760
        %v4472 = vsub.f32 %v4183, %v4471
        %v4473 = vand.u32 %v4472, 4294901760
        %4474 = vmatpush.msra.mxu0 %v4473
        %v4475 = vand.u32 %v4181, 4294901760
        %v4476 = vsub.f32 %v4181, %v4475
        %v4477 = vand.u32 %v4476, 4294901760
        %4478 = vmatpush.msra.mxu0 %v4477
        %v4479 = vand.u32 %v4187, 4294901760
        %4480 = vmatmul.f32.gmra.mxu0 %v4479
        %v4481 = vpop.f32.mrf.mxu0
        %v4482 = vadd.f32 %v4455, %v4481
        %4483 = vdwg.mxu0
        %4484 = vmatpush.msra.mxu0 0.0
        %4485 = vmatpush.msra.mxu0 0.0
        %4486 = vmatpush.msra.mxu0 0.0
        %4487 = vmatpush.msra.mxu0 0.0
        %4488 = vmatpush.msra.mxu0 0.0
        %4489 = vmatpush.msra.mxu0 0.0
        %4490 = vmatpush.msra.mxu0 0.0
        %4491 = vmatpush.msra.mxu0 0.0
        %4492 = vmatpush.msra.mxu0 0.0
        %4493 = vmatpush.msra.mxu0 0.0
        %4494 = vmatpush.msra.mxu0 0.0
        %4495 = vmatpush.msra.mxu0 0.0
        %4496 = vmatpush.msra.mxu0 0.0
        %4497 = vmatpush.msra.mxu0 0.0
        %v4498 = vand.u32 %v4183, 4294901760
        %4499 = vmatpush.msra.mxu0 %v4498
        %v4500 = vand.u32 %v4181, 4294901760
        %4501 = vmatpush.msra.mxu0 %v4500
        %v4502 = vand.u32 %v4187, 4294901760
        %4503 = vmatmul.f32.gmra.mxu0 %v4502
        %v4504 = vpop.f32.mrf.mxu0
        %v4505 = vadd.f32 %v4482, %v4504
        %4506 = vdwg.mxu0
        %v4507 = vmul.f32 %v4346, 1.442695
        %v4508 = vpow.pop %v4507
        %v4509 = vmul.f32 %v4505, 1.442695
        %v4510 = vpow.pop %v4509
        %v4511 = vmul.f32 %v2623, %v4508
        %v4512 = vmul.f32 %v2769, %v4510
        %v4515 = vrot.slane %v4346, 4
        %v4516 = vrot.slane %v4505, 4
        %v4519 = vadd.f32 %v4511, %v4515
        %v4520 = vadd.f32 %v4512, %v4516
        %v4521 = vsel %vm703, %v4519, %v3522
        %v4522 = vsel %vm703, %v4520, %v3523
        %s4523 = scalar_lea.vmem %s1, 16
        %v4524 = vld [vmem:[%s4523] sm:$0xff]
        %s4525 = scalar_lea.vmem %s2, 16
        %v4526 = vld [vmem:[%s4525] sm:$0xff]
        %4528 = vset.pattern.permute.xlu0 0
        %4529 = vperm.xlu0 %4528, %v4526
        %v4530 = vpop.permute.xlu0 %4529
        %v4533 = vsel %vm402, %v4524, 0
        %4535 = vmatpush.msra.mxu0 0.0
        %4536 = vmatpush.msra.mxu0 0.0
        %4537 = vmatpush.msra.mxu0 0.0
        %4538 = vmatpush.msra.mxu0 0.0
        %4539 = vmatpush.msra.mxu0 0.0
        %4540 = vmatpush.msra.mxu0 0.0
        %4541 = vmatpush.msra.mxu0 0.0
        %4542 = vmatpush.msra.mxu0 0.0
        %4543 = vmatpush.msra.mxu0 0.0
        %4544 = vmatpush.msra.mxu0 0.0
        %4545 = vmatpush.msra.mxu0 0.0
        %4546 = vmatpush.msra.mxu0 0.0
        %4547 = vmatpush.msra.mxu0 0.0
        %4548 = vmatpush.msra.mxu0 0.0
        %4549 = vmatpush.msra.mxu0 0.0
        %v4550 = vand.u32 %v4521, 4294901760
        %4551 = vmatpush.msra.mxu0 %v4550
        %v4552 = vand.u32 %v4533, 4294901760
        %v4553 = vsub.f32 %v4533, %v4552
        %v4554 = vand.u32 %v4553, 4294901760
        %v4555 = vsub.f32 %v4553, %v4554
        %v4556 = vand.u32 %v4555, 4294901760
        %4557 = vmatmul.f32.gmra.mxu0 %v4556
        %v4558 = vpop.f32.mrf.mxu0
        %v4559 = vadd.f32 %v4530, %v4558
        %4560 = vdwg.mxu0
        %4561 = vmatpush.msra.mxu0 0.0
        %4562 = vmatpush.msra.mxu0 0.0
        %4563 = vmatpush.msra.mxu0 0.0
        %4564 = vmatpush.msra.mxu0 0.0
        %4565 = vmatpush.msra.mxu0 0.0
        %4566 = vmatpush.msra.mxu0 0.0
        %4567 = vmatpush.msra.mxu0 0.0
        %4568 = vmatpush.msra.mxu0 0.0
        %4569 = vmatpush.msra.mxu0 0.0
        %4570 = vmatpush.msra.mxu0 0.0
        %4571 = vmatpush.msra.mxu0 0.0
        %4572 = vmatpush.msra.mxu0 0.0
        %4573 = vmatpush.msra.mxu0 0.0
        %4574 = vmatpush.msra.mxu0 0.0
        %4575 = vmatpush.msra.mxu0 0.0
        %v4576 = vand.u32 %v4521, 4294901760
        %v4577 = vsub.f32 %v4521, %v4576
        %v4578 = vand.u32 %v4577, 4294901760
        %v4579 = vsub.f32 %v4577, %v4578
        %v4580 = vand.u32 %v4579, 4294901760
        %4581 = vmatpush.msra.mxu0 %v4580
        %v4582 = vand.u32 %v4533, 4294901760
        %4583 = vmatmul.f32.gmra.mxu0 %v4582
        %v4584 = vpop.f32.mrf.mxu0
        %v4585 = vadd.f32 %v4559, %v4584
        %4586 = vdwg.mxu0
        %4587 = vmatpush.msra.mxu0 0.0
        %4588 = vmatpush.msra.mxu0 0.0
        %4589 = vmatpush.msra.mxu0 0.0
        %4590 = vmatpush.msra.mxu0 0.0
        %4591 = vmatpush.msra.mxu0 0.0
        %4592 = vmatpush.msra.mxu0 0.0
        %4593 = vmatpush.msra.mxu0 0.0
        %4594 = vmatpush.msra.mxu0 0.0
        %4595 = vmatpush.msra.mxu0 0.0
        %4596 = vmatpush.msra.mxu0 0.0
        %4597 = vmatpush.msra.mxu0 0.0
        %4598 = vmatpush.msra.mxu0 0.0
        %4599 = vmatpush.msra.mxu0 0.0
        %4600 = vmatpush.msra.mxu0 0.0
        %4601 = vmatpush.msra.mxu0 0.0
        %v4602 = vand.u32 %v4521, 4294901760
        %v4603 = vsub.f32 %v4521, %v4602
        %4604 = vmatpush.msra.mxu0 %v4603
        %v4605 = vand.u32 %v4533, 4294901760
        %v4606 = vsub.f32 %v4533, %v4605
        %4607 = vmatmul.f32.gmra.mxu0 %v4606
        %v4608 = vpop.f32.mrf.mxu0
        %v4609 = vadd.f32 %v4585, %v4608
        %4610 = vdwg.mxu0
        %4611 = vmatpush.msra.mxu0 0.0
        %4612 = vmatpush.msra.mxu0 0.0
        %4613 = vmatpush.msra.mxu0 0.0
        %4614 = vmatpush.msra.mxu0 0.0
        %4615 = vmatpush.msra.mxu0 0.0
        %4616 = vmatpush.msra.mxu0 0.0
        %4617 = vmatpush.msra.mxu0 0.0
        %4618 = vmatpush.msra.mxu0 0.0
        %4619 = vmatpush.msra.mxu0 0.0
        %4620 = vmatpush.msra.mxu0 0.0
        %4621 = vmatpush.msra.mxu0 0.0
        %4622 = vmatpush.msra.mxu0 0.0
        %4623 = vmatpush.msra.mxu0 0.0
        %4624 = vmatpush.msra.mxu0 0.0
        %4625 = vmatpush.msra.mxu0 0.0
        %v4626 = vand.u32 %v4521, 4294901760
        %4627 = vmatpush.msra.mxu0 %v4626
        %v4628 = vand.u32 %v4533, 4294901760
        %v4629 = vsub.f32 %v4533, %v4628
        %v4630 = vand.u32 %v4629, 4294901760
        %4631 = vmatmul.f32.gmra.mxu0 %v4630
        %v4632 = vpop.f32.mrf.mxu0
        %v4633 = vadd.f32 %v4609, %v4632
        %4634 = vdwg.mxu0
        %4635 = vmatpush.msra.mxu0 0.0
        %4636 = vmatpush.msra.mxu0 0.0
        %4637 = vmatpush.msra.mxu0 0.0
        %4638 = vmatpush.msra.mxu0 0.0
        %4639 = vmatpush.msra.mxu0 0.0
        %4640 = vmatpush.msra.mxu0 0.0
        %4641 = vmatpush.msra.mxu0 0.0
        %4642 = vmatpush.msra.mxu0 0.0
        %4643 = vmatpush.msra.mxu0 0.0
        %4644 = vmatpush.msra.mxu0 0.0
        %4645 = vmatpush.msra.mxu0 0.0
        %4646 = vmatpush.msra.mxu0 0.0
        %4647 = vmatpush.msra.mxu0 0.0
        %4648 = vmatpush.msra.mxu0 0.0
        %4649 = vmatpush.msra.mxu0 0.0
        %v4650 = vand.u32 %v4521, 4294901760
        %v4651 = vsub.f32 %v4521, %v4650
        %v4652 = vand.u32 %v4651, 4294901760
        %4653 = vmatpush.msra.mxu0 %v4652
        %v4654 = vand.u32 %v4533, 4294901760
        %4655 = vmatmul.f32.gmra.mxu0 %v4654
        %v4656 = vpop.f32.mrf.mxu0
        %v4657 = vadd.f32 %v4633, %v4656
        %4658 = vdwg.mxu0
        %4659 = vmatpush.msra.mxu0 0.0
        %4660 = vmatpush.msra.mxu0 0.0
        %4661 = vmatpush.msra.mxu0 0.0
        %4662 = vmatpush.msra.mxu0 0.0
        %4663 = vmatpush.msra.mxu0 0.0
        %4664 = vmatpush.msra.mxu0 0.0
        %4665 = vmatpush.msra.mxu0 0.0
        %4666 = vmatpush.msra.mxu0 0.0
        %4667 = vmatpush.msra.mxu0 0.0
        %4668 = vmatpush.msra.mxu0 0.0
        %4669 = vmatpush.msra.mxu0 0.0
        %4670 = vmatpush.msra.mxu0 0.0
        %4671 = vmatpush.msra.mxu0 0.0
        %4672 = vmatpush.msra.mxu0 0.0
        %4673 = vmatpush.msra.mxu0 0.0
        %v4674 = vand.u32 %v4521, 4294901760
        %4675 = vmatpush.msra.mxu0 %v4674
        %v4676 = vand.u32 %v4533, 4294901760
        %4677 = vmatmul.f32.gmra.mxu0 %v4676
        %v4678 = vpop.f32.mrf.mxu0
        %v4679 = vadd.f32 %v4657, %v4678
        %4680 = vdwg.mxu0
        %4681 = vmatpush.msra.mxu0 0.0
        %4682 = vmatpush.msra.mxu0 0.0
        %4683 = vmatpush.msra.mxu0 0.0
        %4684 = vmatpush.msra.mxu0 0.0
        %4685 = vmatpush.msra.mxu0 0.0
        %4686 = vmatpush.msra.mxu0 0.0
        %4687 = vmatpush.msra.mxu0 0.0
        %4688 = vmatpush.msra.mxu0 0.0
        %4689 = vmatpush.msra.mxu0 0.0
        %4690 = vmatpush.msra.mxu0 0.0
        %4691 = vmatpush.msra.mxu0 0.0
        %4692 = vmatpush.msra.mxu0 0.0
        %4693 = vmatpush.msra.mxu0 0.0
        %4694 = vmatpush.msra.mxu0 0.0
        %4695 = vmatpush.msra.mxu0 0.0
        %v4696 = vand.u32 %v4522, 4294901760
        %4697 = vmatpush.msra.mxu0 %v4696
        %v4698 = vand.u32 %v4533, 4294901760
        %v4699 = vsub.f32 %v4533, %v4698
        %v4700 = vand.u32 %v4699, 4294901760
        %v4701 = vsub.f32 %v4699, %v4700
        %v4702 = vand.u32 %v4701, 4294901760
        %4703 = vmatmul.f32.gmra.mxu0 %v4702
        %v4704 = vpop.f32.mrf.mxu0
        %v4705 = vadd.f32 %v4530, %v4704
        %4706 = vdwg.mxu0
        %4707 = vmatpush.msra.mxu0 0.0
        %4708 = vmatpush.msra.mxu0 0.0
        %4709 = vmatpush.msra.mxu0 0.0
        %4710 = vmatpush.msra.mxu0 0.0
        %4711 = vmatpush.msra.mxu0 0.0
        %4712 = vmatpush.msra.mxu0 0.0
        %4713 = vmatpush.msra.mxu0 0.0
        %4714 = vmatpush.msra.mxu0 0.0
        %4715 = vmatpush.msra.mxu0 0.0
        %4716 = vmatpush.msra.mxu0 0.0
        %4717 = vmatpush.msra.mxu0 0.0
        %4718 = vmatpush.msra.mxu0 0.0
        %4719 = vmatpush.msra.mxu0 0.0
        %4720 = vmatpush.msra.mxu0 0.0
        %4721 = vmatpush.msra.mxu0 0.0
        %v4722 = vand.u32 %v4522, 4294901760
        %v4723 = vsub.f32 %v4522, %v4722
        %v4724 = vand.u32 %v4723, 4294901760
        %v4725 = vsub.f32 %v4723, %v4724
        %v4726 = vand.u32 %v4725, 4294901760
        %4727 = vmatpush.msra.mxu0 %v4726
        %v4728 = vand.u32 %v4533, 4294901760
        %4729 = vmatmul.f32.gmra.mxu0 %v4728
        %v4730 = vpop.f32.mrf.mxu0
        %v4731 = vadd.f32 %v4705, %v4730
        %4732 = vdwg.mxu0
        %4733 = vmatpush.msra.mxu0 0.0
        %4734 = vmatpush.msra.mxu0 0.0
        %4735 = vmatpush.msra.mxu0 0.0
        %4736 = vmatpush.msra.mxu0 0.0
        %4737 = vmatpush.msra.mxu0 0.0
        %4738 = vmatpush.msra.mxu0 0.0
        %4739 = vmatpush.msra.mxu0 0.0
        %4740 = vmatpush.msra.mxu0 0.0
        %4741 = vmatpush.msra.mxu0 0.0
        %4742 = vmatpush.msra.mxu0 0.0
        %4743 = vmatpush.msra.mxu0 0.0
        %4744 = vmatpush.msra.mxu0 0.0
        %4745 = vmatpush.msra.mxu0 0.0
        %4746 = vmatpush.msra.mxu0 0.0
        %4747 = vmatpush.msra.mxu0 0.0
        %v4748 = vand.u32 %v4522, 4294901760
        %v4749 = vsub.f32 %v4522, %v4748
        %4750 = vmatpush.msra.mxu0 %v4749
        %v4751 = vand.u32 %v4533, 4294901760
        %v4752 = vsub.f32 %v4533, %v4751
        %4753 = vmatmul.f32.gmra.mxu0 %v4752
        %v4754 = vpop.f32.mrf.mxu0
        %v4755 = vadd.f32 %v4731, %v4754
        %4756 = vdwg.mxu0
        %4757 = vmatpush.msra.mxu0 0.0
        %4758 = vmatpush.msra.mxu0 0.0
        %4759 = vmatpush.msra.mxu0 0.0
        %4760 = vmatpush.msra.mxu0 0.0
        %4761 = vmatpush.msra.mxu0 0.0
        %4762 = vmatpush.msra.mxu0 0.0
        %4763 = vmatpush.msra.mxu0 0.0
        %4764 = vmatpush.msra.mxu0 0.0
        %4765 = vmatpush.msra.mxu0 0.0
        %4766 = vmatpush.msra.mxu0 0.0
        %4767 = vmatpush.msra.mxu0 0.0
        %4768 = vmatpush.msra.mxu0 0.0
        %4769 = vmatpush.msra.mxu0 0.0
        %4770 = vmatpush.msra.mxu0 0.0
        %4771 = vmatpush.msra.mxu0 0.0
        %v4772 = vand.u32 %v4522, 4294901760
        %4773 = vmatpush.msra.mxu0 %v4772
        %v4774 = vand.u32 %v4533, 4294901760
        %v4775 = vsub.f32 %v4533, %v4774
        %v4776 = vand.u32 %v4775, 4294901760
        %4777 = vmatmul.f32.gmra.mxu0 %v4776
        %v4778 = vpop.f32.mrf.mxu0
        %v4779 = vadd.f32 %v4755, %v4778
        %4780 = vdwg.mxu0
        %4781 = vmatpush.msra.mxu0 0.0
        %4782 = vmatpush.msra.mxu0 0.0
        %4783 = vmatpush.msra.mxu0 0.0
        %4784 = vmatpush.msra.mxu0 0.0
        %4785 = vmatpush.msra.mxu0 0.0
        %4786 = vmatpush.msra.mxu0 0.0
        %4787 = vmatpush.msra.mxu0 0.0
        %4788 = vmatpush.msra.mxu0 0.0
        %4789 = vmatpush.msra.mxu0 0.0
        %4790 = vmatpush.msra.mxu0 0.0
        %4791 = vmatpush.msra.mxu0 0.0
        %4792 = vmatpush.msra.mxu0 0.0
        %4793 = vmatpush.msra.mxu0 0.0
        %4794 = vmatpush.msra.mxu0 0.0
        %4795 = vmatpush.msra.mxu0 0.0
        %v4796 = vand.u32 %v4522, 4294901760
        %v4797 = vsub.f32 %v4522, %v4796
        %v4798 = vand.u32 %v4797, 4294901760
        %4799 = vmatpush.msra.mxu0 %v4798
        %v4800 = vand.u32 %v4533, 4294901760
        %4801 = vmatmul.f32.gmra.mxu0 %v4800
        %v4802 = vpop.f32.mrf.mxu0
        %v4803 = vadd.f32 %v4779, %v4802
        %4804 = vdwg.mxu0
        %4805 = vmatpush.msra.mxu0 0.0
        %4806 = vmatpush.msra.mxu0 0.0
        %4807 = vmatpush.msra.mxu0 0.0
        %4808 = vmatpush.msra.mxu0 0.0
        %4809 = vmatpush.msra.mxu0 0.0
        %4810 = vmatpush.msra.mxu0 0.0
        %4811 = vmatpush.msra.mxu0 0.0
        %4812 = vmatpush.msra.mxu0 0.0
        %4813 = vmatpush.msra.mxu0 0.0
        %4814 = vmatpush.msra.mxu0 0.0
        %4815 = vmatpush.msra.mxu0 0.0
        %4816 = vmatpush.msra.mxu0 0.0
        %4817 = vmatpush.msra.mxu0 0.0
        %4818 = vmatpush.msra.mxu0 0.0
        %4819 = vmatpush.msra.mxu0 0.0
        %v4820 = vand.u32 %v4522, 4294901760
        %4821 = vmatpush.msra.mxu0 %v4820
        %v4822 = vand.u32 %v4533, 4294901760
        %4823 = vmatmul.f32.gmra.mxu0 %v4822
        %v4824 = vpop.f32.mrf.mxu0
        %v4825 = vadd.f32 %v4803, %v4824
        %4826 = vdwg.mxu0
        %s4827 = scalar_lea.vmem %s3, 16
        %v4828 = vld [vmem:[%s4827] sm:$0xff]
        %v4830 = vsel %vm699, %v4828, 0
        %v4833 = vsel %vm703, %v4679, 0
        %v4836 = vsel %vm703, %v4825, 0
        %4838 = vmatpush.msra.mxu0 0.0
        %4839 = vmatpush.msra.mxu0 0.0
        %4840 = vmatpush.msra.mxu0 0.0
        %4841 = vmatpush.msra.mxu0 0.0
        %4842 = vmatpush.msra.mxu0 0.0
        %4843 = vmatpush.msra.mxu0 0.0
        %4844 = vmatpush.msra.mxu0 0.0
        %4845 = vmatpush.msra.mxu0 0.0
        %4846 = vmatpush.msra.mxu0 0.0
        %4847 = vmatpush.msra.mxu0 0.0
        %4848 = vmatpush.msra.mxu0 0.0
        %4849 = vmatpush.msra.mxu0 0.0
        %4850 = vmatpush.msra.mxu0 0.0
        %4851 = vmatpush.msra.mxu0 0.0
        %4852 = vmatpush.msra.mxu0 0.0
        %v4853 = vand.u32 %v4833, 4294901760
        %4854 = vmatpush.msra.mxu0 %v4853
        %v4855 = vand.u32 %v4830, 4294901760
        %v4856 = vsub.f32 %v4830, %v4855
        %v4857 = vand.u32 %v4856, 4294901760
        %v4858 = vsub.f32 %v4856, %v4857
        %v4859 = vand.u32 %v4858, 4294901760
        %4860 = vmatmul.f32.gmra.mxu0 %v4859
        %v4861 = vpop.f32.mrf.mxu0
        %v4862 = vadd.f32 0.0, %v4861
        %4863 = vdwg.mxu0
        %4864 = vmatpush.msra.mxu0 0.0
        %4865 = vmatpush.msra.mxu0 0.0
        %4866 = vmatpush.msra.mxu0 0.0
        %4867 = vmatpush.msra.mxu0 0.0
        %4868 = vmatpush.msra.mxu0 0.0
        %4869 = vmatpush.msra.mxu0 0.0
        %4870 = vmatpush.msra.mxu0 0.0
        %4871 = vmatpush.msra.mxu0 0.0
        %4872 = vmatpush.msra.mxu0 0.0
        %4873 = vmatpush.msra.mxu0 0.0
        %4874 = vmatpush.msra.mxu0 0.0
        %4875 = vmatpush.msra.mxu0 0.0
        %4876 = vmatpush.msra.mxu0 0.0
        %4877 = vmatpush.msra.mxu0 0.0
        %4878 = vmatpush.msra.mxu0 0.0
        %v4879 = vand.u32 %v4833, 4294901760
        %v4880 = vsub.f32 %v4833, %v4879
        %v4881 = vand.u32 %v4880, 4294901760
        %v4882 = vsub.f32 %v4880, %v4881
        %v4883 = vand.u32 %v4882, 4294901760
        %4884 = vmatpush.msra.mxu0 %v4883
        %v4885 = vand.u32 %v4830, 4294901760
        %4886 = vmatmul.f32.gmra.mxu0 %v4885
        %v4887 = vpop.f32.mrf.mxu0
        %v4888 = vadd.f32 %v4862, %v4887
        %4889 = vdwg.mxu0
        %4890 = vmatpush.msra.mxu0 0.0
        %4891 = vmatpush.msra.mxu0 0.0
        %4892 = vmatpush.msra.mxu0 0.0
        %4893 = vmatpush.msra.mxu0 0.0
        %4894 = vmatpush.msra.mxu0 0.0
        %4895 = vmatpush.msra.mxu0 0.0
        %4896 = vmatpush.msra.mxu0 0.0
        %4897 = vmatpush.msra.mxu0 0.0
        %4898 = vmatpush.msra.mxu0 0.0
        %4899 = vmatpush.msra.mxu0 0.0
        %4900 = vmatpush.msra.mxu0 0.0
        %4901 = vmatpush.msra.mxu0 0.0
        %4902 = vmatpush.msra.mxu0 0.0
        %4903 = vmatpush.msra.mxu0 0.0
        %4904 = vmatpush.msra.mxu0 0.0
        %v4905 = vand.u32 %v4833, 4294901760
        %v4906 = vsub.f32 %v4833, %v4905
        %4907 = vmatpush.msra.mxu0 %v4906
        %v4908 = vand.u32 %v4830, 4294901760
        %v4909 = vsub.f32 %v4830, %v4908
        %4910 = vmatmul.f32.gmra.mxu0 %v4909
        %v4911 = vpop.f32.mrf.mxu0
        %v4912 = vadd.f32 %v4888, %v4911
        %4913 = vdwg.mxu0
        %4914 = vmatpush.msra.mxu0 0.0
        %4915 = vmatpush.msra.mxu0 0.0
        %4916 = vmatpush.msra.mxu0 0.0
        %4917 = vmatpush.msra.mxu0 0.0
        %4918 = vmatpush.msra.mxu0 0.0
        %4919 = vmatpush.msra.mxu0 0.0
        %4920 = vmatpush.msra.mxu0 0.0
        %4921 = vmatpush.msra.mxu0 0.0
        %4922 = vmatpush.msra.mxu0 0.0
        %4923 = vmatpush.msra.mxu0 0.0
        %4924 = vmatpush.msra.mxu0 0.0
        %4925 = vmatpush.msra.mxu0 0.0
        %4926 = vmatpush.msra.mxu0 0.0
        %4927 = vmatpush.msra.mxu0 0.0
        %4928 = vmatpush.msra.mxu0 0.0
        %v4929 = vand.u32 %v4833, 4294901760
        %4930 = vmatpush.msra.mxu0 %v4929
        %v4931 = vand.u32 %v4830, 4294901760
        %v4932 = vsub.f32 %v4830, %v4931
        %v4933 = vand.u32 %v4932, 4294901760
        %4934 = vmatmul.f32.gmra.mxu0 %v4933
        %v4935 = vpop.f32.mrf.mxu0
        %v4936 = vadd.f32 %v4912, %v4935
        %4937 = vdwg.mxu0
        %4938 = vmatpush.msra.mxu0 0.0
        %4939 = vmatpush.msra.mxu0 0.0
        %4940 = vmatpush.msra.mxu0 0.0
        %4941 = vmatpush.msra.mxu0 0.0
        %4942 = vmatpush.msra.mxu0 0.0
        %4943 = vmatpush.msra.mxu0 0.0
        %4944 = vmatpush.msra.mxu0 0.0
        %4945 = vmatpush.msra.mxu0 0.0
        %4946 = vmatpush.msra.mxu0 0.0
        %4947 = vmatpush.msra.mxu0 0.0
        %4948 = vmatpush.msra.mxu0 0.0
        %4949 = vmatpush.msra.mxu0 0.0
        %4950 = vmatpush.msra.mxu0 0.0
        %4951 = vmatpush.msra.mxu0 0.0
        %4952 = vmatpush.msra.mxu0 0.0
        %v4953 = vand.u32 %v4833, 4294901760
        %v4954 = vsub.f32 %v4833, %v4953
        %v4955 = vand.u32 %v4954, 4294901760
        %4956 = vmatpush.msra.mxu0 %v4955
        %v4957 = vand.u32 %v4830, 4294901760
        %4958 = vmatmul.f32.gmra.mxu0 %v4957
        %v4959 = vpop.f32.mrf.mxu0
        %v4960 = vadd.f32 %v4936, %v4959
        %4961 = vdwg.mxu0
        %4962 = vmatpush.msra.mxu0 0.0
        %4963 = vmatpush.msra.mxu0 0.0
        %4964 = vmatpush.msra.mxu0 0.0
        %4965 = vmatpush.msra.mxu0 0.0
        %4966 = vmatpush.msra.mxu0 0.0
        %4967 = vmatpush.msra.mxu0 0.0
        %4968 = vmatpush.msra.mxu0 0.0
        %4969 = vmatpush.msra.mxu0 0.0
        %4970 = vmatpush.msra.mxu0 0.0
        %4971 = vmatpush.msra.mxu0 0.0
        %4972 = vmatpush.msra.mxu0 0.0
        %4973 = vmatpush.msra.mxu0 0.0
        %4974 = vmatpush.msra.mxu0 0.0
        %4975 = vmatpush.msra.mxu0 0.0
        %4976 = vmatpush.msra.mxu0 0.0
        %v4977 = vand.u32 %v4833, 4294901760
        %4978 = vmatpush.msra.mxu0 %v4977
        %v4979 = vand.u32 %v4830, 4294901760
        %4980 = vmatmul.f32.gmra.mxu0 %v4979
        %v4981 = vpop.f32.mrf.mxu0
        %v4982 = vadd.f32 %v4960, %v4981
        %4983 = vdwg.mxu0
        %4984 = vmatpush.msra.mxu0 0.0
        %4985 = vmatpush.msra.mxu0 0.0
        %4986 = vmatpush.msra.mxu0 0.0
        %4987 = vmatpush.msra.mxu0 0.0
        %4988 = vmatpush.msra.mxu0 0.0
        %4989 = vmatpush.msra.mxu0 0.0
        %4990 = vmatpush.msra.mxu0 0.0
        %4991 = vmatpush.msra.mxu0 0.0
        %4992 = vmatpush.msra.mxu0 0.0
        %4993 = vmatpush.msra.mxu0 0.0
        %4994 = vmatpush.msra.mxu0 0.0
        %4995 = vmatpush.msra.mxu0 0.0
        %4996 = vmatpush.msra.mxu0 0.0
        %4997 = vmatpush.msra.mxu0 0.0
        %4998 = vmatpush.msra.mxu0 0.0
        %v4999 = vand.u32 %v4836, 4294901760
        %5000 = vmatpush.msra.mxu0 %v4999
        %v5001 = vand.u32 %v4830, 4294901760
        %v5002 = vsub.f32 %v4830, %v5001
        %v5003 = vand.u32 %v5002, 4294901760
        %v5004 = vsub.f32 %v5002, %v5003
        %v5005 = vand.u32 %v5004, 4294901760
        %5006 = vmatmul.f32.gmra.mxu0 %v5005
        %v5007 = vpop.f32.mrf.mxu0
        %v5008 = vadd.f32 0.0, %v5007
        %5009 = vdwg.mxu0
        %5010 = vmatpush.msra.mxu0 0.0
        %5011 = vmatpush.msra.mxu0 0.0
        %5012 = vmatpush.msra.mxu0 0.0
        %5013 = vmatpush.msra.mxu0 0.0
        %5014 = vmatpush.msra.mxu0 0.0
        %5015 = vmatpush.msra.mxu0 0.0
        %5016 = vmatpush.msra.mxu0 0.0
        %5017 = vmatpush.msra.mxu0 0.0
        %5018 = vmatpush.msra.mxu0 0.0
        %5019 = vmatpush.msra.mxu0 0.0
        %5020 = vmatpush.msra.mxu0 0.0
        %5021 = vmatpush.msra.mxu0 0.0
        %5022 = vmatpush.msra.mxu0 0.0
        %5023 = vmatpush.msra.mxu0 0.0
        %5024 = vmatpush.msra.mxu0 0.0
        %v5025 = vand.u32 %v4836, 4294901760
        %v5026 = vsub.f32 %v4836, %v5025
        %v5027 = vand.u32 %v5026, 4294901760
        %v5028 = vsub.f32 %v5026, %v5027
        %v5029 = vand.u32 %v5028, 4294901760
        %5030 = vmatpush.msra.mxu0 %v5029
        %v5031 = vand.u32 %v4830, 4294901760
        %5032 = vmatmul.f32.gmra.mxu0 %v5031
        %v5033 = vpop.f32.mrf.mxu0
        %v5034 = vadd.f32 %v5008, %v5033
        %5035 = vdwg.mxu0
        %5036 = vmatpush.msra.mxu0 0.0
        %5037 = vmatpush.msra.mxu0 0.0
        %5038 = vmatpush.msra.mxu0 0.0
        %5039 = vmatpush.msra.mxu0 0.0
        %5040 = vmatpush.msra.mxu0 0.0
        %5041 = vmatpush.msra.mxu0 0.0
        %5042 = vmatpush.msra.mxu0 0.0
        %5043 = vmatpush.msra.mxu0 0.0
        %5044 = vmatpush.msra.mxu0 0.0
        %5045 = vmatpush.msra.mxu0 0.0
        %5046 = vmatpush.msra.mxu0 0.0
        %5047 = vmatpush.msra.mxu0 0.0
        %5048 = vmatpush.msra.mxu0 0.0
        %5049 = vmatpush.msra.mxu0 0.0
        %5050 = vmatpush.msra.mxu0 0.0
        %v5051 = vand.u32 %v4836, 4294901760
        %v5052 = vsub.f32 %v4836, %v5051
        %5053 = vmatpush.msra.mxu0 %v5052
        %v5054 = vand.u32 %v4830, 4294901760
        %v5055 = vsub.f32 %v4830, %v5054
        %5056 = vmatmul.f32.gmra.mxu0 %v5055
        %v5057 = vpop.f32.mrf.mxu0
        %v5058 = vadd.f32 %v5034, %v5057
        %5059 = vdwg.mxu0
        %5060 = vmatpush.msra.mxu0 0.0
        %5061 = vmatpush.msra.mxu0 0.0
        %5062 = vmatpush.msra.mxu0 0.0
        %5063 = vmatpush.msra.mxu0 0.0
        %5064 = vmatpush.msra.mxu0 0.0
        %5065 = vmatpush.msra.mxu0 0.0
        %5066 = vmatpush.msra.mxu0 0.0
        %5067 = vmatpush.msra.mxu0 0.0
        %5068 = vmatpush.msra.mxu0 0.0
        %5069 = vmatpush.msra.mxu0 0.0
        %5070 = vmatpush.msra.mxu0 0.0
        %5071 = vmatpush.msra.mxu0 0.0
        %5072 = vmatpush.msra.mxu0 0.0
        %5073 = vmatpush.msra.mxu0 0.0
        %5074 = vmatpush.msra.mxu0 0.0
        %v5075 = vand.u32 %v4836, 4294901760
        %5076 = vmatpush.msra.mxu0 %v5075
        %v5077 = vand.u32 %v4830, 4294901760
        %v5078 = vsub.f32 %v4830, %v5077
        %v5079 = vand.u32 %v5078, 4294901760
        %5080 = vmatmul.f32.gmra.mxu0 %v5079
        %v5081 = vpop.f32.mrf.mxu0
        %v5082 = vadd.f32 %v5058, %v5081
        %5083 = vdwg.mxu0
        %5084 = vmatpush.msra.mxu0 0.0
        %5085 = vmatpush.msra.mxu0 0.0
        %5086 = vmatpush.msra.mxu0 0.0
        %5087 = vmatpush.msra.mxu0 0.0
        %5088 = vmatpush.msra.mxu0 0.0
        %5089 = vmatpush.msra.mxu0 0.0
        %5090 = vmatpush.msra.mxu0 0.0
        %5091 = vmatpush.msra.mxu0 0.0
        %5092 = vmatpush.msra.mxu0 0.0
        %5093 = vmatpush.msra.mxu0 0.0
        %5094 = vmatpush.msra.mxu0 0.0
        %5095 = vmatpush.msra.mxu0 0.0
        %5096 = vmatpush.msra.mxu0 0.0
        %5097 = vmatpush.msra.mxu0 0.0
        %5098 = vmatpush.msra.mxu0 0.0
        %v5099 = vand.u32 %v4836, 4294901760
        %v5100 = vsub.f32 %v4836, %v5099
        %v5101 = vand.u32 %v5100, 4294901760
        %5102 = vmatpush.msra.mxu0 %v5101
        %v5103 = vand.u32 %v4830, 4294901760
        %5104 = vmatmul.f32.gmra.mxu0 %v5103
        %v5105 = vpop.f32.mrf.mxu0
        %v5106 = vadd.f32 %v5082, %v5105
        %5107 = vdwg.mxu0
        %5108 = vmatpush.msra.mxu0 0.0
        %5109 = vmatpush.msra.mxu0 0.0
        %5110 = vmatpush.msra.mxu0 0.0
        %5111 = vmatpush.msra.mxu0 0.0
        %5112 = vmatpush.msra.mxu0 0.0
        %5113 = vmatpush.msra.mxu0 0.0
        %5114 = vmatpush.msra.mxu0 0.0
        %5115 = vmatpush.msra.mxu0 0.0
        %5116 = vmatpush.msra.mxu0 0.0
        %5117 = vmatpush.msra.mxu0 0.0
        %5118 = vmatpush.msra.mxu0 0.0
        %5119 = vmatpush.msra.mxu0 0.0
        %5120 = vmatpush.msra.mxu0 0.0
        %5121 = vmatpush.msra.mxu0 0.0
        %5122 = vmatpush.msra.mxu0 0.0
        %v5123 = vand.u32 %v4836, 4294901760
        %5124 = vmatpush.msra.mxu0 %v5123
        %v5125 = vand.u32 %v4830, 4294901760
        %5126 = vmatmul.f32.gmra.mxu0 %v5125
        %v5127 = vpop.f32.mrf.mxu0
        %v5128 = vadd.f32 %v5106, %v5127
        %5129 = vdwg.mxu0
        %v5130 = vmax.f32 %v4982, 0.0
        %v5131 = vmax.f32 %v5128, 0.0
        %v5132 = vmin.f32 %v5130, 6.0
        %v5133 = vmin.f32 %v5131, 6.0
        %s5134 = scalar_lea.vmem %s4, 16
        %v5135 = vld [vmem:[%s5134] sm:$0xff]
        %5136 = vrot.lane.b32.xlu0 %v5132, 16
        %v5137 = vpop.permute.xlu0 %5136
        %5138 = vrot.lane.b32.xlu0 %v5133, 16
        %v5139 = vpop.permute.xlu0 %5138
        %v5140 = vsel %vm1011, %v5137, %v5139
        %v5141 = vsel %vm1011, %v5139, %v5137
        %5142 = vrot.lane.b32.xlu0 %v5132, 112
        %v5143 = vpop.permute.xlu0 %5142
        %5144 = vrot.lane.b32.xlu0 %v5133, 112
        %v5145 = vpop.permute.xlu0 %5144
        %v5146 = vsel %vm1018, %v5143, %v5145
        %v5147 = vsel %vm1018, %v5145, %v5143
        %v5148 = vsel %vm1023, %v5146, %v5141
        %v5149 = vsel %vm1024, %v5147, %v5140
        %5150 = vrot.lane.b32.xlu0 %v5148, 1
        %v5151 = vpop.permute.xlu0 %5150
        %5152 = vrot.lane.b32.xlu0 %v5149, 1
        %v5153 = vpop.permute.xlu0 %5152
        %v5154 = vsel %vm1031, %v5151, %v5153
        %v5155 = vsel %vm1031, %v5153, %v5151
        %5156 = vrot.lane.b32.xlu0 %v5148, 127
        %v5157 = vpop.permute.xlu0 %5156
        %5158 = vrot.lane.b32.xlu0 %v5149, 127
        %v5159 = vpop.permute.xlu0 %5158
        %v5160 = vsel %vm1038, %v5157, %v5159
        %v5161 = vsel %vm1038, %v5159, %v5157
        %v5162 = vsel %vm1043, %v5160, %v5155
        %v5163 = vsel %vm1044, %v5161, %v5154
        %v5164 = vsel %vm1049, %v5155, %v5160
        %v5165 = vsel %vm1050, %v5154, %v5161
        %5167 = vset.pattern.permute.xlu0 0
        %5168 = vperm.xlu0 %5167, %v5135
        %v5169 = vpop.permute.xlu0 %5168
        %v5171 = vmul.f32 %v5169, %v5162
        %v5172 = vmul.f32 %v5169, %v5163
        %5173 = vset.pattern.permute.xlu0 1
        %5174 = vperm.xlu0 %5173, %v5135
        %v5175 = vpop.permute.xlu0 %5174
        %v5177 = vmul.f32 %v5175, %v5148
        %v5178 = vmul.f32 %v5175, %v5149
        %v5179 = vadd.f32 %v5171, %v5177
        %v5180 = vadd.f32 %v5172, %v5178
        %5181 = vset.pattern.permute.xlu0 2
        %5182 = vperm.xlu0 %5181, %v5135
        %v5183 = vpop.permute.xlu0 %5182
        %v5185 = vmul.f32 %v5183, %v5164
        %v5186 = vmul.f32 %v5183, %v5165
        %v5187 = vadd.f32 %v5179, %v5185
        %v5188 = vadd.f32 %v5180, %v5186
        %5189 = vrot.lane.b32.xlu0 %v5132, 1
        %v5190 = vpop.permute.xlu0 %5189
        %5191 = vrot.lane.b32.xlu0 %v5133, 1
        %v5192 = vpop.permute.xlu0 %5191
        %v5193 = vsel %vm1031, %v5190, %v5192
        %v5194 = vsel %vm1031, %v5192, %v5190
        %5195 = vrot.lane.b32.xlu0 %v5132, 127
        %v5196 = vpop.permute.xlu0 %5195
        %5197 = vrot.lane.b32.xlu0 %v5133, 127
        %v5198 = vpop.permute.xlu0 %5197
        %v5199 = vsel %vm1038, %v5196, %v5198
        %v5200 = vsel %vm1038, %v5198, %v5196
        %v5201 = vsel %vm1043, %v5199, %v5194
        %v5202 = vsel %vm1044, %v5200, %v5193
        %v5203 = vsel %vm1049, %v5194, %v5199
        %v5204 = vsel %vm1050, %v5193, %v5200
        %5205 = vset.pattern.permute.xlu0 3
        %5206 = vperm.xlu0 %5205, %v5135
        %v5207 = vpop.permute.xlu0 %5206
        %v5209 = vmul.f32 %v5207, %v5201
        %v5210 = vmul.f32 %v5207, %v5202
        %v5211 = vadd.f32 %v5187, %v5209
        %v5212 = vadd.f32 %v5188, %v5210
        %5213 = vset.pattern.permute.xlu0 4
        %5214 = vperm.xlu0 %5213, %v5135
        %v5215 = vpop.permute.xlu0 %5214
        %v5217 = vmul.f32 %v5215, %v5132
        %v5218 = vmul.f32 %v5215, %v5133
        %v5219 = vadd.f32 %v5211, %v5217
        %v5220 = vadd.f32 %v5212, %v5218
        %5221 = vset.pattern.permute.xlu0 5
        %5222 = vperm.xlu0 %5221, %v5135
        %v5223 = vpop.permute.xlu0 %5222
        %v5225 = vmul.f32 %v5223, %v5203
        %v5226 = vmul.f32 %v5223, %v5204
        %v5227 = vadd.f32 %v5219, %v5225
        %v5228 = vadd.f32 %v5220, %v5226
        %v5229 = vsel %vm1118, %v5141, %v5146
        %v5230 = vsel %vm1119, %v5140, %v5147
        %5231 = vrot.lane.b32.xlu0 %v5229, 1
        %v5232 = vpop.permute.xlu0 %5231
        %5233 = vrot.lane.b32.xlu0 %v5230, 1
        %v5234 = vpop.permute.xlu0 %5233
        %v5235 = vsel %vm1031, %v5232, %v5234
        %v5236 = vsel %vm1031, %v5234, %v5232
        %5237 = vrot.lane.b32.xlu0 %v5229, 127
        %v5238 = vpop.permute.xlu0 %5237
        %5239 = vrot.lane.b32.xlu0 %v5230, 127
        %v5240 = vpop.permute.xlu0 %5239
        %v5241 = vsel %vm1038, %v5238, %v5240
        %v5242 = vsel %vm1038, %v5240, %v5238
        %v5243 = vsel %vm1043, %v5241, %v5236
        %v5244 = vsel %vm1044, %v5242, %v5235
        %v5245 = vsel %vm1049, %v5236, %v5241
        %v5246 = vsel %vm1050, %v5235, %v5242
        %5247 = vset.pattern.permute.xlu0 6
        %5248 = vperm.xlu0 %5247, %v5135
        %v5249 = vpop.permute.xlu0 %5248
        %v5251 = vmul.f32 %v5249, %v5243
        %v5252 = vmul.f32 %v5249, %v5244
        %v5253 = vadd.f32 %v5227, %v5251
        %v5254 = vadd.f32 %v5228, %v5252
        %5255 = vset.pattern.permute.xlu0 7
        %5256 = vperm.xlu0 %5255, %v5135
        %v5257 = vpop.permute.xlu0 %5256
        %v5259 = vmul.f32 %v5257, %v5229
        %v5260 = vmul.f32 %v5257, %v5230
        %v5261 = vadd.f32 %v5253, %v5259
        %v5262 = vadd.f32 %v5254, %v5260
        %5263 = vset.pattern.permute.xlu0 8
        %5264 = vperm.xlu0 %5263, %v5135
        %v5265 = vpop.permute.xlu0 %5264
        %v5267 = vmul.f32 %v5265, %v5245
        %v5268 = vmul.f32 %v5265, %v5246
        %v5269 = vadd.f32 %v5261, %v5267
        %v5270 = vadd.f32 %v5262, %v5268
        %v5271 = vmax.f32 %v5269, 0.0
        %v5272 = vmax.f32 %v5270, 0.0
        %v5273 = vmin.f32 %v5271, 6.0
        %v5274 = vmin.f32 %v5272, 6.0
        %s5275 = scalar_lea.vmem %s5, 8
        %v5276 = vld [vmem:[%s5275] sm:$0xf]
        %v5278 = vsel %vm402, %v5276, 0
        %5280 = vmatpush.msra.mxu0 0.0
        %5281 = vmatpush.msra.mxu0 0.0
        %5282 = vmatpush.msra.mxu0 0.0
        %5283 = vmatpush.msra.mxu0 0.0
        %5284 = vmatpush.msra.mxu0 0.0
        %5285 = vmatpush.msra.mxu0 0.0
        %5286 = vmatpush.msra.mxu0 0.0
        %5287 = vmatpush.msra.mxu0 0.0
        %5288 = vmatpush.msra.mxu0 0.0
        %5289 = vmatpush.msra.mxu0 0.0
        %5290 = vmatpush.msra.mxu0 0.0
        %5291 = vmatpush.msra.mxu0 0.0
        %5292 = vmatpush.msra.mxu0 0.0
        %5293 = vmatpush.msra.mxu0 0.0
        %5294 = vmatpush.msra.mxu0 0.0
        %v5295 = vand.u32 %v5273, 4294901760
        %5296 = vmatpush.msra.mxu0 %v5295
        %v5297 = vand.u32 %v5278, 4294901760
        %v5298 = vsub.f32 %v5278, %v5297
        %v5299 = vand.u32 %v5298, 4294901760
        %v5300 = vsub.f32 %v5298, %v5299
        %v5301 = vand.u32 %v5300, 4294901760
        %5302 = vmatmul.f32.gmra.mxu0 %v5301
        %v5303 = vpop.f32.mrf.mxu0
        %v5304 = vadd.f32 0.0, %v5303
        %5305 = vdwg.mxu0
        %5306 = vmatpush.msra.mxu0 0.0
        %5307 = vmatpush.msra.mxu0 0.0
        %5308 = vmatpush.msra.mxu0 0.0
        %5309 = vmatpush.msra.mxu0 0.0
        %5310 = vmatpush.msra.mxu0 0.0
        %5311 = vmatpush.msra.mxu0 0.0
        %5312 = vmatpush.msra.mxu0 0.0
        %5313 = vmatpush.msra.mxu0 0.0
        %5314 = vmatpush.msra.mxu0 0.0
        %5315 = vmatpush.msra.mxu0 0.0
        %5316 = vmatpush.msra.mxu0 0.0
        %5317 = vmatpush.msra.mxu0 0.0
        %5318 = vmatpush.msra.mxu0 0.0
        %5319 = vmatpush.msra.mxu0 0.0
        %5320 = vmatpush.msra.mxu0 0.0
        %v5321 = vand.u32 %v5273, 4294901760
        %v5322 = vsub.f32 %v5273, %v5321
        %v5323 = vand.u32 %v5322, 4294901760
        %v5324 = vsub.f32 %v5322, %v5323
        %v5325 = vand.u32 %v5324, 4294901760
        %5326 = vmatpush.msra.mxu0 %v5325
        %v5327 = vand.u32 %v5278, 4294901760
        %5328 = vmatmul.f32.gmra.mxu0 %v5327
        %v5329 = vpop.f32.mrf.mxu0
        %v5330 = vadd.f32 %v5304, %v5329
        %5331 = vdwg.mxu0
        %5332 = vmatpush.msra.mxu0 0.0
        %5333 = vmatpush.msra.mxu0 0.0
        %5334 = vmatpush.msra.mxu0 0.0
        %5335 = vmatpush.msra.mxu0 0.0
        %5336 = vmatpush.msra.mxu0 0.0
        %5337 = vmatpush.msra.mxu0 0.0
        %5338 = vmatpush.msra.mxu0 0.0
        %5339 = vmatpush.msra.mxu0 0.0
        %5340 = vmatpush.msra.mxu0 0.0
        %5341 = vmatpush.msra.mxu0 0.0
        %5342 = vmatpush.msra.mxu0 0.0
        %5343 = vmatpush.msra.mxu0 0.0
        %5344 = vmatpush.msra.mxu0 0.0
        %5345 = vmatpush.msra.mxu0 0.0
        %5346 = vmatpush.msra.mxu0 0.0
        %v5347 = vand.u32 %v5273, 4294901760
        %v5348 = vsub.f32 %v5273, %v5347
        %5349 = vmatpush.msra.mxu0 %v5348
        %v5350 = vand.u32 %v5278, 4294901760
        %v5351 = vsub.f32 %v5278, %v5350
        %5352 = vmatmul.f32.gmra.mxu0 %v5351
        %v5353 = vpop.f32.mrf.mxu0
        %v5354 = vadd.f32 %v5330, %v5353
        %5355 = vdwg.mxu0
        %5356 = vmatpush.msra.mxu0 0.0
        %5357 = vmatpush.msra.mxu0 0.0
        %5358 = vmatpush.msra.mxu0 0.0
        %5359 = vmatpush.msra.mxu0 0.0
        %5360 = vmatpush.msra.mxu0 0.0
        %5361 = vmatpush.msra.mxu0 0.0
        %5362 = vmatpush.msra.mxu0 0.0
        %5363 = vmatpush.msra.mxu0 0.0
        %5364 = vmatpush.msra.mxu0 0.0
        %5365 = vmatpush.msra.mxu0 0.0
        %5366 = vmatpush.msra.mxu0 0.0
        %5367 = vmatpush.msra.mxu0 0.0
        %5368 = vmatpush.msra.mxu0 0.0
        %5369 = vmatpush.msra.mxu0 0.0
        %5370 = vmatpush.msra.mxu0 0.0
        %v5371 = vand.u32 %v5273, 4294901760
        %5372 = vmatpush.msra.mxu0 %v5371
        %v5373 = vand.u32 %v5278, 4294901760
        %v5374 = vsub.f32 %v5278, %v5373
        %v5375 = vand.u32 %v5374, 4294901760
        %5376 = vmatmul.f32.gmra.mxu0 %v5375
        %v5377 = vpop.f32.mrf.mxu0
        %v5378 = vadd.f32 %v5354, %v5377
        %5379 = vdwg.mxu0
        %5380 = vmatpush.msra.mxu0 0.0
        %5381 = vmatpush.msra.mxu0 0.0
        %5382 = vmatpush.msra.mxu0 0.0
        %5383 = vmatpush.msra.mxu0 0.0
        %5384 = vmatpush.msra.mxu0 0.0
        %5385 = vmatpush.msra.mxu0 0.0
        %5386 = vmatpush.msra.mxu0 0.0
        %5387 = vmatpush.msra.mxu0 0.0
        %5388 = vmatpush.msra.mxu0 0.0
        %5389 = vmatpush.msra.mxu0 0.0
        %5390 = vmatpush.msra.mxu0 0.0
        %5391 = vmatpush.msra.mxu0 0.0
        %5392 = vmatpush.msra.mxu0 0.0
        %5393 = vmatpush.msra.mxu0 0.0
        %5394 = vmatpush.msra.mxu0 0.0
        %v5395 = vand.u32 %v5273, 4294901760
        %v5396 = vsub.f32 %v5273, %v5395
        %v5397 = vand.u32 %v5396, 4294901760
        %5398 = vmatpush.msra.mxu0 %v5397
        %v5399 = vand.u32 %v5278, 4294901760
        %5400 = vmatmul.f32.gmra.mxu0 %v5399
        %v5401 = vpop.f32.mrf.mxu0
        %v5402 = vadd.f32 %v5378, %v5401
        %5403 = vdwg.mxu0
        %5404 = vmatpush.msra.mxu0 0.0
        %5405 = vmatpush.msra.mxu0 0.0
        %5406 = vmatpush.msra.mxu0 0.0
        %5407 = vmatpush.msra.mxu0 0.0
        %5408 = vmatpush.msra.mxu0 0.0
        %5409 = vmatpush.msra.mxu0 0.0
        %5410 = vmatpush.msra.mxu0 0.0
        %5411 = vmatpush.msra.mxu0 0.0
        %5412 = vmatpush.msra.mxu0 0.0
        %5413 = vmatpush.msra.mxu0 0.0
        %5414 = vmatpush.msra.mxu0 0.0
        %5415 = vmatpush.msra.mxu0 0.0
        %5416 = vmatpush.msra.mxu0 0.0
        %5417 = vmatpush.msra.mxu0 0.0
        %5418 = vmatpush.msra.mxu0 0.0
        %v5419 = vand.u32 %v5273, 4294901760
        %5420 = vmatpush.msra.mxu0 %v5419
        %v5421 = vand.u32 %v5278, 4294901760
        %5422 = vmatmul.f32.gmra.mxu0 %v5421
        %v5423 = vpop.f32.mrf.mxu0
        %v5424 = vadd.f32 %v5402, %v5423
        %5425 = vdwg.mxu0
        %5426 = vmatpush.msra.mxu0 0.0
        %5427 = vmatpush.msra.mxu0 0.0
        %5428 = vmatpush.msra.mxu0 0.0
        %5429 = vmatpush.msra.mxu0 0.0
        %5430 = vmatpush.msra.mxu0 0.0
        %5431 = vmatpush.msra.mxu0 0.0
        %5432 = vmatpush.msra.mxu0 0.0
        %5433 = vmatpush.msra.mxu0 0.0
        %5434 = vmatpush.msra.mxu0 0.0
        %5435 = vmatpush.msra.mxu0 0.0
        %5436 = vmatpush.msra.mxu0 0.0
        %5437 = vmatpush.msra.mxu0 0.0
        %5438 = vmatpush.msra.mxu0 0.0
        %5439 = vmatpush.msra.mxu0 0.0
        %5440 = vmatpush.msra.mxu0 0.0
        %v5441 = vand.u32 %v5274, 4294901760
        %5442 = vmatpush.msra.mxu0 %v5441
        %v5443 = vand.u32 %v5278, 4294901760
        %v5444 = vsub.f32 %v5278, %v5443
        %v5445 = vand.u32 %v5444, 4294901760
        %v5446 = vsub.f32 %v5444, %v5445
        %v5447 = vand.u32 %v5446, 4294901760
        %5448 = vmatmul.f32.gmra.mxu0 %v5447
        %v5449 = vpop.f32.mrf.mxu0
        %v5450 = vadd.f32 0.0, %v5449
        %5451 = vdwg.mxu0
        %5452 = vmatpush.msra.mxu0 0.0
        %5453 = vmatpush.msra.mxu0 0.0
        %5454 = vmatpush.msra.mxu0 0.0
        %5455 = vmatpush.msra.mxu0 0.0
        %5456 = vmatpush.msra.mxu0 0.0
        %5457 = vmatpush.msra.mxu0 0.0
        %5458 = vmatpush.msra.mxu0 0.0
        %5459 = vmatpush.msra.mxu0 0.0
        %5460 = vmatpush.msra.mxu0 0.0
        %5461 = vmatpush.msra.mxu0 0.0
        %5462 = vmatpush.msra.mxu0 0.0
        %5463 = vmatpush.msra.mxu0 0.0
        %5464 = vmatpush.msra.mxu0 0.0
        %5465 = vmatpush.msra.mxu0 0.0
        %5466 = vmatpush.msra.mxu0 0.0
        %v5467 = vand.u32 %v5274, 4294901760
        %v5468 = vsub.f32 %v5274, %v5467
        %v5469 = vand.u32 %v5468, 4294901760
        %v5470 = vsub.f32 %v5468, %v5469
        %v5471 = vand.u32 %v5470, 4294901760
        %5472 = vmatpush.msra.mxu0 %v5471
        %v5473 = vand.u32 %v5278, 4294901760
        %5474 = vmatmul.f32.gmra.mxu0 %v5473
        %v5475 = vpop.f32.mrf.mxu0
        %v5476 = vadd.f32 %v5450, %v5475
        %5477 = vdwg.mxu0
        %5478 = vmatpush.msra.mxu0 0.0
        %5479 = vmatpush.msra.mxu0 0.0
        %5480 = vmatpush.msra.mxu0 0.0
        %5481 = vmatpush.msra.mxu0 0.0
        %5482 = vmatpush.msra.mxu0 0.0
        %5483 = vmatpush.msra.mxu0 0.0
        %5484 = vmatpush.msra.mxu0 0.0
        %5485 = vmatpush.msra.mxu0 0.0
        %5486 = vmatpush.msra.mxu0 0.0
        %5487 = vmatpush.msra.mxu0 0.0
        %5488 = vmatpush.msra.mxu0 0.0
        %5489 = vmatpush.msra.mxu0 0.0
        %5490 = vmatpush.msra.mxu0 0.0
        %5491 = vmatpush.msra.mxu0 0.0
        %5492 = vmatpush.msra.mxu0 0.0
        %v5493 = vand.u32 %v5274, 4294901760
        %v5494 = vsub.f32 %v5274, %v5493
        %5495 = vmatpush.msra.mxu0 %v5494
        %v5496 = vand.u32 %v5278, 4294901760
        %v5497 = vsub.f32 %v5278, %v5496
        %5498 = vmatmul.f32.gmra.mxu0 %v5497
        %v5499 = vpop.f32.mrf.mxu0
        %v5500 = vadd.f32 %v5476, %v5499
        %5501 = vdwg.mxu0
        %5502 = vmatpush.msra.mxu0 0.0
        %5503 = vmatpush.msra.mxu0 0.0
        %5504 = vmatpush.msra.mxu0 0.0
        %5505 = vmatpush.msra.mxu0 0.0
        %5506 = vmatpush.msra.mxu0 0.0
        %5507 = vmatpush.msra.mxu0 0.0
        %5508 = vmatpush.msra.mxu0 0.0
        %5509 = vmatpush.msra.mxu0 0.0
        %5510 = vmatpush.msra.mxu0 0.0
        %5511 = vmatpush.msra.mxu0 0.0
        %5512 = vmatpush.msra.mxu0 0.0
        %5513 = vmatpush.msra.mxu0 0.0
        %5514 = vmatpush.msra.mxu0 0.0
        %5515 = vmatpush.msra.mxu0 0.0
        %5516 = vmatpush.msra.mxu0 0.0
        %v5517 = vand.u32 %v5274, 4294901760
        %5518 = vmatpush.msra.mxu0 %v5517
        %v5519 = vand.u32 %v5278, 4294901760
        %v5520 = vsub.f32 %v5278, %v5519
        %v5521 = vand.u32 %v5520, 4294901760
        %5522 = vmatmul.f32.gmra.mxu0 %v5521
        %v5523 = vpop.f32.mrf.mxu0
        %v5524 = vadd.f32 %v5500, %v5523
        %5525 = vdwg.mxu0
        %5526 = vmatpush.msra.mxu0 0.0
        %5527 = vmatpush.msra.mxu0 0.0
        %5528 = vmatpush.msra.mxu0 0.0
        %5529 = vmatpush.msra.mxu0 0.0
        %5530 = vmatpush.msra.mxu0 0.0
        %5531 = vmatpush.msra.mxu0 0.0
        %5532 = vmatpush.msra.mxu0 0.0
        %5533 = vmatpush.msra.mxu0 0.0
        %5534 = vmatpush.msra.mxu0 0.0
        %5535 = vmatpush.msra.mxu0 0.0
        %5536 = vmatpush.msra.mxu0 0.0
        %5537 = vmatpush.msra.mxu0 0.0
        %5538 = vmatpush.msra.mxu0 0.0
        %5539 = vmatpush.msra.mxu0 0.0
        %5540 = vmatpush.msra.mxu0 0.0
        %v5541 = vand.u32 %v5274, 4294901760
        %v5542 = vsub.f32 %v5274, %v5541
        %v5543 = vand.u32 %v5542, 4294901760
        %5544 = vmatpush.msra.mxu0 %v5543
        %v5545 = vand.u32 %v5278, 4294901760
        %5546 = vmatmul.f32.gmra.mxu0 %v5545
        %v5547 = vpop.f32.mrf.mxu0
        %v5548 = vadd.f32 %v5524, %v5547
        %5549 = vdwg.mxu0
        %5550 = vmatpush.msra.mxu0 0.0
        %5551 = vmatpush.msra.mxu0 0.0
        %5552 = vmatpush.msra.mxu0 0.0
        %5553 = vmatpush.msra.mxu0 0.0
        %5554 = vmatpush.msra.mxu0 0.0
        %5555 = vmatpush.msra.mxu0 0.0
        %5556 = vmatpush.msra.mxu0 0.0
        %5557 = vmatpush.msra.mxu0 0.0
        %5558 = vmatpush.msra.mxu0 0.0
        %5559 = vmatpush.msra.mxu0 0.0
        %5560 = vmatpush.msra.mxu0 0.0
        %5561 = vmatpush.msra.mxu0 0.0
        %5562 = vmatpush.msra.mxu0 0.0
        %5563 = vmatpush.msra.mxu0 0.0
        %5564 = vmatpush.msra.mxu0 0.0
        %v5565 = vand.u32 %v5274, 4294901760
        %5566 = vmatpush.msra.mxu0 %v5565
        %v5567 = vand.u32 %v5278, 4294901760
        %5568 = vmatmul.f32.gmra.mxu0 %v5567
        %v5569 = vpop.f32.mrf.mxu0
        %v5570 = vadd.f32 %v5548, %v5569
        %5571 = vdwg.mxu0
        %v5574 = vrot.slane %v5424, 4
        %v5575 = vrot.slane %v5570, 4
        %v5578 = vadd.f32 %v4679, %v5574
        %v5579 = vadd.f32 %v4825, %v5575
        %s5580 = scalar_lea.vmem %s6, 32
        %v5581 = vld [vmem:[%s5580] sm:$0xff]
        %v5582 = vld [vmem:[%s5580 + $0x8] sm:$0xff]
        %v5585 = vrot.slane %v5578, 4
        %v5586 = vrot.slane %v5579, 4
        %v5588 = vsel %vm699, %v5581, 0
        %v5591 = vsel %vm699, %v5582, 0
        %v5593 = vsel %vm703, %v5585, 0
        %v5595 = vsel %vm703, %v5586, 0
        %5597 = vmatpush.msra.mxu0 0.0
        %5598 = vmatpush.msra.mxu0 0.0
        %5599 = vmatpush.msra.mxu0 0.0
        %5600 = vmatpush.msra.mxu0 0.0
        %5601 = vmatpush.msra.mxu0 0.0
        %5602 = vmatpush.msra.mxu0 0.0
        %5603 = vmatpush.msra.mxu0 0.0
        %5604 = vmatpush.msra.mxu0 0.0
        %5605 = vmatpush.msra.mxu0 0.0
        %5606 = vmatpush.msra.mxu0 0.0
        %5607 = vmatpush.msra.mxu0 0.0
        %5608 = vmatpush.msra.mxu0 0.0
        %5609 = vmatpush.msra.mxu0 0.0
        %5610 = vmatpush.msra.mxu0 0.0
        %5611 = vmatpush.msra.mxu0 0.0
        %v5612 = vand.u32 %v5593, 4294901760
        %5613 = vmatpush.msra.mxu0 %v5612
        %v5614 = vand.u32 %v5588, 4294901760
        %v5615 = vsub.f32 %v5588, %v5614
        %v5616 = vand.u32 %v5615, 4294901760
        %v5617 = vsub.f32 %v5615, %v5616
        %v5618 = vand.u32 %v5617, 4294901760
        %5619 = vmatmul.f32.gmra.mxu0 %v5618
        %v5620 = vpop.f32.mrf.mxu0
        %v5621 = vadd.f32 0.0, %v5620
        %v5622 = vand.u32 %v5591, 4294901760
        %v5623 = vsub.f32 %v5591, %v5622
        %v5624 = vand.u32 %v5623, 4294901760
        %v5625 = vsub.f32 %v5623, %v5624
        %v5626 = vand.u32 %v5625, 4294901760
        %5627 = vmatmul.f32.gmra.mxu0 %v5626
        %v5628 = vpop.f32.mrf.mxu0
        %v5629 = vadd.f32 0.0, %v5628
        %5630 = vdwg.mxu0
        %5631 = vmatpush.msra.mxu0 0.0
        %5632 = vmatpush.msra.mxu0 0.0
        %5633 = vmatpush.msra.mxu0 0.0
        %5634 = vmatpush.msra.mxu0 0.0
        %5635 = vmatpush.msra.mxu0 0.0
        %5636 = vmatpush.msra.mxu0 0.0
        %5637 = vmatpush.msra.mxu0 0.0
        %5638 = vmatpush.msra.mxu0 0.0
        %5639 = vmatpush.msra.mxu0 0.0
        %5640 = vmatpush.msra.mxu0 0.0
        %5641 = vmatpush.msra.mxu0 0.0
        %5642 = vmatpush.msra.mxu0 0.0
        %5643 = vmatpush.msra.mxu0 0.0
        %5644 = vmatpush.msra.mxu0 0.0
        %5645 = vmatpush.msra.mxu0 0.0
        %v5646 = vand.u32 %v5593, 4294901760
        %v5647 = vsub.f32 %v5593, %v5646
        %v5648 = vand.u32 %v5647, 4294901760
        %v5649 = vsub.f32 %v5647, %v5648
        %v5650 = vand.u32 %v5649, 4294901760
        %5651 = vmatpush.msra.mxu0 %v5650
        %v5652 = vand.u32 %v5588, 4294901760
        %5653 = vmatmul.f32.gmra.mxu0 %v5652
        %v5654 = vpop.f32.mrf.mxu0
        %v5655 = vadd.f32 %v5621, %v5654
        %v5656 = vand.u32 %v5591, 4294901760
        %5657 = vmatmul.f32.gmra.mxu0 %v5656
        %v5658 = vpop.f32.mrf.mxu0
        %v5659 = vadd.f32 %v5629, %v5658
        %5660 = vdwg.mxu0
        %5661 = vmatpush.msra.mxu0 0.0
        %5662 = vmatpush.msra.mxu0 0.0
        %5663 = vmatpush.msra.mxu0 0.0
        %5664 = vmatpush.msra.mxu0 0.0
        %5665 = vmatpush.msra.mxu0 0.0
        %5666 = vmatpush.msra.mxu0 0.0
        %5667 = vmatpush.msra.mxu0 0.0
        %5668 = vmatpush.msra.mxu0 0.0
        %5669 = vmatpush.msra.mxu0 0.0
        %5670 = vmatpush.msra.mxu0 0.0
        %5671 = vmatpush.msra.mxu0 0.0
        %5672 = vmatpush.msra.mxu0 0.0
        %5673 = vmatpush.msra.mxu0 0.0
        %5674 = vmatpush.msra.mxu0 0.0
        %5675 = vmatpush.msra.mxu0 0.0
        %v5676 = vand.u32 %v5593, 4294901760
        %v5677 = vsub.f32 %v5593, %v5676
        %5678 = vmatpush.msra.mxu0 %v5677
        %v5679 = vand.u32 %v5588, 4294901760
        %v5680 = vsub.f32 %v5588, %v5679
        %5681 = vmatmul.f32.gmra.mxu0 %v5680
        %v5682 = vpop.f32.mrf.mxu0
        %v5683 = vadd.f32 %v5655, %v5682
        %v5684 = vand.u32 %v5591, 4294901760
        %v5685 = vsub.f32 %v5591, %v5684
        %5686 = vmatmul.f32.gmra.mxu0 %v5685
        %v5687 = vpop.f32.mrf.mxu0
        %v5688 = vadd.f32 %v5659, %v5687
        %5689 = vdwg.mxu0
        %5690 = vmatpush.msra.mxu0 0.0
        %5691 = vmatpush.msra.mxu0 0.0
        %5692 = vmatpush.msra.mxu0 0.0
        %5693 = vmatpush.msra.mxu0 0.0
        %5694 = vmatpush.msra.mxu0 0.0
        %5695 = vmatpush.msra.mxu0 0.0
        %5696 = vmatpush.msra.mxu0 0.0
        %5697 = vmatpush.msra.mxu0 0.0
        %5698 = vmatpush.msra.mxu0 0.0
        %5699 = vmatpush.msra.mxu0 0.0
        %5700 = vmatpush.msra.mxu0 0.0
        %5701 = vmatpush.msra.mxu0 0.0
        %5702 = vmatpush.msra.mxu0 0.0
        %5703 = vmatpush.msra.mxu0 0.0
        %5704 = vmatpush.msra.mxu0 0.0
        %v5705 = vand.u32 %v5593, 4294901760
        %5706 = vmatpush.msra.mxu0 %v5705
        %v5707 = vand.u32 %v5588, 4294901760
        %v5708 = vsub.f32 %v5588, %v5707
        %v5709 = vand.u32 %v5708, 4294901760
        %5710 = vmatmul.f32.gmra.mxu0 %v5709
        %v5711 = vpop.f32.mrf.mxu0
        %v5712 = vadd.f32 %v5683, %v5711
        %v5713 = vand.u32 %v5591, 4294901760
        %v5714 = vsub.f32 %v5591, %v5713
        %v5715 = vand.u32 %v5714, 4294901760
        %5716 = vmatmul.f32.gmra.mxu0 %v5715
        %v5717 = vpop.f32.mrf.mxu0
        %v5718 = vadd.f32 %v5688, %v5717
        %5719 = vdwg.mxu0
        %5720 = vmatpush.msra.mxu0 0.0
        %5721 = vmatpush.msra.mxu0 0.0
        %5722 = vmatpush.msra.mxu0 0.0
        %5723 = vmatpush.msra.mxu0 0.0
        %5724 = vmatpush.msra.mxu0 0.0
        %5725 = vmatpush.msra.mxu0 0.0
        %5726 = vmatpush.msra.mxu0 0.0
        %5727 = vmatpush.msra.mxu0 0.0
        %5728 = vmatpush.msra.mxu0 0.0
        %5729 = vmatpush.msra.mxu0 0.0
        %5730 = vmatpush.msra.mxu0 0.0
        %5731 = vmatpush.msra.mxu0 0.0
        %5732 = vmatpush.msra.mxu0 0.0
        %5733 = vmatpush.msra.mxu0 0.0
        %5734 = vmatpush.msra.mxu0 0.0
        %v5735 = vand.u32 %v5593, 4294901760
        %v5736 = vsub.f32 %v5593, %v5735
        %v5737 = vand.u32 %v5736, 4294901760
        %5738 = vmatpush.msra.mxu0 %v5737
        %v5739 = vand.u32 %v5588, 4294901760
        %5740 = vmatmul.f32.gmra.mxu0 %v5739
        %v5741 = vpop.f32.mrf.mxu0
        %v5742 = vadd.f32 %v5712, %v5741
        %v5743 = vand.u32 %v5591, 4294901760
        %5744 = vmatmul.f32.gmra.mxu0 %v5743
        %v5745 = vpop.f32.mrf.mxu0
        %v5746 = vadd.f32 %v5718, %v5745
        %5747 = vdwg.mxu0
        %5748 = vmatpush.msra.mxu0 0.0
        %5749 = vmatpush.msra.mxu0 0.0
        %5750 = vmatpush.msra.mxu0 0.0
        %5751 = vmatpush.msra.mxu0 0.0
        %5752 = vmatpush.msra.mxu0 0.0
        %5753 = vmatpush.msra.mxu0 0.0
        %5754 = vmatpush.msra.mxu0 0.0
        %5755 = vmatpush.msra.mxu0 0.0
        %5756 = vmatpush.msra.mxu0 0.0
        %5757 = vmatpush.msra.mxu0 0.0
        %5758 = vmatpush.msra.mxu0 0.0
        %5759 = vmatpush.msra.mxu0 0.0
        %5760 = vmatpush.msra.mxu0 0.0
        %5761 = vmatpush.msra.mxu0 0.0
        %5762 = vmatpush.msra.mxu0 0.0
        %v5763 = vand.u32 %v5593, 4294901760
        %5764 = vmatpush.msra.mxu0 %v5763
        %v5765 = vand.u32 %v5588, 4294901760
        %5766 = vmatmul.f32.gmra.mxu0 %v5765
        %v5767 = vpop.f32.mrf.mxu0
        %v5768 = vadd.f32 %v5742, %v5767
        %v5769 = vand.u32 %v5591, 4294901760
        %5770 = vmatmul.f32.gmra.mxu0 %v5769
        %v5771 = vpop.f32.mrf.mxu0
        %v5772 = vadd.f32 %v5746, %v5771
        %5773 = vdwg.mxu0
        %5774 = vmatpush.msra.mxu0 0.0
        %5775 = vmatpush.msra.mxu0 0.0
        %5776 = vmatpush.msra.mxu0 0.0
        %5777 = vmatpush.msra.mxu0 0.0
        %5778 = vmatpush.msra.mxu0 0.0
        %5779 = vmatpush.msra.mxu0 0.0
        %5780 = vmatpush.msra.mxu0 0.0
        %5781 = vmatpush.msra.mxu0 0.0
        %5782 = vmatpush.msra.mxu0 0.0
        %5783 = vmatpush.msra.mxu0 0.0
        %5784 = vmatpush.msra.mxu0 0.0
        %5785 = vmatpush.msra.mxu0 0.0
        %5786 = vmatpush.msra.mxu0 0.0
        %5787 = vmatpush.msra.mxu0 0.0
        %5788 = vmatpush.msra.mxu0 0.0
        %v5789 = vand.u32 %v5595, 4294901760
        %5790 = vmatpush.msra.mxu0 %v5789
        %v5791 = vand.u32 %v5588, 4294901760
        %v5792 = vsub.f32 %v5588, %v5791
        %v5793 = vand.u32 %v5792, 4294901760
        %v5794 = vsub.f32 %v5792, %v5793
        %v5795 = vand.u32 %v5794, 4294901760
        %5796 = vmatmul.f32.gmra.mxu0 %v5795
        %v5797 = vpop.f32.mrf.mxu0
        %v5798 = vadd.f32 0.0, %v5797
        %v5799 = vand.u32 %v5591, 4294901760
        %v5800 = vsub.f32 %v5591, %v5799
        %v5801 = vand.u32 %v5800, 4294901760
        %v5802 = vsub.f32 %v5800, %v5801
        %v5803 = vand.u32 %v5802, 4294901760
        %5804 = vmatmul.f32.gmra.mxu0 %v5803
        %v5805 = vpop.f32.mrf.mxu0
        %v5806 = vadd.f32 0.0, %v5805
        %5807 = vdwg.mxu0
        %5808 = vmatpush.msra.mxu0 0.0
        %5809 = vmatpush.msra.mxu0 0.0
        %5810 = vmatpush.msra.mxu0 0.0
        %5811 = vmatpush.msra.mxu0 0.0
        %5812 = vmatpush.msra.mxu0 0.0
        %5813 = vmatpush.msra.mxu0 0.0
        %5814 = vmatpush.msra.mxu0 0.0
        %5815 = vmatpush.msra.mxu0 0.0
        %5816 = vmatpush.msra.mxu0 0.0
        %5817 = vmatpush.msra.mxu0 0.0
        %5818 = vmatpush.msra.mxu0 0.0
        %5819 = vmatpush.msra.mxu0 0.0
        %5820 = vmatpush.msra.mxu0 0.0
        %5821 = vmatpush.msra.mxu0 0.0
        %5822 = vmatpush.msra.mxu0 0.0
        %v5823 = vand.u32 %v5595, 4294901760
        %v5824 = vsub.f32 %v5595, %v5823
        %v5825 = vand.u32 %v5824, 4294901760
        %v5826 = vsub.f32 %v5824, %v5825
        %v5827 = vand.u32 %v5826, 4294901760
        %5828 = vmatpush.msra.mxu0 %v5827
        %v5829 = vand.u32 %v5588, 4294901760
        %5830 = vmatmul.f32.gmra.mxu0 %v5829
        %v5831 = vpop.f32.mrf.mxu0
        %v5832 = vadd.f32 %v5798, %v5831
        %v5833 = vand.u32 %v5591, 4294901760
        %5834 = vmatmul.f32.gmra.mxu0 %v5833
        %v5835 = vpop.f32.mrf.mxu0
        %v5836 = vadd.f32 %v5806, %v5835
        %5837 = vdwg.mxu0
        %5838 = vmatpush.msra.mxu0 0.0
        %5839 = vmatpush.msra.mxu0 0.0
        %5840 = vmatpush.msra.mxu0 0.0
        %5841 = vmatpush.msra.mxu0 0.0
        %5842 = vmatpush.msra.mxu0 0.0
        %5843 = vmatpush.msra.mxu0 0.0
        %5844 = vmatpush.msra.mxu0 0.0
        %5845 = vmatpush.msra.mxu0 0.0
        %5846 = vmatpush.msra.mxu0 0.0
        %5847 = vmatpush.msra.mxu0 0.0
        %5848 = vmatpush.msra.mxu0 0.0
        %5849 = vmatpush.msra.mxu0 0.0
        %5850 = vmatpush.msra.mxu0 0.0
        %5851 = vmatpush.msra.mxu0 0.0
        %5852 = vmatpush.msra.mxu0 0.0
        %v5853 = vand.u32 %v5595, 4294901760
        %v5854 = vsub.f32 %v5595, %v5853
        %5855 = vmatpush.msra.mxu0 %v5854
        %v5856 = vand.u32 %v5588, 4294901760
        %v5857 = vsub.f32 %v5588, %v5856
        %5858 = vmatmul.f32.gmra.mxu0 %v5857
        %v5859 = vpop.f32.mrf.mxu0
        %v5860 = vadd.f32 %v5832, %v5859
        %v5861 = vand.u32 %v5591, 4294901760
        %v5862 = vsub.f32 %v5591, %v5861
        %5863 = vmatmul.f32.gmra.mxu0 %v5862
        %v5864 = vpop.f32.mrf.mxu0
        %v5865 = vadd.f32 %v5836, %v5864
        %5866 = vdwg.mxu0
        %5867 = vmatpush.msra.mxu0 0.0
        %5868 = vmatpush.msra.mxu0 0.0
        %5869 = vmatpush.msra.mxu0 0.0
        %5870 = vmatpush.msra.mxu0 0.0
        %5871 = vmatpush.msra.mxu0 0.0
        %5872 = vmatpush.msra.mxu0 0.0
        %5873 = vmatpush.msra.mxu0 0.0
        %5874 = vmatpush.msra.mxu0 0.0
        %5875 = vmatpush.msra.mxu0 0.0
        %5876 = vmatpush.msra.mxu0 0.0
        %5877 = vmatpush.msra.mxu0 0.0
        %5878 = vmatpush.msra.mxu0 0.0
        %5879 = vmatpush.msra.mxu0 0.0
        %5880 = vmatpush.msra.mxu0 0.0
        %5881 = vmatpush.msra.mxu0 0.0
        %v5882 = vand.u32 %v5595, 4294901760
        %5883 = vmatpush.msra.mxu0 %v5882
        %v5884 = vand.u32 %v5588, 4294901760
        %v5885 = vsub.f32 %v5588, %v5884
        %v5886 = vand.u32 %v5885, 4294901760
        %5887 = vmatmul.f32.gmra.mxu0 %v5886
        %v5888 = vpop.f32.mrf.mxu0
        %v5889 = vadd.f32 %v5860, %v5888
        %v5890 = vand.u32 %v5591, 4294901760
        %v5891 = vsub.f32 %v5591, %v5890
        %v5892 = vand.u32 %v5891, 4294901760
        %5893 = vmatmul.f32.gmra.mxu0 %v5892
        %v5894 = vpop.f32.mrf.mxu0
        %v5895 = vadd.f32 %v5865, %v5894
        %5896 = vdwg.mxu0
        %5897 = vmatpush.msra.mxu0 0.0
        %5898 = vmatpush.msra.mxu0 0.0
        %5899 = vmatpush.msra.mxu0 0.0
        %5900 = vmatpush.msra.mxu0 0.0
        %5901 = vmatpush.msra.mxu0 0.0
        %5902 = vmatpush.msra.mxu0 0.0
        %5903 = vmatpush.msra.mxu0 0.0
        %5904 = vmatpush.msra.mxu0 0.0
        %5905 = vmatpush.msra.mxu0 0.0
        %5906 = vmatpush.msra.mxu0 0.0
        %5907 = vmatpush.msra.mxu0 0.0
        %5908 = vmatpush.msra.mxu0 0.0
        %5909 = vmatpush.msra.mxu0 0.0
        %5910 = vmatpush.msra.mxu0 0.0
        %5911 = vmatpush.msra.mxu0 0.0
        %v5912 = vand.u32 %v5595, 4294901760
        %v5913 = vsub.f32 %v5595, %v5912
        %v5914 = vand.u32 %v5913, 4294901760
        %5915 = vmatpush.msra.mxu0 %v5914
        %v5916 = vand.u32 %v5588, 4294901760
        %5917 = vmatmul.f32.gmra.mxu0 %v5916
        %v5918 = vpop.f32.mrf.mxu0
        %v5919 = vadd.f32 %v5889, %v5918
        %v5920 = vand.u32 %v5591, 4294901760
        %5921 = vmatmul.f32.gmra.mxu0 %v5920
        %v5922 = vpop.f32.mrf.mxu0
        %v5923 = vadd.f32 %v5895, %v5922
        %5924 = vdwg.mxu0
        %5925 = vmatpush.msra.mxu0 0.0
        %5926 = vmatpush.msra.mxu0 0.0
        %5927 = vmatpush.msra.mxu0 0.0
        %5928 = vmatpush.msra.mxu0 0.0
        %5929 = vmatpush.msra.mxu0 0.0
        %5930 = vmatpush.msra.mxu0 0.0
        %5931 = vmatpush.msra.mxu0 0.0
        %5932 = vmatpush.msra.mxu0 0.0
        %5933 = vmatpush.msra.mxu0 0.0
        %5934 = vmatpush.msra.mxu0 0.0
        %5935 = vmatpush.msra.mxu0 0.0
        %5936 = vmatpush.msra.mxu0 0.0
        %5937 = vmatpush.msra.mxu0 0.0
        %5938 = vmatpush.msra.mxu0 0.0
        %5939 = vmatpush.msra.mxu0 0.0
        %v5940 = vand.u32 %v5595, 4294901760
        %5941 = vmatpush.msra.mxu0 %v5940
        %v5942 = vand.u32 %v5588, 4294901760
        %5943 = vmatmul.f32.gmra.mxu0 %v5942
        %v5944 = vpop.f32.mrf.mxu0
        %v5945 = vadd.f32 %v5919, %v5944
        %v5946 = vand.u32 %v5591, 4294901760
        %5947 = vmatmul.f32.gmra.mxu0 %v5946
        %v5948 = vpop.f32.mrf.mxu0
        %v5949 = vadd.f32 %v5923, %v5948
        %5950 = vdwg.mxu0
        %v5951 = vmax.f32 %v5768, 0.0
        %v5952 = vmax.f32 %v5945, 0.0
        %v5953 = vmax.f32 %v5772, 0.0
        %v5954 = vmax.f32 %v5949, 0.0
        %v5955 = vmin.f32 %v5951, 6.0
        %v5956 = vmin.f32 %v5952, 6.0
        %v5957 = vmin.f32 %v5953, 6.0
        %v5958 = vmin.f32 %v5954, 6.0
        %s5959 = scalar_lea.vmem %s7, 32
        %v5960 = vld [vmem:[%s5959] sm:$0xff]
        %v5961 = vld [vmem:[%s5959 + $0x8] sm:$0xff]
        %5962 = vrot.lane.b32.xlu0 %v5955, 16
        %v5963 = vpop.permute.xlu0 %5962
        %5964 = vrot.lane.b32.xlu0 %v5957, 16
        %v5965 = vpop.permute.xlu0 %5964
        %5966 = vrot.lane.b32.xlu0 %v5956, 16
        %v5967 = vpop.permute.xlu0 %5966
        %5968 = vrot.lane.b32.xlu0 %v5958, 16
        %v5969 = vpop.permute.xlu0 %5968
        %v5970 = vsel %vm1011, %v5963, %v5967
        %v5971 = vsel %vm1011, %v5965, %v5969
        %v5972 = vsel %vm1011, %v5967, %v5963
        %v5973 = vsel %vm1011, %v5969, %v5965
        %5974 = vrot.lane.b32.xlu0 %v5955, 112
        %v5975 = vpop.permute.xlu0 %5974
        %5976 = vrot.lane.b32.xlu0 %v5957, 112
        %v5977 = vpop.permute.xlu0 %5976
        %5978 = vrot.lane.b32.xlu0 %v5956, 112
        %v5979 = vpop.permute.xlu0 %5978
        %5980 = vrot.lane.b32.xlu0 %v5958, 112
        %v5981 = vpop.permute.xlu0 %5980
        %v5982 = vsel %vm1018, %v5975, %v5979
        %v5983 = vsel %vm1018, %v5977, %v5981
        %v5984 = vsel %vm1018, %v5979, %v5975
        %v5985 = vsel %vm1018, %v5981, %v5977
        %v5986 = vsel %vm1023, %v5982, %v5972
        %v5987 = vsel %vm1024, %v5984, %v5970
        %v5988 = vsel %vm1023, %v5983, %v5973
        %v5989 = vsel %vm1024, %v5985, %v5971
        %5990 = vrot.lane.b32.xlu0 %v5986, 1
        %v5991 = vpop.permute.xlu0 %5990
        %5992 = vrot.lane.b32.xlu0 %v5988, 1
        %v5993 = vpop.permute.xlu0 %5992
        %5994 = vrot.lane.b32.xlu0 %v5987, 1
        %v5995 = vpop.permute.xlu0 %5994
        %5996 = vrot.lane.b32.xlu0 %v5989, 1
        %v5997 = vpop.permute.xlu0 %5996
        %v5998 = vsel %vm1031, %v5991, %v5995
        %v5999 = vsel %vm1031, %v5993, %v5997
        %v6000 = vsel %vm1031, %v5995, %v5991
        %v6001 = vsel %vm1031, %v5997, %v5993
        %6002 = vrot.lane.b32.xlu0 %v5986, 127
        %v6003 = vpop.permute.xlu0 %6002
        %6004 = vrot.lane.b32.xlu0 %v5988, 127
        %v6005 = vpop.permute.xlu0 %6004
        %6006 = vrot.lane.b32.xlu0 %v5987, 127
        %v6007 = vpop.permute.xlu0 %6006
        %6008 = vrot.lane.b32.xlu0 %v5989, 127
        %v6009 = vpop.permute.xlu0 %6008
        %v6010 = vsel %vm1038, %v6003, %v6007
        %v6011 = vsel %vm1038, %v6005, %v6009
        %v6012 = vsel %vm1038, %v6007, %v6003
        %v6013 = vsel %vm1038, %v6009, %v6005
        %v6014 = vsel %vm1043, %v6010, %v6000
        %v6015 = vsel %vm1044, %v6012, %v5998
        %v6016 = vsel %vm1043, %v6011, %v6001
        %v6017 = vsel %vm1044, %v6013, %v5999
        %v6018 = vsel %vm1049, %v6000, %v6010
        %v6019 = vsel %vm1050, %v5998, %v6012
        %v6020 = vsel %vm1049, %v6001, %v6011
        %v6021 = vsel %vm1050, %v5999, %v6013
        %6023 = vset.pattern.permute.xlu0 0
        %6024 = vperm.xlu0 %6023, %v5960
        %v6025 = vpop.permute.xlu0 %6024
        %6028 = vset.pattern.permute.xlu0 0
        %6029 = vperm.xlu0 %6028, %v5961
        %v6030 = vpop.permute.xlu0 %6029
        %v6032 = vmul.f32 %v6025, %v6014
        %v6033 = vmul.f32 %v6025, %v6015
        %v6034 = vmul.f32 %v6030, %v6016
        %v6035 = vmul.f32 %v6030, %v6017
        %6036 = vset.pattern.permute.xlu0 1
        %6037 = vperm.xlu0 %6036, %v5960
        %v6038 = vpop.permute.xlu0 %6037
        %6040 = vset.pattern.permute.xlu0 1
        %6041 = vperm.xlu0 %6040, %v5961
        %v6042 = vpop.permute.xlu0 %6041
        %v6044 = vmul.f32 %v6038, %v5986
        %v6045 = vmul.f32 %v6038, %v5987
        %v6046 = vmul.f32 %v6042, %v5988
        %v6047 = vmul.f32 %v6042, %v5989
        %v6048 = vadd.f32 %v6032, %v6044
        %v6049 = vadd.f32 %v6033, %v6045
        %v6050 = vadd.f32 %v6034, %v6046
        %v6051 = vadd.f32 %v6035, %v6047
        %6052 = vset.pattern.permute.xlu0 2
        %6053 = vperm.xlu0 %6052, %v5960
        %v6054 = vpop.permute.xlu0 %6053
        %6056 = vset.pattern.permute.xlu0 2
        %6057 = vperm.xlu0 %6056, %v5961
        %v6058 = vpop.permute.xlu0 %6057
        %v6060 = vmul.f32 %v6054, %v6018
        %v6061 = vmul.f32 %v6054, %v6019
        %v6062 = vmul.f32 %v6058, %v6020
        %v6063 = vmul.f32 %v6058, %v6021
        %v6064 = vadd.f32 %v6048, %v6060
        %v6065 = vadd.f32 %v6049, %v6061
        %v6066 = vadd.f32 %v6050, %v6062
        %v6067 = vadd.f32 %v6051, %v6063
        %6068 = vrot.lane.b32.xlu0 %v5955, 1
        %v6069 = vpop.permute.xlu0 %6068
        %6070 = vrot.lane.b32.xlu0 %v5957, 1
        %v6071 = vpop.permute.xlu0 %6070
        %6072 = vrot.lane.b32.xlu0 %v5956, 1
        %v6073 = vpop.permute.xlu0 %6072
        %6074 = vrot.lane.b32.xlu0 %v5958, 1
        %v6075 = vpop.permute.xlu0 %6074
        %v6076 = vsel %vm1031, %v6069, %v6073
        %v6077 = vsel %vm1031, %v6071, %v6075
        %v6078 = vsel %vm1031, %v6073, %v6069
        %v6079 = vsel %vm1031, %v6075, %v6071
        %6080 = vrot.lane.b32.xlu0 %v5955, 127
        %v6081 = vpop.permute.xlu0 %6080
        %6082 = vrot.lane.b32.xlu0 %v5957, 127
        %v6083 = vpop.permute.xlu0 %6082
        %6084 = vrot.lane.b32.xlu0 %v5956, 127
        %v6085 = vpop.permute.xlu0 %6084
        %6086 = vrot.lane.b32.xlu0 %v5958, 127
        %v6087 = vpop.permute.xlu0 %6086
        %v6088 = vsel %vm1038, %v6081, %v6085
        %v6089 = vsel %vm1038, %v6083, %v6087
        %v6090 = vsel %vm1038, %v6085, %v6081
        %v6091 = vsel %vm1038, %v6087, %v6083
        %v6092 = vsel %vm1043, %v6088, %v6078
        %v6093 = vsel %vm1044, %v6090, %v6076
        %v6094 = vsel %vm1043, %v6089, %v6079
        %v6095 = vsel %vm1044, %v6091, %v6077
        %v6096 = vsel %vm1049, %v6078, %v6088
        %v6097 = vsel %vm1050, %v6076, %v6090
        %v6098 = vsel %vm1049, %v6079, %v6089
        %v6099 = vsel %vm1050, %v6077, %v6091
        %6100 = vset.pattern.permute.xlu0 3
        %6101 = vperm.xlu0 %6100, %v5960
        %v6102 = vpop.permute.xlu0 %6101
        %6104 = vset.pattern.permute.xlu0 3
        %6105 = vperm.xlu0 %6104, %v5961
        %v6106 = vpop.permute.xlu0 %6105
        %v6108 = vmul.f32 %v6102, %v6092
        %v6109 = vmul.f32 %v6102, %v6093
        %v6110 = vmul.f32 %v6106, %v6094
        %v6111 = vmul.f32 %v6106, %v6095
        %v6112 = vadd.f32 %v6064, %v6108
        %v6113 = vadd.f32 %v6065, %v6109
        %v6114 = vadd.f32 %v6066, %v6110
        %v6115 = vadd.f32 %v6067, %v6111
        %6116 = vset.pattern.permute.xlu0 4
        %6117 = vperm.xlu0 %6116, %v5960
        %v6118 = vpop.permute.xlu0 %6117
        %6120 = vset.pattern.permute.xlu0 4
        %6121 = vperm.xlu0 %6120, %v5961
        %v6122 = vpop.permute.xlu0 %6121
        %v6124 = vmul.f32 %v6118, %v5955
        %v6125 = vmul.f32 %v6118, %v5956
        %v6126 = vmul.f32 %v6122, %v5957
        %v6127 = vmul.f32 %v6122, %v5958
        %v6128 = vadd.f32 %v6112, %v6124
        %v6129 = vadd.f32 %v6113, %v6125
        %v6130 = vadd.f32 %v6114, %v6126
        %v6131 = vadd.f32 %v6115, %v6127
        %6132 = vset.pattern.permute.xlu0 5
        %6133 = vperm.xlu0 %6132, %v5960
        %v6134 = vpop.permute.xlu0 %6133
        %6136 = vset.pattern.permute.xlu0 5
        %6137 = vperm.xlu0 %6136, %v5961
        %v6138 = vpop.permute.xlu0 %6137
        %v6140 = vmul.f32 %v6134, %v6096
        %v6141 = vmul.f32 %v6134, %v6097
        %v6142 = vmul.f32 %v6138, %v6098
        %v6143 = vmul.f32 %v6138, %v6099
        %v6144 = vadd.f32 %v6128, %v6140
        %v6145 = vadd.f32 %v6129, %v6141
        %v6146 = vadd.f32 %v6130, %v6142
        %v6147 = vadd.f32 %v6131, %v6143
        %v6148 = vsel %vm1118, %v5972, %v5982
        %v6149 = vsel %vm1119, %v5970, %v5984
        %v6150 = vsel %vm1118, %v5973, %v5983
        %v6151 = vsel %vm1119, %v5971, %v5985
        %6152 = vrot.lane.b32.xlu0 %v6148, 1
        %v6153 = vpop.permute.xlu0 %6152
        %6154 = vrot.lane.b32.xlu0 %v6150, 1
        %v6155 = vpop.permute.xlu0 %6154
        %6156 = vrot.lane.b32.xlu0 %v6149, 1
        %v6157 = vpop.permute.xlu0 %6156
        %6158 = vrot.lane.b32.xlu0 %v6151, 1
        %v6159 = vpop.permute.xlu0 %6158
        %v6160 = vsel %vm1031, %v6153, %v6157
        %v6161 = vsel %vm1031, %v6155, %v6159
        %v6162 = vsel %vm1031, %v6157, %v6153
        %v6163 = vsel %vm1031, %v6159, %v6155
        %6164 = vrot.lane.b32.xlu0 %v6148, 127
        %v6165 = vpop.permute.xlu0 %6164
        %6166 = vrot.lane.b32.xlu0 %v6150, 127
        %v6167 = vpop.permute.xlu0 %6166
        %6168 = vrot.lane.b32.xlu0 %v6149, 127
        %v6169 = vpop.permute.xlu0 %6168
        %6170 = vrot.lane.b32.xlu0 %v6151, 127
        %v6171 = vpop.permute.xlu0 %6170
        %v6172 = vsel %vm1038, %v6165, %v6169
        %v6173 = vsel %vm1038, %v6167, %v6171
        %v6174 = vsel %vm1038, %v6169, %v6165
        %v6175 = vsel %vm1038, %v6171, %v6167
        %v6176 = vsel %vm1043, %v6172, %v6162
        %v6177 = vsel %vm1044, %v6174, %v6160
        %v6178 = vsel %vm1043, %v6173, %v6163
        %v6179 = vsel %vm1044, %v6175, %v6161
        %v6180 = vsel %vm1049, %v6162, %v6172
        %v6181 = vsel %vm1050, %v6160, %v6174
        %v6182 = vsel %vm1049, %v6163, %v6173
        %v6183 = vsel %vm1050, %v6161, %v6175
        %6184 = vset.pattern.permute.xlu0 6
        %6185 = vperm.xlu0 %6184, %v5960
        %v6186 = vpop.permute.xlu0 %6185
        %6188 = vset.pattern.permute.xlu0 6
        %6189 = vperm.xlu0 %6188, %v5961
        %v6190 = vpop.permute.xlu0 %6189
        %v6192 = vmul.f32 %v6186, %v6176
        %v6193 = vmul.f32 %v6186, %v6177
        %v6194 = vmul.f32 %v6190, %v6178
        %v6195 = vmul.f32 %v6190, %v6179
        %v6196 = vadd.f32 %v6144, %v6192
        %v6197 = vadd.f32 %v6145, %v6193
        %v6198 = vadd.f32 %v6146, %v6194
        %v6199 = vadd.f32 %v6147, %v6195
        %6200 = vset.pattern.permute.xlu0 7
        %6201 = vperm.xlu0 %6200, %v5960
        %v6202 = vpop.permute.xlu0 %6201
        %6204 = vset.pattern.permute.xlu0 7
        %6205 = vperm.xlu0 %6204, %v5961
        %v6206 = vpop.permute.xlu0 %6205
        %v6208 = vmul.f32 %v6202, %v6148
        %v6209 = vmul.f32 %v6202, %v6149
        %v6210 = vmul.f32 %v6206, %v6150
        %v6211 = vmul.f32 %v6206, %v6151
        %v6212 = vadd.f32 %v6196, %v6208
        %v6213 = vadd.f32 %v6197, %v6209
        %v6214 = vadd.f32 %v6198, %v6210
        %v6215 = vadd.f32 %v6199, %v6211
        %6216 = vset.pattern.permute.xlu0 8
        %6217 = vperm.xlu0 %6216, %v5960
        %v6218 = vpop.permute.xlu0 %6217
        %6220 = vset.pattern.permute.xlu0 8
        %6221 = vperm.xlu0 %6220, %v5961
        %v6222 = vpop.permute.xlu0 %6221
        %v6224 = vmul.f32 %v6218, %v6180
        %v6225 = vmul.f32 %v6218, %v6181
        %v6226 = vmul.f32 %v6222, %v6182
        %v6227 = vmul.f32 %v6222, %v6183
        %v6228 = vadd.f32 %v6212, %v6224
        %v6229 = vadd.f32 %v6213, %v6225
        %v6230 = vadd.f32 %v6214, %v6226
        %v6231 = vadd.f32 %v6215, %v6227
        %v6232 = vmax.f32 %v6228, 0.0
        %v6233 = vmax.f32 %v6229, 0.0
        %v6234 = vmax.f32 %v6230, 0.0
        %v6235 = vmax.f32 %v6231, 0.0
        %v6236 = vmin.f32 %v6232, 6.0
        %v6237 = vmin.f32 %v6233, 6.0
        %v6238 = vmin.f32 %v6234, 6.0
        %v6239 = vmin.f32 %v6235, 6.0
        %s6240 = scalar_lea.vmem %s8, 16
        %v6241 = vld [vmem:[%s6240] sm:$0xff]
        %v6243 = vsel %vm2129, %v6241, 0
        %6245 = vmatpush.msra.mxu0 0.0
        %6246 = vmatpush.msra.mxu0 0.0
        %6247 = vmatpush.msra.mxu0 0.0
        %6248 = vmatpush.msra.mxu0 0.0
        %6249 = vmatpush.msra.mxu0 0.0
        %6250 = vmatpush.msra.mxu0 0.0
        %6251 = vmatpush.msra.mxu0 0.0
        %6252 = vmatpush.msra.mxu0 0.0
        %6253 = vmatpush.msra.mxu0 0.0
        %6254 = vmatpush.msra.mxu0 0.0
        %6255 = vmatpush.msra.mxu0 0.0
        %6256 = vmatpush.msra.mxu0 0.0
        %6257 = vmatpush.msra.mxu0 0.0
        %6258 = vmatpush.msra.mxu0 0.0
        %v6259 = vand.u32 %v6238, 4294901760
        %6260 = vmatpush.msra.mxu0 %v6259
        %v6261 = vand.u32 %v6236, 4294901760
        %6262 = vmatpush.msra.mxu0 %v6261
        %v6263 = vand.u32 %v6243, 4294901760
        %v6264 = vsub.f32 %v6243, %v6263
        %v6265 = vand.u32 %v6264, 4294901760
        %v6266 = vsub.f32 %v6264, %v6265
        %v6267 = vand.u32 %v6266, 4294901760
        %6268 = vmatmul.f32.gmra.mxu0 %v6267
        %v6269 = vpop.f32.mrf.mxu0
        %v6270 = vadd.f32 0.0, %v6269
        %6271 = vdwg.mxu0
        %6272 = vmatpush.msra.mxu0 0.0
        %6273 = vmatpush.msra.mxu0 0.0
        %6274 = vmatpush.msra.mxu0 0.0
        %6275 = vmatpush.msra.mxu0 0.0
        %6276 = vmatpush.msra.mxu0 0.0
        %6277 = vmatpush.msra.mxu0 0.0
        %6278 = vmatpush.msra.mxu0 0.0
        %6279 = vmatpush.msra.mxu0 0.0
        %6280 = vmatpush.msra.mxu0 0.0
        %6281 = vmatpush.msra.mxu0 0.0
        %6282 = vmatpush.msra.mxu0 0.0
        %6283 = vmatpush.msra.mxu0 0.0
        %6284 = vmatpush.msra.mxu0 0.0
        %6285 = vmatpush.msra.mxu0 0.0
        %v6286 = vand.u32 %v6238, 4294901760
        %v6287 = vsub.f32 %v6238, %v6286
        %v6288 = vand.u32 %v6287, 4294901760
        %v6289 = vsub.f32 %v6287, %v6288
        %v6290 = vand.u32 %v6289, 4294901760
        %6291 = vmatpush.msra.mxu0 %v6290
        %v6292 = vand.u32 %v6236, 4294901760
        %v6293 = vsub.f32 %v6236, %v6292
        %v6294 = vand.u32 %v6293, 4294901760
        %v6295 = vsub.f32 %v6293, %v6294
        %v6296 = vand.u32 %v6295, 4294901760
        %6297 = vmatpush.msra.mxu0 %v6296
        %v6298 = vand.u32 %v6243, 4294901760
        %6299 = vmatmul.f32.gmra.mxu0 %v6298
        %v6300 = vpop.f32.mrf.mxu0
        %v6301 = vadd.f32 %v6270, %v6300
        %6302 = vdwg.mxu0
        %6303 = vmatpush.msra.mxu0 0.0
        %6304 = vmatpush.msra.mxu0 0.0
        %6305 = vmatpush.msra.mxu0 0.0
        %6306 = vmatpush.msra.mxu0 0.0
        %6307 = vmatpush.msra.mxu0 0.0
        %6308 = vmatpush.msra.mxu0 0.0
        %6309 = vmatpush.msra.mxu0 0.0
        %6310 = vmatpush.msra.mxu0 0.0
        %6311 = vmatpush.msra.mxu0 0.0
        %6312 = vmatpush.msra.mxu0 0.0
        %6313 = vmatpush.msra.mxu0 0.0
        %6314 = vmatpush.msra.mxu0 0.0
        %6315 = vmatpush.msra.mxu0 0.0
        %6316 = vmatpush.msra.mxu0 0.0
        %v6317 = vand.u32 %v6238, 4294901760
        %v6318 = vsub.f32 %v6238, %v6317
        %6319 = vmatpush.msra.mxu0 %v6318
        %v6320 = vand.u32 %v6236, 4294901760
        %v6321 = vsub.f32 %v6236, %v6320
        %6322 = vmatpush.msra.mxu0 %v6321
        %v6323 = vand.u32 %v6243, 4294901760
        %v6324 = vsub.f32 %v6243, %v6323
        %6325 = vmatmul.f32.gmra.mxu0 %v6324
        %v6326 = vpop.f32.mrf.mxu0
        %v6327 = vadd.f32 %v6301, %v6326
        %6328 = vdwg.mxu0
        %6329 = vmatpush.msra.mxu0 0.0
        %6330 = vmatpush.msra.mxu0 0.0
        %6331 = vmatpush.msra.mxu0 0.0
        %6332 = vmatpush.msra.mxu0 0.0
        %6333 = vmatpush.msra.mxu0 0.0
        %6334 = vmatpush.msra.mxu0 0.0
        %6335 = vmatpush.msra.mxu0 0.0
        %6336 = vmatpush.msra.mxu0 0.0
        %6337 = vmatpush.msra.mxu0 0.0
        %6338 = vmatpush.msra.mxu0 0.0
        %6339 = vmatpush.msra.mxu0 0.0
        %6340 = vmatpush.msra.mxu0 0.0
        %6341 = vmatpush.msra.mxu0 0.0
        %6342 = vmatpush.msra.mxu0 0.0
        %v6343 = vand.u32 %v6238, 4294901760
        %6344 = vmatpush.msra.mxu0 %v6343
        %v6345 = vand.u32 %v6236, 4294901760
        %6346 = vmatpush.msra.mxu0 %v6345
        %v6347 = vand.u32 %v6243, 4294901760
        %v6348 = vsub.f32 %v6243, %v6347
        %v6349 = vand.u32 %v6348, 4294901760
        %6350 = vmatmul.f32.gmra.mxu0 %v6349
        %v6351 = vpop.f32.mrf.mxu0
        %v6352 = vadd.f32 %v6327, %v6351
        %6353 = vdwg.mxu0
        %6354 = vmatpush.msra.mxu0 0.0
        %6355 = vmatpush.msra.mxu0 0.0
        %6356 = vmatpush.msra.mxu0 0.0
        %6357 = vmatpush.msra.mxu0 0.0
        %6358 = vmatpush.msra.mxu0 0.0
        %6359 = vmatpush.msra.mxu0 0.0
        %6360 = vmatpush.msra.mxu0 0.0
        %6361 = vmatpush.msra.mxu0 0.0
        %6362 = vmatpush.msra.mxu0 0.0
        %6363 = vmatpush.msra.mxu0 0.0
        %6364 = vmatpush.msra.mxu0 0.0
        %6365 = vmatpush.msra.mxu0 0.0
        %6366 = vmatpush.msra.mxu0 0.0
        %6367 = vmatpush.msra.mxu0 0.0
        %v6368 = vand.u32 %v6238, 4294901760
        %v6369 = vsub.f32 %v6238, %v6368
        %v6370 = vand.u32 %v6369, 4294901760
        %6371 = vmatpush.msra.mxu0 %v6370
        %v6372 = vand.u32 %v6236, 4294901760
        %v6373 = vsub.f32 %v6236, %v6372
        %v6374 = vand.u32 %v6373, 4294901760
        %6375 = vmatpush.msra.mxu0 %v6374
        %v6376 = vand.u32 %v6243, 4294901760
        %6377 = vmatmul.f32.gmra.mxu0 %v6376
        %v6378 = vpop.f32.mrf.mxu0
        %v6379 = vadd.f32 %v6352, %v6378
        %6380 = vdwg.mxu0
        %6381 = vmatpush.msra.mxu0 0.0
        %6382 = vmatpush.msra.mxu0 0.0
        %6383 = vmatpush.msra.mxu0 0.0
        %6384 = vmatpush.msra.mxu0 0.0
        %6385 = vmatpush.msra.mxu0 0.0
        %6386 = vmatpush.msra.mxu0 0.0
        %6387 = vmatpush.msra.mxu0 0.0
        %6388 = vmatpush.msra.mxu0 0.0
        %6389 = vmatpush.msra.mxu0 0.0
        %6390 = vmatpush.msra.mxu0 0.0
        %6391 = vmatpush.msra.mxu0 0.0
        %6392 = vmatpush.msra.mxu0 0.0
        %6393 = vmatpush.msra.mxu0 0.0
        %6394 = vmatpush.msra.mxu0 0.0
        %v6395 = vand.u32 %v6238, 4294901760
        %6396 = vmatpush.msra.mxu0 %v6395
        %v6397 = vand.u32 %v6236, 4294901760
        %6398 = vmatpush.msra.mxu0 %v6397
        %v6399 = vand.u32 %v6243, 4294901760
        %6400 = vmatmul.f32.gmra.mxu0 %v6399
        %v6401 = vpop.f32.mrf.mxu0
        %v6402 = vadd.f32 %v6379, %v6401
        %6403 = vdwg.mxu0
        %6404 = vmatpush.msra.mxu0 0.0
        %6405 = vmatpush.msra.mxu0 0.0
        %6406 = vmatpush.msra.mxu0 0.0
        %6407 = vmatpush.msra.mxu0 0.0
        %6408 = vmatpush.msra.mxu0 0.0
        %6409 = vmatpush.msra.mxu0 0.0
        %6410 = vmatpush.msra.mxu0 0.0
        %6411 = vmatpush.msra.mxu0 0.0
        %6412 = vmatpush.msra.mxu0 0.0
        %6413 = vmatpush.msra.mxu0 0.0
        %6414 = vmatpush.msra.mxu0 0.0
        %6415 = vmatpush.msra.mxu0 0.0
        %6416 = vmatpush.msra.mxu0 0.0
        %6417 = vmatpush.msra.mxu0 0.0
        %v6418 = vand.u32 %v6239, 4294901760
        %6419 = vmatpush.msra.mxu0 %v6418
        %v6420 = vand.u32 %v6237, 4294901760
        %6421 = vmatpush.msra.mxu0 %v6420
        %v6422 = vand.u32 %v6243, 4294901760
        %v6423 = vsub.f32 %v6243, %v6422
        %v6424 = vand.u32 %v6423, 4294901760
        %v6425 = vsub.f32 %v6423, %v6424
        %v6426 = vand.u32 %v6425, 4294901760
        %6427 = vmatmul.f32.gmra.mxu0 %v6426
        %v6428 = vpop.f32.mrf.mxu0
        %v6429 = vadd.f32 0.0, %v6428
        %6430 = vdwg.mxu0
        %6431 = vmatpush.msra.mxu0 0.0
        %6432 = vmatpush.msra.mxu0 0.0
        %6433 = vmatpush.msra.mxu0 0.0
        %6434 = vmatpush.msra.mxu0 0.0
        %6435 = vmatpush.msra.mxu0 0.0
        %6436 = vmatpush.msra.mxu0 0.0
        %6437 = vmatpush.msra.mxu0 0.0
        %6438 = vmatpush.msra.mxu0 0.0
        %6439 = vmatpush.msra.mxu0 0.0
        %6440 = vmatpush.msra.mxu0 0.0
        %6441 = vmatpush.msra.mxu0 0.0
        %6442 = vmatpush.msra.mxu0 0.0
        %6443 = vmatpush.msra.mxu0 0.0
        %6444 = vmatpush.msra.mxu0 0.0
        %v6445 = vand.u32 %v6239, 4294901760
        %v6446 = vsub.f32 %v6239, %v6445
        %v6447 = vand.u32 %v6446, 4294901760
        %v6448 = vsub.f32 %v6446, %v6447
        %v6449 = vand.u32 %v6448, 4294901760
        %6450 = vmatpush.msra.mxu0 %v6449
        %v6451 = vand.u32 %v6237, 4294901760
        %v6452 = vsub.f32 %v6237, %v6451
        %v6453 = vand.u32 %v6452, 4294901760
        %v6454 = vsub.f32 %v6452, %v6453
        %v6455 = vand.u32 %v6454, 4294901760
        %6456 = vmatpush.msra.mxu0 %v6455
        %v6457 = vand.u32 %v6243, 4294901760
        %6458 = vmatmul.f32.gmra.mxu0 %v6457
        %v6459 = vpop.f32.mrf.mxu0
        %v6460 = vadd.f32 %v6429, %v6459
        %6461 = vdwg.mxu0
        %6462 = vmatpush.msra.mxu0 0.0
        %6463 = vmatpush.msra.mxu0 0.0
        %6464 = vmatpush.msra.mxu0 0.0
        %6465 = vmatpush.msra.mxu0 0.0
        %6466 = vmatpush.msra.mxu0 0.0
        %6467 = vmatpush.msra.mxu0 0.0
        %6468 = vmatpush.msra.mxu0 0.0
        %6469 = vmatpush.msra.mxu0 0.0
        %6470 = vmatpush.msra.mxu0 0.0
        %6471 = vmatpush.msra.mxu0 0.0
        %6472 = vmatpush.msra.mxu0 0.0
        %6473 = vmatpush.msra.mxu0 0.0
        %6474 = vmatpush.msra.mxu0 0.0
        %6475 = vmatpush.msra.mxu0 0.0
        %v6476 = vand.u32 %v6239, 4294901760
        %v6477 = vsub.f32 %v6239, %v6476
        %6478 = vmatpush.msra.mxu0 %v6477
        %v6479 = vand.u32 %v6237, 4294901760
        %v6480 = vsub.f32 %v6237, %v6479
        %6481 = vmatpush.msra.mxu0 %v6480
        %v6482 = vand.u32 %v6243, 4294901760
        %v6483 = vsub.f32 %v6243, %v6482
        %6484 = vmatmul.f32.gmra.mxu0 %v6483
        %v6485 = vpop.f32.mrf.mxu0
        %v6486 = vadd.f32 %v6460, %v6485
        %6487 = vdwg.mxu0
        %6488 = vmatpush.msra.mxu0 0.0
        %6489 = vmatpush.msra.mxu0 0.0
        %6490 = vmatpush.msra.mxu0 0.0
        %6491 = vmatpush.msra.mxu0 0.0
        %6492 = vmatpush.msra.mxu0 0.0
        %6493 = vmatpush.msra.mxu0 0.0
        %6494 = vmatpush.msra.mxu0 0.0
        %6495 = vmatpush.msra.mxu0 0.0
        %6496 = vmatpush.msra.mxu0 0.0
        %6497 = vmatpush.msra.mxu0 0.0
        %6498 = vmatpush.msra.mxu0 0.0
        %6499 = vmatpush.msra.mxu0 0.0
        %6500 = vmatpush.msra.mxu0 0.0
        %6501 = vmatpush.msra.mxu0 0.0
        %v6502 = vand.u32 %v6239, 4294901760
        %6503 = vmatpush.msra.mxu0 %v6502
        %v6504 = vand.u32 %v6237, 4294901760
        %6505 = vmatpush.msra.mxu0 %v6504
        %v6506 = vand.u32 %v6243, 4294901760
        %v6507 = vsub.f32 %v6243, %v6506
        %v6508 = vand.u32 %v6507, 4294901760
        %6509 = vmatmul.f32.gmra.mxu0 %v6508
        %v6510 = vpop.f32.mrf.mxu0
        %v6511 = vadd.f32 %v6486, %v6510
        %6512 = vdwg.mxu0
        %6513 = vmatpush.msra.mxu0 0.0
        %6514 = vmatpush.msra.mxu0 0.0
        %6515 = vmatpush.msra.mxu0 0.0
        %6516 = vmatpush.msra.mxu0 0.0
        %6517 = vmatpush.msra.mxu0 0.0
        %6518 = vmatpush.msra.mxu0 0.0
        %6519 = vmatpush.msra.mxu0 0.0
        %6520 = vmatpush.msra.mxu0 0.0
        %6521 = vmatpush.msra.mxu0 0.0
        %6522 = vmatpush.msra.mxu0 0.0
        %6523 = vmatpush.msra.mxu0 0.0
        %6524 = vmatpush.msra.mxu0 0.0
        %6525 = vmatpush.msra.mxu0 0.0
        %6526 = vmatpush.msra.mxu0 0.0
        %v6527 = vand.u32 %v6239, 4294901760
        %v6528 = vsub.f32 %v6239, %v6527
        %v6529 = vand.u32 %v6528, 4294901760
        %6530 = vmatpush.msra.mxu0 %v6529
        %v6531 = vand.u32 %v6237, 4294901760
        %v6532 = vsub.f32 %v6237, %v6531
        %v6533 = vand.u32 %v6532, 4294901760
        %6534 = vmatpush.msra.mxu0 %v6533
        %v6535 = vand.u32 %v6243, 4294901760
        %6536 = vmatmul.f32.gmra.mxu0 %v6535
        %v6537 = vpop.f32.mrf.mxu0
        %v6538 = vadd.f32 %v6511, %v6537
        %6539 = vdwg.mxu0
        %6540 = vmatpush.msra.mxu0 0.0
        %6541 = vmatpush.msra.mxu0 0.0
        %6542 = vmatpush.msra.mxu0 0.0
        %6543 = vmatpush.msra.mxu0 0.0
        %6544 = vmatpush.msra.mxu0 0.0
        %6545 = vmatpush.msra.mxu0 0.0
        %6546 = vmatpush.msra.mxu0 0.0
        %6547 = vmatpush.msra.mxu0 0.0
        %6548 = vmatpush.msra.mxu0 0.0
        %6549 = vmatpush.msra.mxu0 0.0
        %6550 = vmatpush.msra.mxu0 0.0
        %6551 = vmatpush.msra.mxu0 0.0
        %6552 = vmatpush.msra.mxu0 0.0
        %6553 = vmatpush.msra.mxu0 0.0
        %v6554 = vand.u32 %v6239, 4294901760
        %6555 = vmatpush.msra.mxu0 %v6554
        %v6556 = vand.u32 %v6237, 4294901760
        %6557 = vmatpush.msra.mxu0 %v6556
        %v6558 = vand.u32 %v6243, 4294901760
        %6559 = vmatmul.f32.gmra.mxu0 %v6558
        %v6560 = vpop.f32.mrf.mxu0
        %v6561 = vadd.f32 %v6538, %v6560
        %6562 = vdwg.mxu0
        %v6563 = vmul.f32 %v6402, 1.442695
        %v6564 = vpow.pop %v6563
        %v6565 = vmul.f32 %v6561, 1.442695
        %v6566 = vpow.pop %v6565
        %v6567 = vmul.f32 %v4679, %v6564
        %v6568 = vmul.f32 %v4825, %v6566
        %v6571 = vrot.slane %v6402, 4
        %v6572 = vrot.slane %v6561, 4
        %v6575 = vadd.f32 %v6567, %v6571
        %v6576 = vadd.f32 %v6568, %v6572
        %v6577 = vsel %vm703, %v6575, %v5578
        %v6578 = vsel %vm703, %v6576, %v5579
        %6579 = vst [vmem:[%s326] sm:$0xff] %v6577
        %6580 = vst [vmem:[%s326 + $0x8] sm:$0xff] %v6578
        %s6581 = sand.u32 %s225, 1
        %s6582 = scalar_lea.sflag [#allocation3], %s6581
        %s6583 = sand.u32 %s225, 1
        %s6584 = smul.addr %s6583, 16
        %s6585 = scalar_lea.vmem [#allocation2], %s6584
        // Predicated region
        $region57: #{tpu_custom_call.1} parent=55 // pred_check
          %p6586 = pneg %p235
        $region58: #{tpu_custom_call.1} parent=55 // pred_check_branch
          %6588 = sbr.rel (%p6586) target = $region60
        $region59: #{tpu_custom_call.1} parent=55 // pred_region
          %s6589 = smul.u32 2, %s23
          %6591 = vsyncadd %s6582, 0
          %s6592 = smul.addr %s6589, 8
          %s6593 = scalar_lea.hbm %s9, %s6592
          %s6595 = sshll.u32 %s6585, 4
          %s6596 = int_to_ptr.vmem [resolvable:$true] %s6595
          %s6597 = sshll.u32 %s6593, 4
          %s6598 = int_to_ptr.hbm [resolvable:$true] %s6597
          %6600 = dma.vmem_to_hbm [thread:$0]  %s6596, 256, %s6598, %s6582
        $region60: #{tpu_custom_call.1} parent=55 // pred_fallthru
          _
      $region56: #{tpu_custom_call.1} parent=5 // pred_fallthru
        _
      %p6601 = scmp.le.s32.totalorder 2, %s18
      // Predicated region
      $region61: #{tpu_custom_call.1} parent=5 // pred_check
        %p6602 = pneg %p6601
      $region62: #{tpu_custom_call.1} parent=5 // pred_check_branch
        %6604 = sbr.rel (%p6602) target = $region64
      $region63: #{tpu_custom_call.1} parent=5 // pred_region
        %s6605 = ssub.s32 %s18, 2
        // Predicated region
        $region65: #{tpu_custom_call.1} parent=63 // pred_check
          %p6606 = pneg %p241
        $region66: #{tpu_custom_call.1} parent=63 // pred_check_branch
          %6608 = sbr.rel (%p6606) target = $region68
        $region67: #{tpu_custom_call.1} parent=63 // pred_region
          %s6609 = sand.u32 %s226, 1
          %s6610 = scalar_lea.sflag [#allocation3], %s6609
          %s6611 = sand.u32 %s226, 1
          %s6612 = smul.addr %s6611, 16
          %s6613 = scalar_lea.vmem [#allocation2], %s6612
          %6615 = dma.done %s6610, 256
        $region68: #{tpu_custom_call.1} parent=63 // pred_fallthru
          _
      $region64: #{tpu_custom_call.1} parent=5 // pred_fallthru
        _
    $region6: #{tpu_custom_call.1} parent=1 // loop_footer
      %s22 = sadd.s32 1, %s18
    $region7: #{tpu_custom_call.1} parent=1 // loop_footer_branch
      %17 = sbr.rel target = $region3
    $region8: #{tpu_custom_call.1} parent=1 // loop_exit
      _
    %6616 = vsyncpa [#allocation3], 1
    %s6617 = scalar_lea.sflag [#allocation3], 1
    %6618 = vsyncpa %s6617, 1

</llo_original>
